<compile_context>
chip_gen: v7x
topology: tpu7x:2x2x1
jax: 0.10.0
libtpu: 0.0.40
codegen_flags: <defaults>
</compile_context>

<pallas_src>
import jax
import jax.numpy as jnp
from jax.experimental import pallas as pl
from jax.experimental.pallas import tpu as pltpu


# ----------------------------- JAX glue (knn / gather) -----------------------
def get_knn_idx(x, y, k, offset=0):
    """x: (B, N, d), y: (B, M, d) -> (B, N, k) indices of nearest neighbors."""
    # TODO(synk): pytorch3d.ops.knn_points replaced with brute-force top_k.
    d2 = jnp.sum((x[:, :, None, :] - y[:, None, :, :]) ** 2, axis=-1)  # (B,N,M)
    _, idx = jax.lax.top_k(-d2, k + offset)  # ascending distance order
    return idx[:, :, offset:]


def knn_group(x, idx):
    """x: (B, N, F), idx: (B, M, k) -> (B, M, k, F)."""
    # TODO(synk): neighbor gather stays in XLA (materializes the K-expanded
    # copy in HBM); fusing it into the kernel via scalar-prefetched indices +
    # DMA gather is the remaining HBM-traffic optimization.
    return jax.vmap(lambda xb, ib: xb[ib])(x, idx)


# ----------------------------- Pallas kernel ---------------------------------
def _make_kernel(L, K, d, g, tile, mu, out_used):
    rows = tile * K
    thresh = float(1.0 - mu)

    def spike_bf16(pre):
        # TODO(synk): FCLayer_snn / NCLIF source was not provided; the spiking
        # activation is approximated as a deterministic noisy threshold (mean
        # shift `mu` applied; sigma noise and the temporal membrane recurrence
        # across T are omitted).
        return (pre >= thresh).astype(jnp.bfloat16)

    def bcast_k(v):
        # (tile, g) -> (rows, g): replicate the per-point x contribution
        # across the K neighbor rows.
        return jnp.broadcast_to(v[:, None, :], (tile, K, v.shape[-1])) \
                  .reshape(rows, v.shape[-1])

    def seg_max(flat):
        # K-max of a flat (rows, g) f32 block -> (tile, g)
        return jnp.max(flat.reshape(tile, K, g), axis=1)

    def kernel(knn_ref, x_ref, *refs):
        acts = refs[-1]          # VMEM scratch (rows, (L-1)*g), bf16 (spikes)
        out_ref = refs[-2]       # (tile, out_used), f32
        w = refs[:-2]            # wk0, wx0, b0, (wy_i, wx_i, b_i) for i=1..L-1

        x_f = x_ref[...]                                     # (tile, d) f32
        x_bf = x_f.astype(jnp.bfloat16)

        # ---- layer_first: edge-feature concat folded into (knn, x) blocks
        xb = jnp.dot(x_bf, w[1][...],
                     preferred_element_type=jnp.float32) + w[2][...]
        pre = jnp.dot(knn_ref[...], w[0][...],
                      preferred_element_type=jnp.float32) + bcast_k(xb)
        acts[:, 0:g] = spike_bf16(pre)
        out_ref[:, (L - 1) * g:L * g] = \
            (seg_max(pre) >= thresh).astype(jnp.float32)

        # ---- hidden dense layers (dense concat of spikes lives in scratch,
        #      x rows handled at M=tile and broadcast at the add)
        ptr = 3
        for i in range(1, L - 1):
            xb = jnp.dot(x_bf, w[ptr + 1][...],
                         preferred_element_type=jnp.float32) + w[ptr + 2][...]
            pre = jnp.dot(acts[:, 0:i * g], w[ptr][...],
                          preferred_element_type=jnp.float32) + bcast_k(xb)
            ptr += 3
            acts[:, i * g:(i + 1) * g] = spike_bf16(pre)
            out_ref[:, (L - 1 - i) * g:(L - i) * g] = \
                (seg_max(pre) >= thresh).astype(jnp.float32)

        # ---- layer_last (no activation)
        xb = jnp.dot(x_bf, w[ptr + 1][...],
                     preferred_element_type=jnp.float32) + w[ptr + 2][...]
        pre = jnp.dot(acts[...], w[ptr][...],
                      preferred_element_type=jnp.float32) + bcast_k(xb)
        out_ref[:, 0:g] = seg_max(pre)

        # ---- x passthrough (max over K of broadcast x is x itself)
        out_ref[:, L * g:out_used] = x_f

    return kernel


# ----------------------------- weight preparation ----------------------------
def _prepare_weights(params, L, d, g, relative_feat_only):
    """Fold the edge-feature concat into layer_first and, for every layer,
    split the weights into spike-rows (permuted to the scratch layout
    [y_first, y_1, ..., y_{i-1}]) and x-rows."""
    w1, b1 = params[0]
    w1 = w1.astype(jnp.float32)
    if relative_feat_only:
        wx0, wk0 = -w1, w1
    else:
        wx_, wk_, wd_ = w1[:d], w1[d:2 * d], w1[2 * d:3 * d]
        wx0, wk0 = wx_ - wd_, wk_ + wd_

    flat = [wk0.astype(jnp.bfloat16), wx0.astype(jnp.bfloat16),
            b1.reshape(1, -1).astype(jnp.float32)]

    for i in range(1, L):                    # hidden layers ... layer_last
        w, b = params[i]
        w = w.astype(jnp.float32)
        # PyTorch input order for layer i: [y_{i-1}, ..., y_1, y_first, x]
        wx_i = w[i * g:i * g + d]                                   # x rows
        segs = [w[(i - 1 - j) * g:(i - j) * g] for j in range(i)]   # spike rows
        wy_i = jnp.concatenate(segs, axis=0)   # scratch order [y_first, ...]
        flat += [wy_i.astype(jnp.bfloat16), wx_i.astype(jnp.bfloat16),
                 b.reshape(1, -1).astype(jnp.float32)]
    return flat


def _pick_tile(total_pts, max_tile_pts):
    if total_pts <= max_tile_pts:
        return total_pts                      # single full-extent block
    for t in range(min(max_tile_pts, total_pts), 7, -1):
        if total_pts % t == 0 and t % 8 == 0:
            return t
    return total_pts                          # fallback: one big block


# ----------------------------- wrapper ---------------------------------------
def dense_edge_conv_forward(x, pos, params, *, T, knn, num_fc_layers,
                            in_channels, growth_rate, mu=0.0,
                            relative_feat_only=False, max_tile_pts=1024):
    Tdim, B, N, d = x.shape
    assert Tdim == T and d == in_channels and num_fc_layers > 2
    L, g, K = num_fc_layers, growth_rate, knn
    TB = T * B

    # flatten time into batch (matches x.flatten(0, 1) in the PyTorch forward)
    xf = x.reshape(TB, N, d).astype(jnp.float32)
    posf = pos.reshape(TB, N, pos.shape[-1])

    # knn + neighbor gather kept as JAX glue; gather directly in bf16
    knn_idx = get_knn_idx(posf, posf, k=K, offset=1)             # (TB, N, K)
    knn_feat = knn_group(xf.astype(jnp.bfloat16), knn_idx)       # (TB, N, K, d)

    # The kernel is per-point (K-max is the only within-point coupling), so
    # fold T*B and N into a single points axis: big tiles, 1-D grid.
    P = TB * N
    knn2d = knn_feat.reshape(P * K, d)
    x2d = xf.reshape(P, d)

    tile = _pick_tile(P, max_tile_pts)
    assert P % tile == 0
    rows = tile * K

    weights = _prepare_weights(params, L, d, g, relative_feat_only)
    out_used = d + L * g

    kernel = _make_kernel(L, K, d, g, tile, mu, out_used)

    in_specs = [
        pl.BlockSpec((rows, d), lambda i: (i, 0)),
        pl.BlockSpec((tile, d), lambda i: (i, 0)),
    ]
    in_specs += [pl.BlockSpec(p.shape, lambda i: (0, 0)) for p in weights]

    out = pl.pallas_call(
        kernel,
        out_shape=jax.ShapeDtypeStruct((P, out_used), jnp.float32),
        grid_spec=pltpu.PrefetchScalarGridSpec(
            num_scalar_prefetch=0,
            grid=(P // tile,),
            in_specs=in_specs,
            out_specs=pl.BlockSpec((tile, out_used), lambda i: (i, 0)),
            scratch_shapes=[pltpu.VMEM((rows, (L - 1) * g), jnp.bfloat16)]),
        compiler_params=pltpu.CompilerParams(
            dimension_semantics=("parallel",)),
    )(knn2d, x2d, *weights)

    return out.reshape(T, B, N, out_used)


# ----------------------------- parameter init --------------------------------
def init_params(key, in_channels, num_fc_layers, growth_rate,
                relative_feat_only=False):
    """Deterministic synthetic weights; shapes mirror the module __init__.
    Weight layout is (cin, cout); row order matches PyTorch's concat order."""
    dims = []
    first_in = in_channels if relative_feat_only else 3 * in_channels
    dims.append((first_in, growth_rate))                              # layer_first
    for i in range(1, num_fc_layers - 1):                             # self.layers
        dims.append((in_channels + i * growth_rate, growth_rate))
    dims.append((in_channels + (num_fc_layers - 1) * growth_rate,     # layer_last
                 growth_rate))
    params = []
    for i, (cin, cout) in enumerate(dims):
        kw, kb = jax.random.split(jax.random.fold_in(key, i))
        bound = 1.0 / jnp.sqrt(cin)
        w = jax.random.uniform(kw, (cin, cout), jnp.float32, -bound, bound)
        b = jax.random.uniform(kb, (cout,), jnp.float32, -bound, bound)
        params.append((w, b))
    return params


# ----------------------------- main -------------------------------------------
if __name__ == "__main__":
    T, B, N = 2, 2, 32
    in_channels, growth_rate, num_fc_layers, knn = 8, 16, 3, 8

    key = jax.random.PRNGKey(0)
    kx, kp, kparam = jax.random.split(key, 3)
    x = jax.random.normal(kx, (T, B, N, in_channels), jnp.float32)
    pos = jax.random.normal(kp, (T, B, N, 3), jnp.float32)

    params = init_params(kparam, in_channels, num_fc_layers, growth_rate)

    out = dense_edge_conv_forward(
        x, pos, params, T=T, knn=knn, num_fc_layers=num_fc_layers,
        in_channels=in_channels, growth_rate=growth_rate, mu=0.0)
    jax.block_until_ready(out)

    expected = (T, B, N, in_channels + num_fc_layers * growth_rate)
    assert out.shape == expected, (out.shape, expected)
    assert bool(jnp.all(jnp.isfinite(out)))
    print("KERNEL_OK")
</pallas_src>

<mosaic_0001>
module attributes {stable_mosaic.version = 11 : i64} {
  func.func @kernel(%arg0: i32, %arg1: memref<1024x8xbf16, #tpu.memory_space<vmem>>, %arg2: memref<128x8xf32, #tpu.memory_space<vmem>>, %arg3: memref<8x16xbf16, #tpu.memory_space<vmem>>, %arg4: memref<8x16xbf16, #tpu.memory_space<vmem>>, %arg5: memref<1x16xf32, #tpu.memory_space<vmem>>, %arg6: memref<16x16xbf16, #tpu.memory_space<vmem>>, %arg7: memref<8x16xbf16, #tpu.memory_space<vmem>>, %arg8: memref<1x16xf32, #tpu.memory_space<vmem>>, %arg9: memref<32x16xbf16, #tpu.memory_space<vmem>>, %arg10: memref<8x16xbf16, #tpu.memory_space<vmem>>, %arg11: memref<1x16xf32, #tpu.memory_space<vmem>>, %arg12: memref<128x56xf32, #tpu.memory_space<vmem>>, %arg13: memref<1024x32xbf16, #tpu.memory_space<vmem>>) attributes {dimension_semantics = [#tpu.dimension_semantics<parallel>], iteration_bounds = array<i64: 1>, scalar_prefetch = 0 : i64, scratch_operands = 1 : i64, tpu.core_type = #tpu.core_type<tc>, window_params = [{transform_indices = @transform_0, window_bounds = array<i64: 1024, 8>}, {transform_indices = @transform_1, window_bounds = array<i64: 128, 8>}, {pipeline_mode = #tpu.pipeline_mode<synchronous>, transform_indices = @transform_2, window_bounds = array<i64: 8, 16>}, {pipeline_mode = #tpu.pipeline_mode<synchronous>, transform_indices = @transform_3, window_bounds = array<i64: 8, 16>}, {pipeline_mode = #tpu.pipeline_mode<synchronous>, transform_indices = @transform_4, window_bounds = array<i64: 1, 16>}, {pipeline_mode = #tpu.pipeline_mode<synchronous>, transform_indices = @transform_5, window_bounds = array<i64: 16, 16>}, {pipeline_mode = #tpu.pipeline_mode<synchronous>, transform_indices = @transform_6, window_bounds = array<i64: 8, 16>}, {pipeline_mode = #tpu.pipeline_mode<synchronous>, transform_indices = @transform_7, window_bounds = array<i64: 1, 16>}, {pipeline_mode = #tpu.pipeline_mode<synchronous>, transform_indices = @transform_8, window_bounds = array<i64: 32, 16>}, {pipeline_mode = #tpu.pipeline_mode<synchronous>, transform_indices = @transform_9, window_bounds = array<i64: 8, 16>}, {pipeline_mode = #tpu.pipeline_mode<synchronous>, transform_indices = @transform_10, window_bounds = array<i64: 1, 16>}, {transform_indices = @transform_11, window_bounds = array<i64: 128, 56>}]} {
    %c0 = arith.constant 0 : index
    %c0_0 = arith.constant 0 : index
    %0 = vector.load %arg2[%c0, %c0_0] : memref<128x8xf32, #tpu.memory_space<vmem>>, vector<128x8xf32>
    %1 = arith.truncf %0 : vector<128x8xf32> to vector<128x8xbf16>
    %c0_1 = arith.constant 0 : index
    %c0_2 = arith.constant 0 : index
    %2 = vector.load %arg4[%c0_1, %c0_2] : memref<8x16xbf16, #tpu.memory_space<vmem>>, vector<8x16xbf16>
    %cst = arith.constant dense<0.000000e+00> : vector<128x16xf32>
    %3 = tpu.matmul %1, %2, %cst {dimension_numbers = #tpu.dot_dimension_numbers<[1], [0], [0], [1], [0, 0, 1, 1], [], []>} : vector<128x8xbf16>, vector<8x16xbf16>, vector<128x16xf32> -> vector<128x16xf32>
    %c0_3 = arith.constant 0 : index
    %c0_4 = arith.constant 0 : index
    %4 = vector.load %arg5[%c0_3, %c0_4] : memref<1x16xf32, #tpu.memory_space<vmem>>, vector<1x16xf32>
    %5 = vector.broadcast %4 : vector<1x16xf32> to vector<128x16xf32>
    %6 = arith.addf %3, %5 : vector<128x16xf32>
    %c0_5 = arith.constant 0 : index
    %c0_6 = arith.constant 0 : index
    %7 = vector.load %arg1[%c0_5, %c0_6] : memref<1024x8xbf16, #tpu.memory_space<vmem>>, vector<1024x8xbf16>
    %c0_7 = arith.constant 0 : index
    %c0_8 = arith.constant 0 : index
    %8 = vector.load %arg3[%c0_7, %c0_8] : memref<8x16xbf16, #tpu.memory_space<vmem>>, vector<8x16xbf16>
    %cst_9 = arith.constant dense<0.000000e+00> : vector<1024x16xf32>
    %9 = tpu.matmul %7, %8, %cst_9 {dimension_numbers = #tpu.dot_dimension_numbers<[1], [0], [0], [1], [0, 0, 1, 1], [], []>} : vector<1024x8xbf16>, vector<8x16xbf16>, vector<1024x16xf32> -> vector<1024x16xf32>
    %10 = vector.shape_cast %6 : vector<128x16xf32> to vector<128x1x16xf32>
    %11 = vector.shape_cast %10 : vector<128x1x16xf32> to vector<128x1x16xf32>
    %12 = vector.broadcast %11 : vector<128x1x16xf32> to vector<128x8x16xf32>
    %13 = vector.shape_cast %12 : vector<128x8x16xf32> to vector<1024x16xf32>
    %14 = arith.addf %9, %13 : vector<1024x16xf32>
    %cst_10 = arith.constant 1.000000e+00 : f32
    %15 = vector.broadcast %cst_10 : f32 to vector<1024x16xf32>
    %16 = arith.cmpf oge, %14, %15 : vector<1024x16xf32>
    %17 = arith.extui %16 : vector<1024x16xi1> to vector<1024x16xi32>
    %18 = arith.sitofp %17 : vector<1024x16xi32> to vector<1024x16xf32>
    %19 = arith.truncf %18 : vector<1024x16xf32> to vector<1024x16xbf16>
    %c0_11 = arith.constant 0 : index
    %c0_12 = arith.constant 0 : index
    %20 = vector.load %arg13[%c0_11, %c0_12] : memref<1024x32xbf16, #tpu.memory_space<vmem>>, vector<1024x16xbf16>
    tpu.vector_store %arg13[%c0_11, %c0_12], %19 {strides = array<i32>} : memref<1024x32xbf16, #tpu.memory_space<vmem>>, vector<1024x16xbf16>,
    %21 = vector.shape_cast %14 : vector<1024x16xf32> to vector<128x8x16xf32>
    %cst_13 = arith.constant dense<0xFF800000> : vector<128x16xf32>
    %22 = vector.multi_reduction <maximumf>, %21, %cst_13 [1] : vector<128x8x16xf32> to vector<128x16xf32>
    %cst_14 = arith.constant 1.000000e+00 : f32
    %23 = vector.broadcast %cst_14 : f32 to vector<128x16xf32>
    %24 = arith.cmpf oge, %22, %23 : vector<128x16xf32>
    %25 = arith.extui %24 : vector<128x16xi1> to vector<128x16xi32>
    %26 = arith.sitofp %25 : vector<128x16xi32> to vector<128x16xf32>
    %c0_15 = arith.constant 0 : index
    %c32 = arith.constant 32 : index
    %27 = vector.load %arg12[%c0_15, %c32] : memref<128x56xf32, #tpu.memory_space<vmem>>, vector<128x16xf32>
    tpu.vector_store %arg12[%c0_15, %c32], %26 {strides = array<i32>} : memref<128x56xf32, #tpu.memory_space<vmem>>, vector<128x16xf32>,
    %c0_16 = arith.constant 0 : index
    %c0_17 = arith.constant 0 : index
    %28 = vector.load %arg7[%c0_16, %c0_17] : memref<8x16xbf16, #tpu.memory_space<vmem>>, vector<8x16xbf16>
    %cst_18 = arith.constant dense<0.000000e+00> : vector<128x16xf32>
    %29 = tpu.matmul %1, %28, %cst_18 {dimension_numbers = #tpu.dot_dimension_numbers<[1], [0], [0], [1], [0, 0, 1, 1], [], []>} : vector<128x8xbf16>, vector<8x16xbf16>, vector<128x16xf32> -> vector<128x16xf32>
    %c0_19 = arith.constant 0 : index
    %c0_20 = arith.constant 0 : index
    %30 = vector.load %arg8[%c0_19, %c0_20] : memref<1x16xf32, #tpu.memory_space<vmem>>, vector<1x16xf32>
    %31 = vector.broadcast %30 : vector<1x16xf32> to vector<128x16xf32>
    %32 = arith.addf %29, %31 : vector<128x16xf32>
    %c0_21 = arith.constant 0 : index
    %c0_22 = arith.constant 0 : index
    %33 = vector.load %arg13[%c0_21, %c0_22] : memref<1024x32xbf16, #tpu.memory_space<vmem>>, vector<1024x16xbf16>
    %c0_23 = arith.constant 0 : index
    %c0_24 = arith.constant 0 : index
    %34 = vector.load %arg6[%c0_23, %c0_24] : memref<16x16xbf16, #tpu.memory_space<vmem>>, vector<16x16xbf16>
    %cst_25 = arith.constant dense<0.000000e+00> : vector<1024x16xf32>
    %35 = tpu.matmul %33, %34, %cst_25 {dimension_numbers = #tpu.dot_dimension_numbers<[1], [0], [0], [1], [0, 0, 1, 1], [], []>} : vector<1024x16xbf16>, vector<16x16xbf16>, vector<1024x16xf32> -> vector<1024x16xf32>
    %36 = vector.shape_cast %32 : vector<128x16xf32> to vector<128x1x16xf32>
    %37 = vector.shape_cast %36 : vector<128x1x16xf32> to vector<128x1x16xf32>
    %38 = vector.broadcast %37 : vector<128x1x16xf32> to vector<128x8x16xf32>
    %39 = vector.shape_cast %38 : vector<128x8x16xf32> to vector<1024x16xf32>
    %40 = arith.addf %35, %39 : vector<1024x16xf32>
    %cst_26 = arith.constant 1.000000e+00 : f32
    %41 = vector.broadcast %cst_26 : f32 to vector<1024x16xf32>
    %42 = arith.cmpf oge, %40, %41 : vector<1024x16xf32>
    %43 = arith.extui %42 : vector<1024x16xi1> to vector<1024x16xi32>
    %44 = arith.sitofp %43 : vector<1024x16xi32> to vector<1024x16xf32>
    %45 = arith.truncf %44 : vector<1024x16xf32> to vector<1024x16xbf16>
    %c0_27 = arith.constant 0 : index
    %c16 = arith.constant 16 : index
    %46 = vector.load %arg13[%c0_27, %c16] : memref<1024x32xbf16, #tpu.memory_space<vmem>>, vector<1024x16xbf16>
    tpu.vector_store %arg13[%c0_27, %c16], %45 {strides = array<i32>} : memref<1024x32xbf16, #tpu.memory_space<vmem>>, vector<1024x16xbf16>,
    %47 = vector.shape_cast %40 : vector<1024x16xf32> to vector<128x8x16xf32>
    %cst_28 = arith.constant dense<0xFF800000> : vector<128x16xf32>
    %48 = vector.multi_reduction <maximumf>, %47, %cst_28 [1] : vector<128x8x16xf32> to vector<128x16xf32>
    %cst_29 = arith.constant 1.000000e+00 : f32
    %49 = vector.broadcast %cst_29 : f32 to vector<128x16xf32>
    %50 = arith.cmpf oge, %48, %49 : vector<128x16xf32>
    %51 = arith.extui %50 : vector<128x16xi1> to vector<128x16xi32>
    %52 = arith.sitofp %51 : vector<128x16xi32> to vector<128x16xf32>
    %c0_30 = arith.constant 0 : index
    %c16_31 = arith.constant 16 : index
    %53 = vector.load %arg12[%c0_30, %c16_31] : memref<128x56xf32, #tpu.memory_space<vmem>>, vector<128x16xf32>
    tpu.vector_store %arg12[%c0_30, %c16_31], %52 {strides = array<i32>} : memref<128x56xf32, #tpu.memory_space<vmem>>, vector<128x16xf32>,
    %c0_32 = arith.constant 0 : index
    %c0_33 = arith.constant 0 : index
    %54 = vector.load %arg10[%c0_32, %c0_33] : memref<8x16xbf16, #tpu.memory_space<vmem>>, vector<8x16xbf16>
    %cst_34 = arith.constant dense<0.000000e+00> : vector<128x16xf32>
    %55 = tpu.matmul %1, %54, %cst_34 {dimension_numbers = #tpu.dot_dimension_numbers<[1], [0], [0], [1], [0, 0, 1, 1], [], []>} : vector<128x8xbf16>, vector<8x16xbf16>, vector<128x16xf32> -> vector<128x16xf32>
    %c0_35 = arith.constant 0 : index
    %c0_36 = arith.constant 0 : index
    %56 = vector.load %arg11[%c0_35, %c0_36] : memref<1x16xf32, #tpu.memory_space<vmem>>, vector<1x16xf32>
    %57 = vector.broadcast %56 : vector<1x16xf32> to vector<128x16xf32>
    %58 = arith.addf %55, %57 : vector<128x16xf32>
    %c0_37 = arith.constant 0 : index
    %c0_38 = arith.constant 0 : index
    %59 = vector.load %arg13[%c0_37, %c0_38] : memref<1024x32xbf16, #tpu.memory_space<vmem>>, vector<1024x32xbf16>
    %c0_39 = arith.constant 0 : index
    %c0_40 = arith.constant 0 : index
    %60 = vector.load %arg9[%c0_39, %c0_40] : memref<32x16xbf16, #tpu.memory_space<vmem>>, vector<32x16xbf16>
    %cst_41 = arith.constant dense<0.000000e+00> : vector<1024x16xf32>
    %61 = tpu.matmul %59, %60, %cst_41 {dimension_numbers = #tpu.dot_dimension_numbers<[1], [0], [0], [1], [0, 0, 1, 1], [], []>} : vector<1024x32xbf16>, vector<32x16xbf16>, vector<1024x16xf32> -> vector<1024x16xf32>
    %62 = vector.shape_cast %58 : vector<128x16xf32> to vector<128x1x16xf32>
    %63 = vector.shape_cast %62 : vector<128x1x16xf32> to vector<128x1x16xf32>
    %64 = vector.broadcast %63 : vector<128x1x16xf32> to vector<128x8x16xf32>
    %65 = vector.shape_cast %64 : vector<128x8x16xf32> to vector<1024x16xf32>
    %66 = arith.addf %61, %65 : vector<1024x16xf32>
    %67 = vector.shape_cast %66 : vector<1024x16xf32> to vector<128x8x16xf32>
    %cst_42 = arith.constant dense<0xFF800000> : vector<128x16xf32>
    %68 = vector.multi_reduction <maximumf>, %67, %cst_42 [1] : vector<128x8x16xf32> to vector<128x16xf32>
    %c0_43 = arith.constant 0 : index
    %c0_44 = arith.constant 0 : index
    %69 = vector.load %arg12[%c0_43, %c0_44] : memref<128x56xf32, #tpu.memory_space<vmem>>, vector<128x16xf32>
    tpu.vector_store %arg12[%c0_43, %c0_44], %68 {strides = array<i32>} : memref<128x56xf32, #tpu.memory_space<vmem>>, vector<128x16xf32>,
    %c0_45 = arith.constant 0 : index
    %c48 = arith.constant 48 : index
    %70 = vector.load %arg12[%c0_45, %c48] : memref<128x56xf32, #tpu.memory_space<vmem>>, vector<128x8xf32>
    tpu.vector_store %arg12[%c0_45, %c48], %0 {strides = array<i32>} : memref<128x56xf32, #tpu.memory_space<vmem>>, vector<128x8xf32>,
    return
  }
  func.func @transform_0(%arg0: i32) -> (i32, i32) {
    %c0_i32 = arith.constant 0 : i32
    %c0_i32_0 = arith.constant 0 : i32
    return %arg0, %c0_i32 : i32, i32
  }
  func.func @transform_1(%arg0: i32) -> (i32, i32) {
    %c0_i32 = arith.constant 0 : i32
    %c0_i32_0 = arith.constant 0 : i32
    return %arg0, %c0_i32 : i32, i32
  }
  func.func @transform_2(%arg0: i32) -> (i32, i32) {
    %c0_i32 = arith.constant 0 : i32
    %c0_i32_0 = arith.constant 0 : i32
    %c0_i32_1 = arith.constant 0 : i32
    return %c0_i32, %c0_i32_0 : i32, i32
  }
  func.func @transform_3(%arg0: i32) -> (i32, i32) {
    %c0_i32 = arith.constant 0 : i32
    %c0_i32_0 = arith.constant 0 : i32
    %c0_i32_1 = arith.constant 0 : i32
    return %c0_i32, %c0_i32_0 : i32, i32
  }
  func.func @transform_4(%arg0: i32) -> (i32, i32) {
    %c0_i32 = arith.constant 0 : i32
    %c0_i32_0 = arith.constant 0 : i32
    %c0_i32_1 = arith.constant 0 : i32
    return %c0_i32, %c0_i32_0 : i32, i32
  }
  func.func @transform_5(%arg0: i32) -> (i32, i32) {
    %c0_i32 = arith.constant 0 : i32
    %c0_i32_0 = arith.constant 0 : i32
    %c0_i32_1 = arith.constant 0 : i32
    return %c0_i32, %c0_i32_0 : i32, i32
  }
  func.func @transform_6(%arg0: i32) -> (i32, i32) {
    %c0_i32 = arith.constant 0 : i32
    %c0_i32_0 = arith.constant 0 : i32
    %c0_i32_1 = arith.constant 0 : i32
    return %c0_i32, %c0_i32_0 : i32, i32
  }
  func.func @transform_7(%arg0: i32) -> (i32, i32) {
    %c0_i32 = arith.constant 0 : i32
    %c0_i32_0 = arith.constant 0 : i32
    %c0_i32_1 = arith.constant 0 : i32
    return %c0_i32, %c0_i32_0 : i32, i32
  }
  func.func @transform_8(%arg0: i32) -> (i32, i32) {
    %c0_i32 = arith.constant 0 : i32
    %c0_i32_0 = arith.constant 0 : i32
    %c0_i32_1 = arith.constant 0 : i32
    return %c0_i32, %c0_i32_0 : i32, i32
  }
  func.func @transform_9(%arg0: i32) -> (i32, i32) {
    %c0_i32 = arith.constant 0 : i32
    %c0_i32_0 = arith.constant 0 : i32
    %c0_i32_1 = arith.constant 0 : i32
    return %c0_i32, %c0_i32_0 : i32, i32
  }
  func.func @transform_10(%arg0: i32) -> (i32, i32) {
    %c0_i32 = arith.constant 0 : i32
    %c0_i32_0 = arith.constant 0 : i32
    %c0_i32_1 = arith.constant 0 : i32
    return %c0_i32, %c0_i32_0 : i32, i32
  }
  func.func @transform_11(%arg0: i32) -> (i32, i32) {
    %c0_i32 = arith.constant 0 : i32
    %c0_i32_0 = arith.constant 0 : i32
    return %arg0, %c0_i32 : i32, i32
  }
}

</mosaic_0001>

<llo_original>
// kernel: tpu_custom_call.1
$region0: #{tpu_custom_call.1}
  #allocation0 [shape = 'u32[]', space=smem, size = 0x4, offset = 0x4, fixed_abs, tag = 'smem constant byte address 0x4 - core index']
  #allocation1 [shape = 'u32[144,128]{1,0:T(1,128)}', space=vmem, size = 0x12000, scoped, tag = 'internal scratch']
  #allocation2 [shape = 'bf16[1024,32]{1,0:T(16,128)(2,1)}', space=vmem, size = 0x40000, scoped, tag = 'scratch operand']
  %s0 = inlined_call_operand.vmem [shape: bf16[1024,8], index: 0, kind: input, shape index: {}]
  %s1 = inlined_call_operand.vmem [shape: f32[128,8], index: 1, kind: input, shape index: {}]
  %s2 = inlined_call_operand.vmem [shape: bf16[8,16], index: 2, kind: input, shape index: {}]
  %s3 = inlined_call_operand.vmem [shape: bf16[8,16], index: 3, kind: input, shape index: {}]
  %s4 = inlined_call_operand.vmem [shape: f32[1,16], index: 4, kind: input, shape index: {}]
  %s5 = inlined_call_operand.vmem [shape: bf16[16,16], index: 5, kind: input, shape index: {}]
  %s6 = inlined_call_operand.vmem [shape: bf16[8,16], index: 6, kind: input, shape index: {}]
  %s7 = inlined_call_operand.vmem [shape: f32[1,16], index: 7, kind: input, shape index: {}]
  %s8 = inlined_call_operand.vmem [shape: bf16[32,16], index: 8, kind: input, shape index: {}]
  %s9 = inlined_call_operand.vmem [shape: bf16[8,16], index: 9, kind: input, shape index: {}]
  %s10 = inlined_call_operand.vmem [shape: f32[1,16], index: 10, kind: input, shape index: {}]
  %s11 = inlined_call_operand.vmem [shape: f32[128,56], index: 11, kind: output, shape index: {}]
  %s12 = sld [smem:[#allocation0]]
  $region54: #{tpu_custom_call.1} parent=0
    _
  %s14 = ssub.s32 1, %s12
  %s15 = scalar_select 0, %s14, %s12
  // Predicated region
  $region2: #{tpu_custom_call.1} parent=0 // pred_check
    _
  $region3: #{tpu_custom_call.1} parent=0 // pred_check_branch
    %17 = sbr.rel (0) target = $region5
  $region4: #{tpu_custom_call.1} parent=0 // pred_region
    _
  $region5: #{tpu_custom_call.1} parent=0 // pred_fallthru
    _
  // Predicated region
  $region6: #{tpu_custom_call.1} parent=0 // pred_check
    _
  $region7: #{tpu_custom_call.1} parent=0 // pred_check_branch
    %19 = sbr.rel (0) target = $region9
  $region8: #{tpu_custom_call.1} parent=0 // pred_region
    _
  $region9: #{tpu_custom_call.1} parent=0 // pred_fallthru
    _
  // Predicated region
  $region10: #{tpu_custom_call.1} parent=0 // pred_check
    _
  $region11: #{tpu_custom_call.1} parent=0 // pred_check_branch
    %21 = sbr.rel (0) target = $region13
  $region12: #{tpu_custom_call.1} parent=0 // pred_region
    _
  $region13: #{tpu_custom_call.1} parent=0 // pred_fallthru
    _
  // Predicated region
  $region14: #{tpu_custom_call.1} parent=0 // pred_check
    _
  $region15: #{tpu_custom_call.1} parent=0 // pred_check_branch
    %23 = sbr.rel (0) target = $region17
  $region16: #{tpu_custom_call.1} parent=0 // pred_region
    _
  $region17: #{tpu_custom_call.1} parent=0 // pred_fallthru
    _
  // Predicated region
  $region18: #{tpu_custom_call.1} parent=0 // pred_check
    _
  $region19: #{tpu_custom_call.1} parent=0 // pred_check_branch
    %25 = sbr.rel (0) target = $region21
  $region20: #{tpu_custom_call.1} parent=0 // pred_region
    _
  $region21: #{tpu_custom_call.1} parent=0 // pred_fallthru
    _
  // Predicated region
  $region22: #{tpu_custom_call.1} parent=0 // pred_check
    _
  $region23: #{tpu_custom_call.1} parent=0 // pred_check_branch
    %27 = sbr.rel (0) target = $region25
  $region24: #{tpu_custom_call.1} parent=0 // pred_region
    _
  $region25: #{tpu_custom_call.1} parent=0 // pred_fallthru
    _
  // Predicated region
  $region26: #{tpu_custom_call.1} parent=0 // pred_check
    _
  $region27: #{tpu_custom_call.1} parent=0 // pred_check_branch
    %29 = sbr.rel (0) target = $region29
  $region28: #{tpu_custom_call.1} parent=0 // pred_region
    _
  $region29: #{tpu_custom_call.1} parent=0 // pred_fallthru
    _
  // Predicated region
  $region30: #{tpu_custom_call.1} parent=0 // pred_check
    _
  $region31: #{tpu_custom_call.1} parent=0 // pred_check_branch
    %31 = sbr.rel (0) target = $region33
  $region32: #{tpu_custom_call.1} parent=0 // pred_region
    _
  $region33: #{tpu_custom_call.1} parent=0 // pred_fallthru
    _
  // Predicated region
  $region34: #{tpu_custom_call.1} parent=0 // pred_check
    _
  $region35: #{tpu_custom_call.1} parent=0 // pred_check_branch
    %33 = sbr.rel (0) target = $region37
  $region36: #{tpu_custom_call.1} parent=0 // pred_region
    _
  $region37: #{tpu_custom_call.1} parent=0 // pred_fallthru
    _
  // Predicated region
  $region38: #{tpu_custom_call.1} parent=0 // pred_check
    _
  $region39: #{tpu_custom_call.1} parent=0 // pred_check_branch
    %35 = sbr.rel (0) target = $region41
  $region40: #{tpu_custom_call.1} parent=0 // pred_region
    _
  $region41: #{tpu_custom_call.1} parent=0 // pred_fallthru
    _
  // Predicated region
  $region42: #{tpu_custom_call.1} parent=0 // pred_check
    _
  $region43: #{tpu_custom_call.1} parent=0 // pred_check_branch
    %37 = sbr.rel (0) target = $region45
  $region44: #{tpu_custom_call.1} parent=0 // pred_region
    _
  $region45: #{tpu_custom_call.1} parent=0 // pred_fallthru
    _
  %v39 = vld [vmem:[%s1] sm:$0xff]
  %v40 = vld [vmem:[%s1 + $0x8] sm:$0xff]
  %v41 = vld [vmem:[%s1 + $0x10] sm:$0xff]
  %v42 = vld [vmem:[%s1 + $0x18] sm:$0xff]
  %v43 = vld [vmem:[%s1 + $0x20] sm:$0xff]
  %v44 = vld [vmem:[%s1 + $0x28] sm:$0xff]
  %v45 = vld [vmem:[%s1 + $0x30] sm:$0xff]
  %v46 = vld [vmem:[%s1 + $0x38] sm:$0xff]
  %v47 = vld [vmem:[%s1 + $0x40] sm:$0xff]
  %v48 = vld [vmem:[%s1 + $0x48] sm:$0xff]
  %v49 = vld [vmem:[%s1 + $0x50] sm:$0xff]
  %v50 = vld [vmem:[%s1 + $0x58] sm:$0xff]
  %v51 = vld [vmem:[%s1 + $0x60] sm:$0xff]
  %v52 = vld [vmem:[%s1 + $0x68] sm:$0xff]
  %v53 = vld [vmem:[%s1 + $0x70] sm:$0xff]
  %v54 = vld [vmem:[%s1 + $0x78] sm:$0xff]
  %v55 = vpack.c.bf16 %v40, %v39
  %v56 = vpack.c.bf16 %v42, %v41
  %v57 = vpack.c.bf16 %v44, %v43
  %v58 = vpack.c.bf16 %v46, %v45
  %v59 = vpack.c.bf16 %v48, %v47
  %v60 = vpack.c.bf16 %v50, %v49
  %v61 = vpack.c.bf16 %v52, %v51
  %v62 = vpack.c.bf16 %v54, %v53
  %v63 = vld [vmem:[%s3] sm:$0xf]
  %v64 = vld [vmem:[%s4] sm:$0x1]
  %v66 = vlaneseq
  %v67 = vshrl.u32 %v66, 7
  %v68 = vsub.s32 0, %v67
  %v69 = vrot.slane %v64, %v68
  %vm71 = vcmask 64512
  %v73 = vsel %vm71, %v55, 0
  %v76 = vsel %vm71, %v56, 0
  %v79 = vsel %vm71, %v57, 0
  %v82 = vsel %vm71, %v58, 0
  %v85 = vsel %vm71, %v59, 0
  %v88 = vsel %vm71, %v60, 0
  %v91 = vsel %vm71, %v61, 0
  %v94 = vsel %vm71, %v62, 0
  %vm96 = vcmask 1043456
  %v98 = vsel %vm96, %v63, 0
  %100 = vmatprep.subr.bf16.mxu0 0
  %101 = vmatpush1.bf16.msra.mxu0 %v98
  %102 = vmatprep.subr.bf16.mxu0 0
  %103 = vmatpush1.bf16.msra.mxu0 0
  %104 = vmatprep.subr.bf16.mxu0 0
  %105 = vmatpush1.bf16.msra.mxu0 0
  %106 = vmatprep.subr.bf16.mxu0 0
  %107 = vmatpush1.bf16.msra.mxu0 0
  %108 = vmatprep.subr.bf16.mxu0 0
  %109 = vmatpush1.bf16.msra.mxu0 0
  %110 = vmatprep.subr.bf16.mxu0 0
  %111 = vmatpush1.bf16.msra.mxu0 0
  %112 = vmatprep.subr.bf16.mxu0 0
  %113 = vmatpush1.bf16.msra.mxu0 0
  %114 = vmatprep.subr.bf16.mxu0 0
  %115 = vmatpush1.bf16.msra.mxu0 0
  %116 = vmatprep.subr.bf16.mxu0 0
  %117 = vmatpush1.bf16.msra.mxu0 0
  %118 = vmatprep.subr.bf16.mxu0 0
  %119 = vmatpush1.bf16.msra.mxu0 0
  %120 = vmatprep.subr.bf16.mxu0 0
  %121 = vmatpush1.bf16.msra.mxu0 0
  %122 = vmatprep.subr.bf16.mxu0 0
  %123 = vmatpush1.bf16.msra.mxu0 0
  %124 = vmatprep.subr.bf16.mxu0 0
  %125 = vmatpush1.bf16.msra.mxu0 0
  %126 = vmatprep.subr.bf16.mxu0 0
  %127 = vmatpush1.bf16.msra.mxu0 0
  %128 = vmatprep.subr.bf16.mxu0 0
  %129 = vmatpush1.bf16.msra.mxu0 0
  %130 = vmatprep.subr.bf16.mxu0 0
  %131 = vmatpush1.bf16.msra.mxu0 0
  %132 = vmatprep.mubr.bf16.mxu0 0
  %133 = vmatmul.mubr.bf16.gmra.mrb[0].mxu0 %v73
  %v134 = vpop.f32.mrb[0].mxu0
  %v135 = vadd.f32 %v69, %v134
  %v136 = vpop.f32.mrb[0].mxu0
  %v137 = vpop.f32.mrb[0].mxu0
  %v138 = vadd.f32 %v69, %v137
  %v139 = vpop.f32.mrb[0].mxu0
  %140 = vmatprep.mubr.bf16.mxu0 0
  %141 = vmatmul.mubr.bf16.gmra.mrb[0].mxu0 %v76
  %v142 = vpop.f32.mrb[0].mxu0
  %v143 = vadd.f32 %v69, %v142
  %v144 = vpop.f32.mrb[0].mxu0
  %v145 = vpop.f32.mrb[0].mxu0
  %v146 = vadd.f32 %v69, %v145
  %v147 = vpop.f32.mrb[0].mxu0
  %148 = vmatprep.mubr.bf16.mxu0 0
  %149 = vmatmul.mubr.bf16.gmra.mrb[0].mxu0 %v79
  %v150 = vpop.f32.mrb[0].mxu0
  %v151 = vadd.f32 %v69, %v150
  %v152 = vpop.f32.mrb[0].mxu0
  %v153 = vpop.f32.mrb[0].mxu0
  %v154 = vadd.f32 %v69, %v153
  %v155 = vpop.f32.mrb[0].mxu0
  %156 = vmatprep.mubr.bf16.mxu0 0
  %157 = vmatmul.mubr.bf16.gmra.mrb[0].mxu0 %v82
  %v158 = vpop.f32.mrb[0].mxu0
  %v159 = vadd.f32 %v69, %v158
  %v160 = vpop.f32.mrb[0].mxu0
  %v161 = vpop.f32.mrb[0].mxu0
  %v162 = vadd.f32 %v69, %v161
  %v163 = vpop.f32.mrb[0].mxu0
  %164 = vmatprep.mubr.bf16.mxu0 0
  %165 = vmatmul.mubr.bf16.gmra.mrb[0].mxu0 %v85
  %v166 = vpop.f32.mrb[0].mxu0
  %v167 = vadd.f32 %v69, %v166
  %v168 = vpop.f32.mrb[0].mxu0
  %v169 = vpop.f32.mrb[0].mxu0
  %v170 = vadd.f32 %v69, %v169
  %v171 = vpop.f32.mrb[0].mxu0
  %172 = vmatprep.mubr.bf16.mxu0 0
  %173 = vmatmul.mubr.bf16.gmra.mrb[0].mxu0 %v88
  %v174 = vpop.f32.mrb[0].mxu0
  %v175 = vadd.f32 %v69, %v174
  %v176 = vpop.f32.mrb[0].mxu0
  %v177 = vpop.f32.mrb[0].mxu0
  %v178 = vadd.f32 %v69, %v177
  %v179 = vpop.f32.mrb[0].mxu0
  %180 = vmatprep.mubr.bf16.mxu0 0
  %181 = vmatmul.mubr.bf16.gmra.mrb[0].mxu0 %v91
  %v182 = vpop.f32.mrb[0].mxu0
  %v183 = vadd.f32 %v69, %v182
  %v184 = vpop.f32.mrb[0].mxu0
  %v185 = vpop.f32.mrb[0].mxu0
  %v186 = vadd.f32 %v69, %v185
  %v187 = vpop.f32.mrb[0].mxu0
  %188 = vmatprep.mubr.bf16.mxu0 0
  %189 = vmatmul.mubr.bf16.gmra.mrb[0].mxu0 %v94
  %v190 = vpop.f32.mrb[0].mxu0
  %v191 = vadd.f32 %v69, %v190
  %v192 = vpop.f32.mrb[0].mxu0
  %v193 = vpop.f32.mrb[0].mxu0
  %v194 = vadd.f32 %v69, %v193
  %v195 = vpop.f32.mrb[0].mxu0
  %196 = vdwg.mxu0
  %v197 = vld [vmem:[%s0] sm:$0xf]
  %v198 = vld [vmem:[%s0 + $0x4] sm:$0xf]
  %v199 = vld [vmem:[%s0 + $0x8] sm:$0xf]
  %v200 = vld [vmem:[%s0 + $0xc] sm:$0xf]
  %v201 = vld [vmem:[%s0 + $0x10] sm:$0xf]
  %v202 = vld [vmem:[%s0 + $0x14] sm:$0xf]
  %v203 = vld [vmem:[%s0 + $0x18] sm:$0xf]
  %v204 = vld [vmem:[%s0 + $0x1c] sm:$0xf]
  %v205 = vld [vmem:[%s0 + $0x20] sm:$0xf]
  %v206 = vld [vmem:[%s0 + $0x24] sm:$0xf]
  %v207 = vld [vmem:[%s0 + $0x28] sm:$0xf]
  %v208 = vld [vmem:[%s0 + $0x2c] sm:$0xf]
  %v209 = vld [vmem:[%s0 + $0x30] sm:$0xf]
  %v210 = vld [vmem:[%s0 + $0x34] sm:$0xf]
  %v211 = vld [vmem:[%s0 + $0x38] sm:$0xf]
  %v212 = vld [vmem:[%s0 + $0x3c] sm:$0xf]
  %v213 = vld [vmem:[%s0 + $0x40] sm:$0xf]
  %v214 = vld [vmem:[%s0 + $0x44] sm:$0xf]
  %v215 = vld [vmem:[%s0 + $0x48] sm:$0xf]
  %v216 = vld [vmem:[%s0 + $0x4c] sm:$0xf]
  %v217 = vld [vmem:[%s0 + $0x50] sm:$0xf]
  %v218 = vld [vmem:[%s0 + $0x54] sm:$0xf]
  %v219 = vld [vmem:[%s0 + $0x58] sm:$0xf]
  %v220 = vld [vmem:[%s0 + $0x5c] sm:$0xf]
  %v221 = vld [vmem:[%s0 + $0x60] sm:$0xf]
  %v222 = vld [vmem:[%s0 + $0x64] sm:$0xf]
  %v223 = vld [vmem:[%s0 + $0x68] sm:$0xf]
  %v224 = vld [vmem:[%s0 + $0x6c] sm:$0xf]
  %v225 = vld [vmem:[%s0 + $0x70] sm:$0xf]
  %v226 = vld [vmem:[%s0 + $0x74] sm:$0xf]
  %v227 = vld [vmem:[%s0 + $0x78] sm:$0xf]
  %v228 = vld [vmem:[%s0 + $0x7c] sm:$0xf]
  %v229 = vld [vmem:[%s0 + $0x80] sm:$0xf]
  %v230 = vld [vmem:[%s0 + $0x84] sm:$0xf]
  %v231 = vld [vmem:[%s0 + $0x88] sm:$0xf]
  %v232 = vld [vmem:[%s0 + $0x8c] sm:$0xf]
  %v233 = vld [vmem:[%s0 + $0x90] sm:$0xf]
  %v234 = vld [vmem:[%s0 + $0x94] sm:$0xf]
  %v235 = vld [vmem:[%s0 + $0x98] sm:$0xf]
  %v236 = vld [vmem:[%s0 + $0x9c] sm:$0xf]
  %v237 = vld [vmem:[%s0 + $0xa0] sm:$0xf]
  %v238 = vld [vmem:[%s0 + $0xa4] sm:$0xf]
  %v239 = vld [vmem:[%s0 + $0xa8] sm:$0xf]
  %v240 = vld [vmem:[%s0 + $0xac] sm:$0xf]
  %v241 = vld [vmem:[%s0 + $0xb0] sm:$0xf]
  %v242 = vld [vmem:[%s0 + $0xb4] sm:$0xf]
  %v243 = vld [vmem:[%s0 + $0xb8] sm:$0xf]
  %v244 = vld [vmem:[%s0 + $0xbc] sm:$0xf]
  %v245 = vld [vmem:[%s0 + $0xc0] sm:$0xf]
  %v246 = vld [vmem:[%s0 + $0xc4] sm:$0xf]
  %v247 = vld [vmem:[%s0 + $0xc8] sm:$0xf]
  %v248 = vld [vmem:[%s0 + $0xcc] sm:$0xf]
  %v249 = vld [vmem:[%s0 + $0xd0] sm:$0xf]
  %v250 = vld [vmem:[%s0 + $0xd4] sm:$0xf]
  %v251 = vld [vmem:[%s0 + $0xd8] sm:$0xf]
  %v252 = vld [vmem:[%s0 + $0xdc] sm:$0xf]
  %v253 = vld [vmem:[%s0 + $0xe0] sm:$0xf]
  %v254 = vld [vmem:[%s0 + $0xe4] sm:$0xf]
  %v255 = vld [vmem:[%s0 + $0xe8] sm:$0xf]
  %v256 = vld [vmem:[%s0 + $0xec] sm:$0xf]
  %v257 = vld [vmem:[%s0 + $0xf0] sm:$0xf]
  %v258 = vld [vmem:[%s0 + $0xf4] sm:$0xf]
  %v259 = vld [vmem:[%s0 + $0xf8] sm:$0xf]
  %v260 = vld [vmem:[%s0 + $0xfc] sm:$0xf]
  %v261 = vld [vmem:[%s0 + $0x100] sm:$0xf]
  %v262 = vld [vmem:[%s0 + $0x104] sm:$0xf]
  %v263 = vld [vmem:[%s0 + $0x108] sm:$0xf]
  %v264 = vld [vmem:[%s0 + $0x10c] sm:$0xf]
  %v265 = vld [vmem:[%s0 + $0x110] sm:$0xf]
  %v266 = vld [vmem:[%s0 + $0x114] sm:$0xf]
  %v267 = vld [vmem:[%s0 + $0x118] sm:$0xf]
  %v268 = vld [vmem:[%s0 + $0x11c] sm:$0xf]
  %v269 = vld [vmem:[%s0 + $0x120] sm:$0xf]
  %v270 = vld [vmem:[%s0 + $0x124] sm:$0xf]
  %v271 = vld [vmem:[%s0 + $0x128] sm:$0xf]
  %v272 = vld [vmem:[%s0 + $0x12c] sm:$0xf]
  %v273 = vld [vmem:[%s0 + $0x130] sm:$0xf]
  %v274 = vld [vmem:[%s0 + $0x134] sm:$0xf]
  %v275 = vld [vmem:[%s0 + $0x138] sm:$0xf]
  %v276 = vld [vmem:[%s0 + $0x13c] sm:$0xf]
  %v277 = vld [vmem:[%s0 + $0x140] sm:$0xf]
  %v278 = vld [vmem:[%s0 + $0x144] sm:$0xf]
  %v279 = vld [vmem:[%s0 + $0x148] sm:$0xf]
  %v280 = vld [vmem:[%s0 + $0x14c] sm:$0xf]
  %v281 = vld [vmem:[%s0 + $0x150] sm:$0xf]
  %v282 = vld [vmem:[%s0 + $0x154] sm:$0xf]
  %v283 = vld [vmem:[%s0 + $0x158] sm:$0xf]
  %v284 = vld [vmem:[%s0 + $0x15c] sm:$0xf]
  %v285 = vld [vmem:[%s0 + $0x160] sm:$0xf]
  %v286 = vld [vmem:[%s0 + $0x164] sm:$0xf]
  %v287 = vld [vmem:[%s0 + $0x168] sm:$0xf]
  %v288 = vld [vmem:[%s0 + $0x16c] sm:$0xf]
  %v289 = vld [vmem:[%s0 + $0x170] sm:$0xf]
  %v290 = vld [vmem:[%s0 + $0x174] sm:$0xf]
  %v291 = vld [vmem:[%s0 + $0x178] sm:$0xf]
  %v292 = vld [vmem:[%s0 + $0x17c] sm:$0xf]
  %v293 = vld [vmem:[%s0 + $0x180] sm:$0xf]
  %v294 = vld [vmem:[%s0 + $0x184] sm:$0xf]
  %v295 = vld [vmem:[%s0 + $0x188] sm:$0xf]
  %v296 = vld [vmem:[%s0 + $0x18c] sm:$0xf]
  %v297 = vld [vmem:[%s0 + $0x190] sm:$0xf]
  %v298 = vld [vmem:[%s0 + $0x194] sm:$0xf]
  %v299 = vld [vmem:[%s0 + $0x198] sm:$0xf]
  %v300 = vld [vmem:[%s0 + $0x19c] sm:$0xf]
  %v301 = vld [vmem:[%s0 + $0x1a0] sm:$0xf]
  %v302 = vld [vmem:[%s0 + $0x1a4] sm:$0xf]
  %v303 = vld [vmem:[%s0 + $0x1a8] sm:$0xf]
  %v304 = vld [vmem:[%s0 + $0x1ac] sm:$0xf]
  %v305 = vld [vmem:[%s0 + $0x1b0] sm:$0xf]
  %v306 = vld [vmem:[%s0 + $0x1b4] sm:$0xf]
  %v307 = vld [vmem:[%s0 + $0x1b8] sm:$0xf]
  %v308 = vld [vmem:[%s0 + $0x1bc] sm:$0xf]
  %v309 = vld [vmem:[%s0 + $0x1c0] sm:$0xf]
  %v310 = vld [vmem:[%s0 + $0x1c4] sm:$0xf]
  %v311 = vld [vmem:[%s0 + $0x1c8] sm:$0xf]
  %v312 = vld [vmem:[%s0 + $0x1cc] sm:$0xf]
  %v313 = vld [vmem:[%s0 + $0x1d0] sm:$0xf]
  %v314 = vld [vmem:[%s0 + $0x1d4] sm:$0xf]
  %v315 = vld [vmem:[%s0 + $0x1d8] sm:$0xf]
  %v316 = vld [vmem:[%s0 + $0x1dc] sm:$0xf]
  %v317 = vld [vmem:[%s0 + $0x1e0] sm:$0xf]
  %v318 = vld [vmem:[%s0 + $0x1e4] sm:$0xf]
  %v319 = vld [vmem:[%s0 + $0x1e8] sm:$0xf]
  %v320 = vld [vmem:[%s0 + $0x1ec] sm:$0xf]
  %v321 = vld [vmem:[%s0 + $0x1f0] sm:$0xf]
  %v322 = vld [vmem:[%s0 + $0x1f4] sm:$0xf]
  %v323 = vld [vmem:[%s0 + $0x1f8] sm:$0xf]
  %v324 = vld [vmem:[%s0 + $0x1fc] sm:$0xf]
  %v325 = vld [vmem:[%s2] sm:$0xf]
  %v342 = vcombine.high %v135, %v135
  %v344 = vunpack.c.l.s4 1966171168
  %v345 = vunpack.c.0.s8 %v344
  %v346 = vlaneseq
  %v347 = vshrl.u32 %v346, 7
  %v348 = vsub.s32 %v345, %v347
  %v349 = vrot.slane %v135, %v348
  %v351 = vunpack.c.l.s4 1966171168
  %v352 = vunpack.c.0.s8 %v351
  %v353 = vlaneseq
  %v354 = vshrl.u32 %v353, 7
  %v355 = vsub.s32 %v352, %v354
  %v356 = vrot.slane %v342, %v355
  %v357 = vcombine.high %v349, %v349
  %v358 = vcombine.high %v356, %v356
  %v360 = vunpack.c.l.s4 1966171168
  %v361 = vunpack.c.0.s8 %v360
  %v362 = vlaneseq
  %v363 = vshrl.u32 %v362, 7
  %v364 = vsub.s32 %v361, %v363
  %v365 = vrot.slane %v349, %v364
  %v367 = vunpack.c.l.s4 1966171168
  %v368 = vunpack.c.0.s8 %v367
  %v369 = vlaneseq
  %v370 = vshrl.u32 %v369, 7
  %v371 = vsub.s32 %v368, %v370
  %v372 = vrot.slane %v356, %v371
  %v374 = vunpack.c.l.s4 1966171168
  %v375 = vunpack.c.0.s8 %v374
  %v376 = vlaneseq
  %v377 = vshrl.u32 %v376, 7
  %v378 = vsub.s32 %v375, %v377
  %v379 = vrot.slane %v357, %v378
  %v381 = vunpack.c.l.s4 1966171168
  %v382 = vunpack.c.0.s8 %v381
  %v383 = vlaneseq
  %v384 = vshrl.u32 %v383, 7
  %v385 = vsub.s32 %v382, %v384
  %v386 = vrot.slane %v358, %v385
  %v387 = vcombine.high %v365, %v365
  %v388 = vcombine.high %v372, %v372
  %v389 = vcombine.high %v379, %v379
  %v390 = vcombine.high %v386, %v386
  %v391 = vcombine.high %v138, %v138
  %v393 = vunpack.c.l.s4 1966171168
  %v394 = vunpack.c.0.s8 %v393
  %v395 = vlaneseq
  %v396 = vshrl.u32 %v395, 7
  %v397 = vsub.s32 %v394, %v396
  %v398 = vrot.slane %v138, %v397
  %v400 = vunpack.c.l.s4 1966171168
  %v401 = vunpack.c.0.s8 %v400
  %v402 = vlaneseq
  %v403 = vshrl.u32 %v402, 7
  %v404 = vsub.s32 %v401, %v403
  %v405 = vrot.slane %v391, %v404
  %v406 = vcombine.high %v398, %v398
  %v407 = vcombine.high %v405, %v405
  %v409 = vunpack.c.l.s4 1966171168
  %v410 = vunpack.c.0.s8 %v409
  %v411 = vlaneseq
  %v412 = vshrl.u32 %v411, 7
  %v413 = vsub.s32 %v410, %v412
  %v414 = vrot.slane %v398, %v413
  %v416 = vunpack.c.l.s4 1966171168
  %v417 = vunpack.c.0.s8 %v416
  %v418 = vlaneseq
  %v419 = vshrl.u32 %v418, 7
  %v420 = vsub.s32 %v417, %v419
  %v421 = vrot.slane %v405, %v420
  %v423 = vunpack.c.l.s4 1966171168
  %v424 = vunpack.c.0.s8 %v423
  %v425 = vlaneseq
  %v426 = vshrl.u32 %v425, 7
  %v427 = vsub.s32 %v424, %v426
  %v428 = vrot.slane %v406, %v427
  %v430 = vunpack.c.l.s4 1966171168
  %v431 = vunpack.c.0.s8 %v430
  %v432 = vlaneseq
  %v433 = vshrl.u32 %v432, 7
  %v434 = vsub.s32 %v431, %v433
  %v435 = vrot.slane %v407, %v434
  %v436 = vcombine.high %v414, %v414
  %v437 = vcombine.high %v421, %v421
  %v438 = vcombine.high %v428, %v428
  %v439 = vcombine.high %v435, %v435
  %v440 = vcombine.high %v143, %v143
  %v442 = vunpack.c.l.s4 1966171168
  %v443 = vunpack.c.0.s8 %v442
  %v444 = vlaneseq
  %v445 = vshrl.u32 %v444, 7
  %v446 = vsub.s32 %v443, %v445
  %v447 = vrot.slane %v143, %v446
  %v449 = vunpack.c.l.s4 1966171168
  %v450 = vunpack.c.0.s8 %v449
  %v451 = vlaneseq
  %v452 = vshrl.u32 %v451, 7
  %v453 = vsub.s32 %v450, %v452
  %v454 = vrot.slane %v440, %v453
  %v455 = vcombine.high %v447, %v447
  %v456 = vcombine.high %v454, %v454
  %v458 = vunpack.c.l.s4 1966171168
  %v459 = vunpack.c.0.s8 %v458
  %v460 = vlaneseq
  %v461 = vshrl.u32 %v460, 7
  %v462 = vsub.s32 %v459, %v461
  %v463 = vrot.slane %v447, %v462
  %v465 = vunpack.c.l.s4 1966171168
  %v466 = vunpack.c.0.s8 %v465
  %v467 = vlaneseq
  %v468 = vshrl.u32 %v467, 7
  %v469 = vsub.s32 %v466, %v468
  %v470 = vrot.slane %v454, %v469
  %v472 = vunpack.c.l.s4 1966171168
  %v473 = vunpack.c.0.s8 %v472
  %v474 = vlaneseq
  %v475 = vshrl.u32 %v474, 7
  %v476 = vsub.s32 %v473, %v475
  %v477 = vrot.slane %v455, %v476
  %v479 = vunpack.c.l.s4 1966171168
  %v480 = vunpack.c.0.s8 %v479
  %v481 = vlaneseq
  %v482 = vshrl.u32 %v481, 7
  %v483 = vsub.s32 %v480, %v482
  %v484 = vrot.slane %v456, %v483
  %v485 = vcombine.high %v463, %v463
  %v486 = vcombine.high %v470, %v470
  %v487 = vcombine.high %v477, %v477
  %v488 = vcombine.high %v484, %v484
  %v489 = vcombine.high %v146, %v146
  %v491 = vunpack.c.l.s4 1966171168
  %v492 = vunpack.c.0.s8 %v491
  %v493 = vlaneseq
  %v494 = vshrl.u32 %v493, 7
  %v495 = vsub.s32 %v492, %v494
  %v496 = vrot.slane %v146, %v495
  %v498 = vunpack.c.l.s4 1966171168
  %v499 = vunpack.c.0.s8 %v498
  %v500 = vlaneseq
  %v501 = vshrl.u32 %v500, 7
  %v502 = vsub.s32 %v499, %v501
  %v503 = vrot.slane %v489, %v502
  %v504 = vcombine.high %v496, %v496
  %v505 = vcombine.high %v503, %v503
  %v507 = vunpack.c.l.s4 1966171168
  %v508 = vunpack.c.0.s8 %v507
  %v509 = vlaneseq
  %v510 = vshrl.u32 %v509, 7
  %v511 = vsub.s32 %v508, %v510
  %v512 = vrot.slane %v496, %v511
  %v514 = vunpack.c.l.s4 1966171168
  %v515 = vunpack.c.0.s8 %v514
  %v516 = vlaneseq
  %v517 = vshrl.u32 %v516, 7
  %v518 = vsub.s32 %v515, %v517
  %v519 = vrot.slane %v503, %v518
  %v521 = vunpack.c.l.s4 1966171168
  %v522 = vunpack.c.0.s8 %v521
  %v523 = vlaneseq
  %v524 = vshrl.u32 %v523, 7
  %v525 = vsub.s32 %v522, %v524
  %v526 = vrot.slane %v504, %v525
  %v528 = vunpack.c.l.s4 1966171168
  %v529 = vunpack.c.0.s8 %v528
  %v530 = vlaneseq
  %v531 = vshrl.u32 %v530, 7
  %v532 = vsub.s32 %v529, %v531
  %v533 = vrot.slane %v505, %v532
  %v534 = vcombine.high %v512, %v512
  %v535 = vcombine.high %v519, %v519
  %v536 = vcombine.high %v526, %v526
  %v537 = vcombine.high %v533, %v533
  %v538 = vcombine.high %v151, %v151
  %v540 = vunpack.c.l.s4 1966171168
  %v541 = vunpack.c.0.s8 %v540
  %v542 = vlaneseq
  %v543 = vshrl.u32 %v542, 7
  %v544 = vsub.s32 %v541, %v543
  %v545 = vrot.slane %v151, %v544
  %v547 = vunpack.c.l.s4 1966171168
  %v548 = vunpack.c.0.s8 %v547
  %v549 = vlaneseq
  %v550 = vshrl.u32 %v549, 7
  %v551 = vsub.s32 %v548, %v550
  %v552 = vrot.slane %v538, %v551
  %v553 = vcombine.high %v545, %v545
  %v554 = vcombine.high %v552, %v552
  %v556 = vunpack.c.l.s4 1966171168
  %v557 = vunpack.c.0.s8 %v556
  %v558 = vlaneseq
  %v559 = vshrl.u32 %v558, 7
  %v560 = vsub.s32 %v557, %v559
  %v561 = vrot.slane %v545, %v560
  %v563 = vunpack.c.l.s4 1966171168
  %v564 = vunpack.c.0.s8 %v563
  %v565 = vlaneseq
  %v566 = vshrl.u32 %v565, 7
  %v567 = vsub.s32 %v564, %v566
  %v568 = vrot.slane %v552, %v567
  %v570 = vunpack.c.l.s4 1966171168
  %v571 = vunpack.c.0.s8 %v570
  %v572 = vlaneseq
  %v573 = vshrl.u32 %v572, 7
  %v574 = vsub.s32 %v571, %v573
  %v575 = vrot.slane %v553, %v574
  %v577 = vunpack.c.l.s4 1966171168
  %v578 = vunpack.c.0.s8 %v577
  %v579 = vlaneseq
  %v580 = vshrl.u32 %v579, 7
  %v581 = vsub.s32 %v578, %v580
  %v582 = vrot.slane %v554, %v581
  %v583 = vcombine.high %v561, %v561
  %v584 = vcombine.high %v568, %v568
  %v585 = vcombine.high %v575, %v575
  %v586 = vcombine.high %v582, %v582
  %v587 = vcombine.high %v154, %v154
  %v589 = vunpack.c.l.s4 1966171168
  %v590 = vunpack.c.0.s8 %v589
  %v591 = vlaneseq
  %v592 = vshrl.u32 %v591, 7
  %v593 = vsub.s32 %v590, %v592
  %v594 = vrot.slane %v154, %v593
  %v596 = vunpack.c.l.s4 1966171168
  %v597 = vunpack.c.0.s8 %v596
  %v598 = vlaneseq
  %v599 = vshrl.u32 %v598, 7
  %v600 = vsub.s32 %v597, %v599
  %v601 = vrot.slane %v587, %v600
  %v602 = vcombine.high %v594, %v594
  %v603 = vcombine.high %v601, %v601
  %v605 = vunpack.c.l.s4 1966171168
  %v606 = vunpack.c.0.s8 %v605
  %v607 = vlaneseq
  %v608 = vshrl.u32 %v607, 7
  %v609 = vsub.s32 %v606, %v608
  %v610 = vrot.slane %v594, %v609
  %v612 = vunpack.c.l.s4 1966171168
  %v613 = vunpack.c.0.s8 %v612
  %v614 = vlaneseq
  %v615 = vshrl.u32 %v614, 7
  %v616 = vsub.s32 %v613, %v615
  %v617 = vrot.slane %v601, %v616
  %v619 = vunpack.c.l.s4 1966171168
  %v620 = vunpack.c.0.s8 %v619
  %v621 = vlaneseq
  %v622 = vshrl.u32 %v621, 7
  %v623 = vsub.s32 %v620, %v622
  %v624 = vrot.slane %v602, %v623
  %v626 = vunpack.c.l.s4 1966171168
  %v627 = vunpack.c.0.s8 %v626
  %v628 = vlaneseq
  %v629 = vshrl.u32 %v628, 7
  %v630 = vsub.s32 %v627, %v629
  %v631 = vrot.slane %v603, %v630
  %v632 = vcombine.high %v610, %v610
  %v633 = vcombine.high %v617, %v617
  %v634 = vcombine.high %v624, %v624
  %v635 = vcombine.high %v631, %v631
  %v636 = vcombine.high %v159, %v159
  %v638 = vunpack.c.l.s4 1966171168
  %v639 = vunpack.c.0.s8 %v638
  %v640 = vlaneseq
  %v641 = vshrl.u32 %v640, 7
  %v642 = vsub.s32 %v639, %v641
  %v643 = vrot.slane %v159, %v642
  %v645 = vunpack.c.l.s4 1966171168
  %v646 = vunpack.c.0.s8 %v645
  %v647 = vlaneseq
  %v648 = vshrl.u32 %v647, 7
  %v649 = vsub.s32 %v646, %v648
  %v650 = vrot.slane %v636, %v649
  %v651 = vcombine.high %v643, %v643
  %v652 = vcombine.high %v650, %v650
  %v654 = vunpack.c.l.s4 1966171168
  %v655 = vunpack.c.0.s8 %v654
  %v656 = vlaneseq
  %v657 = vshrl.u32 %v656, 7
  %v658 = vsub.s32 %v655, %v657
  %v659 = vrot.slane %v643, %v658
  %v661 = vunpack.c.l.s4 1966171168
  %v662 = vunpack.c.0.s8 %v661
  %v663 = vlaneseq
  %v664 = vshrl.u32 %v663, 7
  %v665 = vsub.s32 %v662, %v664
  %v666 = vrot.slane %v650, %v665
  %v668 = vunpack.c.l.s4 1966171168
  %v669 = vunpack.c.0.s8 %v668
  %v670 = vlaneseq
  %v671 = vshrl.u32 %v670, 7
  %v672 = vsub.s32 %v669, %v671
  %v673 = vrot.slane %v651, %v672
  %v675 = vunpack.c.l.s4 1966171168
  %v676 = vunpack.c.0.s8 %v675
  %v677 = vlaneseq
  %v678 = vshrl.u32 %v677, 7
  %v679 = vsub.s32 %v676, %v678
  %v680 = vrot.slane %v652, %v679
  %v681 = vcombine.high %v659, %v659
  %v682 = vcombine.high %v666, %v666
  %v683 = vcombine.high %v673, %v673
  %v684 = vcombine.high %v680, %v680
  %v685 = vcombine.high %v162, %v162
  %v687 = vunpack.c.l.s4 1966171168
  %v688 = vunpack.c.0.s8 %v687
  %v689 = vlaneseq
  %v690 = vshrl.u32 %v689, 7
  %v691 = vsub.s32 %v688, %v690
  %v692 = vrot.slane %v162, %v691
  %v694 = vunpack.c.l.s4 1966171168
  %v695 = vunpack.c.0.s8 %v694
  %v696 = vlaneseq
  %v697 = vshrl.u32 %v696, 7
  %v698 = vsub.s32 %v695, %v697
  %v699 = vrot.slane %v685, %v698
  %v700 = vcombine.high %v692, %v692
  %v701 = vcombine.high %v699, %v699
  %v703 = vunpack.c.l.s4 1966171168
  %v704 = vunpack.c.0.s8 %v703
  %v705 = vlaneseq
  %v706 = vshrl.u32 %v705, 7
  %v707 = vsub.s32 %v704, %v706
  %v708 = vrot.slane %v692, %v707
  %v710 = vunpack.c.l.s4 1966171168
  %v711 = vunpack.c.0.s8 %v710
  %v712 = vlaneseq
  %v713 = vshrl.u32 %v712, 7
  %v714 = vsub.s32 %v711, %v713
  %v715 = vrot.slane %v699, %v714
  %v717 = vunpack.c.l.s4 1966171168
  %v718 = vunpack.c.0.s8 %v717
  %v719 = vlaneseq
  %v720 = vshrl.u32 %v719, 7
  %v721 = vsub.s32 %v718, %v720
  %v722 = vrot.slane %v700, %v721
  %v724 = vunpack.c.l.s4 1966171168
  %v725 = vunpack.c.0.s8 %v724
  %v726 = vlaneseq
  %v727 = vshrl.u32 %v726, 7
  %v728 = vsub.s32 %v725, %v727
  %v729 = vrot.slane %v701, %v728
  %v730 = vcombine.high %v708, %v708
  %v731 = vcombine.high %v715, %v715
  %v732 = vcombine.high %v722, %v722
  %v733 = vcombine.high %v729, %v729
  %v734 = vcombine.high %v167, %v167
  %v736 = vunpack.c.l.s4 1966171168
  %v737 = vunpack.c.0.s8 %v736
  %v738 = vlaneseq
  %v739 = vshrl.u32 %v738, 7
  %v740 = vsub.s32 %v737, %v739
  %v741 = vrot.slane %v167, %v740
  %v743 = vunpack.c.l.s4 1966171168
  %v744 = vunpack.c.0.s8 %v743
  %v745 = vlaneseq
  %v746 = vshrl.u32 %v745, 7
  %v747 = vsub.s32 %v744, %v746
  %v748 = vrot.slane %v734, %v747
  %v749 = vcombine.high %v741, %v741
  %v750 = vcombine.high %v748, %v748
  %v752 = vunpack.c.l.s4 1966171168
  %v753 = vunpack.c.0.s8 %v752
  %v754 = vlaneseq
  %v755 = vshrl.u32 %v754, 7
  %v756 = vsub.s32 %v753, %v755
  %v757 = vrot.slane %v741, %v756
  %v759 = vunpack.c.l.s4 1966171168
  %v760 = vunpack.c.0.s8 %v759
  %v761 = vlaneseq
  %v762 = vshrl.u32 %v761, 7
  %v763 = vsub.s32 %v760, %v762
  %v764 = vrot.slane %v748, %v763
  %v766 = vunpack.c.l.s4 1966171168
  %v767 = vunpack.c.0.s8 %v766
  %v768 = vlaneseq
  %v769 = vshrl.u32 %v768, 7
  %v770 = vsub.s32 %v767, %v769
  %v771 = vrot.slane %v749, %v770
  %v773 = vunpack.c.l.s4 1966171168
  %v774 = vunpack.c.0.s8 %v773
  %v775 = vlaneseq
  %v776 = vshrl.u32 %v775, 7
  %v777 = vsub.s32 %v774, %v776
  %v778 = vrot.slane %v750, %v777
  %v779 = vcombine.high %v757, %v757
  %v780 = vcombine.high %v764, %v764
  %v781 = vcombine.high %v771, %v771
  %v782 = vcombine.high %v778, %v778
  %v783 = vcombine.high %v170, %v170
  %v785 = vunpack.c.l.s4 1966171168
  %v786 = vunpack.c.0.s8 %v785
  %v787 = vlaneseq
  %v788 = vshrl.u32 %v787, 7
  %v789 = vsub.s32 %v786, %v788
  %v790 = vrot.slane %v170, %v789
  %v792 = vunpack.c.l.s4 1966171168
  %v793 = vunpack.c.0.s8 %v792
  %v794 = vlaneseq
  %v795 = vshrl.u32 %v794, 7
  %v796 = vsub.s32 %v793, %v795
  %v797 = vrot.slane %v783, %v796
  %v798 = vcombine.high %v790, %v790
  %v799 = vcombine.high %v797, %v797
  %v801 = vunpack.c.l.s4 1966171168
  %v802 = vunpack.c.0.s8 %v801
  %v803 = vlaneseq
  %v804 = vshrl.u32 %v803, 7
  %v805 = vsub.s32 %v802, %v804
  %v806 = vrot.slane %v790, %v805
  %v808 = vunpack.c.l.s4 1966171168
  %v809 = vunpack.c.0.s8 %v808
  %v810 = vlaneseq
  %v811 = vshrl.u32 %v810, 7
  %v812 = vsub.s32 %v809, %v811
  %v813 = vrot.slane %v797, %v812
  %v815 = vunpack.c.l.s4 1966171168
  %v816 = vunpack.c.0.s8 %v815
  %v817 = vlaneseq
  %v818 = vshrl.u32 %v817, 7
  %v819 = vsub.s32 %v816, %v818
  %v820 = vrot.slane %v798, %v819
  %v822 = vunpack.c.l.s4 1966171168
  %v823 = vunpack.c.0.s8 %v822
  %v824 = vlaneseq
  %v825 = vshrl.u32 %v824, 7
  %v826 = vsub.s32 %v823, %v825
  %v827 = vrot.slane %v799, %v826
  %v828 = vcombine.high %v806, %v806
  %v829 = vcombine.high %v813, %v813
  %v830 = vcombine.high %v820, %v820
  %v831 = vcombine.high %v827, %v827
  %v832 = vcombine.high %v175, %v175
  %v834 = vunpack.c.l.s4 1966171168
  %v835 = vunpack.c.0.s8 %v834
  %v836 = vlaneseq
  %v837 = vshrl.u32 %v836, 7
  %v838 = vsub.s32 %v835, %v837
  %v839 = vrot.slane %v175, %v838
  %v841 = vunpack.c.l.s4 1966171168
  %v842 = vunpack.c.0.s8 %v841
  %v843 = vlaneseq
  %v844 = vshrl.u32 %v843, 7
  %v845 = vsub.s32 %v842, %v844
  %v846 = vrot.slane %v832, %v845
  %v847 = vcombine.high %v839, %v839
  %v848 = vcombine.high %v846, %v846
  %v850 = vunpack.c.l.s4 1966171168
  %v851 = vunpack.c.0.s8 %v850
  %v852 = vlaneseq
  %v853 = vshrl.u32 %v852, 7
  %v854 = vsub.s32 %v851, %v853
  %v855 = vrot.slane %v839, %v854
  %v857 = vunpack.c.l.s4 1966171168
  %v858 = vunpack.c.0.s8 %v857
  %v859 = vlaneseq
  %v860 = vshrl.u32 %v859, 7
  %v861 = vsub.s32 %v858, %v860
  %v862 = vrot.slane %v846, %v861
  %v864 = vunpack.c.l.s4 1966171168
  %v865 = vunpack.c.0.s8 %v864
  %v866 = vlaneseq
  %v867 = vshrl.u32 %v866, 7
  %v868 = vsub.s32 %v865, %v867
  %v869 = vrot.slane %v847, %v868
  %v871 = vunpack.c.l.s4 1966171168
  %v872 = vunpack.c.0.s8 %v871
  %v873 = vlaneseq
  %v874 = vshrl.u32 %v873, 7
  %v875 = vsub.s32 %v872, %v874
  %v876 = vrot.slane %v848, %v875
  %v877 = vcombine.high %v855, %v855
  %v878 = vcombine.high %v862, %v862
  %v879 = vcombine.high %v869, %v869
  %v880 = vcombine.high %v876, %v876
  %v881 = vcombine.high %v178, %v178
  %v883 = vunpack.c.l.s4 1966171168
  %v884 = vunpack.c.0.s8 %v883
  %v885 = vlaneseq
  %v886 = vshrl.u32 %v885, 7
  %v887 = vsub.s32 %v884, %v886
  %v888 = vrot.slane %v178, %v887
  %v890 = vunpack.c.l.s4 1966171168
  %v891 = vunpack.c.0.s8 %v890
  %v892 = vlaneseq
  %v893 = vshrl.u32 %v892, 7
  %v894 = vsub.s32 %v891, %v893
  %v895 = vrot.slane %v881, %v894
  %v896 = vcombine.high %v888, %v888
  %v897 = vcombine.high %v895, %v895
  %v899 = vunpack.c.l.s4 1966171168
  %v900 = vunpack.c.0.s8 %v899
  %v901 = vlaneseq
  %v902 = vshrl.u32 %v901, 7
  %v903 = vsub.s32 %v900, %v902
  %v904 = vrot.slane %v888, %v903
  %v906 = vunpack.c.l.s4 1966171168
  %v907 = vunpack.c.0.s8 %v906
  %v908 = vlaneseq
  %v909 = vshrl.u32 %v908, 7
  %v910 = vsub.s32 %v907, %v909
  %v911 = vrot.slane %v895, %v910
  %v913 = vunpack.c.l.s4 1966171168
  %v914 = vunpack.c.0.s8 %v913
  %v915 = vlaneseq
  %v916 = vshrl.u32 %v915, 7
  %v917 = vsub.s32 %v914, %v916
  %v918 = vrot.slane %v896, %v917
  %v920 = vunpack.c.l.s4 1966171168
  %v921 = vunpack.c.0.s8 %v920
  %v922 = vlaneseq
  %v923 = vshrl.u32 %v922, 7
  %v924 = vsub.s32 %v921, %v923
  %v925 = vrot.slane %v897, %v924
  %v926 = vcombine.high %v904, %v904
  %v927 = vcombine.high %v911, %v911
  %v928 = vcombine.high %v918, %v918
  %v929 = vcombine.high %v925, %v925
  %v930 = vcombine.high %v183, %v183
  %v932 = vunpack.c.l.s4 1966171168
  %v933 = vunpack.c.0.s8 %v932
  %v934 = vlaneseq
  %v935 = vshrl.u32 %v934, 7
  %v936 = vsub.s32 %v933, %v935
  %v937 = vrot.slane %v183, %v936
  %v939 = vunpack.c.l.s4 1966171168
  %v940 = vunpack.c.0.s8 %v939
  %v941 = vlaneseq
  %v942 = vshrl.u32 %v941, 7
  %v943 = vsub.s32 %v940, %v942
  %v944 = vrot.slane %v930, %v943
  %v945 = vcombine.high %v937, %v937
  %v946 = vcombine.high %v944, %v944
  %v948 = vunpack.c.l.s4 1966171168
  %v949 = vunpack.c.0.s8 %v948
  %v950 = vlaneseq
  %v951 = vshrl.u32 %v950, 7
  %v952 = vsub.s32 %v949, %v951
  %v953 = vrot.slane %v937, %v952
  %v955 = vunpack.c.l.s4 1966171168
  %v956 = vunpack.c.0.s8 %v955
  %v957 = vlaneseq
  %v958 = vshrl.u32 %v957, 7
  %v959 = vsub.s32 %v956, %v958
  %v960 = vrot.slane %v944, %v959
  %v962 = vunpack.c.l.s4 1966171168
  %v963 = vunpack.c.0.s8 %v962
  %v964 = vlaneseq
  %v965 = vshrl.u32 %v964, 7
  %v966 = vsub.s32 %v963, %v965
  %v967 = vrot.slane %v945, %v966
  %v969 = vunpack.c.l.s4 1966171168
  %v970 = vunpack.c.0.s8 %v969
  %v971 = vlaneseq
  %v972 = vshrl.u32 %v971, 7
  %v973 = vsub.s32 %v970, %v972
  %v974 = vrot.slane %v946, %v973
  %v975 = vcombine.high %v953, %v953
  %v976 = vcombine.high %v960, %v960
  %v977 = vcombine.high %v967, %v967
  %v978 = vcombine.high %v974, %v974
  %v979 = vcombine.high %v186, %v186
  %v981 = vunpack.c.l.s4 1966171168
  %v982 = vunpack.c.0.s8 %v981
  %v983 = vlaneseq
  %v984 = vshrl.u32 %v983, 7
  %v985 = vsub.s32 %v982, %v984
  %v986 = vrot.slane %v186, %v985
  %v988 = vunpack.c.l.s4 1966171168
  %v989 = vunpack.c.0.s8 %v988
  %v990 = vlaneseq
  %v991 = vshrl.u32 %v990, 7
  %v992 = vsub.s32 %v989, %v991
  %v993 = vrot.slane %v979, %v992
  %v994 = vcombine.high %v986, %v986
  %v995 = vcombine.high %v993, %v993
  %v997 = vunpack.c.l.s4 1966171168
  %v998 = vunpack.c.0.s8 %v997
  %v999 = vlaneseq
  %v1000 = vshrl.u32 %v999, 7
  %v1001 = vsub.s32 %v998, %v1000
  %v1002 = vrot.slane %v986, %v1001
  %v1004 = vunpack.c.l.s4 1966171168
  %v1005 = vunpack.c.0.s8 %v1004
  %v1006 = vlaneseq
  %v1007 = vshrl.u32 %v1006, 7
  %v1008 = vsub.s32 %v1005, %v1007
  %v1009 = vrot.slane %v993, %v1008
  %v1011 = vunpack.c.l.s4 1966171168
  %v1012 = vunpack.c.0.s8 %v1011
  %v1013 = vlaneseq
  %v1014 = vshrl.u32 %v1013, 7
  %v1015 = vsub.s32 %v1012, %v1014
  %v1016 = vrot.slane %v994, %v1015
  %v1018 = vunpack.c.l.s4 1966171168
  %v1019 = vunpack.c.0.s8 %v1018
  %v1020 = vlaneseq
  %v1021 = vshrl.u32 %v1020, 7
  %v1022 = vsub.s32 %v1019, %v1021
  %v1023 = vrot.slane %v995, %v1022
  %v1024 = vcombine.high %v1002, %v1002
  %v1025 = vcombine.high %v1009, %v1009
  %v1026 = vcombine.high %v1016, %v1016
  %v1027 = vcombine.high %v1023, %v1023
  %v1028 = vcombine.high %v191, %v191
  %v1030 = vunpack.c.l.s4 1966171168
  %v1031 = vunpack.c.0.s8 %v1030
  %v1032 = vlaneseq
  %v1033 = vshrl.u32 %v1032, 7
  %v1034 = vsub.s32 %v1031, %v1033
  %v1035 = vrot.slane %v191, %v1034
  %v1037 = vunpack.c.l.s4 1966171168
  %v1038 = vunpack.c.0.s8 %v1037
  %v1039 = vlaneseq
  %v1040 = vshrl.u32 %v1039, 7
  %v1041 = vsub.s32 %v1038, %v1040
  %v1042 = vrot.slane %v1028, %v1041
  %v1043 = vcombine.high %v1035, %v1035
  %v1044 = vcombine.high %v1042, %v1042
  %v1046 = vunpack.c.l.s4 1966171168
  %v1047 = vunpack.c.0.s8 %v1046
  %v1048 = vlaneseq
  %v1049 = vshrl.u32 %v1048, 7
  %v1050 = vsub.s32 %v1047, %v1049
  %v1051 = vrot.slane %v1035, %v1050
  %v1053 = vunpack.c.l.s4 1966171168
  %v1054 = vunpack.c.0.s8 %v1053
  %v1055 = vlaneseq
  %v1056 = vshrl.u32 %v1055, 7
  %v1057 = vsub.s32 %v1054, %v1056
  %v1058 = vrot.slane %v1042, %v1057
  %v1060 = vunpack.c.l.s4 1966171168
  %v1061 = vunpack.c.0.s8 %v1060
  %v1062 = vlaneseq
  %v1063 = vshrl.u32 %v1062, 7
  %v1064 = vsub.s32 %v1061, %v1063
  %v1065 = vrot.slane %v1043, %v1064
  %v1067 = vunpack.c.l.s4 1966171168
  %v1068 = vunpack.c.0.s8 %v1067
  %v1069 = vlaneseq
  %v1070 = vshrl.u32 %v1069, 7
  %v1071 = vsub.s32 %v1068, %v1070
  %v1072 = vrot.slane %v1044, %v1071
  %v1073 = vcombine.high %v1051, %v1051
  %v1074 = vcombine.high %v1058, %v1058
  %v1075 = vcombine.high %v1065, %v1065
  %v1076 = vcombine.high %v1072, %v1072
  %v1077 = vcombine.high %v194, %v194
  %v1079 = vunpack.c.l.s4 1966171168
  %v1080 = vunpack.c.0.s8 %v1079
  %v1081 = vlaneseq
  %v1082 = vshrl.u32 %v1081, 7
  %v1083 = vsub.s32 %v1080, %v1082
  %v1084 = vrot.slane %v194, %v1083
  %v1086 = vunpack.c.l.s4 1966171168
  %v1087 = vunpack.c.0.s8 %v1086
  %v1088 = vlaneseq
  %v1089 = vshrl.u32 %v1088, 7
  %v1090 = vsub.s32 %v1087, %v1089
  %v1091 = vrot.slane %v1077, %v1090
  %v1092 = vcombine.high %v1084, %v1084
  %v1093 = vcombine.high %v1091, %v1091
  %v1095 = vunpack.c.l.s4 1966171168
  %v1096 = vunpack.c.0.s8 %v1095
  %v1097 = vlaneseq
  %v1098 = vshrl.u32 %v1097, 7
  %v1099 = vsub.s32 %v1096, %v1098
  %v1100 = vrot.slane %v1084, %v1099
  %v1102 = vunpack.c.l.s4 1966171168
  %v1103 = vunpack.c.0.s8 %v1102
  %v1104 = vlaneseq
  %v1105 = vshrl.u32 %v1104, 7
  %v1106 = vsub.s32 %v1103, %v1105
  %v1107 = vrot.slane %v1091, %v1106
  %v1109 = vunpack.c.l.s4 1966171168
  %v1110 = vunpack.c.0.s8 %v1109
  %v1111 = vlaneseq
  %v1112 = vshrl.u32 %v1111, 7
  %v1113 = vsub.s32 %v1110, %v1112
  %v1114 = vrot.slane %v1092, %v1113
  %v1116 = vunpack.c.l.s4 1966171168
  %v1117 = vunpack.c.0.s8 %v1116
  %v1118 = vlaneseq
  %v1119 = vshrl.u32 %v1118, 7
  %v1120 = vsub.s32 %v1117, %v1119
  %v1121 = vrot.slane %v1093, %v1120
  %v1122 = vcombine.high %v1100, %v1100
  %v1123 = vcombine.high %v1107, %v1107
  %v1124 = vcombine.high %v1114, %v1114
  %v1125 = vcombine.high %v1121, %v1121
  %v1126 = vlaneseq
  %v1127 = vshrl.u32 %v1126, 7
  %v1128 = vsub.s32 0, %v1127
  %v1129 = vrot.slane %v365, %v1128
  %v1130 = vlaneseq
  %v1131 = vshrl.u32 %v1130, 7
  %v1132 = vsub.s32 0, %v1131
  %v1133 = vrot.slane %v379, %v1132
  %v1134 = vlaneseq
  %v1135 = vshrl.u32 %v1134, 7
  %v1136 = vsub.s32 0, %v1135
  %v1137 = vrot.slane %v387, %v1136
  %v1138 = vlaneseq
  %v1139 = vshrl.u32 %v1138, 7
  %v1140 = vsub.s32 0, %v1139
  %v1141 = vrot.slane %v389, %v1140
  %v1142 = vlaneseq
  %v1143 = vshrl.u32 %v1142, 7
  %v1144 = vsub.s32 0, %v1143
  %v1145 = vrot.slane %v372, %v1144
  %v1146 = vlaneseq
  %v1147 = vshrl.u32 %v1146, 7
  %v1148 = vsub.s32 0, %v1147
  %v1149 = vrot.slane %v386, %v1148
  %v1150 = vlaneseq
  %v1151 = vshrl.u32 %v1150, 7
  %v1152 = vsub.s32 0, %v1151
  %v1153 = vrot.slane %v388, %v1152
  %v1154 = vlaneseq
  %v1155 = vshrl.u32 %v1154, 7
  %v1156 = vsub.s32 0, %v1155
  %v1157 = vrot.slane %v390, %v1156
  %v1158 = vlaneseq
  %v1159 = vshrl.u32 %v1158, 7
  %v1160 = vsub.s32 0, %v1159
  %v1161 = vrot.slane %v414, %v1160
  %v1162 = vlaneseq
  %v1163 = vshrl.u32 %v1162, 7
  %v1164 = vsub.s32 0, %v1163
  %v1165 = vrot.slane %v428, %v1164
  %v1166 = vlaneseq
  %v1167 = vshrl.u32 %v1166, 7
  %v1168 = vsub.s32 0, %v1167
  %v1169 = vrot.slane %v436, %v1168
  %v1170 = vlaneseq
  %v1171 = vshrl.u32 %v1170, 7
  %v1172 = vsub.s32 0, %v1171
  %v1173 = vrot.slane %v438, %v1172
  %v1174 = vlaneseq
  %v1175 = vshrl.u32 %v1174, 7
  %v1176 = vsub.s32 0, %v1175
  %v1177 = vrot.slane %v421, %v1176
  %v1178 = vlaneseq
  %v1179 = vshrl.u32 %v1178, 7
  %v1180 = vsub.s32 0, %v1179
  %v1181 = vrot.slane %v435, %v1180
  %v1182 = vlaneseq
  %v1183 = vshrl.u32 %v1182, 7
  %v1184 = vsub.s32 0, %v1183
  %v1185 = vrot.slane %v437, %v1184
  %v1186 = vlaneseq
  %v1187 = vshrl.u32 %v1186, 7
  %v1188 = vsub.s32 0, %v1187
  %v1189 = vrot.slane %v439, %v1188
  %v1190 = vlaneseq
  %v1191 = vshrl.u32 %v1190, 7
  %v1192 = vsub.s32 0, %v1191
  %v1193 = vrot.slane %v463, %v1192
  %v1194 = vlaneseq
  %v1195 = vshrl.u32 %v1194, 7
  %v1196 = vsub.s32 0, %v1195
  %v1197 = vrot.slane %v477, %v1196
  %v1198 = vlaneseq
  %v1199 = vshrl.u32 %v1198, 7
  %v1200 = vsub.s32 0, %v1199
  %v1201 = vrot.slane %v485, %v1200
  %v1202 = vlaneseq
  %v1203 = vshrl.u32 %v1202, 7
  %v1204 = vsub.s32 0, %v1203
  %v1205 = vrot.slane %v487, %v1204
  %v1206 = vlaneseq
  %v1207 = vshrl.u32 %v1206, 7
  %v1208 = vsub.s32 0, %v1207
  %v1209 = vrot.slane %v470, %v1208
  %v1210 = vlaneseq
  %v1211 = vshrl.u32 %v1210, 7
  %v1212 = vsub.s32 0, %v1211
  %v1213 = vrot.slane %v484, %v1212
  %v1214 = vlaneseq
  %v1215 = vshrl.u32 %v1214, 7
  %v1216 = vsub.s32 0, %v1215
  %v1217 = vrot.slane %v486, %v1216
  %v1218 = vlaneseq
  %v1219 = vshrl.u32 %v1218, 7
  %v1220 = vsub.s32 0, %v1219
  %v1221 = vrot.slane %v488, %v1220
  %v1222 = vlaneseq
  %v1223 = vshrl.u32 %v1222, 7
  %v1224 = vsub.s32 0, %v1223
  %v1225 = vrot.slane %v512, %v1224
  %v1226 = vlaneseq
  %v1227 = vshrl.u32 %v1226, 7
  %v1228 = vsub.s32 0, %v1227
  %v1229 = vrot.slane %v526, %v1228
  %v1230 = vlaneseq
  %v1231 = vshrl.u32 %v1230, 7
  %v1232 = vsub.s32 0, %v1231
  %v1233 = vrot.slane %v534, %v1232
  %v1234 = vlaneseq
  %v1235 = vshrl.u32 %v1234, 7
  %v1236 = vsub.s32 0, %v1235
  %v1237 = vrot.slane %v536, %v1236
  %v1238 = vlaneseq
  %v1239 = vshrl.u32 %v1238, 7
  %v1240 = vsub.s32 0, %v1239
  %v1241 = vrot.slane %v519, %v1240
  %v1242 = vlaneseq
  %v1243 = vshrl.u32 %v1242, 7
  %v1244 = vsub.s32 0, %v1243
  %v1245 = vrot.slane %v533, %v1244
  %v1246 = vlaneseq
  %v1247 = vshrl.u32 %v1246, 7
  %v1248 = vsub.s32 0, %v1247
  %v1249 = vrot.slane %v535, %v1248
  %v1250 = vlaneseq
  %v1251 = vshrl.u32 %v1250, 7
  %v1252 = vsub.s32 0, %v1251
  %v1253 = vrot.slane %v537, %v1252
  %v1254 = vlaneseq
  %v1255 = vshrl.u32 %v1254, 7
  %v1256 = vsub.s32 0, %v1255
  %v1257 = vrot.slane %v561, %v1256
  %v1258 = vlaneseq
  %v1259 = vshrl.u32 %v1258, 7
  %v1260 = vsub.s32 0, %v1259
  %v1261 = vrot.slane %v575, %v1260
  %v1262 = vlaneseq
  %v1263 = vshrl.u32 %v1262, 7
  %v1264 = vsub.s32 0, %v1263
  %v1265 = vrot.slane %v583, %v1264
  %v1266 = vlaneseq
  %v1267 = vshrl.u32 %v1266, 7
  %v1268 = vsub.s32 0, %v1267
  %v1269 = vrot.slane %v585, %v1268
  %v1270 = vlaneseq
  %v1271 = vshrl.u32 %v1270, 7
  %v1272 = vsub.s32 0, %v1271
  %v1273 = vrot.slane %v568, %v1272
  %v1274 = vlaneseq
  %v1275 = vshrl.u32 %v1274, 7
  %v1276 = vsub.s32 0, %v1275
  %v1277 = vrot.slane %v582, %v1276
  %v1278 = vlaneseq
  %v1279 = vshrl.u32 %v1278, 7
  %v1280 = vsub.s32 0, %v1279
  %v1281 = vrot.slane %v584, %v1280
  %v1282 = vlaneseq
  %v1283 = vshrl.u32 %v1282, 7
  %v1284 = vsub.s32 0, %v1283
  %v1285 = vrot.slane %v586, %v1284
  %v1286 = vlaneseq
  %v1287 = vshrl.u32 %v1286, 7
  %v1288 = vsub.s32 0, %v1287
  %v1289 = vrot.slane %v610, %v1288
  %v1290 = vlaneseq
  %v1291 = vshrl.u32 %v1290, 7
  %v1292 = vsub.s32 0, %v1291
  %v1293 = vrot.slane %v624, %v1292
  %v1294 = vlaneseq
  %v1295 = vshrl.u32 %v1294, 7
  %v1296 = vsub.s32 0, %v1295
  %v1297 = vrot.slane %v632, %v1296
  %v1298 = vlaneseq
  %v1299 = vshrl.u32 %v1298, 7
  %v1300 = vsub.s32 0, %v1299
  %v1301 = vrot.slane %v634, %v1300
  %v1302 = vlaneseq
  %v1303 = vshrl.u32 %v1302, 7
  %v1304 = vsub.s32 0, %v1303
  %v1305 = vrot.slane %v617, %v1304
  %v1306 = vlaneseq
  %v1307 = vshrl.u32 %v1306, 7
  %v1308 = vsub.s32 0, %v1307
  %v1309 = vrot.slane %v631, %v1308
  %v1310 = vlaneseq
  %v1311 = vshrl.u32 %v1310, 7
  %v1312 = vsub.s32 0, %v1311
  %v1313 = vrot.slane %v633, %v1312
  %v1314 = vlaneseq
  %v1315 = vshrl.u32 %v1314, 7
  %v1316 = vsub.s32 0, %v1315
  %v1317 = vrot.slane %v635, %v1316
  %v1318 = vlaneseq
  %v1319 = vshrl.u32 %v1318, 7
  %v1320 = vsub.s32 0, %v1319
  %v1321 = vrot.slane %v659, %v1320
  %v1322 = vlaneseq
  %v1323 = vshrl.u32 %v1322, 7
  %v1324 = vsub.s32 0, %v1323
  %v1325 = vrot.slane %v673, %v1324
  %v1326 = vlaneseq
  %v1327 = vshrl.u32 %v1326, 7
  %v1328 = vsub.s32 0, %v1327
  %v1329 = vrot.slane %v681, %v1328
  %v1330 = vlaneseq
  %v1331 = vshrl.u32 %v1330, 7
  %v1332 = vsub.s32 0, %v1331
  %v1333 = vrot.slane %v683, %v1332
  %v1334 = vlaneseq
  %v1335 = vshrl.u32 %v1334, 7
  %v1336 = vsub.s32 0, %v1335
  %v1337 = vrot.slane %v666, %v1336
  %v1338 = vlaneseq
  %v1339 = vshrl.u32 %v1338, 7
  %v1340 = vsub.s32 0, %v1339
  %v1341 = vrot.slane %v680, %v1340
  %v1342 = vlaneseq
  %v1343 = vshrl.u32 %v1342, 7
  %v1344 = vsub.s32 0, %v1343
  %v1345 = vrot.slane %v682, %v1344
  %v1346 = vlaneseq
  %v1347 = vshrl.u32 %v1346, 7
  %v1348 = vsub.s32 0, %v1347
  %v1349 = vrot.slane %v684, %v1348
  %v1350 = vlaneseq
  %v1351 = vshrl.u32 %v1350, 7
  %v1352 = vsub.s32 0, %v1351
  %v1353 = vrot.slane %v708, %v1352
  %v1354 = vlaneseq
  %v1355 = vshrl.u32 %v1354, 7
  %v1356 = vsub.s32 0, %v1355
  %v1357 = vrot.slane %v722, %v1356
  %v1358 = vlaneseq
  %v1359 = vshrl.u32 %v1358, 7
  %v1360 = vsub.s32 0, %v1359
  %v1361 = vrot.slane %v730, %v1360
  %v1362 = vlaneseq
  %v1363 = vshrl.u32 %v1362, 7
  %v1364 = vsub.s32 0, %v1363
  %v1365 = vrot.slane %v732, %v1364
  %v1366 = vlaneseq
  %v1367 = vshrl.u32 %v1366, 7
  %v1368 = vsub.s32 0, %v1367
  %v1369 = vrot.slane %v715, %v1368
  %v1370 = vlaneseq
  %v1371 = vshrl.u32 %v1370, 7
  %v1372 = vsub.s32 0, %v1371
  %v1373 = vrot.slane %v729, %v1372
  %v1374 = vlaneseq
  %v1375 = vshrl.u32 %v1374, 7
  %v1376 = vsub.s32 0, %v1375
  %v1377 = vrot.slane %v731, %v1376
  %v1378 = vlaneseq
  %v1379 = vshrl.u32 %v1378, 7
  %v1380 = vsub.s32 0, %v1379
  %v1381 = vrot.slane %v733, %v1380
  %v1382 = vlaneseq
  %v1383 = vshrl.u32 %v1382, 7
  %v1384 = vsub.s32 0, %v1383
  %v1385 = vrot.slane %v757, %v1384
  %v1386 = vlaneseq
  %v1387 = vshrl.u32 %v1386, 7
  %v1388 = vsub.s32 0, %v1387
  %v1389 = vrot.slane %v771, %v1388
  %v1390 = vlaneseq
  %v1391 = vshrl.u32 %v1390, 7
  %v1392 = vsub.s32 0, %v1391
  %v1393 = vrot.slane %v779, %v1392
  %v1394 = vlaneseq
  %v1395 = vshrl.u32 %v1394, 7
  %v1396 = vsub.s32 0, %v1395
  %v1397 = vrot.slane %v781, %v1396
  %v1398 = vlaneseq
  %v1399 = vshrl.u32 %v1398, 7
  %v1400 = vsub.s32 0, %v1399
  %v1401 = vrot.slane %v764, %v1400
  %v1402 = vlaneseq
  %v1403 = vshrl.u32 %v1402, 7
  %v1404 = vsub.s32 0, %v1403
  %v1405 = vrot.slane %v778, %v1404
  %v1406 = vlaneseq
  %v1407 = vshrl.u32 %v1406, 7
  %v1408 = vsub.s32 0, %v1407
  %v1409 = vrot.slane %v780, %v1408
  %v1410 = vlaneseq
  %v1411 = vshrl.u32 %v1410, 7
  %v1412 = vsub.s32 0, %v1411
  %v1413 = vrot.slane %v782, %v1412
  %v1414 = vlaneseq
  %v1415 = vshrl.u32 %v1414, 7
  %v1416 = vsub.s32 0, %v1415
  %v1417 = vrot.slane %v806, %v1416
  %v1418 = vlaneseq
  %v1419 = vshrl.u32 %v1418, 7
  %v1420 = vsub.s32 0, %v1419
  %v1421 = vrot.slane %v820, %v1420
  %v1422 = vlaneseq
  %v1423 = vshrl.u32 %v1422, 7
  %v1424 = vsub.s32 0, %v1423
  %v1425 = vrot.slane %v828, %v1424
  %v1426 = vlaneseq
  %v1427 = vshrl.u32 %v1426, 7
  %v1428 = vsub.s32 0, %v1427
  %v1429 = vrot.slane %v830, %v1428
  %v1430 = vlaneseq
  %v1431 = vshrl.u32 %v1430, 7
  %v1432 = vsub.s32 0, %v1431
  %v1433 = vrot.slane %v813, %v1432
  %v1434 = vlaneseq
  %v1435 = vshrl.u32 %v1434, 7
  %v1436 = vsub.s32 0, %v1435
  %v1437 = vrot.slane %v827, %v1436
  %v1438 = vlaneseq
  %v1439 = vshrl.u32 %v1438, 7
  %v1440 = vsub.s32 0, %v1439
  %v1441 = vrot.slane %v829, %v1440
  %v1442 = vlaneseq
  %v1443 = vshrl.u32 %v1442, 7
  %v1444 = vsub.s32 0, %v1443
  %v1445 = vrot.slane %v831, %v1444
  %v1446 = vlaneseq
  %v1447 = vshrl.u32 %v1446, 7
  %v1448 = vsub.s32 0, %v1447
  %v1449 = vrot.slane %v855, %v1448
  %v1450 = vlaneseq
  %v1451 = vshrl.u32 %v1450, 7
  %v1452 = vsub.s32 0, %v1451
  %v1453 = vrot.slane %v869, %v1452
  %v1454 = vlaneseq
  %v1455 = vshrl.u32 %v1454, 7
  %v1456 = vsub.s32 0, %v1455
  %v1457 = vrot.slane %v877, %v1456
  %v1458 = vlaneseq
  %v1459 = vshrl.u32 %v1458, 7
  %v1460 = vsub.s32 0, %v1459
  %v1461 = vrot.slane %v879, %v1460
  %v1462 = vlaneseq
  %v1463 = vshrl.u32 %v1462, 7
  %v1464 = vsub.s32 0, %v1463
  %v1465 = vrot.slane %v862, %v1464
  %v1466 = vlaneseq
  %v1467 = vshrl.u32 %v1466, 7
  %v1468 = vsub.s32 0, %v1467
  %v1469 = vrot.slane %v876, %v1468
  %v1470 = vlaneseq
  %v1471 = vshrl.u32 %v1470, 7
  %v1472 = vsub.s32 0, %v1471
  %v1473 = vrot.slane %v878, %v1472
  %v1474 = vlaneseq
  %v1475 = vshrl.u32 %v1474, 7
  %v1476 = vsub.s32 0, %v1475
  %v1477 = vrot.slane %v880, %v1476
  %v1478 = vlaneseq
  %v1479 = vshrl.u32 %v1478, 7
  %v1480 = vsub.s32 0, %v1479
  %v1481 = vrot.slane %v904, %v1480
  %v1482 = vlaneseq
  %v1483 = vshrl.u32 %v1482, 7
  %v1484 = vsub.s32 0, %v1483
  %v1485 = vrot.slane %v918, %v1484
  %v1486 = vlaneseq
  %v1487 = vshrl.u32 %v1486, 7
  %v1488 = vsub.s32 0, %v1487
  %v1489 = vrot.slane %v926, %v1488
  %v1490 = vlaneseq
  %v1491 = vshrl.u32 %v1490, 7
  %v1492 = vsub.s32 0, %v1491
  %v1493 = vrot.slane %v928, %v1492
  %v1494 = vlaneseq
  %v1495 = vshrl.u32 %v1494, 7
  %v1496 = vsub.s32 0, %v1495
  %v1497 = vrot.slane %v911, %v1496
  %v1498 = vlaneseq
  %v1499 = vshrl.u32 %v1498, 7
  %v1500 = vsub.s32 0, %v1499
  %v1501 = vrot.slane %v925, %v1500
  %v1502 = vlaneseq
  %v1503 = vshrl.u32 %v1502, 7
  %v1504 = vsub.s32 0, %v1503
  %v1505 = vrot.slane %v927, %v1504
  %v1506 = vlaneseq
  %v1507 = vshrl.u32 %v1506, 7
  %v1508 = vsub.s32 0, %v1507
  %v1509 = vrot.slane %v929, %v1508
  %v1510 = vlaneseq
  %v1511 = vshrl.u32 %v1510, 7
  %v1512 = vsub.s32 0, %v1511
  %v1513 = vrot.slane %v953, %v1512
  %v1514 = vlaneseq
  %v1515 = vshrl.u32 %v1514, 7
  %v1516 = vsub.s32 0, %v1515
  %v1517 = vrot.slane %v967, %v1516
  %v1518 = vlaneseq
  %v1519 = vshrl.u32 %v1518, 7
  %v1520 = vsub.s32 0, %v1519
  %v1521 = vrot.slane %v975, %v1520
  %v1522 = vlaneseq
  %v1523 = vshrl.u32 %v1522, 7
  %v1524 = vsub.s32 0, %v1523
  %v1525 = vrot.slane %v977, %v1524
  %v1526 = vlaneseq
  %v1527 = vshrl.u32 %v1526, 7
  %v1528 = vsub.s32 0, %v1527
  %v1529 = vrot.slane %v960, %v1528
  %v1530 = vlaneseq
  %v1531 = vshrl.u32 %v1530, 7
  %v1532 = vsub.s32 0, %v1531
  %v1533 = vrot.slane %v974, %v1532
  %v1534 = vlaneseq
  %v1535 = vshrl.u32 %v1534, 7
  %v1536 = vsub.s32 0, %v1535
  %v1537 = vrot.slane %v976, %v1536
  %v1538 = vlaneseq
  %v1539 = vshrl.u32 %v1538, 7
  %v1540 = vsub.s32 0, %v1539
  %v1541 = vrot.slane %v978, %v1540
  %v1542 = vlaneseq
  %v1543 = vshrl.u32 %v1542, 7
  %v1544 = vsub.s32 0, %v1543
  %v1545 = vrot.slane %v1002, %v1544
  %v1546 = vlaneseq
  %v1547 = vshrl.u32 %v1546, 7
  %v1548 = vsub.s32 0, %v1547
  %v1549 = vrot.slane %v1016, %v1548
  %v1550 = vlaneseq
  %v1551 = vshrl.u32 %v1550, 7
  %v1552 = vsub.s32 0, %v1551
  %v1553 = vrot.slane %v1024, %v1552
  %v1554 = vlaneseq
  %v1555 = vshrl.u32 %v1554, 7
  %v1556 = vsub.s32 0, %v1555
  %v1557 = vrot.slane %v1026, %v1556
  %v1558 = vlaneseq
  %v1559 = vshrl.u32 %v1558, 7
  %v1560 = vsub.s32 0, %v1559
  %v1561 = vrot.slane %v1009, %v1560
  %v1562 = vlaneseq
  %v1563 = vshrl.u32 %v1562, 7
  %v1564 = vsub.s32 0, %v1563
  %v1565 = vrot.slane %v1023, %v1564
  %v1566 = vlaneseq
  %v1567 = vshrl.u32 %v1566, 7
  %v1568 = vsub.s32 0, %v1567
  %v1569 = vrot.slane %v1025, %v1568
  %v1570 = vlaneseq
  %v1571 = vshrl.u32 %v1570, 7
  %v1572 = vsub.s32 0, %v1571
  %v1573 = vrot.slane %v1027, %v1572
  %v1574 = vlaneseq
  %v1575 = vshrl.u32 %v1574, 7
  %v1576 = vsub.s32 0, %v1575
  %v1577 = vrot.slane %v1051, %v1576
  %v1578 = vlaneseq
  %v1579 = vshrl.u32 %v1578, 7
  %v1580 = vsub.s32 0, %v1579
  %v1581 = vrot.slane %v1065, %v1580
  %v1582 = vlaneseq
  %v1583 = vshrl.u32 %v1582, 7
  %v1584 = vsub.s32 0, %v1583
  %v1585 = vrot.slane %v1073, %v1584
  %v1586 = vlaneseq
  %v1587 = vshrl.u32 %v1586, 7
  %v1588 = vsub.s32 0, %v1587
  %v1589 = vrot.slane %v1075, %v1588
  %v1590 = vlaneseq
  %v1591 = vshrl.u32 %v1590, 7
  %v1592 = vsub.s32 0, %v1591
  %v1593 = vrot.slane %v1058, %v1592
  %v1594 = vlaneseq
  %v1595 = vshrl.u32 %v1594, 7
  %v1596 = vsub.s32 0, %v1595
  %v1597 = vrot.slane %v1072, %v1596
  %v1598 = vlaneseq
  %v1599 = vshrl.u32 %v1598, 7
  %v1600 = vsub.s32 0, %v1599
  %v1601 = vrot.slane %v1074, %v1600
  %v1602 = vlaneseq
  %v1603 = vshrl.u32 %v1602, 7
  %v1604 = vsub.s32 0, %v1603
  %v1605 = vrot.slane %v1076, %v1604
  %v1606 = vlaneseq
  %v1607 = vshrl.u32 %v1606, 7
  %v1608 = vsub.s32 0, %v1607
  %v1609 = vrot.slane %v1100, %v1608
  %v1610 = vlaneseq
  %v1611 = vshrl.u32 %v1610, 7
  %v1612 = vsub.s32 0, %v1611
  %v1613 = vrot.slane %v1114, %v1612
  %v1614 = vlaneseq
  %v1615 = vshrl.u32 %v1614, 7
  %v1616 = vsub.s32 0, %v1615
  %v1617 = vrot.slane %v1122, %v1616
  %v1618 = vlaneseq
  %v1619 = vshrl.u32 %v1618, 7
  %v1620 = vsub.s32 0, %v1619
  %v1621 = vrot.slane %v1124, %v1620
  %v1622 = vlaneseq
  %v1623 = vshrl.u32 %v1622, 7
  %v1624 = vsub.s32 0, %v1623
  %v1625 = vrot.slane %v1107, %v1624
  %v1626 = vlaneseq
  %v1627 = vshrl.u32 %v1626, 7
  %v1628 = vsub.s32 0, %v1627
  %v1629 = vrot.slane %v1121, %v1628
  %v1630 = vlaneseq
  %v1631 = vshrl.u32 %v1630, 7
  %v1632 = vsub.s32 0, %v1631
  %v1633 = vrot.slane %v1123, %v1632
  %v1634 = vlaneseq
  %v1635 = vshrl.u32 %v1634, 7
  %v1636 = vsub.s32 0, %v1635
  %v1637 = vrot.slane %v1125, %v1636
  %v1894 = vunpack.c.l.b16 %v197
  %v1895 = vunpack.c.l.b16 %v198
  %v1896 = vunpack.c.l.b16 %v199
  %v1897 = vunpack.c.l.b16 %v200
  %v1898 = vunpack.c.l.b16 %v201
  %v1899 = vunpack.c.l.b16 %v202
  %v1900 = vunpack.c.l.b16 %v203
  %v1901 = vunpack.c.l.b16 %v204
  %v1902 = vunpack.c.l.b16 %v205
  %v1903 = vunpack.c.l.b16 %v206
  %v1904 = vunpack.c.l.b16 %v207
  %v1905 = vunpack.c.l.b16 %v208
  %v1906 = vunpack.c.l.b16 %v209
  %v1907 = vunpack.c.l.b16 %v210
  %v1908 = vunpack.c.l.b16 %v211
  %v1909 = vunpack.c.l.b16 %v212
  %v1910 = vunpack.c.l.b16 %v213
  %v1911 = vunpack.c.l.b16 %v214
  %v1912 = vunpack.c.l.b16 %v215
  %v1913 = vunpack.c.l.b16 %v216
  %v1914 = vunpack.c.l.b16 %v217
  %v1915 = vunpack.c.l.b16 %v218
  %v1916 = vunpack.c.l.b16 %v219
  %v1917 = vunpack.c.l.b16 %v220
  %v1918 = vunpack.c.l.b16 %v221
  %v1919 = vunpack.c.l.b16 %v222
  %v1920 = vunpack.c.l.b16 %v223
  %v1921 = vunpack.c.l.b16 %v224
  %v1922 = vunpack.c.l.b16 %v225
  %v1923 = vunpack.c.l.b16 %v226
  %v1924 = vunpack.c.l.b16 %v227
  %v1925 = vunpack.c.l.b16 %v228
  %v1926 = vunpack.c.l.b16 %v229
  %v1927 = vunpack.c.l.b16 %v230
  %v1928 = vunpack.c.l.b16 %v231
  %v1929 = vunpack.c.l.b16 %v232
  %v1930 = vunpack.c.l.b16 %v233
  %v1931 = vunpack.c.l.b16 %v234
  %v1932 = vunpack.c.l.b16 %v235
  %v1933 = vunpack.c.l.b16 %v236
  %v1934 = vunpack.c.l.b16 %v237
  %v1935 = vunpack.c.l.b16 %v238
  %v1936 = vunpack.c.l.b16 %v239
  %v1937 = vunpack.c.l.b16 %v240
  %v1938 = vunpack.c.l.b16 %v241
  %v1939 = vunpack.c.l.b16 %v242
  %v1940 = vunpack.c.l.b16 %v243
  %v1941 = vunpack.c.l.b16 %v244
  %v1942 = vunpack.c.l.b16 %v245
  %v1943 = vunpack.c.l.b16 %v246
  %v1944 = vunpack.c.l.b16 %v247
  %v1945 = vunpack.c.l.b16 %v248
  %v1946 = vunpack.c.l.b16 %v249
  %v1947 = vunpack.c.l.b16 %v250
  %v1948 = vunpack.c.l.b16 %v251
  %v1949 = vunpack.c.l.b16 %v252
  %v1950 = vunpack.c.l.b16 %v253
  %v1951 = vunpack.c.l.b16 %v254
  %v1952 = vunpack.c.l.b16 %v255
  %v1953 = vunpack.c.l.b16 %v256
  %v1954 = vunpack.c.l.b16 %v257
  %v1955 = vunpack.c.l.b16 %v258
  %v1956 = vunpack.c.l.b16 %v259
  %v1957 = vunpack.c.l.b16 %v260
  %v1958 = vunpack.c.l.b16 %v261
  %v1959 = vunpack.c.l.b16 %v262
  %v1960 = vunpack.c.l.b16 %v263
  %v1961 = vunpack.c.l.b16 %v264
  %v1962 = vunpack.c.l.b16 %v265
  %v1963 = vunpack.c.l.b16 %v266
  %v1964 = vunpack.c.l.b16 %v267
  %v1965 = vunpack.c.l.b16 %v268
  %v1966 = vunpack.c.l.b16 %v269
  %v1967 = vunpack.c.l.b16 %v270
  %v1968 = vunpack.c.l.b16 %v271
  %v1969 = vunpack.c.l.b16 %v272
  %v1970 = vunpack.c.l.b16 %v273
  %v1971 = vunpack.c.l.b16 %v274
  %v1972 = vunpack.c.l.b16 %v275
  %v1973 = vunpack.c.l.b16 %v276
  %v1974 = vunpack.c.l.b16 %v277
  %v1975 = vunpack.c.l.b16 %v278
  %v1976 = vunpack.c.l.b16 %v279
  %v1977 = vunpack.c.l.b16 %v280
  %v1978 = vunpack.c.l.b16 %v281
  %v1979 = vunpack.c.l.b16 %v282
  %v1980 = vunpack.c.l.b16 %v283
  %v1981 = vunpack.c.l.b16 %v284
  %v1982 = vunpack.c.l.b16 %v285
  %v1983 = vunpack.c.l.b16 %v286
  %v1984 = vunpack.c.l.b16 %v287
  %v1985 = vunpack.c.l.b16 %v288
  %v1986 = vunpack.c.l.b16 %v289
  %v1987 = vunpack.c.l.b16 %v290
  %v1988 = vunpack.c.l.b16 %v291
  %v1989 = vunpack.c.l.b16 %v292
  %v1990 = vunpack.c.l.b16 %v293
  %v1991 = vunpack.c.l.b16 %v294
  %v1992 = vunpack.c.l.b16 %v295
  %v1993 = vunpack.c.l.b16 %v296
  %v1994 = vunpack.c.l.b16 %v297
  %v1995 = vunpack.c.l.b16 %v298
  %v1996 = vunpack.c.l.b16 %v299
  %v1997 = vunpack.c.l.b16 %v300
  %v1998 = vunpack.c.l.b16 %v301
  %v1999 = vunpack.c.l.b16 %v302
  %v2000 = vunpack.c.l.b16 %v303
  %v2001 = vunpack.c.l.b16 %v304
  %v2002 = vunpack.c.l.b16 %v305
  %v2003 = vunpack.c.l.b16 %v306
  %v2004 = vunpack.c.l.b16 %v307
  %v2005 = vunpack.c.l.b16 %v308
  %v2006 = vunpack.c.l.b16 %v309
  %v2007 = vunpack.c.l.b16 %v310
  %v2008 = vunpack.c.l.b16 %v311
  %v2009 = vunpack.c.l.b16 %v312
  %v2010 = vunpack.c.l.b16 %v313
  %v2011 = vunpack.c.l.b16 %v314
  %v2012 = vunpack.c.l.b16 %v315
  %v2013 = vunpack.c.l.b16 %v316
  %v2014 = vunpack.c.l.b16 %v317
  %v2015 = vunpack.c.l.b16 %v318
  %v2016 = vunpack.c.l.b16 %v319
  %v2017 = vunpack.c.l.b16 %v320
  %v2018 = vunpack.c.l.b16 %v321
  %v2019 = vunpack.c.l.b16 %v322
  %v2020 = vunpack.c.l.b16 %v323
  %v2021 = vunpack.c.l.b16 %v324
  %v2022 = vpack.c.b16 %v1895, %v1894
  %v2023 = vpack.c.b16 %v1897, %v1896
  %v2024 = vpack.c.b16 %v1899, %v1898
  %v2025 = vpack.c.b16 %v1901, %v1900
  %v2026 = vpack.c.b16 %v1903, %v1902
  %v2027 = vpack.c.b16 %v1905, %v1904
  %v2028 = vpack.c.b16 %v1907, %v1906
  %v2029 = vpack.c.b16 %v1909, %v1908
  %v2030 = vpack.c.b16 %v1911, %v1910
  %v2031 = vpack.c.b16 %v1913, %v1912
  %v2032 = vpack.c.b16 %v1915, %v1914
  %v2033 = vpack.c.b16 %v1917, %v1916
  %v2034 = vpack.c.b16 %v1919, %v1918
  %v2035 = vpack.c.b16 %v1921, %v1920
  %v2036 = vpack.c.b16 %v1923, %v1922
  %v2037 = vpack.c.b16 %v1925, %v1924
  %v2038 = vpack.c.b16 %v1927, %v1926
  %v2039 = vpack.c.b16 %v1929, %v1928
  %v2040 = vpack.c.b16 %v1931, %v1930
  %v2041 = vpack.c.b16 %v1933, %v1932
  %v2042 = vpack.c.b16 %v1935, %v1934
  %v2043 = vpack.c.b16 %v1937, %v1936
  %v2044 = vpack.c.b16 %v1939, %v1938
  %v2045 = vpack.c.b16 %v1941, %v1940
  %v2046 = vpack.c.b16 %v1943, %v1942
  %v2047 = vpack.c.b16 %v1945, %v1944
  %v2048 = vpack.c.b16 %v1947, %v1946
  %v2049 = vpack.c.b16 %v1949, %v1948
  %v2050 = vpack.c.b16 %v1951, %v1950
  %v2051 = vpack.c.b16 %v1953, %v1952
  %v2052 = vpack.c.b16 %v1955, %v1954
  %v2053 = vpack.c.b16 %v1957, %v1956
  %v2054 = vpack.c.b16 %v1959, %v1958
  %v2055 = vpack.c.b16 %v1961, %v1960
  %v2056 = vpack.c.b16 %v1963, %v1962
  %v2057 = vpack.c.b16 %v1965, %v1964
  %v2058 = vpack.c.b16 %v1967, %v1966
  %v2059 = vpack.c.b16 %v1969, %v1968
  %v2060 = vpack.c.b16 %v1971, %v1970
  %v2061 = vpack.c.b16 %v1973, %v1972
  %v2062 = vpack.c.b16 %v1975, %v1974
  %v2063 = vpack.c.b16 %v1977, %v1976
  %v2064 = vpack.c.b16 %v1979, %v1978
  %v2065 = vpack.c.b16 %v1981, %v1980
  %v2066 = vpack.c.b16 %v1983, %v1982
  %v2067 = vpack.c.b16 %v1985, %v1984
  %v2068 = vpack.c.b16 %v1987, %v1986
  %v2069 = vpack.c.b16 %v1989, %v1988
  %v2070 = vpack.c.b16 %v1991, %v1990
  %v2071 = vpack.c.b16 %v1993, %v1992
  %v2072 = vpack.c.b16 %v1995, %v1994
  %v2073 = vpack.c.b16 %v1997, %v1996
  %v2074 = vpack.c.b16 %v1999, %v1998
  %v2075 = vpack.c.b16 %v2001, %v2000
  %v2076 = vpack.c.b16 %v2003, %v2002
  %v2077 = vpack.c.b16 %v2005, %v2004
  %v2078 = vpack.c.b16 %v2007, %v2006
  %v2079 = vpack.c.b16 %v2009, %v2008
  %v2080 = vpack.c.b16 %v2011, %v2010
  %v2081 = vpack.c.b16 %v2013, %v2012
  %v2082 = vpack.c.b16 %v2015, %v2014
  %v2083 = vpack.c.b16 %v2017, %v2016
  %v2084 = vpack.c.b16 %v2019, %v2018
  %v2085 = vpack.c.b16 %v2021, %v2020
  %v2087 = vsel %vm71, %v2022, 0
  %v2090 = vsel %vm71, %v2023, 0
  %v2093 = vsel %vm71, %v2024, 0
  %v2096 = vsel %vm71, %v2025, 0
  %v2099 = vsel %vm71, %v2026, 0
  %v2102 = vsel %vm71, %v2027, 0
  %v2105 = vsel %vm71, %v2028, 0
  %v2108 = vsel %vm71, %v2029, 0
  %v2111 = vsel %vm71, %v2030, 0
  %v2114 = vsel %vm71, %v2031, 0
  %v2117 = vsel %vm71, %v2032, 0
  %v2120 = vsel %vm71, %v2033, 0
  %v2123 = vsel %vm71, %v2034, 0
  %v2126 = vsel %vm71, %v2035, 0
  %v2129 = vsel %vm71, %v2036, 0
  %v2132 = vsel %vm71, %v2037, 0
  %v2135 = vsel %vm71, %v2038, 0
  %v2138 = vsel %vm71, %v2039, 0
  %v2141 = vsel %vm71, %v2040, 0
  %v2144 = vsel %vm71, %v2041, 0
  %v2147 = vsel %vm71, %v2042, 0
  %v2150 = vsel %vm71, %v2043, 0
  %v2153 = vsel %vm71, %v2044, 0
  %v2156 = vsel %vm71, %v2045, 0
  %v2159 = vsel %vm71, %v2046, 0
  %v2162 = vsel %vm71, %v2047, 0
  %v2165 = vsel %vm71, %v2048, 0
  %v2168 = vsel %vm71, %v2049, 0
  %v2171 = vsel %vm71, %v2050, 0
  %v2174 = vsel %vm71, %v2051, 0
  %v2177 = vsel %vm71, %v2052, 0
  %v2180 = vsel %vm71, %v2053, 0
  %v2183 = vsel %vm71, %v2054, 0
  %v2186 = vsel %vm71, %v2055, 0
  %v2189 = vsel %vm71, %v2056, 0
  %v2192 = vsel %vm71, %v2057, 0
  %v2195 = vsel %vm71, %v2058, 0
  %v2198 = vsel %vm71, %v2059, 0
  %v2201 = vsel %vm71, %v2060, 0
  %v2204 = vsel %vm71, %v2061, 0
  %v2207 = vsel %vm71, %v2062, 0
  %v2210 = vsel %vm71, %v2063, 0
  %v2213 = vsel %vm71, %v2064, 0
  %v2216 = vsel %vm71, %v2065, 0
  %v2219 = vsel %vm71, %v2066, 0
  %v2222 = vsel %vm71, %v2067, 0
  %v2225 = vsel %vm71, %v2068, 0
  %v2228 = vsel %vm71, %v2069, 0
  %v2231 = vsel %vm71, %v2070, 0
  %v2234 = vsel %vm71, %v2071, 0
  %v2237 = vsel %vm71, %v2072, 0
  %v2240 = vsel %vm71, %v2073, 0
  %v2243 = vsel %vm71, %v2074, 0
  %v2246 = vsel %vm71, %v2075, 0
  %v2249 = vsel %vm71, %v2076, 0
  %v2252 = vsel %vm71, %v2077, 0
  %v2255 = vsel %vm71, %v2078, 0
  %v2258 = vsel %vm71, %v2079, 0
  %v2261 = vsel %vm71, %v2080, 0
  %v2264 = vsel %vm71, %v2081, 0
  %v2267 = vsel %vm71, %v2082, 0
  %v2270 = vsel %vm71, %v2083, 0
  %v2273 = vsel %vm71, %v2084, 0
  %v2276 = vsel %vm71, %v2085, 0
  %v2279 = vsel %vm96, %v325, 0
  %2281 = vmatprep.subr.bf16.mxu0 0
  %2282 = vmatpush1.bf16.msra.mxu0 %v2279
  %2283 = vmatprep.subr.bf16.mxu0 0
  %2284 = vmatpush1.bf16.msra.mxu0 0
  %2285 = vmatprep.subr.bf16.mxu0 0
  %2286 = vmatpush1.bf16.msra.mxu0 0
  %2287 = vmatprep.subr.bf16.mxu0 0
  %2288 = vmatpush1.bf16.msra.mxu0 0
  %2289 = vmatprep.subr.bf16.mxu0 0
  %2290 = vmatpush1.bf16.msra.mxu0 0
  %2291 = vmatprep.subr.bf16.mxu0 0
  %2292 = vmatpush1.bf16.msra.mxu0 0
  %2293 = vmatprep.subr.bf16.mxu0 0
  %2294 = vmatpush1.bf16.msra.mxu0 0
  %2295 = vmatprep.subr.bf16.mxu0 0
  %2296 = vmatpush1.bf16.msra.mxu0 0
  %2297 = vmatprep.subr.bf16.mxu0 0
  %2298 = vmatpush1.bf16.msra.mxu0 0
  %2299 = vmatprep.subr.bf16.mxu0 0
  %2300 = vmatpush1.bf16.msra.mxu0 0
  %2301 = vmatprep.subr.bf16.mxu0 0
  %2302 = vmatpush1.bf16.msra.mxu0 0
  %2303 = vmatprep.subr.bf16.mxu0 0
  %2304 = vmatpush1.bf16.msra.mxu0 0
  %2305 = vmatprep.subr.bf16.mxu0 0
  %2306 = vmatpush1.bf16.msra.mxu0 0
  %2307 = vmatprep.subr.bf16.mxu0 0
  %2308 = vmatpush1.bf16.msra.mxu0 0
  %2309 = vmatprep.subr.bf16.mxu0 0
  %2310 = vmatpush1.bf16.msra.mxu0 0
  %2311 = vmatprep.subr.bf16.mxu0 0
  %2312 = vmatpush1.bf16.msra.mxu0 0
  %2313 = vmatprep.mubr.bf16.mxu0 0
  %2314 = vmatmul.mubr.bf16.gmra.mrb[0].mxu0 %v2087
  %v2315 = vpop.f32.mrb[0].mxu0
  %v2316 = vadd.f32 %v1129, %v2315
  %v2317 = vpop.f32.mrb[0].mxu0
  %v2318 = vpop.f32.mrb[0].mxu0
  %v2319 = vadd.f32 %v1133, %v2318
  %v2320 = vpop.f32.mrb[0].mxu0
  %2321 = vmatprep.mubr.bf16.mxu0 0
  %2322 = vmatmul.mubr.bf16.gmra.mrb[0].mxu0 %v2090
  %v2323 = vpop.f32.mrb[0].mxu0
  %v2324 = vadd.f32 %v1137, %v2323
  %v2325 = vpop.f32.mrb[0].mxu0
  %v2326 = vpop.f32.mrb[0].mxu0
  %v2327 = vadd.f32 %v1141, %v2326
  %v2328 = vpop.f32.mrb[0].mxu0
  %2329 = vmatprep.mubr.bf16.mxu0 0
  %2330 = vmatmul.mubr.bf16.gmra.mrb[0].mxu0 %v2093
  %v2331 = vpop.f32.mrb[0].mxu0
  %v2332 = vadd.f32 %v1145, %v2331
  %v2333 = vpop.f32.mrb[0].mxu0
  %v2334 = vpop.f32.mrb[0].mxu0
  %v2335 = vadd.f32 %v1149, %v2334
  %v2336 = vpop.f32.mrb[0].mxu0
  %2337 = vmatprep.mubr.bf16.mxu0 0
  %2338 = vmatmul.mubr.bf16.gmra.mrb[0].mxu0 %v2096
  %v2339 = vpop.f32.mrb[0].mxu0
  %v2340 = vadd.f32 %v1153, %v2339
  %v2341 = vpop.f32.mrb[0].mxu0
  %v2342 = vpop.f32.mrb[0].mxu0
  %v2343 = vadd.f32 %v1157, %v2342
  %v2344 = vpop.f32.mrb[0].mxu0
  %2345 = vmatprep.mubr.bf16.mxu0 0
  %2346 = vmatmul.mubr.bf16.gmra.mrb[0].mxu0 %v2099
  %v2347 = vpop.f32.mrb[0].mxu0
  %v2348 = vadd.f32 %v1161, %v2347
  %v2349 = vpop.f32.mrb[0].mxu0
  %v2350 = vpop.f32.mrb[0].mxu0
  %v2351 = vadd.f32 %v1165, %v2350
  %v2352 = vpop.f32.mrb[0].mxu0
  %2353 = vmatprep.mubr.bf16.mxu0 0
  %2354 = vmatmul.mubr.bf16.gmra.mrb[0].mxu0 %v2102
  %v2355 = vpop.f32.mrb[0].mxu0
  %v2356 = vadd.f32 %v1169, %v2355
  %v2357 = vpop.f32.mrb[0].mxu0
  %v2358 = vpop.f32.mrb[0].mxu0
  %v2359 = vadd.f32 %v1173, %v2358
  %v2360 = vpop.f32.mrb[0].mxu0
  %2361 = vmatprep.mubr.bf16.mxu0 0
  %2362 = vmatmul.mubr.bf16.gmra.mrb[0].mxu0 %v2105
  %v2363 = vpop.f32.mrb[0].mxu0
  %v2364 = vadd.f32 %v1177, %v2363
  %v2365 = vpop.f32.mrb[0].mxu0
  %v2366 = vpop.f32.mrb[0].mxu0
  %v2367 = vadd.f32 %v1181, %v2366
  %v2368 = vpop.f32.mrb[0].mxu0
  %2369 = vmatprep.mubr.bf16.mxu0 0
  %2370 = vmatmul.mubr.bf16.gmra.mrb[0].mxu0 %v2108
  %v2371 = vpop.f32.mrb[0].mxu0
  %v2372 = vadd.f32 %v1185, %v2371
  %v2373 = vpop.f32.mrb[0].mxu0
  %v2374 = vpop.f32.mrb[0].mxu0
  %v2375 = vadd.f32 %v1189, %v2374
  %v2376 = vpop.f32.mrb[0].mxu0
  %2377 = vmatprep.mubr.bf16.mxu0 0
  %2378 = vmatmul.mubr.bf16.gmra.mrb[0].mxu0 %v2111
  %v2379 = vpop.f32.mrb[0].mxu0
  %v2380 = vadd.f32 %v1193, %v2379
  %v2381 = vpop.f32.mrb[0].mxu0
  %v2382 = vpop.f32.mrb[0].mxu0
  %v2383 = vadd.f32 %v1197, %v2382
  %v2384 = vpop.f32.mrb[0].mxu0
  %2385 = vmatprep.mubr.bf16.mxu0 0
  %2386 = vmatmul.mubr.bf16.gmra.mrb[0].mxu0 %v2114
  %v2387 = vpop.f32.mrb[0].mxu0
  %v2388 = vadd.f32 %v1201, %v2387
  %v2389 = vpop.f32.mrb[0].mxu0
  %v2390 = vpop.f32.mrb[0].mxu0
  %v2391 = vadd.f32 %v1205, %v2390
  %v2392 = vpop.f32.mrb[0].mxu0
  %2393 = vmatprep.mubr.bf16.mxu0 0
  %2394 = vmatmul.mubr.bf16.gmra.mrb[0].mxu0 %v2117
  %v2395 = vpop.f32.mrb[0].mxu0
  %v2396 = vadd.f32 %v1209, %v2395
  %v2397 = vpop.f32.mrb[0].mxu0
  %v2398 = vpop.f32.mrb[0].mxu0
  %v2399 = vadd.f32 %v1213, %v2398
  %v2400 = vpop.f32.mrb[0].mxu0
  %2401 = vmatprep.mubr.bf16.mxu0 0
  %2402 = vmatmul.mubr.bf16.gmra.mrb[0].mxu0 %v2120
  %v2403 = vpop.f32.mrb[0].mxu0
  %v2404 = vadd.f32 %v1217, %v2403
  %v2405 = vpop.f32.mrb[0].mxu0
  %v2406 = vpop.f32.mrb[0].mxu0
  %v2407 = vadd.f32 %v1221, %v2406
  %v2408 = vpop.f32.mrb[0].mxu0
  %2409 = vmatprep.mubr.bf16.mxu0 0
  %2410 = vmatmul.mubr.bf16.gmra.mrb[0].mxu0 %v2123
  %v2411 = vpop.f32.mrb[0].mxu0
  %v2412 = vadd.f32 %v1225, %v2411
  %v2413 = vpop.f32.mrb[0].mxu0
  %v2414 = vpop.f32.mrb[0].mxu0
  %v2415 = vadd.f32 %v1229, %v2414
  %v2416 = vpop.f32.mrb[0].mxu0
  %2417 = vmatprep.mubr.bf16.mxu0 0
  %2418 = vmatmul.mubr.bf16.gmra.mrb[0].mxu0 %v2126
  %v2419 = vpop.f32.mrb[0].mxu0
  %v2420 = vadd.f32 %v1233, %v2419
  %v2421 = vpop.f32.mrb[0].mxu0
  %v2422 = vpop.f32.mrb[0].mxu0
  %v2423 = vadd.f32 %v1237, %v2422
  %v2424 = vpop.f32.mrb[0].mxu0
  %2425 = vmatprep.mubr.bf16.mxu0 0
  %2426 = vmatmul.mubr.bf16.gmra.mrb[0].mxu0 %v2129
  %v2427 = vpop.f32.mrb[0].mxu0
  %v2428 = vadd.f32 %v1241, %v2427
  %v2429 = vpop.f32.mrb[0].mxu0
  %v2430 = vpop.f32.mrb[0].mxu0
  %v2431 = vadd.f32 %v1245, %v2430
  %v2432 = vpop.f32.mrb[0].mxu0
  %2433 = vmatprep.mubr.bf16.mxu0 0
  %2434 = vmatmul.mubr.bf16.gmra.mrb[0].mxu0 %v2132
  %v2435 = vpop.f32.mrb[0].mxu0
  %v2436 = vadd.f32 %v1249, %v2435
  %v2437 = vpop.f32.mrb[0].mxu0
  %v2438 = vpop.f32.mrb[0].mxu0
  %v2439 = vadd.f32 %v1253, %v2438
  %v2440 = vpop.f32.mrb[0].mxu0
  %2441 = vmatprep.mubr.bf16.mxu0 0
  %2442 = vmatmul.mubr.bf16.gmra.mrb[0].mxu0 %v2135
  %v2443 = vpop.f32.mrb[0].mxu0
  %v2444 = vadd.f32 %v1257, %v2443
  %v2445 = vpop.f32.mrb[0].mxu0
  %v2446 = vpop.f32.mrb[0].mxu0
  %v2447 = vadd.f32 %v1261, %v2446
  %v2448 = vpop.f32.mrb[0].mxu0
  %2449 = vmatprep.mubr.bf16.mxu0 0
  %2450 = vmatmul.mubr.bf16.gmra.mrb[0].mxu0 %v2138
  %v2451 = vpop.f32.mrb[0].mxu0
  %v2452 = vadd.f32 %v1265, %v2451
  %v2453 = vpop.f32.mrb[0].mxu0
  %v2454 = vpop.f32.mrb[0].mxu0
  %v2455 = vadd.f32 %v1269, %v2454
  %v2456 = vpop.f32.mrb[0].mxu0
  %2457 = vmatprep.mubr.bf16.mxu0 0
  %2458 = vmatmul.mubr.bf16.gmra.mrb[0].mxu0 %v2141
  %v2459 = vpop.f32.mrb[0].mxu0
  %v2460 = vadd.f32 %v1273, %v2459
  %v2461 = vpop.f32.mrb[0].mxu0
  %v2462 = vpop.f32.mrb[0].mxu0
  %v2463 = vadd.f32 %v1277, %v2462
  %v2464 = vpop.f32.mrb[0].mxu0
  %2465 = vmatprep.mubr.bf16.mxu0 0
  %2466 = vmatmul.mubr.bf16.gmra.mrb[0].mxu0 %v2144
  %v2467 = vpop.f32.mrb[0].mxu0
  %v2468 = vadd.f32 %v1281, %v2467
  %v2469 = vpop.f32.mrb[0].mxu0
  %v2470 = vpop.f32.mrb[0].mxu0
  %v2471 = vadd.f32 %v1285, %v2470
  %v2472 = vpop.f32.mrb[0].mxu0
  %2473 = vmatprep.mubr.bf16.mxu0 0
  %2474 = vmatmul.mubr.bf16.gmra.mrb[0].mxu0 %v2147
  %v2475 = vpop.f32.mrb[0].mxu0
  %v2476 = vadd.f32 %v1289, %v2475
  %v2477 = vpop.f32.mrb[0].mxu0
  %v2478 = vpop.f32.mrb[0].mxu0
  %v2479 = vadd.f32 %v1293, %v2478
  %v2480 = vpop.f32.mrb[0].mxu0
  %2481 = vmatprep.mubr.bf16.mxu0 0
  %2482 = vmatmul.mubr.bf16.gmra.mrb[0].mxu0 %v2150
  %v2483 = vpop.f32.mrb[0].mxu0
  %v2484 = vadd.f32 %v1297, %v2483
  %v2485 = vpop.f32.mrb[0].mxu0
  %v2486 = vpop.f32.mrb[0].mxu0
  %v2487 = vadd.f32 %v1301, %v2486
  %v2488 = vpop.f32.mrb[0].mxu0
  %2489 = vmatprep.mubr.bf16.mxu0 0
  %2490 = vmatmul.mubr.bf16.gmra.mrb[0].mxu0 %v2153
  %v2491 = vpop.f32.mrb[0].mxu0
  %v2492 = vadd.f32 %v1305, %v2491
  %v2493 = vpop.f32.mrb[0].mxu0
  %v2494 = vpop.f32.mrb[0].mxu0
  %v2495 = vadd.f32 %v1309, %v2494
  %v2496 = vpop.f32.mrb[0].mxu0
  %2497 = vmatprep.mubr.bf16.mxu0 0
  %2498 = vmatmul.mubr.bf16.gmra.mrb[0].mxu0 %v2156
  %v2499 = vpop.f32.mrb[0].mxu0
  %v2500 = vadd.f32 %v1313, %v2499
  %v2501 = vpop.f32.mrb[0].mxu0
  %v2502 = vpop.f32.mrb[0].mxu0
  %v2503 = vadd.f32 %v1317, %v2502
  %v2504 = vpop.f32.mrb[0].mxu0
  %2505 = vmatprep.mubr.bf16.mxu0 0
  %2506 = vmatmul.mubr.bf16.gmra.mrb[0].mxu0 %v2159
  %v2507 = vpop.f32.mrb[0].mxu0
  %v2508 = vadd.f32 %v1321, %v2507
  %v2509 = vpop.f32.mrb[0].mxu0
  %v2510 = vpop.f32.mrb[0].mxu0
  %v2511 = vadd.f32 %v1325, %v2510
  %v2512 = vpop.f32.mrb[0].mxu0
  %2513 = vmatprep.mubr.bf16.mxu0 0
  %2514 = vmatmul.mubr.bf16.gmra.mrb[0].mxu0 %v2162
  %v2515 = vpop.f32.mrb[0].mxu0
  %v2516 = vadd.f32 %v1329, %v2515
  %v2517 = vpop.f32.mrb[0].mxu0
  %v2518 = vpop.f32.mrb[0].mxu0
  %v2519 = vadd.f32 %v1333, %v2518
  %v2520 = vpop.f32.mrb[0].mxu0
  %2521 = vmatprep.mubr.bf16.mxu0 0
  %2522 = vmatmul.mubr.bf16.gmra.mrb[0].mxu0 %v2165
  %v2523 = vpop.f32.mrb[0].mxu0
  %v2524 = vadd.f32 %v1337, %v2523
  %v2525 = vpop.f32.mrb[0].mxu0
  %v2526 = vpop.f32.mrb[0].mxu0
  %v2527 = vadd.f32 %v1341, %v2526
  %v2528 = vpop.f32.mrb[0].mxu0
  %2529 = vmatprep.mubr.bf16.mxu0 0
  %2530 = vmatmul.mubr.bf16.gmra.mrb[0].mxu0 %v2168
  %v2531 = vpop.f32.mrb[0].mxu0
  %v2532 = vadd.f32 %v1345, %v2531
  %v2533 = vpop.f32.mrb[0].mxu0
  %v2534 = vpop.f32.mrb[0].mxu0
  %v2535 = vadd.f32 %v1349, %v2534
  %v2536 = vpop.f32.mrb[0].mxu0
  %2537 = vmatprep.mubr.bf16.mxu0 0
  %2538 = vmatmul.mubr.bf16.gmra.mrb[0].mxu0 %v2171
  %v2539 = vpop.f32.mrb[0].mxu0
  %v2540 = vadd.f32 %v1353, %v2539
  %v2541 = vpop.f32.mrb[0].mxu0
  %v2542 = vpop.f32.mrb[0].mxu0
  %v2543 = vadd.f32 %v1357, %v2542
  %v2544 = vpop.f32.mrb[0].mxu0
  %2545 = vmatprep.mubr.bf16.mxu0 0
  %2546 = vmatmul.mubr.bf16.gmra.mrb[0].mxu0 %v2174
  %v2547 = vpop.f32.mrb[0].mxu0
  %v2548 = vadd.f32 %v1361, %v2547
  %v2549 = vpop.f32.mrb[0].mxu0
  %v2550 = vpop.f32.mrb[0].mxu0
  %v2551 = vadd.f32 %v1365, %v2550
  %v2552 = vpop.f32.mrb[0].mxu0
  %2553 = vmatprep.mubr.bf16.mxu0 0
  %2554 = vmatmul.mubr.bf16.gmra.mrb[0].mxu0 %v2177
  %v2555 = vpop.f32.mrb[0].mxu0
  %v2556 = vadd.f32 %v1369, %v2555
  %v2557 = vpop.f32.mrb[0].mxu0
  %v2558 = vpop.f32.mrb[0].mxu0
  %v2559 = vadd.f32 %v1373, %v2558
  %v2560 = vpop.f32.mrb[0].mxu0
  %2561 = vmatprep.mubr.bf16.mxu0 0
  %2562 = vmatmul.mubr.bf16.gmra.mrb[0].mxu0 %v2180
  %v2563 = vpop.f32.mrb[0].mxu0
  %v2564 = vadd.f32 %v1377, %v2563
  %v2565 = vpop.f32.mrb[0].mxu0
  %v2566 = vpop.f32.mrb[0].mxu0
  %v2567 = vadd.f32 %v1381, %v2566
  %v2568 = vpop.f32.mrb[0].mxu0
  %2569 = vmatprep.mubr.bf16.mxu0 0
  %2570 = vmatmul.mubr.bf16.gmra.mrb[0].mxu0 %v2183
  %v2571 = vpop.f32.mrb[0].mxu0
  %v2572 = vadd.f32 %v1385, %v2571
  %v2573 = vpop.f32.mrb[0].mxu0
  %v2574 = vpop.f32.mrb[0].mxu0
  %v2575 = vadd.f32 %v1389, %v2574
  %v2576 = vpop.f32.mrb[0].mxu0
  %2577 = vmatprep.mubr.bf16.mxu0 0
  %2578 = vmatmul.mubr.bf16.gmra.mrb[0].mxu0 %v2186
  %v2579 = vpop.f32.mrb[0].mxu0
  %v2580 = vadd.f32 %v1393, %v2579
  %v2581 = vpop.f32.mrb[0].mxu0
  %v2582 = vpop.f32.mrb[0].mxu0
  %v2583 = vadd.f32 %v1397, %v2582
  %v2584 = vpop.f32.mrb[0].mxu0
  %2585 = vmatprep.mubr.bf16.mxu0 0
  %2586 = vmatmul.mubr.bf16.gmra.mrb[0].mxu0 %v2189
  %v2587 = vpop.f32.mrb[0].mxu0
  %v2588 = vadd.f32 %v1401, %v2587
  %v2589 = vpop.f32.mrb[0].mxu0
  %v2590 = vpop.f32.mrb[0].mxu0
  %v2591 = vadd.f32 %v1405, %v2590
  %v2592 = vpop.f32.mrb[0].mxu0
  %2593 = vmatprep.mubr.bf16.mxu0 0
  %2594 = vmatmul.mubr.bf16.gmra.mrb[0].mxu0 %v2192
  %v2595 = vpop.f32.mrb[0].mxu0
  %v2596 = vadd.f32 %v1409, %v2595
  %v2597 = vpop.f32.mrb[0].mxu0
  %v2598 = vpop.f32.mrb[0].mxu0
  %v2599 = vadd.f32 %v1413, %v2598
  %v2600 = vpop.f32.mrb[0].mxu0
  %2601 = vmatprep.mubr.bf16.mxu0 0
  %2602 = vmatmul.mubr.bf16.gmra.mrb[0].mxu0 %v2195
  %v2603 = vpop.f32.mrb[0].mxu0
  %v2604 = vadd.f32 %v1417, %v2603
  %v2605 = vpop.f32.mrb[0].mxu0
  %v2606 = vpop.f32.mrb[0].mxu0
  %v2607 = vadd.f32 %v1421, %v2606
  %v2608 = vpop.f32.mrb[0].mxu0
  %2609 = vmatprep.mubr.bf16.mxu0 0
  %2610 = vmatmul.mubr.bf16.gmra.mrb[0].mxu0 %v2198
  %v2611 = vpop.f32.mrb[0].mxu0
  %v2612 = vadd.f32 %v1425, %v2611
  %v2613 = vpop.f32.mrb[0].mxu0
  %v2614 = vpop.f32.mrb[0].mxu0
  %v2615 = vadd.f32 %v1429, %v2614
  %v2616 = vpop.f32.mrb[0].mxu0
  %2617 = vmatprep.mubr.bf16.mxu0 0
  %2618 = vmatmul.mubr.bf16.gmra.mrb[0].mxu0 %v2201
  %v2619 = vpop.f32.mrb[0].mxu0
  %v2620 = vadd.f32 %v1433, %v2619
  %v2621 = vpop.f32.mrb[0].mxu0
  %v2622 = vpop.f32.mrb[0].mxu0
  %v2623 = vadd.f32 %v1437, %v2622
  %v2624 = vpop.f32.mrb[0].mxu0
  %2625 = vmatprep.mubr.bf16.mxu0 0
  %2626 = vmatmul.mubr.bf16.gmra.mrb[0].mxu0 %v2204
  %v2627 = vpop.f32.mrb[0].mxu0
  %v2628 = vadd.f32 %v1441, %v2627
  %v2629 = vpop.f32.mrb[0].mxu0
  %v2630 = vpop.f32.mrb[0].mxu0
  %v2631 = vadd.f32 %v1445, %v2630
  %v2632 = vpop.f32.mrb[0].mxu0
  %2633 = vmatprep.mubr.bf16.mxu0 0
  %2634 = vmatmul.mubr.bf16.gmra.mrb[0].mxu0 %v2207
  %v2635 = vpop.f32.mrb[0].mxu0
  %v2636 = vadd.f32 %v1449, %v2635
  %v2637 = vpop.f32.mrb[0].mxu0
  %v2638 = vpop.f32.mrb[0].mxu0
  %v2639 = vadd.f32 %v1453, %v2638
  %v2640 = vpop.f32.mrb[0].mxu0
  %2641 = vmatprep.mubr.bf16.mxu0 0
  %2642 = vmatmul.mubr.bf16.gmra.mrb[0].mxu0 %v2210
  %v2643 = vpop.f32.mrb[0].mxu0
  %v2644 = vadd.f32 %v1457, %v2643
  %v2645 = vpop.f32.mrb[0].mxu0
  %v2646 = vpop.f32.mrb[0].mxu0
  %v2647 = vadd.f32 %v1461, %v2646
  %v2648 = vpop.f32.mrb[0].mxu0
  %2649 = vmatprep.mubr.bf16.mxu0 0
  %2650 = vmatmul.mubr.bf16.gmra.mrb[0].mxu0 %v2213
  %v2651 = vpop.f32.mrb[0].mxu0
  %v2652 = vadd.f32 %v1465, %v2651
  %v2653 = vpop.f32.mrb[0].mxu0
  %v2654 = vpop.f32.mrb[0].mxu0
  %v2655 = vadd.f32 %v1469, %v2654
  %v2656 = vpop.f32.mrb[0].mxu0
  %2657 = vmatprep.mubr.bf16.mxu0 0
  %2658 = vmatmul.mubr.bf16.gmra.mrb[0].mxu0 %v2216
  %v2659 = vpop.f32.mrb[0].mxu0
  %v2660 = vadd.f32 %v1473, %v2659
  %v2661 = vpop.f32.mrb[0].mxu0
  %v2662 = vpop.f32.mrb[0].mxu0
  %v2663 = vadd.f32 %v1477, %v2662
  %v2664 = vpop.f32.mrb[0].mxu0
  %2665 = vmatprep.mubr.bf16.mxu0 0
  %2666 = vmatmul.mubr.bf16.gmra.mrb[0].mxu0 %v2219
  %v2667 = vpop.f32.mrb[0].mxu0
  %v2668 = vadd.f32 %v1481, %v2667
  %v2669 = vpop.f32.mrb[0].mxu0
  %v2670 = vpop.f32.mrb[0].mxu0
  %v2671 = vadd.f32 %v1485, %v2670
  %v2672 = vpop.f32.mrb[0].mxu0
  %2673 = vmatprep.mubr.bf16.mxu0 0
  %2674 = vmatmul.mubr.bf16.gmra.mrb[0].mxu0 %v2222
  %v2675 = vpop.f32.mrb[0].mxu0
  %v2676 = vadd.f32 %v1489, %v2675
  %v2677 = vpop.f32.mrb[0].mxu0
  %v2678 = vpop.f32.mrb[0].mxu0
  %v2679 = vadd.f32 %v1493, %v2678
  %v2680 = vpop.f32.mrb[0].mxu0
  %2681 = vmatprep.mubr.bf16.mxu0 0
  %2682 = vmatmul.mubr.bf16.gmra.mrb[0].mxu0 %v2225
  %v2683 = vpop.f32.mrb[0].mxu0
  %v2684 = vadd.f32 %v1497, %v2683
  %v2685 = vpop.f32.mrb[0].mxu0
  %v2686 = vpop.f32.mrb[0].mxu0
  %v2687 = vadd.f32 %v1501, %v2686
  %v2688 = vpop.f32.mrb[0].mxu0
  %2689 = vmatprep.mubr.bf16.mxu0 0
  %2690 = vmatmul.mubr.bf16.gmra.mrb[0].mxu0 %v2228
  %v2691 = vpop.f32.mrb[0].mxu0
  %v2692 = vadd.f32 %v1505, %v2691
  %v2693 = vpop.f32.mrb[0].mxu0
  %v2694 = vpop.f32.mrb[0].mxu0
  %v2695 = vadd.f32 %v1509, %v2694
  %v2696 = vpop.f32.mrb[0].mxu0
  %2697 = vmatprep.mubr.bf16.mxu0 0
  %2698 = vmatmul.mubr.bf16.gmra.mrb[0].mxu0 %v2231
  %v2699 = vpop.f32.mrb[0].mxu0
  %v2700 = vadd.f32 %v1513, %v2699
  %v2701 = vpop.f32.mrb[0].mxu0
  %v2702 = vpop.f32.mrb[0].mxu0
  %v2703 = vadd.f32 %v1517, %v2702
  %v2704 = vpop.f32.mrb[0].mxu0
  %2705 = vmatprep.mubr.bf16.mxu0 0
  %2706 = vmatmul.mubr.bf16.gmra.mrb[0].mxu0 %v2234
  %v2707 = vpop.f32.mrb[0].mxu0
  %v2708 = vadd.f32 %v1521, %v2707
  %v2709 = vpop.f32.mrb[0].mxu0
  %v2710 = vpop.f32.mrb[0].mxu0
  %v2711 = vadd.f32 %v1525, %v2710
  %v2712 = vpop.f32.mrb[0].mxu0
  %2713 = vmatprep.mubr.bf16.mxu0 0
  %2714 = vmatmul.mubr.bf16.gmra.mrb[0].mxu0 %v2237
  %v2715 = vpop.f32.mrb[0].mxu0
  %v2716 = vadd.f32 %v1529, %v2715
  %v2717 = vpop.f32.mrb[0].mxu0
  %v2718 = vpop.f32.mrb[0].mxu0
  %v2719 = vadd.f32 %v1533, %v2718
  %v2720 = vpop.f32.mrb[0].mxu0
  %2721 = vmatprep.mubr.bf16.mxu0 0
  %2722 = vmatmul.mubr.bf16.gmra.mrb[0].mxu0 %v2240
  %v2723 = vpop.f32.mrb[0].mxu0
  %v2724 = vadd.f32 %v1537, %v2723
  %v2725 = vpop.f32.mrb[0].mxu0
  %v2726 = vpop.f32.mrb[0].mxu0
  %v2727 = vadd.f32 %v1541, %v2726
  %v2728 = vpop.f32.mrb[0].mxu0
  %2729 = vmatprep.mubr.bf16.mxu0 0
  %2730 = vmatmul.mubr.bf16.gmra.mrb[0].mxu0 %v2243
  %v2731 = vpop.f32.mrb[0].mxu0
  %v2732 = vadd.f32 %v1545, %v2731
  %v2733 = vpop.f32.mrb[0].mxu0
  %v2734 = vpop.f32.mrb[0].mxu0
  %v2735 = vadd.f32 %v1549, %v2734
  %v2736 = vpop.f32.mrb[0].mxu0
  %2737 = vmatprep.mubr.bf16.mxu0 0
  %2738 = vmatmul.mubr.bf16.gmra.mrb[0].mxu0 %v2246
  %v2739 = vpop.f32.mrb[0].mxu0
  %v2740 = vadd.f32 %v1553, %v2739
  %v2741 = vpop.f32.mrb[0].mxu0
  %v2742 = vpop.f32.mrb[0].mxu0
  %v2743 = vadd.f32 %v1557, %v2742
  %v2744 = vpop.f32.mrb[0].mxu0
  %2745 = vmatprep.mubr.bf16.mxu0 0
  %2746 = vmatmul.mubr.bf16.gmra.mrb[0].mxu0 %v2249
  %v2747 = vpop.f32.mrb[0].mxu0
  %v2748 = vadd.f32 %v1561, %v2747
  %v2749 = vpop.f32.mrb[0].mxu0
  %v2750 = vpop.f32.mrb[0].mxu0
  %v2751 = vadd.f32 %v1565, %v2750
  %v2752 = vpop.f32.mrb[0].mxu0
  %2753 = vmatprep.mubr.bf16.mxu0 0
  %2754 = vmatmul.mubr.bf16.gmra.mrb[0].mxu0 %v2252
  %v2755 = vpop.f32.mrb[0].mxu0
  %v2756 = vadd.f32 %v1569, %v2755
  %v2757 = vpop.f32.mrb[0].mxu0
  %v2758 = vpop.f32.mrb[0].mxu0
  %v2759 = vadd.f32 %v1573, %v2758
  %v2760 = vpop.f32.mrb[0].mxu0
  %2761 = vmatprep.mubr.bf16.mxu0 0
  %2762 = vmatmul.mubr.bf16.gmra.mrb[0].mxu0 %v2255
  %v2763 = vpop.f32.mrb[0].mxu0
  %v2764 = vadd.f32 %v1577, %v2763
  %v2765 = vpop.f32.mrb[0].mxu0
  %v2766 = vpop.f32.mrb[0].mxu0
  %v2767 = vadd.f32 %v1581, %v2766
  %v2768 = vpop.f32.mrb[0].mxu0
  %2769 = vmatprep.mubr.bf16.mxu0 0
  %2770 = vmatmul.mubr.bf16.gmra.mrb[0].mxu0 %v2258
  %v2771 = vpop.f32.mrb[0].mxu0
  %v2772 = vadd.f32 %v1585, %v2771
  %v2773 = vpop.f32.mrb[0].mxu0
  %v2774 = vpop.f32.mrb[0].mxu0
  %v2775 = vadd.f32 %v1589, %v2774
  %v2776 = vpop.f32.mrb[0].mxu0
  %2777 = vmatprep.mubr.bf16.mxu0 0
  %2778 = vmatmul.mubr.bf16.gmra.mrb[0].mxu0 %v2261
  %v2779 = vpop.f32.mrb[0].mxu0
  %v2780 = vadd.f32 %v1593, %v2779
  %v2781 = vpop.f32.mrb[0].mxu0
  %v2782 = vpop.f32.mrb[0].mxu0
  %v2783 = vadd.f32 %v1597, %v2782
  %v2784 = vpop.f32.mrb[0].mxu0
  %2785 = vmatprep.mubr.bf16.mxu0 0
  %2786 = vmatmul.mubr.bf16.gmra.mrb[0].mxu0 %v2264
  %v2787 = vpop.f32.mrb[0].mxu0
  %v2788 = vadd.f32 %v1601, %v2787
  %v2789 = vpop.f32.mrb[0].mxu0
  %v2790 = vpop.f32.mrb[0].mxu0
  %v2791 = vadd.f32 %v1605, %v2790
  %v2792 = vpop.f32.mrb[0].mxu0
  %2793 = vmatprep.mubr.bf16.mxu0 0
  %2794 = vmatmul.mubr.bf16.gmra.mrb[0].mxu0 %v2267
  %v2795 = vpop.f32.mrb[0].mxu0
  %v2796 = vadd.f32 %v1609, %v2795
  %v2797 = vpop.f32.mrb[0].mxu0
  %v2798 = vpop.f32.mrb[0].mxu0
  %v2799 = vadd.f32 %v1613, %v2798
  %v2800 = vpop.f32.mrb[0].mxu0
  %2801 = vmatprep.mubr.bf16.mxu0 0
  %2802 = vmatmul.mubr.bf16.gmra.mrb[0].mxu0 %v2270
  %v2803 = vpop.f32.mrb[0].mxu0
  %v2804 = vadd.f32 %v1617, %v2803
  %v2805 = vpop.f32.mrb[0].mxu0
  %v2806 = vpop.f32.mrb[0].mxu0
  %v2807 = vadd.f32 %v1621, %v2806
  %v2808 = vpop.f32.mrb[0].mxu0
  %2809 = vmatprep.mubr.bf16.mxu0 0
  %2810 = vmatmul.mubr.bf16.gmra.mrb[0].mxu0 %v2273
  %v2811 = vpop.f32.mrb[0].mxu0
  %v2812 = vadd.f32 %v1625, %v2811
  %v2813 = vpop.f32.mrb[0].mxu0
  %v2814 = vpop.f32.mrb[0].mxu0
  %v2815 = vadd.f32 %v1629, %v2814
  %v2816 = vpop.f32.mrb[0].mxu0
  %2817 = vmatprep.mubr.bf16.mxu0 0
  %2818 = vmatmul.mubr.bf16.gmra.mrb[0].mxu0 %v2276
  %v2819 = vpop.f32.mrb[0].mxu0
  %v2820 = vadd.f32 %v1633, %v2819
  %v2821 = vpop.f32.mrb[0].mxu0
  %v2822 = vpop.f32.mrb[0].mxu0
  %v2823 = vadd.f32 %v1637, %v2822
  %v2824 = vpop.f32.mrb[0].mxu0
  %2825 = vdwg.mxu0
  %vm2826 = vcmp.ge.f32.partialorder %v2316, 1.0
  %vm2827 = vcmp.ge.f32.partialorder %v2319, 1.0
  %vm2828 = vcmp.ge.f32.partialorder %v2324, 1.0
  %vm2829 = vcmp.ge.f32.partialorder %v2327, 1.0
  %vm2830 = vcmp.ge.f32.partialorder %v2332, 1.0
  %vm2831 = vcmp.ge.f32.partialorder %v2335, 1.0
  %vm2832 = vcmp.ge.f32.partialorder %v2340, 1.0
  %vm2833 = vcmp.ge.f32.partialorder %v2343, 1.0
  %vm2834 = vcmp.ge.f32.partialorder %v2348, 1.0
  %vm2835 = vcmp.ge.f32.partialorder %v2351, 1.0
  %vm2836 = vcmp.ge.f32.partialorder %v2356, 1.0
  %vm2837 = vcmp.ge.f32.partialorder %v2359, 1.0
  %vm2838 = vcmp.ge.f32.partialorder %v2364, 1.0
  %vm2839 = vcmp.ge.f32.partialorder %v2367, 1.0
  %vm2840 = vcmp.ge.f32.partialorder %v2372, 1.0
  %vm2841 = vcmp.ge.f32.partialorder %v2375, 1.0
  %vm2842 = vcmp.ge.f32.partialorder %v2380, 1.0
  %vm2843 = vcmp.ge.f32.partialorder %v2383, 1.0
  %vm2844 = vcmp.ge.f32.partialorder %v2388, 1.0
  %vm2845 = vcmp.ge.f32.partialorder %v2391, 1.0
  %vm2846 = vcmp.ge.f32.partialorder %v2396, 1.0
  %vm2847 = vcmp.ge.f32.partialorder %v2399, 1.0
  %vm2848 = vcmp.ge.f32.partialorder %v2404, 1.0
  %vm2849 = vcmp.ge.f32.partialorder %v2407, 1.0
  %vm2850 = vcmp.ge.f32.partialorder %v2412, 1.0
  %vm2851 = vcmp.ge.f32.partialorder %v2415, 1.0
  %vm2852 = vcmp.ge.f32.partialorder %v2420, 1.0
  %vm2853 = vcmp.ge.f32.partialorder %v2423, 1.0
  %vm2854 = vcmp.ge.f32.partialorder %v2428, 1.0
  %vm2855 = vcmp.ge.f32.partialorder %v2431, 1.0
  %vm2856 = vcmp.ge.f32.partialorder %v2436, 1.0
  %vm2857 = vcmp.ge.f32.partialorder %v2439, 1.0
  %vm2858 = vcmp.ge.f32.partialorder %v2444, 1.0
  %vm2859 = vcmp.ge.f32.partialorder %v2447, 1.0
  %vm2860 = vcmp.ge.f32.partialorder %v2452, 1.0
  %vm2861 = vcmp.ge.f32.partialorder %v2455, 1.0
  %vm2862 = vcmp.ge.f32.partialorder %v2460, 1.0
  %vm2863 = vcmp.ge.f32.partialorder %v2463, 1.0
  %vm2864 = vcmp.ge.f32.partialorder %v2468, 1.0
  %vm2865 = vcmp.ge.f32.partialorder %v2471, 1.0
  %vm2866 = vcmp.ge.f32.partialorder %v2476, 1.0
  %vm2867 = vcmp.ge.f32.partialorder %v2479, 1.0
  %vm2868 = vcmp.ge.f32.partialorder %v2484, 1.0
  %vm2869 = vcmp.ge.f32.partialorder %v2487, 1.0
  %vm2870 = vcmp.ge.f32.partialorder %v2492, 1.0
  %vm2871 = vcmp.ge.f32.partialorder %v2495, 1.0
  %vm2872 = vcmp.ge.f32.partialorder %v2500, 1.0
  %vm2873 = vcmp.ge.f32.partialorder %v2503, 1.0
  %vm2874 = vcmp.ge.f32.partialorder %v2508, 1.0
  %vm2875 = vcmp.ge.f32.partialorder %v2511, 1.0
  %vm2876 = vcmp.ge.f32.partialorder %v2516, 1.0
  %vm2877 = vcmp.ge.f32.partialorder %v2519, 1.0
  %vm2878 = vcmp.ge.f32.partialorder %v2524, 1.0
  %vm2879 = vcmp.ge.f32.partialorder %v2527, 1.0
  %vm2880 = vcmp.ge.f32.partialorder %v2532, 1.0
  %vm2881 = vcmp.ge.f32.partialorder %v2535, 1.0
  %vm2882 = vcmp.ge.f32.partialorder %v2540, 1.0
  %vm2883 = vcmp.ge.f32.partialorder %v2543, 1.0
  %vm2884 = vcmp.ge.f32.partialorder %v2548, 1.0
  %vm2885 = vcmp.ge.f32.partialorder %v2551, 1.0
  %vm2886 = vcmp.ge.f32.partialorder %v2556, 1.0
  %vm2887 = vcmp.ge.f32.partialorder %v2559, 1.0
  %vm2888 = vcmp.ge.f32.partialorder %v2564, 1.0
  %vm2889 = vcmp.ge.f32.partialorder %v2567, 1.0
  %vm2890 = vcmp.ge.f32.partialorder %v2572, 1.0
  %vm2891 = vcmp.ge.f32.partialorder %v2575, 1.0
  %vm2892 = vcmp.ge.f32.partialorder %v2580, 1.0
  %vm2893 = vcmp.ge.f32.partialorder %v2583, 1.0
  %vm2894 = vcmp.ge.f32.partialorder %v2588, 1.0
  %vm2895 = vcmp.ge.f32.partialorder %v2591, 1.0
  %vm2896 = vcmp.ge.f32.partialorder %v2596, 1.0
  %vm2897 = vcmp.ge.f32.partialorder %v2599, 1.0
  %vm2898 = vcmp.ge.f32.partialorder %v2604, 1.0
  %vm2899 = vcmp.ge.f32.partialorder %v2607, 1.0
  %vm2900 = vcmp.ge.f32.partialorder %v2612, 1.0
  %vm2901 = vcmp.ge.f32.partialorder %v2615, 1.0
  %vm2902 = vcmp.ge.f32.partialorder %v2620, 1.0
  %vm2903 = vcmp.ge.f32.partialorder %v2623, 1.0
  %vm2904 = vcmp.ge.f32.partialorder %v2628, 1.0
  %vm2905 = vcmp.ge.f32.partialorder %v2631, 1.0
  %vm2906 = vcmp.ge.f32.partialorder %v2636, 1.0
  %vm2907 = vcmp.ge.f32.partialorder %v2639, 1.0
  %vm2908 = vcmp.ge.f32.partialorder %v2644, 1.0
  %vm2909 = vcmp.ge.f32.partialorder %v2647, 1.0
  %vm2910 = vcmp.ge.f32.partialorder %v2652, 1.0
  %vm2911 = vcmp.ge.f32.partialorder %v2655, 1.0
  %vm2912 = vcmp.ge.f32.partialorder %v2660, 1.0
  %vm2913 = vcmp.ge.f32.partialorder %v2663, 1.0
  %vm2914 = vcmp.ge.f32.partialorder %v2668, 1.0
  %vm2915 = vcmp.ge.f32.partialorder %v2671, 1.0
  %vm2916 = vcmp.ge.f32.partialorder %v2676, 1.0
  %vm2917 = vcmp.ge.f32.partialorder %v2679, 1.0
  %vm2918 = vcmp.ge.f32.partialorder %v2684, 1.0
  %vm2919 = vcmp.ge.f32.partialorder %v2687, 1.0
  %vm2920 = vcmp.ge.f32.partialorder %v2692, 1.0
  %vm2921 = vcmp.ge.f32.partialorder %v2695, 1.0
  %vm2922 = vcmp.ge.f32.partialorder %v2700, 1.0
  %vm2923 = vcmp.ge.f32.partialorder %v2703, 1.0
  %vm2924 = vcmp.ge.f32.partialorder %v2708, 1.0
  %vm2925 = vcmp.ge.f32.partialorder %v2711, 1.0
  %vm2926 = vcmp.ge.f32.partialorder %v2716, 1.0
  %vm2927 = vcmp.ge.f32.partialorder %v2719, 1.0
  %vm2928 = vcmp.ge.f32.partialorder %v2724, 1.0
  %vm2929 = vcmp.ge.f32.partialorder %v2727, 1.0
  %vm2930 = vcmp.ge.f32.partialorder %v2732, 1.0
  %vm2931 = vcmp.ge.f32.partialorder %v2735, 1.0
  %vm2932 = vcmp.ge.f32.partialorder %v2740, 1.0
  %vm2933 = vcmp.ge.f32.partialorder %v2743, 1.0
  %vm2934 = vcmp.ge.f32.partialorder %v2748, 1.0
  %vm2935 = vcmp.ge.f32.partialorder %v2751, 1.0
  %vm2936 = vcmp.ge.f32.partialorder %v2756, 1.0
  %vm2937 = vcmp.ge.f32.partialorder %v2759, 1.0
  %vm2938 = vcmp.ge.f32.partialorder %v2764, 1.0
  %vm2939 = vcmp.ge.f32.partialorder %v2767, 1.0
  %vm2940 = vcmp.ge.f32.partialorder %v2772, 1.0
  %vm2941 = vcmp.ge.f32.partialorder %v2775, 1.0
  %vm2942 = vcmp.ge.f32.partialorder %v2780, 1.0
  %vm2943 = vcmp.ge.f32.partialorder %v2783, 1.0
  %vm2944 = vcmp.ge.f32.partialorder %v2788, 1.0
  %vm2945 = vcmp.ge.f32.partialorder %v2791, 1.0
  %vm2946 = vcmp.ge.f32.partialorder %v2796, 1.0
  %vm2947 = vcmp.ge.f32.partialorder %v2799, 1.0
  %vm2948 = vcmp.ge.f32.partialorder %v2804, 1.0
  %vm2949 = vcmp.ge.f32.partialorder %v2807, 1.0
  %vm2950 = vcmp.ge.f32.partialorder %v2812, 1.0
  %vm2951 = vcmp.ge.f32.partialorder %v2815, 1.0
  %vm2952 = vcmp.ge.f32.partialorder %v2820, 1.0
  %vm2953 = vcmp.ge.f32.partialorder %v2823, 1.0
  %v2954 = vsel %vm2826, 1, 0
  %v2955 = vsel %vm2827, 1, 0
  %v2956 = vsel %vm2828, 1, 0
  %v2957 = vsel %vm2829, 1, 0
  %v2958 = vsel %vm2830, 1, 0
  %v2959 = vsel %vm2831, 1, 0
  %v2960 = vsel %vm2832, 1, 0
  %v2961 = vsel %vm2833, 1, 0
  %v2962 = vsel %vm2834, 1, 0
  %v2963 = vsel %vm2835, 1, 0
  %v2964 = vsel %vm2836, 1, 0
  %v2965 = vsel %vm2837, 1, 0
  %v2966 = vsel %vm2838, 1, 0
  %v2967 = vsel %vm2839, 1, 0
  %v2968 = vsel %vm2840, 1, 0
  %v2969 = vsel %vm2841, 1, 0
  %v2970 = vsel %vm2842, 1, 0
  %v2971 = vsel %vm2843, 1, 0
  %v2972 = vsel %vm2844, 1, 0
  %v2973 = vsel %vm2845, 1, 0
  %v2974 = vsel %vm2846, 1, 0
  %v2975 = vsel %vm2847, 1, 0
  %v2976 = vsel %vm2848, 1, 0
  %v2977 = vsel %vm2849, 1, 0
  %v2978 = vsel %vm2850, 1, 0
  %v2979 = vsel %vm2851, 1, 0
  %v2980 = vsel %vm2852, 1, 0
  %v2981 = vsel %vm2853, 1, 0
  %v2982 = vsel %vm2854, 1, 0
  %v2983 = vsel %vm2855, 1, 0
  %v2984 = vsel %vm2856, 1, 0
  %v2985 = vsel %vm2857, 1, 0
  %v2986 = vsel %vm2858, 1, 0
  %v2987 = vsel %vm2859, 1, 0
  %v2988 = vsel %vm2860, 1, 0
  %v2989 = vsel %vm2861, 1, 0
  %v2990 = vsel %vm2862, 1, 0
  %v2991 = vsel %vm2863, 1, 0
  %v2992 = vsel %vm2864, 1, 0
  %v2993 = vsel %vm2865, 1, 0
  %v2994 = vsel %vm2866, 1, 0
  %v2995 = vsel %vm2867, 1, 0
  %v2996 = vsel %vm2868, 1, 0
  %v2997 = vsel %vm2869, 1, 0
  %v2998 = vsel %vm2870, 1, 0
  %v2999 = vsel %vm2871, 1, 0
  %v3000 = vsel %vm2872, 1, 0
  %v3001 = vsel %vm2873, 1, 0
  %v3002 = vsel %vm2874, 1, 0
  %v3003 = vsel %vm2875, 1, 0
  %v3004 = vsel %vm2876, 1, 0
  %v3005 = vsel %vm2877, 1, 0
  %v3006 = vsel %vm2878, 1, 0
  %v3007 = vsel %vm2879, 1, 0
  %v3008 = vsel %vm2880, 1, 0
  %v3009 = vsel %vm2881, 1, 0
  %v3010 = vsel %vm2882, 1, 0
  %v3011 = vsel %vm2883, 1, 0
  %v3012 = vsel %vm2884, 1, 0
  %v3013 = vsel %vm2885, 1, 0
  %v3014 = vsel %vm2886, 1, 0
  %v3015 = vsel %vm2887, 1, 0
  %v3016 = vsel %vm2888, 1, 0
  %v3017 = vsel %vm2889, 1, 0
  %v3018 = vsel %vm2890, 1, 0
  %v3019 = vsel %vm2891, 1, 0
  %v3020 = vsel %vm2892, 1, 0
  %v3021 = vsel %vm2893, 1, 0
  %v3022 = vsel %vm2894, 1, 0
  %v3023 = vsel %vm2895, 1, 0
  %v3024 = vsel %vm2896, 1, 0
  %v3025 = vsel %vm2897, 1, 0
  %v3026 = vsel %vm2898, 1, 0
  %v3027 = vsel %vm2899, 1, 0
  %v3028 = vsel %vm2900, 1, 0
  %v3029 = vsel %vm2901, 1, 0
  %v3030 = vsel %vm2902, 1, 0
  %v3031 = vsel %vm2903, 1, 0
  %v3032 = vsel %vm2904, 1, 0
  %v3033 = vsel %vm2905, 1, 0
  %v3034 = vsel %vm2906, 1, 0
  %v3035 = vsel %vm2907, 1, 0
  %v3036 = vsel %vm2908, 1, 0
  %v3037 = vsel %vm2909, 1, 0
  %v3038 = vsel %vm2910, 1, 0
  %v3039 = vsel %vm2911, 1, 0
  %v3040 = vsel %vm2912, 1, 0
  %v3041 = vsel %vm2913, 1, 0
  %v3042 = vsel %vm2914, 1, 0
  %v3043 = vsel %vm2915, 1, 0
  %v3044 = vsel %vm2916, 1, 0
  %v3045 = vsel %vm2917, 1, 0
  %v3046 = vsel %vm2918, 1, 0
  %v3047 = vsel %vm2919, 1, 0
  %v3048 = vsel %vm2920, 1, 0
  %v3049 = vsel %vm2921, 1, 0
  %v3050 = vsel %vm2922, 1, 0
  %v3051 = vsel %vm2923, 1, 0
  %v3052 = vsel %vm2924, 1, 0
  %v3053 = vsel %vm2925, 1, 0
  %v3054 = vsel %vm2926, 1, 0
  %v3055 = vsel %vm2927, 1, 0
  %v3056 = vsel %vm2928, 1, 0
  %v3057 = vsel %vm2929, 1, 0
  %v3058 = vsel %vm2930, 1, 0
  %v3059 = vsel %vm2931, 1, 0
  %v3060 = vsel %vm2932, 1, 0
  %v3061 = vsel %vm2933, 1, 0
  %v3062 = vsel %vm2934, 1, 0
  %v3063 = vsel %vm2935, 1, 0
  %v3064 = vsel %vm2936, 1, 0
  %v3065 = vsel %vm2937, 1, 0
  %v3066 = vsel %vm2938, 1, 0
  %v3067 = vsel %vm2939, 1, 0
  %v3068 = vsel %vm2940, 1, 0
  %v3069 = vsel %vm2941, 1, 0
  %v3070 = vsel %vm2942, 1, 0
  %v3071 = vsel %vm2943, 1, 0
  %v3072 = vsel %vm2944, 1, 0
  %v3073 = vsel %vm2945, 1, 0
  %v3074 = vsel %vm2946, 1, 0
  %v3075 = vsel %vm2947, 1, 0
  %v3076 = vsel %vm2948, 1, 0
  %v3077 = vsel %vm2949, 1, 0
  %v3078 = vsel %vm2950, 1, 0
  %v3079 = vsel %vm2951, 1, 0
  %v3080 = vsel %vm2952, 1, 0
  %v3081 = vsel %vm2953, 1, 0
  %v3082 = vcvt.s32.f32 %v2954
  %v3083 = vcvt.s32.f32 %v2955
  %v3084 = vcvt.s32.f32 %v2956
  %v3085 = vcvt.s32.f32 %v2957
  %v3086 = vcvt.s32.f32 %v2958
  %v3087 = vcvt.s32.f32 %v2959
  %v3088 = vcvt.s32.f32 %v2960
  %v3089 = vcvt.s32.f32 %v2961
  %v3090 = vcvt.s32.f32 %v2962
  %v3091 = vcvt.s32.f32 %v2963
  %v3092 = vcvt.s32.f32 %v2964
  %v3093 = vcvt.s32.f32 %v2965
  %v3094 = vcvt.s32.f32 %v2966
  %v3095 = vcvt.s32.f32 %v2967
  %v3096 = vcvt.s32.f32 %v2968
  %v3097 = vcvt.s32.f32 %v2969
  %v3098 = vcvt.s32.f32 %v2970
  %v3099 = vcvt.s32.f32 %v2971
  %v3100 = vcvt.s32.f32 %v2972
  %v3101 = vcvt.s32.f32 %v2973
  %v3102 = vcvt.s32.f32 %v2974
  %v3103 = vcvt.s32.f32 %v2975
  %v3104 = vcvt.s32.f32 %v2976
  %v3105 = vcvt.s32.f32 %v2977
  %v3106 = vcvt.s32.f32 %v2978
  %v3107 = vcvt.s32.f32 %v2979
  %v3108 = vcvt.s32.f32 %v2980
  %v3109 = vcvt.s32.f32 %v2981
  %v3110 = vcvt.s32.f32 %v2982
  %v3111 = vcvt.s32.f32 %v2983
  %v3112 = vcvt.s32.f32 %v2984
  %v3113 = vcvt.s32.f32 %v2985
  %v3114 = vcvt.s32.f32 %v2986
  %v3115 = vcvt.s32.f32 %v2987
  %v3116 = vcvt.s32.f32 %v2988
  %v3117 = vcvt.s32.f32 %v2989
  %v3118 = vcvt.s32.f32 %v2990
  %v3119 = vcvt.s32.f32 %v2991
  %v3120 = vcvt.s32.f32 %v2992
  %v3121 = vcvt.s32.f32 %v2993
  %v3122 = vcvt.s32.f32 %v2994
  %v3123 = vcvt.s32.f32 %v2995
  %v3124 = vcvt.s32.f32 %v2996
  %v3125 = vcvt.s32.f32 %v2997
  %v3126 = vcvt.s32.f32 %v2998
  %v3127 = vcvt.s32.f32 %v2999
  %v3128 = vcvt.s32.f32 %v3000
  %v3129 = vcvt.s32.f32 %v3001
  %v3130 = vcvt.s32.f32 %v3002
  %v3131 = vcvt.s32.f32 %v3003
  %v3132 = vcvt.s32.f32 %v3004
  %v3133 = vcvt.s32.f32 %v3005
  %v3134 = vcvt.s32.f32 %v3006
  %v3135 = vcvt.s32.f32 %v3007
  %v3136 = vcvt.s32.f32 %v3008
  %v3137 = vcvt.s32.f32 %v3009
  %v3138 = vcvt.s32.f32 %v3010
  %v3139 = vcvt.s32.f32 %v3011
  %v3140 = vcvt.s32.f32 %v3012
  %v3141 = vcvt.s32.f32 %v3013
  %v3142 = vcvt.s32.f32 %v3014
  %v3143 = vcvt.s32.f32 %v3015
  %v3144 = vcvt.s32.f32 %v3016
  %v3145 = vcvt.s32.f32 %v3017
  %v3146 = vcvt.s32.f32 %v3018
  %v3147 = vcvt.s32.f32 %v3019
  %v3148 = vcvt.s32.f32 %v3020
  %v3149 = vcvt.s32.f32 %v3021
  %v3150 = vcvt.s32.f32 %v3022
  %v3151 = vcvt.s32.f32 %v3023
  %v3152 = vcvt.s32.f32 %v3024
  %v3153 = vcvt.s32.f32 %v3025
  %v3154 = vcvt.s32.f32 %v3026
  %v3155 = vcvt.s32.f32 %v3027
  %v3156 = vcvt.s32.f32 %v3028
  %v3157 = vcvt.s32.f32 %v3029
  %v3158 = vcvt.s32.f32 %v3030
  %v3159 = vcvt.s32.f32 %v3031
  %v3160 = vcvt.s32.f32 %v3032
  %v3161 = vcvt.s32.f32 %v3033
  %v3162 = vcvt.s32.f32 %v3034
  %v3163 = vcvt.s32.f32 %v3035
  %v3164 = vcvt.s32.f32 %v3036
  %v3165 = vcvt.s32.f32 %v3037
  %v3166 = vcvt.s32.f32 %v3038
  %v3167 = vcvt.s32.f32 %v3039
  %v3168 = vcvt.s32.f32 %v3040
  %v3169 = vcvt.s32.f32 %v3041
  %v3170 = vcvt.s32.f32 %v3042
  %v3171 = vcvt.s32.f32 %v3043
  %v3172 = vcvt.s32.f32 %v3044
  %v3173 = vcvt.s32.f32 %v3045
  %v3174 = vcvt.s32.f32 %v3046
  %v3175 = vcvt.s32.f32 %v3047
  %v3176 = vcvt.s32.f32 %v3048
  %v3177 = vcvt.s32.f32 %v3049
  %v3178 = vcvt.s32.f32 %v3050
  %v3179 = vcvt.s32.f32 %v3051
  %v3180 = vcvt.s32.f32 %v3052
  %v3181 = vcvt.s32.f32 %v3053
  %v3182 = vcvt.s32.f32 %v3054
  %v3183 = vcvt.s32.f32 %v3055
  %v3184 = vcvt.s32.f32 %v3056
  %v3185 = vcvt.s32.f32 %v3057
  %v3186 = vcvt.s32.f32 %v3058
  %v3187 = vcvt.s32.f32 %v3059
  %v3188 = vcvt.s32.f32 %v3060
  %v3189 = vcvt.s32.f32 %v3061
  %v3190 = vcvt.s32.f32 %v3062
  %v3191 = vcvt.s32.f32 %v3063
  %v3192 = vcvt.s32.f32 %v3064
  %v3193 = vcvt.s32.f32 %v3065
  %v3194 = vcvt.s32.f32 %v3066
  %v3195 = vcvt.s32.f32 %v3067
  %v3196 = vcvt.s32.f32 %v3068
  %v3197 = vcvt.s32.f32 %v3069
  %v3198 = vcvt.s32.f32 %v3070
  %v3199 = vcvt.s32.f32 %v3071
  %v3200 = vcvt.s32.f32 %v3072
  %v3201 = vcvt.s32.f32 %v3073
  %v3202 = vcvt.s32.f32 %v3074
  %v3203 = vcvt.s32.f32 %v3075
  %v3204 = vcvt.s32.f32 %v3076
  %v3205 = vcvt.s32.f32 %v3077
  %v3206 = vcvt.s32.f32 %v3078
  %v3207 = vcvt.s32.f32 %v3079
  %v3208 = vcvt.s32.f32 %v3080
  %v3209 = vcvt.s32.f32 %v3081
  %v3210 = vpack.c.bf16 %v3083, %v3082
  %v3211 = vpack.c.bf16 %v3085, %v3084
  %v3212 = vpack.c.bf16 %v3087, %v3086
  %v3213 = vpack.c.bf16 %v3089, %v3088
  %v3214 = vpack.c.bf16 %v3091, %v3090
  %v3215 = vpack.c.bf16 %v3093, %v3092
  %v3216 = vpack.c.bf16 %v3095, %v3094
  %v3217 = vpack.c.bf16 %v3097, %v3096
  %v3218 = vpack.c.bf16 %v3099, %v3098
  %v3219 = vpack.c.bf16 %v3101, %v3100
  %v3220 = vpack.c.bf16 %v3103, %v3102
  %v3221 = vpack.c.bf16 %v3105, %v3104
  %v3222 = vpack.c.bf16 %v3107, %v3106
  %v3223 = vpack.c.bf16 %v3109, %v3108
  %v3224 = vpack.c.bf16 %v3111, %v3110
  %v3225 = vpack.c.bf16 %v3113, %v3112
  %v3226 = vpack.c.bf16 %v3115, %v3114
  %v3227 = vpack.c.bf16 %v3117, %v3116
  %v3228 = vpack.c.bf16 %v3119, %v3118
  %v3229 = vpack.c.bf16 %v3121, %v3120
  %v3230 = vpack.c.bf16 %v3123, %v3122
  %v3231 = vpack.c.bf16 %v3125, %v3124
  %v3232 = vpack.c.bf16 %v3127, %v3126
  %v3233 = vpack.c.bf16 %v3129, %v3128
  %v3234 = vpack.c.bf16 %v3131, %v3130
  %v3235 = vpack.c.bf16 %v3133, %v3132
  %v3236 = vpack.c.bf16 %v3135, %v3134
  %v3237 = vpack.c.bf16 %v3137, %v3136
  %v3238 = vpack.c.bf16 %v3139, %v3138
  %v3239 = vpack.c.bf16 %v3141, %v3140
  %v3240 = vpack.c.bf16 %v3143, %v3142
  %v3241 = vpack.c.bf16 %v3145, %v3144
  %v3242 = vpack.c.bf16 %v3147, %v3146
  %v3243 = vpack.c.bf16 %v3149, %v3148
  %v3244 = vpack.c.bf16 %v3151, %v3150
  %v3245 = vpack.c.bf16 %v3153, %v3152
  %v3246 = vpack.c.bf16 %v3155, %v3154
  %v3247 = vpack.c.bf16 %v3157, %v3156
  %v3248 = vpack.c.bf16 %v3159, %v3158
  %v3249 = vpack.c.bf16 %v3161, %v3160
  %v3250 = vpack.c.bf16 %v3163, %v3162
  %v3251 = vpack.c.bf16 %v3165, %v3164
  %v3252 = vpack.c.bf16 %v3167, %v3166
  %v3253 = vpack.c.bf16 %v3169, %v3168
  %v3254 = vpack.c.bf16 %v3171, %v3170
  %v3255 = vpack.c.bf16 %v3173, %v3172
  %v3256 = vpack.c.bf16 %v3175, %v3174
  %v3257 = vpack.c.bf16 %v3177, %v3176
  %v3258 = vpack.c.bf16 %v3179, %v3178
  %v3259 = vpack.c.bf16 %v3181, %v3180
  %v3260 = vpack.c.bf16 %v3183, %v3182
  %v3261 = vpack.c.bf16 %v3185, %v3184
  %v3262 = vpack.c.bf16 %v3187, %v3186
  %v3263 = vpack.c.bf16 %v3189, %v3188
  %v3264 = vpack.c.bf16 %v3191, %v3190
  %v3265 = vpack.c.bf16 %v3193, %v3192
  %v3266 = vpack.c.bf16 %v3195, %v3194
  %v3267 = vpack.c.bf16 %v3197, %v3196
  %v3268 = vpack.c.bf16 %v3199, %v3198
  %v3269 = vpack.c.bf16 %v3201, %v3200
  %v3270 = vpack.c.bf16 %v3203, %v3202
  %v3271 = vpack.c.bf16 %v3205, %v3204
  %v3272 = vpack.c.bf16 %v3207, %v3206
  %v3273 = vpack.c.bf16 %v3209, %v3208
  %vm3274 = vcmask 130048
  %3275 = vst.msk [vmem:[#allocation2] sm:$0xff] %vm3274, %v3210
  %3276 = vst.msk [vmem:[#allocation2 + $0x8] sm:$0xff] %vm3274, %v3211
  %3277 = vst.msk [vmem:[#allocation2 + $0x10] sm:$0xff] %vm3274, %v3212
  %3278 = vst.msk [vmem:[#allocation2 + $0x18] sm:$0xff] %vm3274, %v3213
  %3279 = vst.msk [vmem:[#allocation2 + $0x20] sm:$0xff] %vm3274, %v3214
  %3280 = vst.msk [vmem:[#allocation2 + $0x28] sm:$0xff] %vm3274, %v3215
  %3281 = vst.msk [vmem:[#allocation2 + $0x30] sm:$0xff] %vm3274, %v3216
  %3282 = vst.msk [vmem:[#allocation2 + $0x38] sm:$0xff] %vm3274, %v3217
  %3283 = vst.msk [vmem:[#allocation2 + $0x40] sm:$0xff] %vm3274, %v3218
  %3284 = vst.msk [vmem:[#allocation2 + $0x48] sm:$0xff] %vm3274, %v3219
  %3285 = vst.msk [vmem:[#allocation2 + $0x50] sm:$0xff] %vm3274, %v3220
  %3286 = vst.msk [vmem:[#allocation2 + $0x58] sm:$0xff] %vm3274, %v3221
  %3287 = vst.msk [vmem:[#allocation2 + $0x60] sm:$0xff] %vm3274, %v3222
  %3288 = vst.msk [vmem:[#allocation2 + $0x68] sm:$0xff] %vm3274, %v3223
  %3289 = vst.msk [vmem:[#allocation2 + $0x70] sm:$0xff] %vm3274, %v3224
  %3290 = vst.msk [vmem:[#allocation2 + $0x78] sm:$0xff] %vm3274, %v3225
  %3291 = vst.msk [vmem:[#allocation2 + $0x80] sm:$0xff] %vm3274, %v3226
  %3292 = vst.msk [vmem:[#allocation2 + $0x88] sm:$0xff] %vm3274, %v3227
  %3293 = vst.msk [vmem:[#allocation2 + $0x90] sm:$0xff] %vm3274, %v3228
  %3294 = vst.msk [vmem:[#allocation2 + $0x98] sm:$0xff] %vm3274, %v3229
  %3295 = vst.msk [vmem:[#allocation2 + $0xa0] sm:$0xff] %vm3274, %v3230
  %3296 = vst.msk [vmem:[#allocation2 + $0xa8] sm:$0xff] %vm3274, %v3231
  %3297 = vst.msk [vmem:[#allocation2 + $0xb0] sm:$0xff] %vm3274, %v3232
  %3298 = vst.msk [vmem:[#allocation2 + $0xb8] sm:$0xff] %vm3274, %v3233
  %3299 = vst.msk [vmem:[#allocation2 + $0xc0] sm:$0xff] %vm3274, %v3234
  %3300 = vst.msk [vmem:[#allocation2 + $0xc8] sm:$0xff] %vm3274, %v3235
  %3301 = vst.msk [vmem:[#allocation2 + $0xd0] sm:$0xff] %vm3274, %v3236
  %3302 = vst.msk [vmem:[#allocation2 + $0xd8] sm:$0xff] %vm3274, %v3237
  %3303 = vst.msk [vmem:[#allocation2 + $0xe0] sm:$0xff] %vm3274, %v3238
  %3304 = vst.msk [vmem:[#allocation2 + $0xe8] sm:$0xff] %vm3274, %v3239
  %3305 = vst.msk [vmem:[#allocation2 + $0xf0] sm:$0xff] %vm3274, %v3240
  %3306 = vst.msk [vmem:[#allocation2 + $0xf8] sm:$0xff] %vm3274, %v3241
  %3307 = vst.msk [vmem:[#allocation2 + $0x100] sm:$0xff] %vm3274, %v3242
  %3308 = vst.msk [vmem:[#allocation2 + $0x108] sm:$0xff] %vm3274, %v3243
  %3309 = vst.msk [vmem:[#allocation2 + $0x110] sm:$0xff] %vm3274, %v3244
  %3310 = vst.msk [vmem:[#allocation2 + $0x118] sm:$0xff] %vm3274, %v3245
  %3311 = vst.msk [vmem:[#allocation2 + $0x120] sm:$0xff] %vm3274, %v3246
  %3312 = vst.msk [vmem:[#allocation2 + $0x128] sm:$0xff] %vm3274, %v3247
  %3313 = vst.msk [vmem:[#allocation2 + $0x130] sm:$0xff] %vm3274, %v3248
  %3314 = vst.msk [vmem:[#allocation2 + $0x138] sm:$0xff] %vm3274, %v3249
  %3315 = vst.msk [vmem:[#allocation2 + $0x140] sm:$0xff] %vm3274, %v3250
  %3316 = vst.msk [vmem:[#allocation2 + $0x148] sm:$0xff] %vm3274, %v3251
  %3317 = vst.msk [vmem:[#allocation2 + $0x150] sm:$0xff] %vm3274, %v3252
  %3318 = vst.msk [vmem:[#allocation2 + $0x158] sm:$0xff] %vm3274, %v3253
  %3319 = vst.msk [vmem:[#allocation2 + $0x160] sm:$0xff] %vm3274, %v3254
  %3320 = vst.msk [vmem:[#allocation2 + $0x168] sm:$0xff] %vm3274, %v3255
  %3321 = vst.msk [vmem:[#allocation2 + $0x170] sm:$0xff] %vm3274, %v3256
  %3322 = vst.msk [vmem:[#allocation2 + $0x178] sm:$0xff] %vm3274, %v3257
  %3323 = vst.msk [vmem:[#allocation2 + $0x180] sm:$0xff] %vm3274, %v3258
  %3324 = vst.msk [vmem:[#allocation2 + $0x188] sm:$0xff] %vm3274, %v3259
  %3325 = vst.msk [vmem:[#allocation2 + $0x190] sm:$0xff] %vm3274, %v3260
  %3326 = vst.msk [vmem:[#allocation2 + $0x198] sm:$0xff] %vm3274, %v3261
  %3327 = vst.msk [vmem:[#allocation2 + $0x1a0] sm:$0xff] %vm3274, %v3262
  %3328 = vst.msk [vmem:[#allocation2 + $0x1a8] sm:$0xff] %vm3274, %v3263
  %3329 = vst.msk [vmem:[#allocation2 + $0x1b0] sm:$0xff] %vm3274, %v3264
  %3330 = vst.msk [vmem:[#allocation2 + $0x1b8] sm:$0xff] %vm3274, %v3265
  %3331 = vst.msk [vmem:[#allocation2 + $0x1c0] sm:$0xff] %vm3274, %v3266
  %3332 = vst.msk [vmem:[#allocation2 + $0x1c8] sm:$0xff] %vm3274, %v3267
  %3333 = vst.msk [vmem:[#allocation2 + $0x1d0] sm:$0xff] %vm3274, %v3268
  %3334 = vst.msk [vmem:[#allocation2 + $0x1d8] sm:$0xff] %vm3274, %v3269
  %3335 = vst.msk [vmem:[#allocation2 + $0x1e0] sm:$0xff] %vm3274, %v3270
  %3336 = vst.msk [vmem:[#allocation2 + $0x1e8] sm:$0xff] %vm3274, %v3271
  %3337 = vst.msk [vmem:[#allocation2 + $0x1f0] sm:$0xff] %vm3274, %v3272
  %3338 = vst.msk [vmem:[#allocation2 + $0x1f8] sm:$0xff] %vm3274, %v3273
  %v3339 = vsel %vm3274, %v2316, -inf
  %v3340 = vrot.slane %v3339, 4
  %v3341 = vmax.f32 %v3339, %v3340
  %v3342 = vrot.slane %v3341, 2
  %v3343 = vmax.f32 %v3341, %v3342
  %v3344 = vrot.slane %v3343, 1
  %v3345 = vmax.f32 %v3343, %v3344
  %v3346 = vsel %vm3274, %v2319, -inf
  %v3347 = vrot.slane %v3346, 4
  %v3348 = vmax.f32 %v3346, %v3347
  %v3349 = vrot.slane %v3348, 2
  %v3350 = vmax.f32 %v3348, %v3349
  %v3351 = vrot.slane %v3350, 1
  %v3352 = vmax.f32 %v3350, %v3351
  %v3353 = vsel %vm3274, %v2324, -inf
  %v3354 = vrot.slane %v3353, 4
  %v3355 = vmax.f32 %v3353, %v3354
  %v3356 = vrot.slane %v3355, 2
  %v3357 = vmax.f32 %v3355, %v3356
  %v3358 = vrot.slane %v3357, 1
  %v3359 = vmax.f32 %v3357, %v3358
  %v3360 = vsel %vm3274, %v2327, -inf
  %v3361 = vrot.slane %v3360, 4
  %v3362 = vmax.f32 %v3360, %v3361
  %v3363 = vrot.slane %v3362, 2
  %v3364 = vmax.f32 %v3362, %v3363
  %v3365 = vrot.slane %v3364, 1
  %v3366 = vmax.f32 %v3364, %v3365
  %v3367 = vsel %vm3274, %v2332, -inf
  %v3368 = vrot.slane %v3367, 4
  %v3369 = vmax.f32 %v3367, %v3368
  %v3370 = vrot.slane %v3369, 2
  %v3371 = vmax.f32 %v3369, %v3370
  %v3372 = vrot.slane %v3371, 1
  %v3373 = vmax.f32 %v3371, %v3372
  %v3374 = vsel %vm3274, %v2335, -inf
  %v3375 = vrot.slane %v3374, 4
  %v3376 = vmax.f32 %v3374, %v3375
  %v3377 = vrot.slane %v3376, 2
  %v3378 = vmax.f32 %v3376, %v3377
  %v3379 = vrot.slane %v3378, 1
  %v3380 = vmax.f32 %v3378, %v3379
  %v3381 = vsel %vm3274, %v2340, -inf
  %v3382 = vrot.slane %v3381, 4
  %v3383 = vmax.f32 %v3381, %v3382
  %v3384 = vrot.slane %v3383, 2
  %v3385 = vmax.f32 %v3383, %v3384
  %v3386 = vrot.slane %v3385, 1
  %v3387 = vmax.f32 %v3385, %v3386
  %v3388 = vsel %vm3274, %v2343, -inf
  %v3389 = vrot.slane %v3388, 4
  %v3390 = vmax.f32 %v3388, %v3389
  %v3391 = vrot.slane %v3390, 2
  %v3392 = vmax.f32 %v3390, %v3391
  %v3393 = vrot.slane %v3392, 1
  %v3394 = vmax.f32 %v3392, %v3393
  %v3395 = vsel %vm3274, %v2348, -inf
  %v3396 = vrot.slane %v3395, 4
  %v3397 = vmax.f32 %v3395, %v3396
  %v3398 = vrot.slane %v3397, 2
  %v3399 = vmax.f32 %v3397, %v3398
  %v3400 = vrot.slane %v3399, 1
  %v3401 = vmax.f32 %v3399, %v3400
  %v3402 = vsel %vm3274, %v2351, -inf
  %v3403 = vrot.slane %v3402, 4
  %v3404 = vmax.f32 %v3402, %v3403
  %v3405 = vrot.slane %v3404, 2
  %v3406 = vmax.f32 %v3404, %v3405
  %v3407 = vrot.slane %v3406, 1
  %v3408 = vmax.f32 %v3406, %v3407
  %v3409 = vsel %vm3274, %v2356, -inf
  %v3410 = vrot.slane %v3409, 4
  %v3411 = vmax.f32 %v3409, %v3410
  %v3412 = vrot.slane %v3411, 2
  %v3413 = vmax.f32 %v3411, %v3412
  %v3414 = vrot.slane %v3413, 1
  %v3415 = vmax.f32 %v3413, %v3414
  %v3416 = vsel %vm3274, %v2359, -inf
  %v3417 = vrot.slane %v3416, 4
  %v3418 = vmax.f32 %v3416, %v3417
  %v3419 = vrot.slane %v3418, 2
  %v3420 = vmax.f32 %v3418, %v3419
  %v3421 = vrot.slane %v3420, 1
  %v3422 = vmax.f32 %v3420, %v3421
  %v3423 = vsel %vm3274, %v2364, -inf
  %v3424 = vrot.slane %v3423, 4
  %v3425 = vmax.f32 %v3423, %v3424
  %v3426 = vrot.slane %v3425, 2
  %v3427 = vmax.f32 %v3425, %v3426
  %v3428 = vrot.slane %v3427, 1
  %v3429 = vmax.f32 %v3427, %v3428
  %v3430 = vsel %vm3274, %v2367, -inf
  %v3431 = vrot.slane %v3430, 4
  %v3432 = vmax.f32 %v3430, %v3431
  %v3433 = vrot.slane %v3432, 2
  %v3434 = vmax.f32 %v3432, %v3433
  %v3435 = vrot.slane %v3434, 1
  %v3436 = vmax.f32 %v3434, %v3435
  %v3437 = vsel %vm3274, %v2372, -inf
  %v3438 = vrot.slane %v3437, 4
  %v3439 = vmax.f32 %v3437, %v3438
  %v3440 = vrot.slane %v3439, 2
  %v3441 = vmax.f32 %v3439, %v3440
  %v3442 = vrot.slane %v3441, 1
  %v3443 = vmax.f32 %v3441, %v3442
  %v3444 = vsel %vm3274, %v2375, -inf
  %v3445 = vrot.slane %v3444, 4
  %v3446 = vmax.f32 %v3444, %v3445
  %v3447 = vrot.slane %v3446, 2
  %v3448 = vmax.f32 %v3446, %v3447
  %v3449 = vrot.slane %v3448, 1
  %v3450 = vmax.f32 %v3448, %v3449
  %v3451 = vsel %vm3274, %v2380, -inf
  %v3452 = vrot.slane %v3451, 4
  %v3453 = vmax.f32 %v3451, %v3452
  %v3454 = vrot.slane %v3453, 2
  %v3455 = vmax.f32 %v3453, %v3454
  %v3456 = vrot.slane %v3455, 1
  %v3457 = vmax.f32 %v3455, %v3456
  %v3458 = vsel %vm3274, %v2383, -inf
  %v3459 = vrot.slane %v3458, 4
  %v3460 = vmax.f32 %v3458, %v3459
  %v3461 = vrot.slane %v3460, 2
  %v3462 = vmax.f32 %v3460, %v3461
  %v3463 = vrot.slane %v3462, 1
  %v3464 = vmax.f32 %v3462, %v3463
  %v3465 = vsel %vm3274, %v2388, -inf
  %v3466 = vrot.slane %v3465, 4
  %v3467 = vmax.f32 %v3465, %v3466
  %v3468 = vrot.slane %v3467, 2
  %v3469 = vmax.f32 %v3467, %v3468
  %v3470 = vrot.slane %v3469, 1
  %v3471 = vmax.f32 %v3469, %v3470
  %v3472 = vsel %vm3274, %v2391, -inf
  %v3473 = vrot.slane %v3472, 4
  %v3474 = vmax.f32 %v3472, %v3473
  %v3475 = vrot.slane %v3474, 2
  %v3476 = vmax.f32 %v3474, %v3475
  %v3477 = vrot.slane %v3476, 1
  %v3478 = vmax.f32 %v3476, %v3477
  %v3479 = vsel %vm3274, %v2396, -inf
  %v3480 = vrot.slane %v3479, 4
  %v3481 = vmax.f32 %v3479, %v3480
  %v3482 = vrot.slane %v3481, 2
  %v3483 = vmax.f32 %v3481, %v3482
  %v3484 = vrot.slane %v3483, 1
  %v3485 = vmax.f32 %v3483, %v3484
  %v3486 = vsel %vm3274, %v2399, -inf
  %v3487 = vrot.slane %v3486, 4
  %v3488 = vmax.f32 %v3486, %v3487
  %v3489 = vrot.slane %v3488, 2
  %v3490 = vmax.f32 %v3488, %v3489
  %v3491 = vrot.slane %v3490, 1
  %v3492 = vmax.f32 %v3490, %v3491
  %v3493 = vsel %vm3274, %v2404, -inf
  %v3494 = vrot.slane %v3493, 4
  %v3495 = vmax.f32 %v3493, %v3494
  %v3496 = vrot.slane %v3495, 2
  %v3497 = vmax.f32 %v3495, %v3496
  %v3498 = vrot.slane %v3497, 1
  %v3499 = vmax.f32 %v3497, %v3498
  %v3500 = vsel %vm3274, %v2407, -inf
  %v3501 = vrot.slane %v3500, 4
  %v3502 = vmax.f32 %v3500, %v3501
  %v3503 = vrot.slane %v3502, 2
  %v3504 = vmax.f32 %v3502, %v3503
  %v3505 = vrot.slane %v3504, 1
  %v3506 = vmax.f32 %v3504, %v3505
  %v3507 = vsel %vm3274, %v2412, -inf
  %v3508 = vrot.slane %v3507, 4
  %v3509 = vmax.f32 %v3507, %v3508
  %v3510 = vrot.slane %v3509, 2
  %v3511 = vmax.f32 %v3509, %v3510
  %v3512 = vrot.slane %v3511, 1
  %v3513 = vmax.f32 %v3511, %v3512
  %v3514 = vsel %vm3274, %v2415, -inf
  %v3515 = vrot.slane %v3514, 4
  %v3516 = vmax.f32 %v3514, %v3515
  %v3517 = vrot.slane %v3516, 2
  %v3518 = vmax.f32 %v3516, %v3517
  %v3519 = vrot.slane %v3518, 1
  %v3520 = vmax.f32 %v3518, %v3519
  %v3521 = vsel %vm3274, %v2420, -inf
  %v3522 = vrot.slane %v3521, 4
  %v3523 = vmax.f32 %v3521, %v3522
  %v3524 = vrot.slane %v3523, 2
  %v3525 = vmax.f32 %v3523, %v3524
  %v3526 = vrot.slane %v3525, 1
  %v3527 = vmax.f32 %v3525, %v3526
  %v3528 = vsel %vm3274, %v2423, -inf
  %v3529 = vrot.slane %v3528, 4
  %v3530 = vmax.f32 %v3528, %v3529
  %v3531 = vrot.slane %v3530, 2
  %v3532 = vmax.f32 %v3530, %v3531
  %v3533 = vrot.slane %v3532, 1
  %v3534 = vmax.f32 %v3532, %v3533
  %v3535 = vsel %vm3274, %v2428, -inf
  %v3536 = vrot.slane %v3535, 4
  %v3537 = vmax.f32 %v3535, %v3536
  %v3538 = vrot.slane %v3537, 2
  %v3539 = vmax.f32 %v3537, %v3538
  %v3540 = vrot.slane %v3539, 1
  %v3541 = vmax.f32 %v3539, %v3540
  %v3542 = vsel %vm3274, %v2431, -inf
  %v3543 = vrot.slane %v3542, 4
  %v3544 = vmax.f32 %v3542, %v3543
  %v3545 = vrot.slane %v3544, 2
  %v3546 = vmax.f32 %v3544, %v3545
  %v3547 = vrot.slane %v3546, 1
  %v3548 = vmax.f32 %v3546, %v3547
  %v3549 = vsel %vm3274, %v2436, -inf
  %v3550 = vrot.slane %v3549, 4
  %v3551 = vmax.f32 %v3549, %v3550
  %v3552 = vrot.slane %v3551, 2
  %v3553 = vmax.f32 %v3551, %v3552
  %v3554 = vrot.slane %v3553, 1
  %v3555 = vmax.f32 %v3553, %v3554
  %v3556 = vsel %vm3274, %v2439, -inf
  %v3557 = vrot.slane %v3556, 4
  %v3558 = vmax.f32 %v3556, %v3557
  %v3559 = vrot.slane %v3558, 2
  %v3560 = vmax.f32 %v3558, %v3559
  %v3561 = vrot.slane %v3560, 1
  %v3562 = vmax.f32 %v3560, %v3561
  %v3563 = vsel %vm3274, %v2444, -inf
  %v3564 = vrot.slane %v3563, 4
  %v3565 = vmax.f32 %v3563, %v3564
  %v3566 = vrot.slane %v3565, 2
  %v3567 = vmax.f32 %v3565, %v3566
  %v3568 = vrot.slane %v3567, 1
  %v3569 = vmax.f32 %v3567, %v3568
  %v3570 = vsel %vm3274, %v2447, -inf
  %v3571 = vrot.slane %v3570, 4
  %v3572 = vmax.f32 %v3570, %v3571
  %v3573 = vrot.slane %v3572, 2
  %v3574 = vmax.f32 %v3572, %v3573
  %v3575 = vrot.slane %v3574, 1
  %v3576 = vmax.f32 %v3574, %v3575
  %v3577 = vsel %vm3274, %v2452, -inf
  %v3578 = vrot.slane %v3577, 4
  %v3579 = vmax.f32 %v3577, %v3578
  %v3580 = vrot.slane %v3579, 2
  %v3581 = vmax.f32 %v3579, %v3580
  %v3582 = vrot.slane %v3581, 1
  %v3583 = vmax.f32 %v3581, %v3582
  %v3584 = vsel %vm3274, %v2455, -inf
  %v3585 = vrot.slane %v3584, 4
  %v3586 = vmax.f32 %v3584, %v3585
  %v3587 = vrot.slane %v3586, 2
  %v3588 = vmax.f32 %v3586, %v3587
  %v3589 = vrot.slane %v3588, 1
  %v3590 = vmax.f32 %v3588, %v3589
  %v3591 = vsel %vm3274, %v2460, -inf
  %v3592 = vrot.slane %v3591, 4
  %v3593 = vmax.f32 %v3591, %v3592
  %v3594 = vrot.slane %v3593, 2
  %v3595 = vmax.f32 %v3593, %v3594
  %v3596 = vrot.slane %v3595, 1
  %v3597 = vmax.f32 %v3595, %v3596
  %v3598 = vsel %vm3274, %v2463, -inf
  %v3599 = vrot.slane %v3598, 4
  %v3600 = vmax.f32 %v3598, %v3599
  %v3601 = vrot.slane %v3600, 2
  %v3602 = vmax.f32 %v3600, %v3601
  %v3603 = vrot.slane %v3602, 1
  %v3604 = vmax.f32 %v3602, %v3603
  %v3605 = vsel %vm3274, %v2468, -inf
  %v3606 = vrot.slane %v3605, 4
  %v3607 = vmax.f32 %v3605, %v3606
  %v3608 = vrot.slane %v3607, 2
  %v3609 = vmax.f32 %v3607, %v3608
  %v3610 = vrot.slane %v3609, 1
  %v3611 = vmax.f32 %v3609, %v3610
  %v3612 = vsel %vm3274, %v2471, -inf
  %v3613 = vrot.slane %v3612, 4
  %v3614 = vmax.f32 %v3612, %v3613
  %v3615 = vrot.slane %v3614, 2
  %v3616 = vmax.f32 %v3614, %v3615
  %v3617 = vrot.slane %v3616, 1
  %v3618 = vmax.f32 %v3616, %v3617
  %v3619 = vsel %vm3274, %v2476, -inf
  %v3620 = vrot.slane %v3619, 4
  %v3621 = vmax.f32 %v3619, %v3620
  %v3622 = vrot.slane %v3621, 2
  %v3623 = vmax.f32 %v3621, %v3622
  %v3624 = vrot.slane %v3623, 1
  %v3625 = vmax.f32 %v3623, %v3624
  %v3626 = vsel %vm3274, %v2479, -inf
  %v3627 = vrot.slane %v3626, 4
  %v3628 = vmax.f32 %v3626, %v3627
  %v3629 = vrot.slane %v3628, 2
  %v3630 = vmax.f32 %v3628, %v3629
  %v3631 = vrot.slane %v3630, 1
  %v3632 = vmax.f32 %v3630, %v3631
  %v3633 = vsel %vm3274, %v2484, -inf
  %v3634 = vrot.slane %v3633, 4
  %v3635 = vmax.f32 %v3633, %v3634
  %v3636 = vrot.slane %v3635, 2
  %v3637 = vmax.f32 %v3635, %v3636
  %v3638 = vrot.slane %v3637, 1
  %v3639 = vmax.f32 %v3637, %v3638
  %v3640 = vsel %vm3274, %v2487, -inf
  %v3641 = vrot.slane %v3640, 4
  %v3642 = vmax.f32 %v3640, %v3641
  %v3643 = vrot.slane %v3642, 2
  %v3644 = vmax.f32 %v3642, %v3643
  %v3645 = vrot.slane %v3644, 1
  %v3646 = vmax.f32 %v3644, %v3645
  %v3647 = vsel %vm3274, %v2492, -inf
  %v3648 = vrot.slane %v3647, 4
  %v3649 = vmax.f32 %v3647, %v3648
  %v3650 = vrot.slane %v3649, 2
  %v3651 = vmax.f32 %v3649, %v3650
  %v3652 = vrot.slane %v3651, 1
  %v3653 = vmax.f32 %v3651, %v3652
  %v3654 = vsel %vm3274, %v2495, -inf
  %v3655 = vrot.slane %v3654, 4
  %v3656 = vmax.f32 %v3654, %v3655
  %v3657 = vrot.slane %v3656, 2
  %v3658 = vmax.f32 %v3656, %v3657
  %v3659 = vrot.slane %v3658, 1
  %v3660 = vmax.f32 %v3658, %v3659
  %v3661 = vsel %vm3274, %v2500, -inf
  %v3662 = vrot.slane %v3661, 4
  %v3663 = vmax.f32 %v3661, %v3662
  %v3664 = vrot.slane %v3663, 2
  %v3665 = vmax.f32 %v3663, %v3664
  %v3666 = vrot.slane %v3665, 1
  %v3667 = vmax.f32 %v3665, %v3666
  %v3668 = vsel %vm3274, %v2503, -inf
  %v3669 = vrot.slane %v3668, 4
  %v3670 = vmax.f32 %v3668, %v3669
  %v3671 = vrot.slane %v3670, 2
  %v3672 = vmax.f32 %v3670, %v3671
  %v3673 = vrot.slane %v3672, 1
  %v3674 = vmax.f32 %v3672, %v3673
  %v3675 = vsel %vm3274, %v2508, -inf
  %v3676 = vrot.slane %v3675, 4
  %v3677 = vmax.f32 %v3675, %v3676
  %v3678 = vrot.slane %v3677, 2
  %v3679 = vmax.f32 %v3677, %v3678
  %v3680 = vrot.slane %v3679, 1
  %v3681 = vmax.f32 %v3679, %v3680
  %v3682 = vsel %vm3274, %v2511, -inf
  %v3683 = vrot.slane %v3682, 4
  %v3684 = vmax.f32 %v3682, %v3683
  %v3685 = vrot.slane %v3684, 2
  %v3686 = vmax.f32 %v3684, %v3685
  %v3687 = vrot.slane %v3686, 1
  %v3688 = vmax.f32 %v3686, %v3687
  %v3689 = vsel %vm3274, %v2516, -inf
  %v3690 = vrot.slane %v3689, 4
  %v3691 = vmax.f32 %v3689, %v3690
  %v3692 = vrot.slane %v3691, 2
  %v3693 = vmax.f32 %v3691, %v3692
  %v3694 = vrot.slane %v3693, 1
  %v3695 = vmax.f32 %v3693, %v3694
  %v3696 = vsel %vm3274, %v2519, -inf
  %v3697 = vrot.slane %v3696, 4
  %v3698 = vmax.f32 %v3696, %v3697
  %v3699 = vrot.slane %v3698, 2
  %v3700 = vmax.f32 %v3698, %v3699
  %v3701 = vrot.slane %v3700, 1
  %v3702 = vmax.f32 %v3700, %v3701
  %v3703 = vsel %vm3274, %v2524, -inf
  %v3704 = vrot.slane %v3703, 4
  %v3705 = vmax.f32 %v3703, %v3704
  %v3706 = vrot.slane %v3705, 2
  %v3707 = vmax.f32 %v3705, %v3706
  %v3708 = vrot.slane %v3707, 1
  %v3709 = vmax.f32 %v3707, %v3708
  %v3710 = vsel %vm3274, %v2527, -inf
  %v3711 = vrot.slane %v3710, 4
  %v3712 = vmax.f32 %v3710, %v3711
  %v3713 = vrot.slane %v3712, 2
  %v3714 = vmax.f32 %v3712, %v3713
  %v3715 = vrot.slane %v3714, 1
  %v3716 = vmax.f32 %v3714, %v3715
  %v3717 = vsel %vm3274, %v2532, -inf
  %v3718 = vrot.slane %v3717, 4
  %v3719 = vmax.f32 %v3717, %v3718
  %v3720 = vrot.slane %v3719, 2
  %v3721 = vmax.f32 %v3719, %v3720
  %v3722 = vrot.slane %v3721, 1
  %v3723 = vmax.f32 %v3721, %v3722
  %v3724 = vsel %vm3274, %v2535, -inf
  %v3725 = vrot.slane %v3724, 4
  %v3726 = vmax.f32 %v3724, %v3725
  %v3727 = vrot.slane %v3726, 2
  %v3728 = vmax.f32 %v3726, %v3727
  %v3729 = vrot.slane %v3728, 1
  %v3730 = vmax.f32 %v3728, %v3729
  %v3731 = vsel %vm3274, %v2540, -inf
  %v3732 = vrot.slane %v3731, 4
  %v3733 = vmax.f32 %v3731, %v3732
  %v3734 = vrot.slane %v3733, 2
  %v3735 = vmax.f32 %v3733, %v3734
  %v3736 = vrot.slane %v3735, 1
  %v3737 = vmax.f32 %v3735, %v3736
  %v3738 = vsel %vm3274, %v2543, -inf
  %v3739 = vrot.slane %v3738, 4
  %v3740 = vmax.f32 %v3738, %v3739
  %v3741 = vrot.slane %v3740, 2
  %v3742 = vmax.f32 %v3740, %v3741
  %v3743 = vrot.slane %v3742, 1
  %v3744 = vmax.f32 %v3742, %v3743
  %v3745 = vsel %vm3274, %v2548, -inf
  %v3746 = vrot.slane %v3745, 4
  %v3747 = vmax.f32 %v3745, %v3746
  %v3748 = vrot.slane %v3747, 2
  %v3749 = vmax.f32 %v3747, %v3748
  %v3750 = vrot.slane %v3749, 1
  %v3751 = vmax.f32 %v3749, %v3750
  %v3752 = vsel %vm3274, %v2551, -inf
  %v3753 = vrot.slane %v3752, 4
  %v3754 = vmax.f32 %v3752, %v3753
  %v3755 = vrot.slane %v3754, 2
  %v3756 = vmax.f32 %v3754, %v3755
  %v3757 = vrot.slane %v3756, 1
  %v3758 = vmax.f32 %v3756, %v3757
  %v3759 = vsel %vm3274, %v2556, -inf
  %v3760 = vrot.slane %v3759, 4
  %v3761 = vmax.f32 %v3759, %v3760
  %v3762 = vrot.slane %v3761, 2
  %v3763 = vmax.f32 %v3761, %v3762
  %v3764 = vrot.slane %v3763, 1
  %v3765 = vmax.f32 %v3763, %v3764
  %v3766 = vsel %vm3274, %v2559, -inf
  %v3767 = vrot.slane %v3766, 4
  %v3768 = vmax.f32 %v3766, %v3767
  %v3769 = vrot.slane %v3768, 2
  %v3770 = vmax.f32 %v3768, %v3769
  %v3771 = vrot.slane %v3770, 1
  %v3772 = vmax.f32 %v3770, %v3771
  %v3773 = vsel %vm3274, %v2564, -inf
  %v3774 = vrot.slane %v3773, 4
  %v3775 = vmax.f32 %v3773, %v3774
  %v3776 = vrot.slane %v3775, 2
  %v3777 = vmax.f32 %v3775, %v3776
  %v3778 = vrot.slane %v3777, 1
  %v3779 = vmax.f32 %v3777, %v3778
  %v3780 = vsel %vm3274, %v2567, -inf
  %v3781 = vrot.slane %v3780, 4
  %v3782 = vmax.f32 %v3780, %v3781
  %v3783 = vrot.slane %v3782, 2
  %v3784 = vmax.f32 %v3782, %v3783
  %v3785 = vrot.slane %v3784, 1
  %v3786 = vmax.f32 %v3784, %v3785
  %v3787 = vsel %vm3274, %v2572, -inf
  %v3788 = vrot.slane %v3787, 4
  %v3789 = vmax.f32 %v3787, %v3788
  %v3790 = vrot.slane %v3789, 2
  %v3791 = vmax.f32 %v3789, %v3790
  %v3792 = vrot.slane %v3791, 1
  %v3793 = vmax.f32 %v3791, %v3792
  %v3794 = vsel %vm3274, %v2575, -inf
  %v3795 = vrot.slane %v3794, 4
  %v3796 = vmax.f32 %v3794, %v3795
  %v3797 = vrot.slane %v3796, 2
  %v3798 = vmax.f32 %v3796, %v3797
  %v3799 = vrot.slane %v3798, 1
  %v3800 = vmax.f32 %v3798, %v3799
  %v3801 = vsel %vm3274, %v2580, -inf
  %v3802 = vrot.slane %v3801, 4
  %v3803 = vmax.f32 %v3801, %v3802
  %v3804 = vrot.slane %v3803, 2
  %v3805 = vmax.f32 %v3803, %v3804
  %v3806 = vrot.slane %v3805, 1
  %v3807 = vmax.f32 %v3805, %v3806
  %v3808 = vsel %vm3274, %v2583, -inf
  %v3809 = vrot.slane %v3808, 4
  %v3810 = vmax.f32 %v3808, %v3809
  %v3811 = vrot.slane %v3810, 2
  %v3812 = vmax.f32 %v3810, %v3811
  %v3813 = vrot.slane %v3812, 1
  %v3814 = vmax.f32 %v3812, %v3813
  %v3815 = vsel %vm3274, %v2588, -inf
  %v3816 = vrot.slane %v3815, 4
  %v3817 = vmax.f32 %v3815, %v3816
  %v3818 = vrot.slane %v3817, 2
  %v3819 = vmax.f32 %v3817, %v3818
  %v3820 = vrot.slane %v3819, 1
  %v3821 = vmax.f32 %v3819, %v3820
  %v3822 = vsel %vm3274, %v2591, -inf
  %v3823 = vrot.slane %v3822, 4
  %v3824 = vmax.f32 %v3822, %v3823
  %v3825 = vrot.slane %v3824, 2
  %v3826 = vmax.f32 %v3824, %v3825
  %v3827 = vrot.slane %v3826, 1
  %v3828 = vmax.f32 %v3826, %v3827
  %v3829 = vsel %vm3274, %v2596, -inf
  %v3830 = vrot.slane %v3829, 4
  %v3831 = vmax.f32 %v3829, %v3830
  %v3832 = vrot.slane %v3831, 2
  %v3833 = vmax.f32 %v3831, %v3832
  %v3834 = vrot.slane %v3833, 1
  %v3835 = vmax.f32 %v3833, %v3834
  %v3836 = vsel %vm3274, %v2599, -inf
  %v3837 = vrot.slane %v3836, 4
  %v3838 = vmax.f32 %v3836, %v3837
  %v3839 = vrot.slane %v3838, 2
  %v3840 = vmax.f32 %v3838, %v3839
  %v3841 = vrot.slane %v3840, 1
  %v3842 = vmax.f32 %v3840, %v3841
  %v3843 = vsel %vm3274, %v2604, -inf
  %v3844 = vrot.slane %v3843, 4
  %v3845 = vmax.f32 %v3843, %v3844
  %v3846 = vrot.slane %v3845, 2
  %v3847 = vmax.f32 %v3845, %v3846
  %v3848 = vrot.slane %v3847, 1
  %v3849 = vmax.f32 %v3847, %v3848
  %v3850 = vsel %vm3274, %v2607, -inf
  %v3851 = vrot.slane %v3850, 4
  %v3852 = vmax.f32 %v3850, %v3851
  %v3853 = vrot.slane %v3852, 2
  %v3854 = vmax.f32 %v3852, %v3853
  %v3855 = vrot.slane %v3854, 1
  %v3856 = vmax.f32 %v3854, %v3855
  %v3857 = vsel %vm3274, %v2612, -inf
  %v3858 = vrot.slane %v3857, 4
  %v3859 = vmax.f32 %v3857, %v3858
  %v3860 = vrot.slane %v3859, 2
  %v3861 = vmax.f32 %v3859, %v3860
  %v3862 = vrot.slane %v3861, 1
  %v3863 = vmax.f32 %v3861, %v3862
  %v3864 = vsel %vm3274, %v2615, -inf
  %v3865 = vrot.slane %v3864, 4
  %v3866 = vmax.f32 %v3864, %v3865
  %v3867 = vrot.slane %v3866, 2
  %v3868 = vmax.f32 %v3866, %v3867
  %v3869 = vrot.slane %v3868, 1
  %v3870 = vmax.f32 %v3868, %v3869
  %v3871 = vsel %vm3274, %v2620, -inf
  %v3872 = vrot.slane %v3871, 4
  %v3873 = vmax.f32 %v3871, %v3872
  %v3874 = vrot.slane %v3873, 2
  %v3875 = vmax.f32 %v3873, %v3874
  %v3876 = vrot.slane %v3875, 1
  %v3877 = vmax.f32 %v3875, %v3876
  %v3878 = vsel %vm3274, %v2623, -inf
  %v3879 = vrot.slane %v3878, 4
  %v3880 = vmax.f32 %v3878, %v3879
  %v3881 = vrot.slane %v3880, 2
  %v3882 = vmax.f32 %v3880, %v3881
  %v3883 = vrot.slane %v3882, 1
  %v3884 = vmax.f32 %v3882, %v3883
  %v3885 = vsel %vm3274, %v2628, -inf
  %v3886 = vrot.slane %v3885, 4
  %v3887 = vmax.f32 %v3885, %v3886
  %v3888 = vrot.slane %v3887, 2
  %v3889 = vmax.f32 %v3887, %v3888
  %v3890 = vrot.slane %v3889, 1
  %v3891 = vmax.f32 %v3889, %v3890
  %v3892 = vsel %vm3274, %v2631, -inf
  %v3893 = vrot.slane %v3892, 4
  %v3894 = vmax.f32 %v3892, %v3893
  %v3895 = vrot.slane %v3894, 2
  %v3896 = vmax.f32 %v3894, %v3895
  %v3897 = vrot.slane %v3896, 1
  %v3898 = vmax.f32 %v3896, %v3897
  %v3899 = vsel %vm3274, %v2636, -inf
  %v3900 = vrot.slane %v3899, 4
  %v3901 = vmax.f32 %v3899, %v3900
  %v3902 = vrot.slane %v3901, 2
  %v3903 = vmax.f32 %v3901, %v3902
  %v3904 = vrot.slane %v3903, 1
  %v3905 = vmax.f32 %v3903, %v3904
  %v3906 = vsel %vm3274, %v2639, -inf
  %v3907 = vrot.slane %v3906, 4
  %v3908 = vmax.f32 %v3906, %v3907
  %v3909 = vrot.slane %v3908, 2
  %v3910 = vmax.f32 %v3908, %v3909
  %v3911 = vrot.slane %v3910, 1
  %v3912 = vmax.f32 %v3910, %v3911
  %v3913 = vsel %vm3274, %v2644, -inf
  %v3914 = vrot.slane %v3913, 4
  %v3915 = vmax.f32 %v3913, %v3914
  %v3916 = vrot.slane %v3915, 2
  %v3917 = vmax.f32 %v3915, %v3916
  %v3918 = vrot.slane %v3917, 1
  %v3919 = vmax.f32 %v3917, %v3918
  %v3920 = vsel %vm3274, %v2647, -inf
  %v3921 = vrot.slane %v3920, 4
  %v3922 = vmax.f32 %v3920, %v3921
  %v3923 = vrot.slane %v3922, 2
  %v3924 = vmax.f32 %v3922, %v3923
  %v3925 = vrot.slane %v3924, 1
  %v3926 = vmax.f32 %v3924, %v3925
  %v3927 = vsel %vm3274, %v2652, -inf
  %v3928 = vrot.slane %v3927, 4
  %v3929 = vmax.f32 %v3927, %v3928
  %v3930 = vrot.slane %v3929, 2
  %v3931 = vmax.f32 %v3929, %v3930
  %v3932 = vrot.slane %v3931, 1
  %v3933 = vmax.f32 %v3931, %v3932
  %v3934 = vsel %vm3274, %v2655, -inf
  %v3935 = vrot.slane %v3934, 4
  %v3936 = vmax.f32 %v3934, %v3935
  %v3937 = vrot.slane %v3936, 2
  %v3938 = vmax.f32 %v3936, %v3937
  %v3939 = vrot.slane %v3938, 1
  %v3940 = vmax.f32 %v3938, %v3939
  %v3941 = vsel %vm3274, %v2660, -inf
  %v3942 = vrot.slane %v3941, 4
  %v3943 = vmax.f32 %v3941, %v3942
  %v3944 = vrot.slane %v3943, 2
  %v3945 = vmax.f32 %v3943, %v3944
  %v3946 = vrot.slane %v3945, 1
  %v3947 = vmax.f32 %v3945, %v3946
  %v3948 = vsel %vm3274, %v2663, -inf
  %v3949 = vrot.slane %v3948, 4
  %v3950 = vmax.f32 %v3948, %v3949
  %v3951 = vrot.slane %v3950, 2
  %v3952 = vmax.f32 %v3950, %v3951
  %v3953 = vrot.slane %v3952, 1
  %v3954 = vmax.f32 %v3952, %v3953
  %v3955 = vsel %vm3274, %v2668, -inf
  %v3956 = vrot.slane %v3955, 4
  %v3957 = vmax.f32 %v3955, %v3956
  %v3958 = vrot.slane %v3957, 2
  %v3959 = vmax.f32 %v3957, %v3958
  %v3960 = vrot.slane %v3959, 1
  %v3961 = vmax.f32 %v3959, %v3960
  %v3962 = vsel %vm3274, %v2671, -inf
  %v3963 = vrot.slane %v3962, 4
  %v3964 = vmax.f32 %v3962, %v3963
  %v3965 = vrot.slane %v3964, 2
  %v3966 = vmax.f32 %v3964, %v3965
  %v3967 = vrot.slane %v3966, 1
  %v3968 = vmax.f32 %v3966, %v3967
  %v3969 = vsel %vm3274, %v2676, -inf
  %v3970 = vrot.slane %v3969, 4
  %v3971 = vmax.f32 %v3969, %v3970
  %v3972 = vrot.slane %v3971, 2
  %v3973 = vmax.f32 %v3971, %v3972
  %v3974 = vrot.slane %v3973, 1
  %v3975 = vmax.f32 %v3973, %v3974
  %v3976 = vsel %vm3274, %v2679, -inf
  %v3977 = vrot.slane %v3976, 4
  %v3978 = vmax.f32 %v3976, %v3977
  %v3979 = vrot.slane %v3978, 2
  %v3980 = vmax.f32 %v3978, %v3979
  %v3981 = vrot.slane %v3980, 1
  %v3982 = vmax.f32 %v3980, %v3981
  %v3983 = vsel %vm3274, %v2684, -inf
  %v3984 = vrot.slane %v3983, 4
  %v3985 = vmax.f32 %v3983, %v3984
  %v3986 = vrot.slane %v3985, 2
  %v3987 = vmax.f32 %v3985, %v3986
  %v3988 = vrot.slane %v3987, 1
  %v3989 = vmax.f32 %v3987, %v3988
  %v3990 = vsel %vm3274, %v2687, -inf
  %v3991 = vrot.slane %v3990, 4
  %v3992 = vmax.f32 %v3990, %v3991
  %v3993 = vrot.slane %v3992, 2
  %v3994 = vmax.f32 %v3992, %v3993
  %v3995 = vrot.slane %v3994, 1
  %v3996 = vmax.f32 %v3994, %v3995
  %v3997 = vsel %vm3274, %v2692, -inf
  %v3998 = vrot.slane %v3997, 4
  %v3999 = vmax.f32 %v3997, %v3998
  %v4000 = vrot.slane %v3999, 2
  %v4001 = vmax.f32 %v3999, %v4000
  %v4002 = vrot.slane %v4001, 1
  %v4003 = vmax.f32 %v4001, %v4002
  %v4004 = vsel %vm3274, %v2695, -inf
  %v4005 = vrot.slane %v4004, 4
  %v4006 = vmax.f32 %v4004, %v4005
  %v4007 = vrot.slane %v4006, 2
  %v4008 = vmax.f32 %v4006, %v4007
  %v4009 = vrot.slane %v4008, 1
  %v4010 = vmax.f32 %v4008, %v4009
  %v4011 = vsel %vm3274, %v2700, -inf
  %v4012 = vrot.slane %v4011, 4
  %v4013 = vmax.f32 %v4011, %v4012
  %v4014 = vrot.slane %v4013, 2
  %v4015 = vmax.f32 %v4013, %v4014
  %v4016 = vrot.slane %v4015, 1
  %v4017 = vmax.f32 %v4015, %v4016
  %v4018 = vsel %vm3274, %v2703, -inf
  %v4019 = vrot.slane %v4018, 4
  %v4020 = vmax.f32 %v4018, %v4019
  %v4021 = vrot.slane %v4020, 2
  %v4022 = vmax.f32 %v4020, %v4021
  %v4023 = vrot.slane %v4022, 1
  %v4024 = vmax.f32 %v4022, %v4023
  %v4025 = vsel %vm3274, %v2708, -inf
  %v4026 = vrot.slane %v4025, 4
  %v4027 = vmax.f32 %v4025, %v4026
  %v4028 = vrot.slane %v4027, 2
  %v4029 = vmax.f32 %v4027, %v4028
  %v4030 = vrot.slane %v4029, 1
  %v4031 = vmax.f32 %v4029, %v4030
  %v4032 = vsel %vm3274, %v2711, -inf
  %v4033 = vrot.slane %v4032, 4
  %v4034 = vmax.f32 %v4032, %v4033
  %v4035 = vrot.slane %v4034, 2
  %v4036 = vmax.f32 %v4034, %v4035
  %v4037 = vrot.slane %v4036, 1
  %v4038 = vmax.f32 %v4036, %v4037
  %v4039 = vsel %vm3274, %v2716, -inf
  %v4040 = vrot.slane %v4039, 4
  %v4041 = vmax.f32 %v4039, %v4040
  %v4042 = vrot.slane %v4041, 2
  %v4043 = vmax.f32 %v4041, %v4042
  %v4044 = vrot.slane %v4043, 1
  %v4045 = vmax.f32 %v4043, %v4044
  %v4046 = vsel %vm3274, %v2719, -inf
  %v4047 = vrot.slane %v4046, 4
  %v4048 = vmax.f32 %v4046, %v4047
  %v4049 = vrot.slane %v4048, 2
  %v4050 = vmax.f32 %v4048, %v4049
  %v4051 = vrot.slane %v4050, 1
  %v4052 = vmax.f32 %v4050, %v4051
  %v4053 = vsel %vm3274, %v2724, -inf
  %v4054 = vrot.slane %v4053, 4
  %v4055 = vmax.f32 %v4053, %v4054
  %v4056 = vrot.slane %v4055, 2
  %v4057 = vmax.f32 %v4055, %v4056
  %v4058 = vrot.slane %v4057, 1
  %v4059 = vmax.f32 %v4057, %v4058
  %v4060 = vsel %vm3274, %v2727, -inf
  %v4061 = vrot.slane %v4060, 4
  %v4062 = vmax.f32 %v4060, %v4061
  %v4063 = vrot.slane %v4062, 2
  %v4064 = vmax.f32 %v4062, %v4063
  %v4065 = vrot.slane %v4064, 1
  %v4066 = vmax.f32 %v4064, %v4065
  %v4067 = vsel %vm3274, %v2732, -inf
  %v4068 = vrot.slane %v4067, 4
  %v4069 = vmax.f32 %v4067, %v4068
  %v4070 = vrot.slane %v4069, 2
  %v4071 = vmax.f32 %v4069, %v4070
  %v4072 = vrot.slane %v4071, 1
  %v4073 = vmax.f32 %v4071, %v4072
  %v4074 = vsel %vm3274, %v2735, -inf
  %v4075 = vrot.slane %v4074, 4
  %v4076 = vmax.f32 %v4074, %v4075
  %v4077 = vrot.slane %v4076, 2
  %v4078 = vmax.f32 %v4076, %v4077
  %v4079 = vrot.slane %v4078, 1
  %v4080 = vmax.f32 %v4078, %v4079
  %v4081 = vsel %vm3274, %v2740, -inf
  %v4082 = vrot.slane %v4081, 4
  %v4083 = vmax.f32 %v4081, %v4082
  %v4084 = vrot.slane %v4083, 2
  %v4085 = vmax.f32 %v4083, %v4084
  %v4086 = vrot.slane %v4085, 1
  %v4087 = vmax.f32 %v4085, %v4086
  %v4088 = vsel %vm3274, %v2743, -inf
  %v4089 = vrot.slane %v4088, 4
  %v4090 = vmax.f32 %v4088, %v4089
  %v4091 = vrot.slane %v4090, 2
  %v4092 = vmax.f32 %v4090, %v4091
  %v4093 = vrot.slane %v4092, 1
  %v4094 = vmax.f32 %v4092, %v4093
  %v4095 = vsel %vm3274, %v2748, -inf
  %v4096 = vrot.slane %v4095, 4
  %v4097 = vmax.f32 %v4095, %v4096
  %v4098 = vrot.slane %v4097, 2
  %v4099 = vmax.f32 %v4097, %v4098
  %v4100 = vrot.slane %v4099, 1
  %v4101 = vmax.f32 %v4099, %v4100
  %v4102 = vsel %vm3274, %v2751, -inf
  %v4103 = vrot.slane %v4102, 4
  %v4104 = vmax.f32 %v4102, %v4103
  %v4105 = vrot.slane %v4104, 2
  %v4106 = vmax.f32 %v4104, %v4105
  %v4107 = vrot.slane %v4106, 1
  %v4108 = vmax.f32 %v4106, %v4107
  %v4109 = vsel %vm3274, %v2756, -inf
  %v4110 = vrot.slane %v4109, 4
  %v4111 = vmax.f32 %v4109, %v4110
  %v4112 = vrot.slane %v4111, 2
  %v4113 = vmax.f32 %v4111, %v4112
  %v4114 = vrot.slane %v4113, 1
  %v4115 = vmax.f32 %v4113, %v4114
  %v4116 = vsel %vm3274, %v2759, -inf
  %v4117 = vrot.slane %v4116, 4
  %v4118 = vmax.f32 %v4116, %v4117
  %v4119 = vrot.slane %v4118, 2
  %v4120 = vmax.f32 %v4118, %v4119
  %v4121 = vrot.slane %v4120, 1
  %v4122 = vmax.f32 %v4120, %v4121
  %v4123 = vsel %vm3274, %v2764, -inf
  %v4124 = vrot.slane %v4123, 4
  %v4125 = vmax.f32 %v4123, %v4124
  %v4126 = vrot.slane %v4125, 2
  %v4127 = vmax.f32 %v4125, %v4126
  %v4128 = vrot.slane %v4127, 1
  %v4129 = vmax.f32 %v4127, %v4128
  %v4130 = vsel %vm3274, %v2767, -inf
  %v4131 = vrot.slane %v4130, 4
  %v4132 = vmax.f32 %v4130, %v4131
  %v4133 = vrot.slane %v4132, 2
  %v4134 = vmax.f32 %v4132, %v4133
  %v4135 = vrot.slane %v4134, 1
  %v4136 = vmax.f32 %v4134, %v4135
  %v4137 = vsel %vm3274, %v2772, -inf
  %v4138 = vrot.slane %v4137, 4
  %v4139 = vmax.f32 %v4137, %v4138
  %v4140 = vrot.slane %v4139, 2
  %v4141 = vmax.f32 %v4139, %v4140
  %v4142 = vrot.slane %v4141, 1
  %v4143 = vmax.f32 %v4141, %v4142
  %v4144 = vsel %vm3274, %v2775, -inf
  %v4145 = vrot.slane %v4144, 4
  %v4146 = vmax.f32 %v4144, %v4145
  %v4147 = vrot.slane %v4146, 2
  %v4148 = vmax.f32 %v4146, %v4147
  %v4149 = vrot.slane %v4148, 1
  %v4150 = vmax.f32 %v4148, %v4149
  %v4151 = vsel %vm3274, %v2780, -inf
  %v4152 = vrot.slane %v4151, 4
  %v4153 = vmax.f32 %v4151, %v4152
  %v4154 = vrot.slane %v4153, 2
  %v4155 = vmax.f32 %v4153, %v4154
  %v4156 = vrot.slane %v4155, 1
  %v4157 = vmax.f32 %v4155, %v4156
  %v4158 = vsel %vm3274, %v2783, -inf
  %v4159 = vrot.slane %v4158, 4
  %v4160 = vmax.f32 %v4158, %v4159
  %v4161 = vrot.slane %v4160, 2
  %v4162 = vmax.f32 %v4160, %v4161
  %v4163 = vrot.slane %v4162, 1
  %v4164 = vmax.f32 %v4162, %v4163
  %v4165 = vsel %vm3274, %v2788, -inf
  %v4166 = vrot.slane %v4165, 4
  %v4167 = vmax.f32 %v4165, %v4166
  %v4168 = vrot.slane %v4167, 2
  %v4169 = vmax.f32 %v4167, %v4168
  %v4170 = vrot.slane %v4169, 1
  %v4171 = vmax.f32 %v4169, %v4170
  %v4172 = vsel %vm3274, %v2791, -inf
  %v4173 = vrot.slane %v4172, 4
  %v4174 = vmax.f32 %v4172, %v4173
  %v4175 = vrot.slane %v4174, 2
  %v4176 = vmax.f32 %v4174, %v4175
  %v4177 = vrot.slane %v4176, 1
  %v4178 = vmax.f32 %v4176, %v4177
  %v4179 = vsel %vm3274, %v2796, -inf
  %v4180 = vrot.slane %v4179, 4
  %v4181 = vmax.f32 %v4179, %v4180
  %v4182 = vrot.slane %v4181, 2
  %v4183 = vmax.f32 %v4181, %v4182
  %v4184 = vrot.slane %v4183, 1
  %v4185 = vmax.f32 %v4183, %v4184
  %v4186 = vsel %vm3274, %v2799, -inf
  %v4187 = vrot.slane %v4186, 4
  %v4188 = vmax.f32 %v4186, %v4187
  %v4189 = vrot.slane %v4188, 2
  %v4190 = vmax.f32 %v4188, %v4189
  %v4191 = vrot.slane %v4190, 1
  %v4192 = vmax.f32 %v4190, %v4191
  %v4193 = vsel %vm3274, %v2804, -inf
  %v4194 = vrot.slane %v4193, 4
  %v4195 = vmax.f32 %v4193, %v4194
  %v4196 = vrot.slane %v4195, 2
  %v4197 = vmax.f32 %v4195, %v4196
  %v4198 = vrot.slane %v4197, 1
  %v4199 = vmax.f32 %v4197, %v4198
  %v4200 = vsel %vm3274, %v2807, -inf
  %v4201 = vrot.slane %v4200, 4
  %v4202 = vmax.f32 %v4200, %v4201
  %v4203 = vrot.slane %v4202, 2
  %v4204 = vmax.f32 %v4202, %v4203
  %v4205 = vrot.slane %v4204, 1
  %v4206 = vmax.f32 %v4204, %v4205
  %v4207 = vsel %vm3274, %v2812, -inf
  %v4208 = vrot.slane %v4207, 4
  %v4209 = vmax.f32 %v4207, %v4208
  %v4210 = vrot.slane %v4209, 2
  %v4211 = vmax.f32 %v4209, %v4210
  %v4212 = vrot.slane %v4211, 1
  %v4213 = vmax.f32 %v4211, %v4212
  %v4214 = vsel %vm3274, %v2815, -inf
  %v4215 = vrot.slane %v4214, 4
  %v4216 = vmax.f32 %v4214, %v4215
  %v4217 = vrot.slane %v4216, 2
  %v4218 = vmax.f32 %v4216, %v4217
  %v4219 = vrot.slane %v4218, 1
  %v4220 = vmax.f32 %v4218, %v4219
  %v4221 = vsel %vm3274, %v2820, -inf
  %v4222 = vrot.slane %v4221, 4
  %v4223 = vmax.f32 %v4221, %v4222
  %v4224 = vrot.slane %v4223, 2
  %v4225 = vmax.f32 %v4223, %v4224
  %v4226 = vrot.slane %v4225, 1
  %v4227 = vmax.f32 %v4225, %v4226
  %v4228 = vsel %vm3274, %v2823, -inf
  %v4229 = vrot.slane %v4228, 4
  %v4230 = vmax.f32 %v4228, %v4229
  %v4231 = vrot.slane %v4230, 2
  %v4232 = vmax.f32 %v4230, %v4231
  %v4233 = vrot.slane %v4232, 1
  %v4234 = vmax.f32 %v4232, %v4233
  %vm4235 = vcmp.ge.f32.partialorder %v3345, 1.0
  %vm4236 = vcmp.ge.f32.partialorder %v3352, 1.0
  %vm4237 = vcmp.ge.f32.partialorder %v3359, 1.0
  %vm4238 = vcmp.ge.f32.partialorder %v3366, 1.0
  %vm4239 = vcmp.ge.f32.partialorder %v3373, 1.0
  %vm4240 = vcmp.ge.f32.partialorder %v3380, 1.0
  %vm4241 = vcmp.ge.f32.partialorder %v3387, 1.0
  %vm4242 = vcmp.ge.f32.partialorder %v3394, 1.0
  %vm4243 = vcmp.ge.f32.partialorder %v3401, 1.0
  %vm4244 = vcmp.ge.f32.partialorder %v3408, 1.0
  %vm4245 = vcmp.ge.f32.partialorder %v3415, 1.0
  %vm4246 = vcmp.ge.f32.partialorder %v3422, 1.0
  %vm4247 = vcmp.ge.f32.partialorder %v3429, 1.0
  %vm4248 = vcmp.ge.f32.partialorder %v3436, 1.0
  %vm4249 = vcmp.ge.f32.partialorder %v3443, 1.0
  %vm4250 = vcmp.ge.f32.partialorder %v3450, 1.0
  %vm4251 = vcmp.ge.f32.partialorder %v3457, 1.0
  %vm4252 = vcmp.ge.f32.partialorder %v3464, 1.0
  %vm4253 = vcmp.ge.f32.partialorder %v3471, 1.0
  %vm4254 = vcmp.ge.f32.partialorder %v3478, 1.0
  %vm4255 = vcmp.ge.f32.partialorder %v3485, 1.0
  %vm4256 = vcmp.ge.f32.partialorder %v3492, 1.0
  %vm4257 = vcmp.ge.f32.partialorder %v3499, 1.0
  %vm4258 = vcmp.ge.f32.partialorder %v3506, 1.0
  %vm4259 = vcmp.ge.f32.partialorder %v3513, 1.0
  %vm4260 = vcmp.ge.f32.partialorder %v3520, 1.0
  %vm4261 = vcmp.ge.f32.partialorder %v3527, 1.0
  %vm4262 = vcmp.ge.f32.partialorder %v3534, 1.0
  %vm4263 = vcmp.ge.f32.partialorder %v3541, 1.0
  %vm4264 = vcmp.ge.f32.partialorder %v3548, 1.0
  %vm4265 = vcmp.ge.f32.partialorder %v3555, 1.0
  %vm4266 = vcmp.ge.f32.partialorder %v3562, 1.0
  %vm4267 = vcmp.ge.f32.partialorder %v3569, 1.0
  %vm4268 = vcmp.ge.f32.partialorder %v3576, 1.0
  %vm4269 = vcmp.ge.f32.partialorder %v3583, 1.0
  %vm4270 = vcmp.ge.f32.partialorder %v3590, 1.0
  %vm4271 = vcmp.ge.f32.partialorder %v3597, 1.0
  %vm4272 = vcmp.ge.f32.partialorder %v3604, 1.0
  %vm4273 = vcmp.ge.f32.partialorder %v3611, 1.0
  %vm4274 = vcmp.ge.f32.partialorder %v3618, 1.0
  %vm4275 = vcmp.ge.f32.partialorder %v3625, 1.0
  %vm4276 = vcmp.ge.f32.partialorder %v3632, 1.0
  %vm4277 = vcmp.ge.f32.partialorder %v3639, 1.0
  %vm4278 = vcmp.ge.f32.partialorder %v3646, 1.0
  %vm4279 = vcmp.ge.f32.partialorder %v3653, 1.0
  %vm4280 = vcmp.ge.f32.partialorder %v3660, 1.0
  %vm4281 = vcmp.ge.f32.partialorder %v3667, 1.0
  %vm4282 = vcmp.ge.f32.partialorder %v3674, 1.0
  %vm4283 = vcmp.ge.f32.partialorder %v3681, 1.0
  %vm4284 = vcmp.ge.f32.partialorder %v3688, 1.0
  %vm4285 = vcmp.ge.f32.partialorder %v3695, 1.0
  %vm4286 = vcmp.ge.f32.partialorder %v3702, 1.0
  %vm4287 = vcmp.ge.f32.partialorder %v3709, 1.0
  %vm4288 = vcmp.ge.f32.partialorder %v3716, 1.0
  %vm4289 = vcmp.ge.f32.partialorder %v3723, 1.0
  %vm4290 = vcmp.ge.f32.partialorder %v3730, 1.0
  %vm4291 = vcmp.ge.f32.partialorder %v3737, 1.0
  %vm4292 = vcmp.ge.f32.partialorder %v3744, 1.0
  %vm4293 = vcmp.ge.f32.partialorder %v3751, 1.0
  %vm4294 = vcmp.ge.f32.partialorder %v3758, 1.0
  %vm4295 = vcmp.ge.f32.partialorder %v3765, 1.0
  %vm4296 = vcmp.ge.f32.partialorder %v3772, 1.0
  %vm4297 = vcmp.ge.f32.partialorder %v3779, 1.0
  %vm4298 = vcmp.ge.f32.partialorder %v3786, 1.0
  %vm4299 = vcmp.ge.f32.partialorder %v3793, 1.0
  %vm4300 = vcmp.ge.f32.partialorder %v3800, 1.0
  %vm4301 = vcmp.ge.f32.partialorder %v3807, 1.0
  %vm4302 = vcmp.ge.f32.partialorder %v3814, 1.0
  %vm4303 = vcmp.ge.f32.partialorder %v3821, 1.0
  %vm4304 = vcmp.ge.f32.partialorder %v3828, 1.0
  %vm4305 = vcmp.ge.f32.partialorder %v3835, 1.0
  %vm4306 = vcmp.ge.f32.partialorder %v3842, 1.0
  %vm4307 = vcmp.ge.f32.partialorder %v3849, 1.0
  %vm4308 = vcmp.ge.f32.partialorder %v3856, 1.0
  %vm4309 = vcmp.ge.f32.partialorder %v3863, 1.0
  %vm4310 = vcmp.ge.f32.partialorder %v3870, 1.0
  %vm4311 = vcmp.ge.f32.partialorder %v3877, 1.0
  %vm4312 = vcmp.ge.f32.partialorder %v3884, 1.0
  %vm4313 = vcmp.ge.f32.partialorder %v3891, 1.0
  %vm4314 = vcmp.ge.f32.partialorder %v3898, 1.0
  %vm4315 = vcmp.ge.f32.partialorder %v3905, 1.0
  %vm4316 = vcmp.ge.f32.partialorder %v3912, 1.0
  %vm4317 = vcmp.ge.f32.partialorder %v3919, 1.0
  %vm4318 = vcmp.ge.f32.partialorder %v3926, 1.0
  %vm4319 = vcmp.ge.f32.partialorder %v3933, 1.0
  %vm4320 = vcmp.ge.f32.partialorder %v3940, 1.0
  %vm4321 = vcmp.ge.f32.partialorder %v3947, 1.0
  %vm4322 = vcmp.ge.f32.partialorder %v3954, 1.0
  %vm4323 = vcmp.ge.f32.partialorder %v3961, 1.0
  %vm4324 = vcmp.ge.f32.partialorder %v3968, 1.0
  %vm4325 = vcmp.ge.f32.partialorder %v3975, 1.0
  %vm4326 = vcmp.ge.f32.partialorder %v3982, 1.0
  %vm4327 = vcmp.ge.f32.partialorder %v3989, 1.0
  %vm4328 = vcmp.ge.f32.partialorder %v3996, 1.0
  %vm4329 = vcmp.ge.f32.partialorder %v4003, 1.0
  %vm4330 = vcmp.ge.f32.partialorder %v4010, 1.0
  %vm4331 = vcmp.ge.f32.partialorder %v4017, 1.0
  %vm4332 = vcmp.ge.f32.partialorder %v4024, 1.0
  %vm4333 = vcmp.ge.f32.partialorder %v4031, 1.0
  %vm4334 = vcmp.ge.f32.partialorder %v4038, 1.0
  %vm4335 = vcmp.ge.f32.partialorder %v4045, 1.0
  %vm4336 = vcmp.ge.f32.partialorder %v4052, 1.0
  %vm4337 = vcmp.ge.f32.partialorder %v4059, 1.0
  %vm4338 = vcmp.ge.f32.partialorder %v4066, 1.0
  %vm4339 = vcmp.ge.f32.partialorder %v4073, 1.0
  %vm4340 = vcmp.ge.f32.partialorder %v4080, 1.0
  %vm4341 = vcmp.ge.f32.partialorder %v4087, 1.0
  %vm4342 = vcmp.ge.f32.partialorder %v4094, 1.0
  %vm4343 = vcmp.ge.f32.partialorder %v4101, 1.0
  %vm4344 = vcmp.ge.f32.partialorder %v4108, 1.0
  %vm4345 = vcmp.ge.f32.partialorder %v4115, 1.0
  %vm4346 = vcmp.ge.f32.partialorder %v4122, 1.0
  %vm4347 = vcmp.ge.f32.partialorder %v4129, 1.0
  %vm4348 = vcmp.ge.f32.partialorder %v4136, 1.0
  %vm4349 = vcmp.ge.f32.partialorder %v4143, 1.0
  %vm4350 = vcmp.ge.f32.partialorder %v4150, 1.0
  %vm4351 = vcmp.ge.f32.partialorder %v4157, 1.0
  %vm4352 = vcmp.ge.f32.partialorder %v4164, 1.0
  %vm4353 = vcmp.ge.f32.partialorder %v4171, 1.0
  %vm4354 = vcmp.ge.f32.partialorder %v4178, 1.0
  %vm4355 = vcmp.ge.f32.partialorder %v4185, 1.0
  %vm4356 = vcmp.ge.f32.partialorder %v4192, 1.0
  %vm4357 = vcmp.ge.f32.partialorder %v4199, 1.0
  %vm4358 = vcmp.ge.f32.partialorder %v4206, 1.0
  %vm4359 = vcmp.ge.f32.partialorder %v4213, 1.0
  %vm4360 = vcmp.ge.f32.partialorder %v4220, 1.0
  %vm4361 = vcmp.ge.f32.partialorder %v4227, 1.0
  %vm4362 = vcmp.ge.f32.partialorder %v4234, 1.0
  %v4363 = vsel %vm4235, 1, 0
  %v4364 = vsel %vm4236, 1, 0
  %v4365 = vsel %vm4237, 1, 0
  %v4366 = vsel %vm4238, 1, 0
  %v4367 = vsel %vm4239, 1, 0
  %v4368 = vsel %vm4240, 1, 0
  %v4369 = vsel %vm4241, 1, 0
  %v4370 = vsel %vm4242, 1, 0
  %v4371 = vsel %vm4243, 1, 0
  %v4372 = vsel %vm4244, 1, 0
  %v4373 = vsel %vm4245, 1, 0
  %v4374 = vsel %vm4246, 1, 0
  %v4375 = vsel %vm4247, 1, 0
  %v4376 = vsel %vm4248, 1, 0
  %v4377 = vsel %vm4249, 1, 0
  %v4378 = vsel %vm4250, 1, 0
  %v4379 = vsel %vm4251, 1, 0
  %v4380 = vsel %vm4252, 1, 0
  %v4381 = vsel %vm4253, 1, 0
  %v4382 = vsel %vm4254, 1, 0
  %v4383 = vsel %vm4255, 1, 0
  %v4384 = vsel %vm4256, 1, 0
  %v4385 = vsel %vm4257, 1, 0
  %v4386 = vsel %vm4258, 1, 0
  %v4387 = vsel %vm4259, 1, 0
  %v4388 = vsel %vm4260, 1, 0
  %v4389 = vsel %vm4261, 1, 0
  %v4390 = vsel %vm4262, 1, 0
  %v4391 = vsel %vm4263, 1, 0
  %v4392 = vsel %vm4264, 1, 0
  %v4393 = vsel %vm4265, 1, 0
  %v4394 = vsel %vm4266, 1, 0
  %v4395 = vsel %vm4267, 1, 0
  %v4396 = vsel %vm4268, 1, 0
  %v4397 = vsel %vm4269, 1, 0
  %v4398 = vsel %vm4270, 1, 0
  %v4399 = vsel %vm4271, 1, 0
  %v4400 = vsel %vm4272, 1, 0
  %v4401 = vsel %vm4273, 1, 0
  %v4402 = vsel %vm4274, 1, 0
  %v4403 = vsel %vm4275, 1, 0
  %v4404 = vsel %vm4276, 1, 0
  %v4405 = vsel %vm4277, 1, 0
  %v4406 = vsel %vm4278, 1, 0
  %v4407 = vsel %vm4279, 1, 0
  %v4408 = vsel %vm4280, 1, 0
  %v4409 = vsel %vm4281, 1, 0
  %v4410 = vsel %vm4282, 1, 0
  %v4411 = vsel %vm4283, 1, 0
  %v4412 = vsel %vm4284, 1, 0
  %v4413 = vsel %vm4285, 1, 0
  %v4414 = vsel %vm4286, 1, 0
  %v4415 = vsel %vm4287, 1, 0
  %v4416 = vsel %vm4288, 1, 0
  %v4417 = vsel %vm4289, 1, 0
  %v4418 = vsel %vm4290, 1, 0
  %v4419 = vsel %vm4291, 1, 0
  %v4420 = vsel %vm4292, 1, 0
  %v4421 = vsel %vm4293, 1, 0
  %v4422 = vsel %vm4294, 1, 0
  %v4423 = vsel %vm4295, 1, 0
  %v4424 = vsel %vm4296, 1, 0
  %v4425 = vsel %vm4297, 1, 0
  %v4426 = vsel %vm4298, 1, 0
  %v4427 = vsel %vm4299, 1, 0
  %v4428 = vsel %vm4300, 1, 0
  %v4429 = vsel %vm4301, 1, 0
  %v4430 = vsel %vm4302, 1, 0
  %v4431 = vsel %vm4303, 1, 0
  %v4432 = vsel %vm4304, 1, 0
  %v4433 = vsel %vm4305, 1, 0
  %v4434 = vsel %vm4306, 1, 0
  %v4435 = vsel %vm4307, 1, 0
  %v4436 = vsel %vm4308, 1, 0
  %v4437 = vsel %vm4309, 1, 0
  %v4438 = vsel %vm4310, 1, 0
  %v4439 = vsel %vm4311, 1, 0
  %v4440 = vsel %vm4312, 1, 0
  %v4441 = vsel %vm4313, 1, 0
  %v4442 = vsel %vm4314, 1, 0
  %v4443 = vsel %vm4315, 1, 0
  %v4444 = vsel %vm4316, 1, 0
  %v4445 = vsel %vm4317, 1, 0
  %v4446 = vsel %vm4318, 1, 0
  %v4447 = vsel %vm4319, 1, 0
  %v4448 = vsel %vm4320, 1, 0
  %v4449 = vsel %vm4321, 1, 0
  %v4450 = vsel %vm4322, 1, 0
  %v4451 = vsel %vm4323, 1, 0
  %v4452 = vsel %vm4324, 1, 0
  %v4453 = vsel %vm4325, 1, 0
  %v4454 = vsel %vm4326, 1, 0
  %v4455 = vsel %vm4327, 1, 0
  %v4456 = vsel %vm4328, 1, 0
  %v4457 = vsel %vm4329, 1, 0
  %v4458 = vsel %vm4330, 1, 0
  %v4459 = vsel %vm4331, 1, 0
  %v4460 = vsel %vm4332, 1, 0
  %v4461 = vsel %vm4333, 1, 0
  %v4462 = vsel %vm4334, 1, 0
  %v4463 = vsel %vm4335, 1, 0
  %v4464 = vsel %vm4336, 1, 0
  %v4465 = vsel %vm4337, 1, 0
  %v4466 = vsel %vm4338, 1, 0
  %v4467 = vsel %vm4339, 1, 0
  %v4468 = vsel %vm4340, 1, 0
  %v4469 = vsel %vm4341, 1, 0
  %v4470 = vsel %vm4342, 1, 0
  %v4471 = vsel %vm4343, 1, 0
  %v4472 = vsel %vm4344, 1, 0
  %v4473 = vsel %vm4345, 1, 0
  %v4474 = vsel %vm4346, 1, 0
  %v4475 = vsel %vm4347, 1, 0
  %v4476 = vsel %vm4348, 1, 0
  %v4477 = vsel %vm4349, 1, 0
  %v4478 = vsel %vm4350, 1, 0
  %v4479 = vsel %vm4351, 1, 0
  %v4480 = vsel %vm4352, 1, 0
  %v4481 = vsel %vm4353, 1, 0
  %v4482 = vsel %vm4354, 1, 0
  %v4483 = vsel %vm4355, 1, 0
  %v4484 = vsel %vm4356, 1, 0
  %v4485 = vsel %vm4357, 1, 0
  %v4486 = vsel %vm4358, 1, 0
  %v4487 = vsel %vm4359, 1, 0
  %v4488 = vsel %vm4360, 1, 0
  %v4489 = vsel %vm4361, 1, 0
  %v4490 = vsel %vm4362, 1, 0
  %v4491 = vcvt.s32.f32 %v4363
  %v4492 = vcvt.s32.f32 %v4364
  %v4493 = vcvt.s32.f32 %v4365
  %v4494 = vcvt.s32.f32 %v4366
  %v4495 = vcvt.s32.f32 %v4367
  %v4496 = vcvt.s32.f32 %v4368
  %v4497 = vcvt.s32.f32 %v4369
  %v4498 = vcvt.s32.f32 %v4370
  %v4499 = vcvt.s32.f32 %v4371
  %v4500 = vcvt.s32.f32 %v4372
  %v4501 = vcvt.s32.f32 %v4373
  %v4502 = vcvt.s32.f32 %v4374
  %v4503 = vcvt.s32.f32 %v4375
  %v4504 = vcvt.s32.f32 %v4376
  %v4505 = vcvt.s32.f32 %v4377
  %v4506 = vcvt.s32.f32 %v4378
  %v4507 = vcvt.s32.f32 %v4379
  %v4508 = vcvt.s32.f32 %v4380
  %v4509 = vcvt.s32.f32 %v4381
  %v4510 = vcvt.s32.f32 %v4382
  %v4511 = vcvt.s32.f32 %v4383
  %v4512 = vcvt.s32.f32 %v4384
  %v4513 = vcvt.s32.f32 %v4385
  %v4514 = vcvt.s32.f32 %v4386
  %v4515 = vcvt.s32.f32 %v4387
  %v4516 = vcvt.s32.f32 %v4388
  %v4517 = vcvt.s32.f32 %v4389
  %v4518 = vcvt.s32.f32 %v4390
  %v4519 = vcvt.s32.f32 %v4391
  %v4520 = vcvt.s32.f32 %v4392
  %v4521 = vcvt.s32.f32 %v4393
  %v4522 = vcvt.s32.f32 %v4394
  %v4523 = vcvt.s32.f32 %v4395
  %v4524 = vcvt.s32.f32 %v4396
  %v4525 = vcvt.s32.f32 %v4397
  %v4526 = vcvt.s32.f32 %v4398
  %v4527 = vcvt.s32.f32 %v4399
  %v4528 = vcvt.s32.f32 %v4400
  %v4529 = vcvt.s32.f32 %v4401
  %v4530 = vcvt.s32.f32 %v4402
  %v4531 = vcvt.s32.f32 %v4403
  %v4532 = vcvt.s32.f32 %v4404
  %v4533 = vcvt.s32.f32 %v4405
  %v4534 = vcvt.s32.f32 %v4406
  %v4535 = vcvt.s32.f32 %v4407
  %v4536 = vcvt.s32.f32 %v4408
  %v4537 = vcvt.s32.f32 %v4409
  %v4538 = vcvt.s32.f32 %v4410
  %v4539 = vcvt.s32.f32 %v4411
  %v4540 = vcvt.s32.f32 %v4412
  %v4541 = vcvt.s32.f32 %v4413
  %v4542 = vcvt.s32.f32 %v4414
  %v4543 = vcvt.s32.f32 %v4415
  %v4544 = vcvt.s32.f32 %v4416
  %v4545 = vcvt.s32.f32 %v4417
  %v4546 = vcvt.s32.f32 %v4418
  %v4547 = vcvt.s32.f32 %v4419
  %v4548 = vcvt.s32.f32 %v4420
  %v4549 = vcvt.s32.f32 %v4421
  %v4550 = vcvt.s32.f32 %v4422
  %v4551 = vcvt.s32.f32 %v4423
  %v4552 = vcvt.s32.f32 %v4424
  %v4553 = vcvt.s32.f32 %v4425
  %v4554 = vcvt.s32.f32 %v4426
  %v4555 = vcvt.s32.f32 %v4427
  %v4556 = vcvt.s32.f32 %v4428
  %v4557 = vcvt.s32.f32 %v4429
  %v4558 = vcvt.s32.f32 %v4430
  %v4559 = vcvt.s32.f32 %v4431
  %v4560 = vcvt.s32.f32 %v4432
  %v4561 = vcvt.s32.f32 %v4433
  %v4562 = vcvt.s32.f32 %v4434
  %v4563 = vcvt.s32.f32 %v4435
  %v4564 = vcvt.s32.f32 %v4436
  %v4565 = vcvt.s32.f32 %v4437
  %v4566 = vcvt.s32.f32 %v4438
  %v4567 = vcvt.s32.f32 %v4439
  %v4568 = vcvt.s32.f32 %v4440
  %v4569 = vcvt.s32.f32 %v4441
  %v4570 = vcvt.s32.f32 %v4442
  %v4571 = vcvt.s32.f32 %v4443
  %v4572 = vcvt.s32.f32 %v4444
  %v4573 = vcvt.s32.f32 %v4445
  %v4574 = vcvt.s32.f32 %v4446
  %v4575 = vcvt.s32.f32 %v4447
  %v4576 = vcvt.s32.f32 %v4448
  %v4577 = vcvt.s32.f32 %v4449
  %v4578 = vcvt.s32.f32 %v4450
  %v4579 = vcvt.s32.f32 %v4451
  %v4580 = vcvt.s32.f32 %v4452
  %v4581 = vcvt.s32.f32 %v4453
  %v4582 = vcvt.s32.f32 %v4454
  %v4583 = vcvt.s32.f32 %v4455
  %v4584 = vcvt.s32.f32 %v4456
  %v4585 = vcvt.s32.f32 %v4457
  %v4586 = vcvt.s32.f32 %v4458
  %v4587 = vcvt.s32.f32 %v4459
  %v4588 = vcvt.s32.f32 %v4460
  %v4589 = vcvt.s32.f32 %v4461
  %v4590 = vcvt.s32.f32 %v4462
  %v4591 = vcvt.s32.f32 %v4463
  %v4592 = vcvt.s32.f32 %v4464
  %v4593 = vcvt.s32.f32 %v4465
  %v4594 = vcvt.s32.f32 %v4466
  %v4595 = vcvt.s32.f32 %v4467
  %v4596 = vcvt.s32.f32 %v4468
  %v4597 = vcvt.s32.f32 %v4469
  %v4598 = vcvt.s32.f32 %v4470
  %v4599 = vcvt.s32.f32 %v4471
  %v4600 = vcvt.s32.f32 %v4472
  %v4601 = vcvt.s32.f32 %v4473
  %v4602 = vcvt.s32.f32 %v4474
  %v4603 = vcvt.s32.f32 %v4475
  %v4604 = vcvt.s32.f32 %v4476
  %v4605 = vcvt.s32.f32 %v4477
  %v4606 = vcvt.s32.f32 %v4478
  %v4607 = vcvt.s32.f32 %v4479
  %v4608 = vcvt.s32.f32 %v4480
  %v4609 = vcvt.s32.f32 %v4481
  %v4610 = vcvt.s32.f32 %v4482
  %v4611 = vcvt.s32.f32 %v4483
  %v4612 = vcvt.s32.f32 %v4484
  %v4613 = vcvt.s32.f32 %v4485
  %v4614 = vcvt.s32.f32 %v4486
  %v4615 = vcvt.s32.f32 %v4487
  %v4616 = vcvt.s32.f32 %v4488
  %v4617 = vcvt.s32.f32 %v4489
  %v4618 = vcvt.s32.f32 %v4490
  %vm4747 = vcmask 1041409
  %v4748 = vsel %vm4747, %v4492, %v4491
  %vm4749 = vcmask 1042434
  %v4750 = vsel %vm4749, %v4493, %v4748
  %vm4751 = vcmask 1043459
  %v4752 = vsel %vm4751, %v4494, %v4750
  %vm4753 = vcmask 1044484
  %v4754 = vsel %vm4753, %v4495, %v4752
  %vm4755 = vcmask 1045509
  %v4756 = vsel %vm4755, %v4496, %v4754
  %vm4757 = vcmask 1046534
  %v4758 = vsel %vm4757, %v4497, %v4756
  %vm4759 = vcmask 1047559
  %v4760 = vsel %vm4759, %v4498, %v4758
  %v4761 = vsel %vm4747, %v4500, %v4499
  %v4762 = vsel %vm4749, %v4501, %v4761
  %v4763 = vsel %vm4751, %v4502, %v4762
  %v4764 = vsel %vm4753, %v4503, %v4763
  %v4765 = vsel %vm4755, %v4504, %v4764
  %v4766 = vsel %vm4757, %v4505, %v4765
  %v4767 = vsel %vm4759, %v4506, %v4766
  %v4768 = vsel %vm4747, %v4508, %v4507
  %v4769 = vsel %vm4749, %v4509, %v4768
  %v4770 = vsel %vm4751, %v4510, %v4769
  %v4771 = vsel %vm4753, %v4511, %v4770
  %v4772 = vsel %vm4755, %v4512, %v4771
  %v4773 = vsel %vm4757, %v4513, %v4772
  %v4774 = vsel %vm4759, %v4514, %v4773
  %v4775 = vsel %vm4747, %v4516, %v4515
  %v4776 = vsel %vm4749, %v4517, %v4775
  %v4777 = vsel %vm4751, %v4518, %v4776
  %v4778 = vsel %vm4753, %v4519, %v4777
  %v4779 = vsel %vm4755, %v4520, %v4778
  %v4780 = vsel %vm4757, %v4521, %v4779
  %v4781 = vsel %vm4759, %v4522, %v4780
  %v4782 = vsel %vm4747, %v4524, %v4523
  %v4783 = vsel %vm4749, %v4525, %v4782
  %v4784 = vsel %vm4751, %v4526, %v4783
  %v4785 = vsel %vm4753, %v4527, %v4784
  %v4786 = vsel %vm4755, %v4528, %v4785
  %v4787 = vsel %vm4757, %v4529, %v4786
  %v4788 = vsel %vm4759, %v4530, %v4787
  %v4789 = vsel %vm4747, %v4532, %v4531
  %v4790 = vsel %vm4749, %v4533, %v4789
  %v4791 = vsel %vm4751, %v4534, %v4790
  %v4792 = vsel %vm4753, %v4535, %v4791
  %v4793 = vsel %vm4755, %v4536, %v4792
  %v4794 = vsel %vm4757, %v4537, %v4793
  %v4795 = vsel %vm4759, %v4538, %v4794
  %v4796 = vsel %vm4747, %v4540, %v4539
  %v4797 = vsel %vm4749, %v4541, %v4796
  %v4798 = vsel %vm4751, %v4542, %v4797
  %v4799 = vsel %vm4753, %v4543, %v4798
  %v4800 = vsel %vm4755, %v4544, %v4799
  %v4801 = vsel %vm4757, %v4545, %v4800
  %v4802 = vsel %vm4759, %v4546, %v4801
  %v4803 = vsel %vm4747, %v4548, %v4547
  %v4804 = vsel %vm4749, %v4549, %v4803
  %v4805 = vsel %vm4751, %v4550, %v4804
  %v4806 = vsel %vm4753, %v4551, %v4805
  %v4807 = vsel %vm4755, %v4552, %v4806
  %v4808 = vsel %vm4757, %v4553, %v4807
  %v4809 = vsel %vm4759, %v4554, %v4808
  %v4810 = vsel %vm4747, %v4556, %v4555
  %v4811 = vsel %vm4749, %v4557, %v4810
  %v4812 = vsel %vm4751, %v4558, %v4811
  %v4813 = vsel %vm4753, %v4559, %v4812
  %v4814 = vsel %vm4755, %v4560, %v4813
  %v4815 = vsel %vm4757, %v4561, %v4814
  %v4816 = vsel %vm4759, %v4562, %v4815
  %v4817 = vsel %vm4747, %v4564, %v4563
  %v4818 = vsel %vm4749, %v4565, %v4817
  %v4819 = vsel %vm4751, %v4566, %v4818
  %v4820 = vsel %vm4753, %v4567, %v4819
  %v4821 = vsel %vm4755, %v4568, %v4820
  %v4822 = vsel %vm4757, %v4569, %v4821
  %v4823 = vsel %vm4759, %v4570, %v4822
  %v4824 = vsel %vm4747, %v4572, %v4571
  %v4825 = vsel %vm4749, %v4573, %v4824
  %v4826 = vsel %vm4751, %v4574, %v4825
  %v4827 = vsel %vm4753, %v4575, %v4826
  %v4828 = vsel %vm4755, %v4576, %v4827
  %v4829 = vsel %vm4757, %v4577, %v4828
  %v4830 = vsel %vm4759, %v4578, %v4829
  %v4831 = vsel %vm4747, %v4580, %v4579
  %v4832 = vsel %vm4749, %v4581, %v4831
  %v4833 = vsel %vm4751, %v4582, %v4832
  %v4834 = vsel %vm4753, %v4583, %v4833
  %v4835 = vsel %vm4755, %v4584, %v4834
  %v4836 = vsel %vm4757, %v4585, %v4835
  %v4837 = vsel %vm4759, %v4586, %v4836
  %v4838 = vsel %vm4747, %v4588, %v4587
  %v4839 = vsel %vm4749, %v4589, %v4838
  %v4840 = vsel %vm4751, %v4590, %v4839
  %v4841 = vsel %vm4753, %v4591, %v4840
  %v4842 = vsel %vm4755, %v4592, %v4841
  %v4843 = vsel %vm4757, %v4593, %v4842
  %v4844 = vsel %vm4759, %v4594, %v4843
  %v4845 = vsel %vm4747, %v4596, %v4595
  %v4846 = vsel %vm4749, %v4597, %v4845
  %v4847 = vsel %vm4751, %v4598, %v4846
  %v4848 = vsel %vm4753, %v4599, %v4847
  %v4849 = vsel %vm4755, %v4600, %v4848
  %v4850 = vsel %vm4757, %v4601, %v4849
  %v4851 = vsel %vm4759, %v4602, %v4850
  %v4852 = vsel %vm4747, %v4604, %v4603
  %v4853 = vsel %vm4749, %v4605, %v4852
  %v4854 = vsel %vm4751, %v4606, %v4853
  %v4855 = vsel %vm4753, %v4607, %v4854
  %v4856 = vsel %vm4755, %v4608, %v4855
  %v4857 = vsel %vm4757, %v4609, %v4856
  %v4858 = vsel %vm4759, %v4610, %v4857
  %v4859 = vsel %vm4747, %v4612, %v4611
  %v4860 = vsel %vm4749, %v4613, %v4859
  %v4861 = vsel %vm4751, %v4614, %v4860
  %v4862 = vsel %vm4753, %v4615, %v4861
  %v4863 = vsel %vm4755, %v4616, %v4862
  %v4864 = vsel %vm4757, %v4617, %v4863
  %v4865 = vsel %vm4759, %v4618, %v4864
  %4866 = vrot.lane.b32.xlu0 %v4760, 32
  %v4867 = vpop.permute.xlu0 %4866
  %4868 = vrot.lane.b32.xlu0 %v4767, 32
  %v4869 = vpop.permute.xlu0 %4868
  %4870 = vrot.lane.b32.xlu0 %v4774, 32
  %v4871 = vpop.permute.xlu0 %4870
  %4872 = vrot.lane.b32.xlu0 %v4781, 32
  %v4873 = vpop.permute.xlu0 %4872
  %4874 = vrot.lane.b32.xlu0 %v4788, 32
  %v4875 = vpop.permute.xlu0 %4874
  %4876 = vrot.lane.b32.xlu0 %v4795, 32
  %v4877 = vpop.permute.xlu0 %4876
  %4878 = vrot.lane.b32.xlu0 %v4802, 32
  %v4879 = vpop.permute.xlu0 %4878
  %4880 = vrot.lane.b32.xlu0 %v4809, 32
  %v4881 = vpop.permute.xlu0 %4880
  %4882 = vrot.lane.b32.xlu0 %v4816, 32
  %v4883 = vpop.permute.xlu0 %4882
  %4884 = vrot.lane.b32.xlu0 %v4823, 32
  %v4885 = vpop.permute.xlu0 %4884
  %4886 = vrot.lane.b32.xlu0 %v4830, 32
  %v4887 = vpop.permute.xlu0 %4886
  %4888 = vrot.lane.b32.xlu0 %v4837, 32
  %v4889 = vpop.permute.xlu0 %4888
  %4890 = vrot.lane.b32.xlu0 %v4844, 32
  %v4891 = vpop.permute.xlu0 %4890
  %4892 = vrot.lane.b32.xlu0 %v4851, 32
  %v4893 = vpop.permute.xlu0 %4892
  %4894 = vrot.lane.b32.xlu0 %v4858, 32
  %v4895 = vpop.permute.xlu0 %4894
  %4896 = vrot.lane.b32.xlu0 %v4865, 32
  %v4897 = vpop.permute.xlu0 %4896
  %vm4914 = vcmask 392448
  %4915 = vst.msk [vmem:[%s11] sm:$0xff] %vm4914, %v4867
  %4916 = vst.msk [vmem:[%s11 + $0x8] sm:$0xff] %vm4914, %v4869
  %4917 = vst.msk [vmem:[%s11 + $0x10] sm:$0xff] %vm4914, %v4871
  %4918 = vst.msk [vmem:[%s11 + $0x18] sm:$0xff] %vm4914, %v4873
  %4919 = vst.msk [vmem:[%s11 + $0x20] sm:$0xff] %vm4914, %v4875
  %4920 = vst.msk [vmem:[%s11 + $0x28] sm:$0xff] %vm4914, %v4877
  %4921 = vst.msk [vmem:[%s11 + $0x30] sm:$0xff] %vm4914, %v4879
  %4922 = vst.msk [vmem:[%s11 + $0x38] sm:$0xff] %vm4914, %v4881
  %4923 = vst.msk [vmem:[%s11 + $0x40] sm:$0xff] %vm4914, %v4883
  %4924 = vst.msk [vmem:[%s11 + $0x48] sm:$0xff] %vm4914, %v4885
  %4925 = vst.msk [vmem:[%s11 + $0x50] sm:$0xff] %vm4914, %v4887
  %4926 = vst.msk [vmem:[%s11 + $0x58] sm:$0xff] %vm4914, %v4889
  %4927 = vst.msk [vmem:[%s11 + $0x60] sm:$0xff] %vm4914, %v4891
  %4928 = vst.msk [vmem:[%s11 + $0x68] sm:$0xff] %vm4914, %v4893
  %4929 = vst.msk [vmem:[%s11 + $0x70] sm:$0xff] %vm4914, %v4895
  %4930 = vst.msk [vmem:[%s11 + $0x78] sm:$0xff] %vm4914, %v4897
  %v4931 = vld [vmem:[%s6] sm:$0xf]
  %v4932 = vld [vmem:[%s7] sm:$0x1]
  %v4934 = vlaneseq
  %v4935 = vshrl.u32 %v4934, 7
  %v4936 = vsub.s32 0, %v4935
  %v4937 = vrot.slane %v4932, %v4936
  %v4940 = vsel %vm96, %v4931, 0
  %4942 = vmatprep.subr.bf16.mxu0 0
  %4943 = vmatpush1.bf16.msra.mxu0 %v4940
  %4944 = vmatprep.subr.bf16.mxu0 0
  %4945 = vmatpush1.bf16.msra.mxu0 0
  %4946 = vmatprep.subr.bf16.mxu0 0
  %4947 = vmatpush1.bf16.msra.mxu0 0
  %4948 = vmatprep.subr.bf16.mxu0 0
  %4949 = vmatpush1.bf16.msra.mxu0 0
  %4950 = vmatprep.subr.bf16.mxu0 0
  %4951 = vmatpush1.bf16.msra.mxu0 0
  %4952 = vmatprep.subr.bf16.mxu0 0
  %4953 = vmatpush1.bf16.msra.mxu0 0
  %4954 = vmatprep.subr.bf16.mxu0 0
  %4955 = vmatpush1.bf16.msra.mxu0 0
  %4956 = vmatprep.subr.bf16.mxu0 0
  %4957 = vmatpush1.bf16.msra.mxu0 0
  %4958 = vmatprep.subr.bf16.mxu0 0
  %4959 = vmatpush1.bf16.msra.mxu0 0
  %4960 = vmatprep.subr.bf16.mxu0 0
  %4961 = vmatpush1.bf16.msra.mxu0 0
  %4962 = vmatprep.subr.bf16.mxu0 0
  %4963 = vmatpush1.bf16.msra.mxu0 0
  %4964 = vmatprep.subr.bf16.mxu0 0
  %4965 = vmatpush1.bf16.msra.mxu0 0
  %4966 = vmatprep.subr.bf16.mxu0 0
  %4967 = vmatpush1.bf16.msra.mxu0 0
  %4968 = vmatprep.subr.bf16.mxu0 0
  %4969 = vmatpush1.bf16.msra.mxu0 0
  %4970 = vmatprep.subr.bf16.mxu0 0
  %4971 = vmatpush1.bf16.msra.mxu0 0
  %4972 = vmatprep.subr.bf16.mxu0 0
  %4973 = vmatpush1.bf16.msra.mxu0 0
  %4974 = vmatprep.mubr.bf16.mxu0 0
  %4975 = vmatmul.mubr.bf16.gmra.mrb[0].mxu0 %v73
  %v4976 = vpop.f32.mrb[0].mxu0
  %v4977 = vadd.f32 %v4937, %v4976
  %v4978 = vpop.f32.mrb[0].mxu0
  %v4979 = vpop.f32.mrb[0].mxu0
  %v4980 = vadd.f32 %v4937, %v4979
  %v4981 = vpop.f32.mrb[0].mxu0
  %4982 = vmatprep.mubr.bf16.mxu0 0
  %4983 = vmatmul.mubr.bf16.gmra.mrb[0].mxu0 %v76
  %v4984 = vpop.f32.mrb[0].mxu0
  %v4985 = vadd.f32 %v4937, %v4984
  %v4986 = vpop.f32.mrb[0].mxu0
  %v4987 = vpop.f32.mrb[0].mxu0
  %v4988 = vadd.f32 %v4937, %v4987
  %v4989 = vpop.f32.mrb[0].mxu0
  %4990 = vmatprep.mubr.bf16.mxu0 0
  %4991 = vmatmul.mubr.bf16.gmra.mrb[0].mxu0 %v79
  %v4992 = vpop.f32.mrb[0].mxu0
  %v4993 = vadd.f32 %v4937, %v4992
  %v4994 = vpop.f32.mrb[0].mxu0
  %v4995 = vpop.f32.mrb[0].mxu0
  %v4996 = vadd.f32 %v4937, %v4995
  %v4997 = vpop.f32.mrb[0].mxu0
  %4998 = vmatprep.mubr.bf16.mxu0 0
  %4999 = vmatmul.mubr.bf16.gmra.mrb[0].mxu0 %v82
  %v5000 = vpop.f32.mrb[0].mxu0
  %v5001 = vadd.f32 %v4937, %v5000
  %v5002 = vpop.f32.mrb[0].mxu0
  %v5003 = vpop.f32.mrb[0].mxu0
  %v5004 = vadd.f32 %v4937, %v5003
  %v5005 = vpop.f32.mrb[0].mxu0
  %5006 = vmatprep.mubr.bf16.mxu0 0
  %5007 = vmatmul.mubr.bf16.gmra.mrb[0].mxu0 %v85
  %v5008 = vpop.f32.mrb[0].mxu0
  %v5009 = vadd.f32 %v4937, %v5008
  %v5010 = vpop.f32.mrb[0].mxu0
  %v5011 = vpop.f32.mrb[0].mxu0
  %v5012 = vadd.f32 %v4937, %v5011
  %v5013 = vpop.f32.mrb[0].mxu0
  %5014 = vmatprep.mubr.bf16.mxu0 0
  %5015 = vmatmul.mubr.bf16.gmra.mrb[0].mxu0 %v88
  %v5016 = vpop.f32.mrb[0].mxu0
  %v5017 = vadd.f32 %v4937, %v5016
  %v5018 = vpop.f32.mrb[0].mxu0
  %v5019 = vpop.f32.mrb[0].mxu0
  %v5020 = vadd.f32 %v4937, %v5019
  %v5021 = vpop.f32.mrb[0].mxu0
  %5022 = vmatprep.mubr.bf16.mxu0 0
  %5023 = vmatmul.mubr.bf16.gmra.mrb[0].mxu0 %v91
  %v5024 = vpop.f32.mrb[0].mxu0
  %v5025 = vadd.f32 %v4937, %v5024
  %v5026 = vpop.f32.mrb[0].mxu0
  %v5027 = vpop.f32.mrb[0].mxu0
  %v5028 = vadd.f32 %v4937, %v5027
  %v5029 = vpop.f32.mrb[0].mxu0
  %5030 = vmatprep.mubr.bf16.mxu0 0
  %5031 = vmatmul.mubr.bf16.gmra.mrb[0].mxu0 %v94
  %v5032 = vpop.f32.mrb[0].mxu0
  %v5033 = vadd.f32 %v4937, %v5032
  %v5034 = vpop.f32.mrb[0].mxu0
  %v5035 = vpop.f32.mrb[0].mxu0
  %v5036 = vadd.f32 %v4937, %v5035
  %v5037 = vpop.f32.mrb[0].mxu0
  %5038 = vdwg.mxu0
  %v5039 = vld [vmem:[#allocation2] sm:$0xff]
  %v5040 = vld [vmem:[#allocation2 + $0x8] sm:$0xff]
  %v5041 = vld [vmem:[#allocation2 + $0x10] sm:$0xff]
  %v5042 = vld [vmem:[#allocation2 + $0x18] sm:$0xff]
  %v5043 = vld [vmem:[#allocation2 + $0x20] sm:$0xff]
  %v5044 = vld [vmem:[#allocation2 + $0x28] sm:$0xff]
  %v5045 = vld [vmem:[#allocation2 + $0x30] sm:$0xff]
  %v5046 = vld [vmem:[#allocation2 + $0x38] sm:$0xff]
  %v5047 = vld [vmem:[#allocation2 + $0x40] sm:$0xff]
  %v5048 = vld [vmem:[#allocation2 + $0x48] sm:$0xff]
  %v5049 = vld [vmem:[#allocation2 + $0x50] sm:$0xff]
  %v5050 = vld [vmem:[#allocation2 + $0x58] sm:$0xff]
  %v5051 = vld [vmem:[#allocation2 + $0x60] sm:$0xff]
  %v5052 = vld [vmem:[#allocation2 + $0x68] sm:$0xff]
  %v5053 = vld [vmem:[#allocation2 + $0x70] sm:$0xff]
  %v5054 = vld [vmem:[#allocation2 + $0x78] sm:$0xff]
  %v5055 = vld [vmem:[#allocation2 + $0x80] sm:$0xff]
  %v5056 = vld [vmem:[#allocation2 + $0x88] sm:$0xff]
  %v5057 = vld [vmem:[#allocation2 + $0x90] sm:$0xff]
  %v5058 = vld [vmem:[#allocation2 + $0x98] sm:$0xff]
  %v5059 = vld [vmem:[#allocation2 + $0xa0] sm:$0xff]
  %v5060 = vld [vmem:[#allocation2 + $0xa8] sm:$0xff]
  %v5061 = vld [vmem:[#allocation2 + $0xb0] sm:$0xff]
  %v5062 = vld [vmem:[#allocation2 + $0xb8] sm:$0xff]
  %v5063 = vld [vmem:[#allocation2 + $0xc0] sm:$0xff]
  %v5064 = vld [vmem:[#allocation2 + $0xc8] sm:$0xff]
  %v5065 = vld [vmem:[#allocation2 + $0xd0] sm:$0xff]
  %v5066 = vld [vmem:[#allocation2 + $0xd8] sm:$0xff]
  %v5067 = vld [vmem:[#allocation2 + $0xe0] sm:$0xff]
  %v5068 = vld [vmem:[#allocation2 + $0xe8] sm:$0xff]
  %v5069 = vld [vmem:[#allocation2 + $0xf0] sm:$0xff]
  %v5070 = vld [vmem:[#allocation2 + $0xf8] sm:$0xff]
  %v5071 = vld [vmem:[#allocation2 + $0x100] sm:$0xff]
  %v5072 = vld [vmem:[#allocation2 + $0x108] sm:$0xff]
  %v5073 = vld [vmem:[#allocation2 + $0x110] sm:$0xff]
  %v5074 = vld [vmem:[#allocation2 + $0x118] sm:$0xff]
  %v5075 = vld [vmem:[#allocation2 + $0x120] sm:$0xff]
  %v5076 = vld [vmem:[#allocation2 + $0x128] sm:$0xff]
  %v5077 = vld [vmem:[#allocation2 + $0x130] sm:$0xff]
  %v5078 = vld [vmem:[#allocation2 + $0x138] sm:$0xff]
  %v5079 = vld [vmem:[#allocation2 + $0x140] sm:$0xff]
  %v5080 = vld [vmem:[#allocation2 + $0x148] sm:$0xff]
  %v5081 = vld [vmem:[#allocation2 + $0x150] sm:$0xff]
  %v5082 = vld [vmem:[#allocation2 + $0x158] sm:$0xff]
  %v5083 = vld [vmem:[#allocation2 + $0x160] sm:$0xff]
  %v5084 = vld [vmem:[#allocation2 + $0x168] sm:$0xff]
  %v5085 = vld [vmem:[#allocation2 + $0x170] sm:$0xff]
  %v5086 = vld [vmem:[#allocation2 + $0x178] sm:$0xff]
  %v5087 = vld [vmem:[#allocation2 + $0x180] sm:$0xff]
  %v5088 = vld [vmem:[#allocation2 + $0x188] sm:$0xff]
  %v5089 = vld [vmem:[#allocation2 + $0x190] sm:$0xff]
  %v5090 = vld [vmem:[#allocation2 + $0x198] sm:$0xff]
  %v5091 = vld [vmem:[#allocation2 + $0x1a0] sm:$0xff]
  %v5092 = vld [vmem:[#allocation2 + $0x1a8] sm:$0xff]
  %v5093 = vld [vmem:[#allocation2 + $0x1b0] sm:$0xff]
  %v5094 = vld [vmem:[#allocation2 + $0x1b8] sm:$0xff]
  %v5095 = vld [vmem:[#allocation2 + $0x1c0] sm:$0xff]
  %v5096 = vld [vmem:[#allocation2 + $0x1c8] sm:$0xff]
  %v5097 = vld [vmem:[#allocation2 + $0x1d0] sm:$0xff]
  %v5098 = vld [vmem:[#allocation2 + $0x1d8] sm:$0xff]
  %v5099 = vld [vmem:[#allocation2 + $0x1e0] sm:$0xff]
  %v5100 = vld [vmem:[#allocation2 + $0x1e8] sm:$0xff]
  %v5101 = vld [vmem:[#allocation2 + $0x1f0] sm:$0xff]
  %v5102 = vld [vmem:[#allocation2 + $0x1f8] sm:$0xff]
  %v5103 = vld [vmem:[%s5] sm:$0xf]
  %v5104 = vld [vmem:[%s5 + $0x4] sm:$0xf]
  %v5121 = vcombine.high %v4977, %v4977
  %v5123 = vunpack.c.l.s4 1966171168
  %v5124 = vunpack.c.0.s8 %v5123
  %v5125 = vlaneseq
  %v5126 = vshrl.u32 %v5125, 7
  %v5127 = vsub.s32 %v5124, %v5126
  %v5128 = vrot.slane %v4977, %v5127
  %v5130 = vunpack.c.l.s4 1966171168
  %v5131 = vunpack.c.0.s8 %v5130
  %v5132 = vlaneseq
  %v5133 = vshrl.u32 %v5132, 7
  %v5134 = vsub.s32 %v5131, %v5133
  %v5135 = vrot.slane %v5121, %v5134
  %v5136 = vcombine.high %v5128, %v5128
  %v5137 = vcombine.high %v5135, %v5135
  %v5139 = vunpack.c.l.s4 1966171168
  %v5140 = vunpack.c.0.s8 %v5139
  %v5141 = vlaneseq
  %v5142 = vshrl.u32 %v5141, 7
  %v5143 = vsub.s32 %v5140, %v5142
  %v5144 = vrot.slane %v5128, %v5143
  %v5146 = vunpack.c.l.s4 1966171168
  %v5147 = vunpack.c.0.s8 %v5146
  %v5148 = vlaneseq
  %v5149 = vshrl.u32 %v5148, 7
  %v5150 = vsub.s32 %v5147, %v5149
  %v5151 = vrot.slane %v5135, %v5150
  %v5153 = vunpack.c.l.s4 1966171168
  %v5154 = vunpack.c.0.s8 %v5153
  %v5155 = vlaneseq
  %v5156 = vshrl.u32 %v5155, 7
  %v5157 = vsub.s32 %v5154, %v5156
  %v5158 = vrot.slane %v5136, %v5157
  %v5160 = vunpack.c.l.s4 1966171168
  %v5161 = vunpack.c.0.s8 %v5160
  %v5162 = vlaneseq
  %v5163 = vshrl.u32 %v5162, 7
  %v5164 = vsub.s32 %v5161, %v5163
  %v5165 = vrot.slane %v5137, %v5164
  %v5166 = vcombine.high %v5144, %v5144
  %v5167 = vcombine.high %v5151, %v5151
  %v5168 = vcombine.high %v5158, %v5158
  %v5169 = vcombine.high %v5165, %v5165
  %v5170 = vcombine.high %v4980, %v4980
  %v5172 = vunpack.c.l.s4 1966171168
  %v5173 = vunpack.c.0.s8 %v5172
  %v5174 = vlaneseq
  %v5175 = vshrl.u32 %v5174, 7
  %v5176 = vsub.s32 %v5173, %v5175
  %v5177 = vrot.slane %v4980, %v5176
  %v5179 = vunpack.c.l.s4 1966171168
  %v5180 = vunpack.c.0.s8 %v5179
  %v5181 = vlaneseq
  %v5182 = vshrl.u32 %v5181, 7
  %v5183 = vsub.s32 %v5180, %v5182
  %v5184 = vrot.slane %v5170, %v5183
  %v5185 = vcombine.high %v5177, %v5177
  %v5186 = vcombine.high %v5184, %v5184
  %v5188 = vunpack.c.l.s4 1966171168
  %v5189 = vunpack.c.0.s8 %v5188
  %v5190 = vlaneseq
  %v5191 = vshrl.u32 %v5190, 7
  %v5192 = vsub.s32 %v5189, %v5191
  %v5193 = vrot.slane %v5177, %v5192
  %v5195 = vunpack.c.l.s4 1966171168
  %v5196 = vunpack.c.0.s8 %v5195
  %v5197 = vlaneseq
  %v5198 = vshrl.u32 %v5197, 7
  %v5199 = vsub.s32 %v5196, %v5198
  %v5200 = vrot.slane %v5184, %v5199
  %v5202 = vunpack.c.l.s4 1966171168
  %v5203 = vunpack.c.0.s8 %v5202
  %v5204 = vlaneseq
  %v5205 = vshrl.u32 %v5204, 7
  %v5206 = vsub.s32 %v5203, %v5205
  %v5207 = vrot.slane %v5185, %v5206
  %v5209 = vunpack.c.l.s4 1966171168
  %v5210 = vunpack.c.0.s8 %v5209
  %v5211 = vlaneseq
  %v5212 = vshrl.u32 %v5211, 7
  %v5213 = vsub.s32 %v5210, %v5212
  %v5214 = vrot.slane %v5186, %v5213
  %v5215 = vcombine.high %v5193, %v5193
  %v5216 = vcombine.high %v5200, %v5200
  %v5217 = vcombine.high %v5207, %v5207
  %v5218 = vcombine.high %v5214, %v5214
  %v5219 = vcombine.high %v4985, %v4985
  %v5221 = vunpack.c.l.s4 1966171168
  %v5222 = vunpack.c.0.s8 %v5221
  %v5223 = vlaneseq
  %v5224 = vshrl.u32 %v5223, 7
  %v5225 = vsub.s32 %v5222, %v5224
  %v5226 = vrot.slane %v4985, %v5225
  %v5228 = vunpack.c.l.s4 1966171168
  %v5229 = vunpack.c.0.s8 %v5228
  %v5230 = vlaneseq
  %v5231 = vshrl.u32 %v5230, 7
  %v5232 = vsub.s32 %v5229, %v5231
  %v5233 = vrot.slane %v5219, %v5232
  %v5234 = vcombine.high %v5226, %v5226
  %v5235 = vcombine.high %v5233, %v5233
  %v5237 = vunpack.c.l.s4 1966171168
  %v5238 = vunpack.c.0.s8 %v5237
  %v5239 = vlaneseq
  %v5240 = vshrl.u32 %v5239, 7
  %v5241 = vsub.s32 %v5238, %v5240
  %v5242 = vrot.slane %v5226, %v5241
  %v5244 = vunpack.c.l.s4 1966171168
  %v5245 = vunpack.c.0.s8 %v5244
  %v5246 = vlaneseq
  %v5247 = vshrl.u32 %v5246, 7
  %v5248 = vsub.s32 %v5245, %v5247
  %v5249 = vrot.slane %v5233, %v5248
  %v5251 = vunpack.c.l.s4 1966171168
  %v5252 = vunpack.c.0.s8 %v5251
  %v5253 = vlaneseq
  %v5254 = vshrl.u32 %v5253, 7
  %v5255 = vsub.s32 %v5252, %v5254
  %v5256 = vrot.slane %v5234, %v5255
  %v5258 = vunpack.c.l.s4 1966171168
  %v5259 = vunpack.c.0.s8 %v5258
  %v5260 = vlaneseq
  %v5261 = vshrl.u32 %v5260, 7
  %v5262 = vsub.s32 %v5259, %v5261
  %v5263 = vrot.slane %v5235, %v5262
  %v5264 = vcombine.high %v5242, %v5242
  %v5265 = vcombine.high %v5249, %v5249
  %v5266 = vcombine.high %v5256, %v5256
  %v5267 = vcombine.high %v5263, %v5263
  %v5268 = vcombine.high %v4988, %v4988
  %v5270 = vunpack.c.l.s4 1966171168
  %v5271 = vunpack.c.0.s8 %v5270
  %v5272 = vlaneseq
  %v5273 = vshrl.u32 %v5272, 7
  %v5274 = vsub.s32 %v5271, %v5273
  %v5275 = vrot.slane %v4988, %v5274
  %v5277 = vunpack.c.l.s4 1966171168
  %v5278 = vunpack.c.0.s8 %v5277
  %v5279 = vlaneseq
  %v5280 = vshrl.u32 %v5279, 7
  %v5281 = vsub.s32 %v5278, %v5280
  %v5282 = vrot.slane %v5268, %v5281
  %v5283 = vcombine.high %v5275, %v5275
  %v5284 = vcombine.high %v5282, %v5282
  %v5286 = vunpack.c.l.s4 1966171168
  %v5287 = vunpack.c.0.s8 %v5286
  %v5288 = vlaneseq
  %v5289 = vshrl.u32 %v5288, 7
  %v5290 = vsub.s32 %v5287, %v5289
  %v5291 = vrot.slane %v5275, %v5290
  %v5293 = vunpack.c.l.s4 1966171168
  %v5294 = vunpack.c.0.s8 %v5293
  %v5295 = vlaneseq
  %v5296 = vshrl.u32 %v5295, 7
  %v5297 = vsub.s32 %v5294, %v5296
  %v5298 = vrot.slane %v5282, %v5297
  %v5300 = vunpack.c.l.s4 1966171168
  %v5301 = vunpack.c.0.s8 %v5300
  %v5302 = vlaneseq
  %v5303 = vshrl.u32 %v5302, 7
  %v5304 = vsub.s32 %v5301, %v5303
  %v5305 = vrot.slane %v5283, %v5304
  %v5307 = vunpack.c.l.s4 1966171168
  %v5308 = vunpack.c.0.s8 %v5307
  %v5309 = vlaneseq
  %v5310 = vshrl.u32 %v5309, 7
  %v5311 = vsub.s32 %v5308, %v5310
  %v5312 = vrot.slane %v5284, %v5311
  %v5313 = vcombine.high %v5291, %v5291
  %v5314 = vcombine.high %v5298, %v5298
  %v5315 = vcombine.high %v5305, %v5305
  %v5316 = vcombine.high %v5312, %v5312
  %v5317 = vcombine.high %v4993, %v4993
  %v5319 = vunpack.c.l.s4 1966171168
  %v5320 = vunpack.c.0.s8 %v5319
  %v5321 = vlaneseq
  %v5322 = vshrl.u32 %v5321, 7
  %v5323 = vsub.s32 %v5320, %v5322
  %v5324 = vrot.slane %v4993, %v5323
  %v5326 = vunpack.c.l.s4 1966171168
  %v5327 = vunpack.c.0.s8 %v5326
  %v5328 = vlaneseq
  %v5329 = vshrl.u32 %v5328, 7
  %v5330 = vsub.s32 %v5327, %v5329
  %v5331 = vrot.slane %v5317, %v5330
  %v5332 = vcombine.high %v5324, %v5324
  %v5333 = vcombine.high %v5331, %v5331
  %v5335 = vunpack.c.l.s4 1966171168
  %v5336 = vunpack.c.0.s8 %v5335
  %v5337 = vlaneseq
  %v5338 = vshrl.u32 %v5337, 7
  %v5339 = vsub.s32 %v5336, %v5338
  %v5340 = vrot.slane %v5324, %v5339
  %v5342 = vunpack.c.l.s4 1966171168
  %v5343 = vunpack.c.0.s8 %v5342
  %v5344 = vlaneseq
  %v5345 = vshrl.u32 %v5344, 7
  %v5346 = vsub.s32 %v5343, %v5345
  %v5347 = vrot.slane %v5331, %v5346
  %v5349 = vunpack.c.l.s4 1966171168
  %v5350 = vunpack.c.0.s8 %v5349
  %v5351 = vlaneseq
  %v5352 = vshrl.u32 %v5351, 7
  %v5353 = vsub.s32 %v5350, %v5352
  %v5354 = vrot.slane %v5332, %v5353
  %v5356 = vunpack.c.l.s4 1966171168
  %v5357 = vunpack.c.0.s8 %v5356
  %v5358 = vlaneseq
  %v5359 = vshrl.u32 %v5358, 7
  %v5360 = vsub.s32 %v5357, %v5359
  %v5361 = vrot.slane %v5333, %v5360
  %v5362 = vcombine.high %v5340, %v5340
  %v5363 = vcombine.high %v5347, %v5347
  %v5364 = vcombine.high %v5354, %v5354
  %v5365 = vcombine.high %v5361, %v5361
  %v5366 = vcombine.high %v4996, %v4996
  %v5368 = vunpack.c.l.s4 1966171168
  %v5369 = vunpack.c.0.s8 %v5368
  %v5370 = vlaneseq
  %v5371 = vshrl.u32 %v5370, 7
  %v5372 = vsub.s32 %v5369, %v5371
  %v5373 = vrot.slane %v4996, %v5372
  %v5375 = vunpack.c.l.s4 1966171168
  %v5376 = vunpack.c.0.s8 %v5375
  %v5377 = vlaneseq
  %v5378 = vshrl.u32 %v5377, 7
  %v5379 = vsub.s32 %v5376, %v5378
  %v5380 = vrot.slane %v5366, %v5379
  %v5381 = vcombine.high %v5373, %v5373
  %v5382 = vcombine.high %v5380, %v5380
  %v5384 = vunpack.c.l.s4 1966171168
  %v5385 = vunpack.c.0.s8 %v5384
  %v5386 = vlaneseq
  %v5387 = vshrl.u32 %v5386, 7
  %v5388 = vsub.s32 %v5385, %v5387
  %v5389 = vrot.slane %v5373, %v5388
  %v5391 = vunpack.c.l.s4 1966171168
  %v5392 = vunpack.c.0.s8 %v5391
  %v5393 = vlaneseq
  %v5394 = vshrl.u32 %v5393, 7
  %v5395 = vsub.s32 %v5392, %v5394
  %v5396 = vrot.slane %v5380, %v5395
  %v5398 = vunpack.c.l.s4 1966171168
  %v5399 = vunpack.c.0.s8 %v5398
  %v5400 = vlaneseq
  %v5401 = vshrl.u32 %v5400, 7
  %v5402 = vsub.s32 %v5399, %v5401
  %v5403 = vrot.slane %v5381, %v5402
  %v5405 = vunpack.c.l.s4 1966171168
  %v5406 = vunpack.c.0.s8 %v5405
  %v5407 = vlaneseq
  %v5408 = vshrl.u32 %v5407, 7
  %v5409 = vsub.s32 %v5406, %v5408
  %v5410 = vrot.slane %v5382, %v5409
  %v5411 = vcombine.high %v5389, %v5389
  %v5412 = vcombine.high %v5396, %v5396
  %v5413 = vcombine.high %v5403, %v5403
  %v5414 = vcombine.high %v5410, %v5410
  %v5415 = vcombine.high %v5001, %v5001
  %v5417 = vunpack.c.l.s4 1966171168
  %v5418 = vunpack.c.0.s8 %v5417
  %v5419 = vlaneseq
  %v5420 = vshrl.u32 %v5419, 7
  %v5421 = vsub.s32 %v5418, %v5420
  %v5422 = vrot.slane %v5001, %v5421
  %v5424 = vunpack.c.l.s4 1966171168
  %v5425 = vunpack.c.0.s8 %v5424
  %v5426 = vlaneseq
  %v5427 = vshrl.u32 %v5426, 7
  %v5428 = vsub.s32 %v5425, %v5427
  %v5429 = vrot.slane %v5415, %v5428
  %v5430 = vcombine.high %v5422, %v5422
  %v5431 = vcombine.high %v5429, %v5429
  %v5433 = vunpack.c.l.s4 1966171168
  %v5434 = vunpack.c.0.s8 %v5433
  %v5435 = vlaneseq
  %v5436 = vshrl.u32 %v5435, 7
  %v5437 = vsub.s32 %v5434, %v5436
  %v5438 = vrot.slane %v5422, %v5437
  %v5440 = vunpack.c.l.s4 1966171168
  %v5441 = vunpack.c.0.s8 %v5440
  %v5442 = vlaneseq
  %v5443 = vshrl.u32 %v5442, 7
  %v5444 = vsub.s32 %v5441, %v5443
  %v5445 = vrot.slane %v5429, %v5444
  %v5447 = vunpack.c.l.s4 1966171168
  %v5448 = vunpack.c.0.s8 %v5447
  %v5449 = vlaneseq
  %v5450 = vshrl.u32 %v5449, 7
  %v5451 = vsub.s32 %v5448, %v5450
  %v5452 = vrot.slane %v5430, %v5451
  %v5454 = vunpack.c.l.s4 1966171168
  %v5455 = vunpack.c.0.s8 %v5454
  %v5456 = vlaneseq
  %v5457 = vshrl.u32 %v5456, 7
  %v5458 = vsub.s32 %v5455, %v5457
  %v5459 = vrot.slane %v5431, %v5458
  %v5460 = vcombine.high %v5438, %v5438
  %v5461 = vcombine.high %v5445, %v5445
  %v5462 = vcombine.high %v5452, %v5452
  %v5463 = vcombine.high %v5459, %v5459
  %v5464 = vcombine.high %v5004, %v5004
  %v5466 = vunpack.c.l.s4 1966171168
  %v5467 = vunpack.c.0.s8 %v5466
  %v5468 = vlaneseq
  %v5469 = vshrl.u32 %v5468, 7
  %v5470 = vsub.s32 %v5467, %v5469
  %v5471 = vrot.slane %v5004, %v5470
  %v5473 = vunpack.c.l.s4 1966171168
  %v5474 = vunpack.c.0.s8 %v5473
  %v5475 = vlaneseq
  %v5476 = vshrl.u32 %v5475, 7
  %v5477 = vsub.s32 %v5474, %v5476
  %v5478 = vrot.slane %v5464, %v5477
  %v5479 = vcombine.high %v5471, %v5471
  %v5480 = vcombine.high %v5478, %v5478
  %v5482 = vunpack.c.l.s4 1966171168
  %v5483 = vunpack.c.0.s8 %v5482
  %v5484 = vlaneseq
  %v5485 = vshrl.u32 %v5484, 7
  %v5486 = vsub.s32 %v5483, %v5485
  %v5487 = vrot.slane %v5471, %v5486
  %v5489 = vunpack.c.l.s4 1966171168
  %v5490 = vunpack.c.0.s8 %v5489
  %v5491 = vlaneseq
  %v5492 = vshrl.u32 %v5491, 7
  %v5493 = vsub.s32 %v5490, %v5492
  %v5494 = vrot.slane %v5478, %v5493
  %v5496 = vunpack.c.l.s4 1966171168
  %v5497 = vunpack.c.0.s8 %v5496
  %v5498 = vlaneseq
  %v5499 = vshrl.u32 %v5498, 7
  %v5500 = vsub.s32 %v5497, %v5499
  %v5501 = vrot.slane %v5479, %v5500
  %v5503 = vunpack.c.l.s4 1966171168
  %v5504 = vunpack.c.0.s8 %v5503
  %v5505 = vlaneseq
  %v5506 = vshrl.u32 %v5505, 7
  %v5507 = vsub.s32 %v5504, %v5506
  %v5508 = vrot.slane %v5480, %v5507
  %v5509 = vcombine.high %v5487, %v5487
  %v5510 = vcombine.high %v5494, %v5494
  %v5511 = vcombine.high %v5501, %v5501
  %v5512 = vcombine.high %v5508, %v5508
  %v5513 = vcombine.high %v5009, %v5009
  %v5515 = vunpack.c.l.s4 1966171168
  %v5516 = vunpack.c.0.s8 %v5515
  %v5517 = vlaneseq
  %v5518 = vshrl.u32 %v5517, 7
  %v5519 = vsub.s32 %v5516, %v5518
  %v5520 = vrot.slane %v5009, %v5519
  %v5522 = vunpack.c.l.s4 1966171168
  %v5523 = vunpack.c.0.s8 %v5522
  %v5524 = vlaneseq
  %v5525 = vshrl.u32 %v5524, 7
  %v5526 = vsub.s32 %v5523, %v5525
  %v5527 = vrot.slane %v5513, %v5526
  %v5528 = vcombine.high %v5520, %v5520
  %v5529 = vcombine.high %v5527, %v5527
  %v5531 = vunpack.c.l.s4 1966171168
  %v5532 = vunpack.c.0.s8 %v5531
  %v5533 = vlaneseq
  %v5534 = vshrl.u32 %v5533, 7
  %v5535 = vsub.s32 %v5532, %v5534
  %v5536 = vrot.slane %v5520, %v5535
  %v5538 = vunpack.c.l.s4 1966171168
  %v5539 = vunpack.c.0.s8 %v5538
  %v5540 = vlaneseq
  %v5541 = vshrl.u32 %v5540, 7
  %v5542 = vsub.s32 %v5539, %v5541
  %v5543 = vrot.slane %v5527, %v5542
  %v5545 = vunpack.c.l.s4 1966171168
  %v5546 = vunpack.c.0.s8 %v5545
  %v5547 = vlaneseq
  %v5548 = vshrl.u32 %v5547, 7
  %v5549 = vsub.s32 %v5546, %v5548
  %v5550 = vrot.slane %v5528, %v5549
  %v5552 = vunpack.c.l.s4 1966171168
  %v5553 = vunpack.c.0.s8 %v5552
  %v5554 = vlaneseq
  %v5555 = vshrl.u32 %v5554, 7
  %v5556 = vsub.s32 %v5553, %v5555
  %v5557 = vrot.slane %v5529, %v5556
  %v5558 = vcombine.high %v5536, %v5536
  %v5559 = vcombine.high %v5543, %v5543
  %v5560 = vcombine.high %v5550, %v5550
  %v5561 = vcombine.high %v5557, %v5557
  %v5562 = vcombine.high %v5012, %v5012
  %v5564 = vunpack.c.l.s4 1966171168
  %v5565 = vunpack.c.0.s8 %v5564
  %v5566 = vlaneseq
  %v5567 = vshrl.u32 %v5566, 7
  %v5568 = vsub.s32 %v5565, %v5567
  %v5569 = vrot.slane %v5012, %v5568
  %v5571 = vunpack.c.l.s4 1966171168
  %v5572 = vunpack.c.0.s8 %v5571
  %v5573 = vlaneseq
  %v5574 = vshrl.u32 %v5573, 7
  %v5575 = vsub.s32 %v5572, %v5574
  %v5576 = vrot.slane %v5562, %v5575
  %v5577 = vcombine.high %v5569, %v5569
  %v5578 = vcombine.high %v5576, %v5576
  %v5580 = vunpack.c.l.s4 1966171168
  %v5581 = vunpack.c.0.s8 %v5580
  %v5582 = vlaneseq
  %v5583 = vshrl.u32 %v5582, 7
  %v5584 = vsub.s32 %v5581, %v5583
  %v5585 = vrot.slane %v5569, %v5584
  %v5587 = vunpack.c.l.s4 1966171168
  %v5588 = vunpack.c.0.s8 %v5587
  %v5589 = vlaneseq
  %v5590 = vshrl.u32 %v5589, 7
  %v5591 = vsub.s32 %v5588, %v5590
  %v5592 = vrot.slane %v5576, %v5591
  %v5594 = vunpack.c.l.s4 1966171168
  %v5595 = vunpack.c.0.s8 %v5594
  %v5596 = vlaneseq
  %v5597 = vshrl.u32 %v5596, 7
  %v5598 = vsub.s32 %v5595, %v5597
  %v5599 = vrot.slane %v5577, %v5598
  %v5601 = vunpack.c.l.s4 1966171168
  %v5602 = vunpack.c.0.s8 %v5601
  %v5603 = vlaneseq
  %v5604 = vshrl.u32 %v5603, 7
  %v5605 = vsub.s32 %v5602, %v5604
  %v5606 = vrot.slane %v5578, %v5605
  %v5607 = vcombine.high %v5585, %v5585
  %v5608 = vcombine.high %v5592, %v5592
  %v5609 = vcombine.high %v5599, %v5599
  %v5610 = vcombine.high %v5606, %v5606
  %v5611 = vcombine.high %v5017, %v5017
  %v5613 = vunpack.c.l.s4 1966171168
  %v5614 = vunpack.c.0.s8 %v5613
  %v5615 = vlaneseq
  %v5616 = vshrl.u32 %v5615, 7
  %v5617 = vsub.s32 %v5614, %v5616
  %v5618 = vrot.slane %v5017, %v5617
  %v5620 = vunpack.c.l.s4 1966171168
  %v5621 = vunpack.c.0.s8 %v5620
  %v5622 = vlaneseq
  %v5623 = vshrl.u32 %v5622, 7
  %v5624 = vsub.s32 %v5621, %v5623
  %v5625 = vrot.slane %v5611, %v5624
  %v5626 = vcombine.high %v5618, %v5618
  %v5627 = vcombine.high %v5625, %v5625
  %v5629 = vunpack.c.l.s4 1966171168
  %v5630 = vunpack.c.0.s8 %v5629
  %v5631 = vlaneseq
  %v5632 = vshrl.u32 %v5631, 7
  %v5633 = vsub.s32 %v5630, %v5632
  %v5634 = vrot.slane %v5618, %v5633
  %v5636 = vunpack.c.l.s4 1966171168
  %v5637 = vunpack.c.0.s8 %v5636
  %v5638 = vlaneseq
  %v5639 = vshrl.u32 %v5638, 7
  %v5640 = vsub.s32 %v5637, %v5639
  %v5641 = vrot.slane %v5625, %v5640
  %v5643 = vunpack.c.l.s4 1966171168
  %v5644 = vunpack.c.0.s8 %v5643
  %v5645 = vlaneseq
  %v5646 = vshrl.u32 %v5645, 7
  %v5647 = vsub.s32 %v5644, %v5646
  %v5648 = vrot.slane %v5626, %v5647
  %v5650 = vunpack.c.l.s4 1966171168
  %v5651 = vunpack.c.0.s8 %v5650
  %v5652 = vlaneseq
  %v5653 = vshrl.u32 %v5652, 7
  %v5654 = vsub.s32 %v5651, %v5653
  %v5655 = vrot.slane %v5627, %v5654
  %v5656 = vcombine.high %v5634, %v5634
  %v5657 = vcombine.high %v5641, %v5641
  %v5658 = vcombine.high %v5648, %v5648
  %v5659 = vcombine.high %v5655, %v5655
  %v5660 = vcombine.high %v5020, %v5020
  %v5662 = vunpack.c.l.s4 1966171168
  %v5663 = vunpack.c.0.s8 %v5662
  %v5664 = vlaneseq
  %v5665 = vshrl.u32 %v5664, 7
  %v5666 = vsub.s32 %v5663, %v5665
  %v5667 = vrot.slane %v5020, %v5666
  %v5669 = vunpack.c.l.s4 1966171168
  %v5670 = vunpack.c.0.s8 %v5669
  %v5671 = vlaneseq
  %v5672 = vshrl.u32 %v5671, 7
  %v5673 = vsub.s32 %v5670, %v5672
  %v5674 = vrot.slane %v5660, %v5673
  %v5675 = vcombine.high %v5667, %v5667
  %v5676 = vcombine.high %v5674, %v5674
  %v5678 = vunpack.c.l.s4 1966171168
  %v5679 = vunpack.c.0.s8 %v5678
  %v5680 = vlaneseq
  %v5681 = vshrl.u32 %v5680, 7
  %v5682 = vsub.s32 %v5679, %v5681
  %v5683 = vrot.slane %v5667, %v5682
  %v5685 = vunpack.c.l.s4 1966171168
  %v5686 = vunpack.c.0.s8 %v5685
  %v5687 = vlaneseq
  %v5688 = vshrl.u32 %v5687, 7
  %v5689 = vsub.s32 %v5686, %v5688
  %v5690 = vrot.slane %v5674, %v5689
  %v5692 = vunpack.c.l.s4 1966171168
  %v5693 = vunpack.c.0.s8 %v5692
  %v5694 = vlaneseq
  %v5695 = vshrl.u32 %v5694, 7
  %v5696 = vsub.s32 %v5693, %v5695
  %v5697 = vrot.slane %v5675, %v5696
  %v5699 = vunpack.c.l.s4 1966171168
  %v5700 = vunpack.c.0.s8 %v5699
  %v5701 = vlaneseq
  %v5702 = vshrl.u32 %v5701, 7
  %v5703 = vsub.s32 %v5700, %v5702
  %v5704 = vrot.slane %v5676, %v5703
  %v5705 = vcombine.high %v5683, %v5683
  %v5706 = vcombine.high %v5690, %v5690
  %v5707 = vcombine.high %v5697, %v5697
  %v5708 = vcombine.high %v5704, %v5704
  %v5709 = vcombine.high %v5025, %v5025
  %v5711 = vunpack.c.l.s4 1966171168
  %v5712 = vunpack.c.0.s8 %v5711
  %v5713 = vlaneseq
  %v5714 = vshrl.u32 %v5713, 7
  %v5715 = vsub.s32 %v5712, %v5714
  %v5716 = vrot.slane %v5025, %v5715
  %v5718 = vunpack.c.l.s4 1966171168
  %v5719 = vunpack.c.0.s8 %v5718
  %v5720 = vlaneseq
  %v5721 = vshrl.u32 %v5720, 7
  %v5722 = vsub.s32 %v5719, %v5721
  %v5723 = vrot.slane %v5709, %v5722
  %v5724 = vcombine.high %v5716, %v5716
  %v5725 = vcombine.high %v5723, %v5723
  %v5727 = vunpack.c.l.s4 1966171168
  %v5728 = vunpack.c.0.s8 %v5727
  %v5729 = vlaneseq
  %v5730 = vshrl.u32 %v5729, 7
  %v5731 = vsub.s32 %v5728, %v5730
  %v5732 = vrot.slane %v5716, %v5731
  %v5734 = vunpack.c.l.s4 1966171168
  %v5735 = vunpack.c.0.s8 %v5734
  %v5736 = vlaneseq
  %v5737 = vshrl.u32 %v5736, 7
  %v5738 = vsub.s32 %v5735, %v5737
  %v5739 = vrot.slane %v5723, %v5738
  %v5741 = vunpack.c.l.s4 1966171168
  %v5742 = vunpack.c.0.s8 %v5741
  %v5743 = vlaneseq
  %v5744 = vshrl.u32 %v5743, 7
  %v5745 = vsub.s32 %v5742, %v5744
  %v5746 = vrot.slane %v5724, %v5745
  %v5748 = vunpack.c.l.s4 1966171168
  %v5749 = vunpack.c.0.s8 %v5748
  %v5750 = vlaneseq
  %v5751 = vshrl.u32 %v5750, 7
  %v5752 = vsub.s32 %v5749, %v5751
  %v5753 = vrot.slane %v5725, %v5752
  %v5754 = vcombine.high %v5732, %v5732
  %v5755 = vcombine.high %v5739, %v5739
  %v5756 = vcombine.high %v5746, %v5746
  %v5757 = vcombine.high %v5753, %v5753
  %v5758 = vcombine.high %v5028, %v5028
  %v5760 = vunpack.c.l.s4 1966171168
  %v5761 = vunpack.c.0.s8 %v5760
  %v5762 = vlaneseq
  %v5763 = vshrl.u32 %v5762, 7
  %v5764 = vsub.s32 %v5761, %v5763
  %v5765 = vrot.slane %v5028, %v5764
  %v5767 = vunpack.c.l.s4 1966171168
  %v5768 = vunpack.c.0.s8 %v5767
  %v5769 = vlaneseq
  %v5770 = vshrl.u32 %v5769, 7
  %v5771 = vsub.s32 %v5768, %v5770
  %v5772 = vrot.slane %v5758, %v5771
  %v5773 = vcombine.high %v5765, %v5765
  %v5774 = vcombine.high %v5772, %v5772
  %v5776 = vunpack.c.l.s4 1966171168
  %v5777 = vunpack.c.0.s8 %v5776
  %v5778 = vlaneseq
  %v5779 = vshrl.u32 %v5778, 7
  %v5780 = vsub.s32 %v5777, %v5779
  %v5781 = vrot.slane %v5765, %v5780
  %v5783 = vunpack.c.l.s4 1966171168
  %v5784 = vunpack.c.0.s8 %v5783
  %v5785 = vlaneseq
  %v5786 = vshrl.u32 %v5785, 7
  %v5787 = vsub.s32 %v5784, %v5786
  %v5788 = vrot.slane %v5772, %v5787
  %v5790 = vunpack.c.l.s4 1966171168
  %v5791 = vunpack.c.0.s8 %v5790
  %v5792 = vlaneseq
  %v5793 = vshrl.u32 %v5792, 7
  %v5794 = vsub.s32 %v5791, %v5793
  %v5795 = vrot.slane %v5773, %v5794
  %v5797 = vunpack.c.l.s4 1966171168
  %v5798 = vunpack.c.0.s8 %v5797
  %v5799 = vlaneseq
  %v5800 = vshrl.u32 %v5799, 7
  %v5801 = vsub.s32 %v5798, %v5800
  %v5802 = vrot.slane %v5774, %v5801
  %v5803 = vcombine.high %v5781, %v5781
  %v5804 = vcombine.high %v5788, %v5788
  %v5805 = vcombine.high %v5795, %v5795
  %v5806 = vcombine.high %v5802, %v5802
  %v5807 = vcombine.high %v5033, %v5033
  %v5809 = vunpack.c.l.s4 1966171168
  %v5810 = vunpack.c.0.s8 %v5809
  %v5811 = vlaneseq
  %v5812 = vshrl.u32 %v5811, 7
  %v5813 = vsub.s32 %v5810, %v5812
  %v5814 = vrot.slane %v5033, %v5813
  %v5816 = vunpack.c.l.s4 1966171168
  %v5817 = vunpack.c.0.s8 %v5816
  %v5818 = vlaneseq
  %v5819 = vshrl.u32 %v5818, 7
  %v5820 = vsub.s32 %v5817, %v5819
  %v5821 = vrot.slane %v5807, %v5820
  %v5822 = vcombine.high %v5814, %v5814
  %v5823 = vcombine.high %v5821, %v5821
  %v5825 = vunpack.c.l.s4 1966171168
  %v5826 = vunpack.c.0.s8 %v5825
  %v5827 = vlaneseq
  %v5828 = vshrl.u32 %v5827, 7
  %v5829 = vsub.s32 %v5826, %v5828
  %v5830 = vrot.slane %v5814, %v5829
  %v5832 = vunpack.c.l.s4 1966171168
  %v5833 = vunpack.c.0.s8 %v5832
  %v5834 = vlaneseq
  %v5835 = vshrl.u32 %v5834, 7
  %v5836 = vsub.s32 %v5833, %v5835
  %v5837 = vrot.slane %v5821, %v5836
  %v5839 = vunpack.c.l.s4 1966171168
  %v5840 = vunpack.c.0.s8 %v5839
  %v5841 = vlaneseq
  %v5842 = vshrl.u32 %v5841, 7
  %v5843 = vsub.s32 %v5840, %v5842
  %v5844 = vrot.slane %v5822, %v5843
  %v5846 = vunpack.c.l.s4 1966171168
  %v5847 = vunpack.c.0.s8 %v5846
  %v5848 = vlaneseq
  %v5849 = vshrl.u32 %v5848, 7
  %v5850 = vsub.s32 %v5847, %v5849
  %v5851 = vrot.slane %v5823, %v5850
  %v5852 = vcombine.high %v5830, %v5830
  %v5853 = vcombine.high %v5837, %v5837
  %v5854 = vcombine.high %v5844, %v5844
  %v5855 = vcombine.high %v5851, %v5851
  %v5856 = vcombine.high %v5036, %v5036
  %v5858 = vunpack.c.l.s4 1966171168
  %v5859 = vunpack.c.0.s8 %v5858
  %v5860 = vlaneseq
  %v5861 = vshrl.u32 %v5860, 7
  %v5862 = vsub.s32 %v5859, %v5861
  %v5863 = vrot.slane %v5036, %v5862
  %v5865 = vunpack.c.l.s4 1966171168
  %v5866 = vunpack.c.0.s8 %v5865
  %v5867 = vlaneseq
  %v5868 = vshrl.u32 %v5867, 7
  %v5869 = vsub.s32 %v5866, %v5868
  %v5870 = vrot.slane %v5856, %v5869
  %v5871 = vcombine.high %v5863, %v5863
  %v5872 = vcombine.high %v5870, %v5870
  %v5874 = vunpack.c.l.s4 1966171168
  %v5875 = vunpack.c.0.s8 %v5874
  %v5876 = vlaneseq
  %v5877 = vshrl.u32 %v5876, 7
  %v5878 = vsub.s32 %v5875, %v5877
  %v5879 = vrot.slane %v5863, %v5878
  %v5881 = vunpack.c.l.s4 1966171168
  %v5882 = vunpack.c.0.s8 %v5881
  %v5883 = vlaneseq
  %v5884 = vshrl.u32 %v5883, 7
  %v5885 = vsub.s32 %v5882, %v5884
  %v5886 = vrot.slane %v5870, %v5885
  %v5888 = vunpack.c.l.s4 1966171168
  %v5889 = vunpack.c.0.s8 %v5888
  %v5890 = vlaneseq
  %v5891 = vshrl.u32 %v5890, 7
  %v5892 = vsub.s32 %v5889, %v5891
  %v5893 = vrot.slane %v5871, %v5892
  %v5895 = vunpack.c.l.s4 1966171168
  %v5896 = vunpack.c.0.s8 %v5895
  %v5897 = vlaneseq
  %v5898 = vshrl.u32 %v5897, 7
  %v5899 = vsub.s32 %v5896, %v5898
  %v5900 = vrot.slane %v5872, %v5899
  %v5901 = vcombine.high %v5879, %v5879
  %v5902 = vcombine.high %v5886, %v5886
  %v5903 = vcombine.high %v5893, %v5893
  %v5904 = vcombine.high %v5900, %v5900
  %v5905 = vlaneseq
  %v5906 = vshrl.u32 %v5905, 7
  %v5907 = vsub.s32 0, %v5906
  %v5908 = vrot.slane %v5144, %v5907
  %v5909 = vlaneseq
  %v5910 = vshrl.u32 %v5909, 7
  %v5911 = vsub.s32 0, %v5910
  %v5912 = vrot.slane %v5158, %v5911
  %v5913 = vlaneseq
  %v5914 = vshrl.u32 %v5913, 7
  %v5915 = vsub.s32 0, %v5914
  %v5916 = vrot.slane %v5166, %v5915
  %v5917 = vlaneseq
  %v5918 = vshrl.u32 %v5917, 7
  %v5919 = vsub.s32 0, %v5918
  %v5920 = vrot.slane %v5168, %v5919
  %v5921 = vlaneseq
  %v5922 = vshrl.u32 %v5921, 7
  %v5923 = vsub.s32 0, %v5922
  %v5924 = vrot.slane %v5151, %v5923
  %v5925 = vlaneseq
  %v5926 = vshrl.u32 %v5925, 7
  %v5927 = vsub.s32 0, %v5926
  %v5928 = vrot.slane %v5165, %v5927
  %v5929 = vlaneseq
  %v5930 = vshrl.u32 %v5929, 7
  %v5931 = vsub.s32 0, %v5930
  %v5932 = vrot.slane %v5167, %v5931
  %v5933 = vlaneseq
  %v5934 = vshrl.u32 %v5933, 7
  %v5935 = vsub.s32 0, %v5934
  %v5936 = vrot.slane %v5169, %v5935
  %v5937 = vlaneseq
  %v5938 = vshrl.u32 %v5937, 7
  %v5939 = vsub.s32 0, %v5938
  %v5940 = vrot.slane %v5193, %v5939
  %v5941 = vlaneseq
  %v5942 = vshrl.u32 %v5941, 7
  %v5943 = vsub.s32 0, %v5942
  %v5944 = vrot.slane %v5207, %v5943
  %v5945 = vlaneseq
  %v5946 = vshrl.u32 %v5945, 7
  %v5947 = vsub.s32 0, %v5946
  %v5948 = vrot.slane %v5215, %v5947
  %v5949 = vlaneseq
  %v5950 = vshrl.u32 %v5949, 7
  %v5951 = vsub.s32 0, %v5950
  %v5952 = vrot.slane %v5217, %v5951
  %v5953 = vlaneseq
  %v5954 = vshrl.u32 %v5953, 7
  %v5955 = vsub.s32 0, %v5954
  %v5956 = vrot.slane %v5200, %v5955
  %v5957 = vlaneseq
  %v5958 = vshrl.u32 %v5957, 7
  %v5959 = vsub.s32 0, %v5958
  %v5960 = vrot.slane %v5214, %v5959
  %v5961 = vlaneseq
  %v5962 = vshrl.u32 %v5961, 7
  %v5963 = vsub.s32 0, %v5962
  %v5964 = vrot.slane %v5216, %v5963
  %v5965 = vlaneseq
  %v5966 = vshrl.u32 %v5965, 7
  %v5967 = vsub.s32 0, %v5966
  %v5968 = vrot.slane %v5218, %v5967
  %v5969 = vlaneseq
  %v5970 = vshrl.u32 %v5969, 7
  %v5971 = vsub.s32 0, %v5970
  %v5972 = vrot.slane %v5242, %v5971
  %v5973 = vlaneseq
  %v5974 = vshrl.u32 %v5973, 7
  %v5975 = vsub.s32 0, %v5974
  %v5976 = vrot.slane %v5256, %v5975
  %v5977 = vlaneseq
  %v5978 = vshrl.u32 %v5977, 7
  %v5979 = vsub.s32 0, %v5978
  %v5980 = vrot.slane %v5264, %v5979
  %v5981 = vlaneseq
  %v5982 = vshrl.u32 %v5981, 7
  %v5983 = vsub.s32 0, %v5982
  %v5984 = vrot.slane %v5266, %v5983
  %v5985 = vlaneseq
  %v5986 = vshrl.u32 %v5985, 7
  %v5987 = vsub.s32 0, %v5986
  %v5988 = vrot.slane %v5249, %v5987
  %v5989 = vlaneseq
  %v5990 = vshrl.u32 %v5989, 7
  %v5991 = vsub.s32 0, %v5990
  %v5992 = vrot.slane %v5263, %v5991
  %v5993 = vlaneseq
  %v5994 = vshrl.u32 %v5993, 7
  %v5995 = vsub.s32 0, %v5994
  %v5996 = vrot.slane %v5265, %v5995
  %v5997 = vlaneseq
  %v5998 = vshrl.u32 %v5997, 7
  %v5999 = vsub.s32 0, %v5998
  %v6000 = vrot.slane %v5267, %v5999
  %v6001 = vlaneseq
  %v6002 = vshrl.u32 %v6001, 7
  %v6003 = vsub.s32 0, %v6002
  %v6004 = vrot.slane %v5291, %v6003
  %v6005 = vlaneseq
  %v6006 = vshrl.u32 %v6005, 7
  %v6007 = vsub.s32 0, %v6006
  %v6008 = vrot.slane %v5305, %v6007
  %v6009 = vlaneseq
  %v6010 = vshrl.u32 %v6009, 7
  %v6011 = vsub.s32 0, %v6010
  %v6012 = vrot.slane %v5313, %v6011
  %v6013 = vlaneseq
  %v6014 = vshrl.u32 %v6013, 7
  %v6015 = vsub.s32 0, %v6014
  %v6016 = vrot.slane %v5315, %v6015
  %v6017 = vlaneseq
  %v6018 = vshrl.u32 %v6017, 7
  %v6019 = vsub.s32 0, %v6018
  %v6020 = vrot.slane %v5298, %v6019
  %v6021 = vlaneseq
  %v6022 = vshrl.u32 %v6021, 7
  %v6023 = vsub.s32 0, %v6022
  %v6024 = vrot.slane %v5312, %v6023
  %v6025 = vlaneseq
  %v6026 = vshrl.u32 %v6025, 7
  %v6027 = vsub.s32 0, %v6026
  %v6028 = vrot.slane %v5314, %v6027
  %v6029 = vlaneseq
  %v6030 = vshrl.u32 %v6029, 7
  %v6031 = vsub.s32 0, %v6030
  %v6032 = vrot.slane %v5316, %v6031
  %v6033 = vlaneseq
  %v6034 = vshrl.u32 %v6033, 7
  %v6035 = vsub.s32 0, %v6034
  %v6036 = vrot.slane %v5340, %v6035
  %v6037 = vlaneseq
  %v6038 = vshrl.u32 %v6037, 7
  %v6039 = vsub.s32 0, %v6038
  %v6040 = vrot.slane %v5354, %v6039
  %v6041 = vlaneseq
  %v6042 = vshrl.u32 %v6041, 7
  %v6043 = vsub.s32 0, %v6042
  %v6044 = vrot.slane %v5362, %v6043
  %v6045 = vlaneseq
  %v6046 = vshrl.u32 %v6045, 7
  %v6047 = vsub.s32 0, %v6046
  %v6048 = vrot.slane %v5364, %v6047
  %v6049 = vlaneseq
  %v6050 = vshrl.u32 %v6049, 7
  %v6051 = vsub.s32 0, %v6050
  %v6052 = vrot.slane %v5347, %v6051
  %v6053 = vlaneseq
  %v6054 = vshrl.u32 %v6053, 7
  %v6055 = vsub.s32 0, %v6054
  %v6056 = vrot.slane %v5361, %v6055
  %v6057 = vlaneseq
  %v6058 = vshrl.u32 %v6057, 7
  %v6059 = vsub.s32 0, %v6058
  %v6060 = vrot.slane %v5363, %v6059
  %v6061 = vlaneseq
  %v6062 = vshrl.u32 %v6061, 7
  %v6063 = vsub.s32 0, %v6062
  %v6064 = vrot.slane %v5365, %v6063
  %v6065 = vlaneseq
  %v6066 = vshrl.u32 %v6065, 7
  %v6067 = vsub.s32 0, %v6066
  %v6068 = vrot.slane %v5389, %v6067
  %v6069 = vlaneseq
  %v6070 = vshrl.u32 %v6069, 7
  %v6071 = vsub.s32 0, %v6070
  %v6072 = vrot.slane %v5403, %v6071
  %v6073 = vlaneseq
  %v6074 = vshrl.u32 %v6073, 7
  %v6075 = vsub.s32 0, %v6074
  %v6076 = vrot.slane %v5411, %v6075
  %v6077 = vlaneseq
  %v6078 = vshrl.u32 %v6077, 7
  %v6079 = vsub.s32 0, %v6078
  %v6080 = vrot.slane %v5413, %v6079
  %v6081 = vlaneseq
  %v6082 = vshrl.u32 %v6081, 7
  %v6083 = vsub.s32 0, %v6082
  %v6084 = vrot.slane %v5396, %v6083
  %v6085 = vlaneseq
  %v6086 = vshrl.u32 %v6085, 7
  %v6087 = vsub.s32 0, %v6086
  %v6088 = vrot.slane %v5410, %v6087
  %v6089 = vlaneseq
  %v6090 = vshrl.u32 %v6089, 7
  %v6091 = vsub.s32 0, %v6090
  %v6092 = vrot.slane %v5412, %v6091
  %v6093 = vlaneseq
  %v6094 = vshrl.u32 %v6093, 7
  %v6095 = vsub.s32 0, %v6094
  %v6096 = vrot.slane %v5414, %v6095
  %v6097 = vlaneseq
  %v6098 = vshrl.u32 %v6097, 7
  %v6099 = vsub.s32 0, %v6098
  %v6100 = vrot.slane %v5438, %v6099
  %v6101 = vlaneseq
  %v6102 = vshrl.u32 %v6101, 7
  %v6103 = vsub.s32 0, %v6102
  %v6104 = vrot.slane %v5452, %v6103
  %v6105 = vlaneseq
  %v6106 = vshrl.u32 %v6105, 7
  %v6107 = vsub.s32 0, %v6106
  %v6108 = vrot.slane %v5460, %v6107
  %v6109 = vlaneseq
  %v6110 = vshrl.u32 %v6109, 7
  %v6111 = vsub.s32 0, %v6110
  %v6112 = vrot.slane %v5462, %v6111
  %v6113 = vlaneseq
  %v6114 = vshrl.u32 %v6113, 7
  %v6115 = vsub.s32 0, %v6114
  %v6116 = vrot.slane %v5445, %v6115
  %v6117 = vlaneseq
  %v6118 = vshrl.u32 %v6117, 7
  %v6119 = vsub.s32 0, %v6118
  %v6120 = vrot.slane %v5459, %v6119
  %v6121 = vlaneseq
  %v6122 = vshrl.u32 %v6121, 7
  %v6123 = vsub.s32 0, %v6122
  %v6124 = vrot.slane %v5461, %v6123
  %v6125 = vlaneseq
  %v6126 = vshrl.u32 %v6125, 7
  %v6127 = vsub.s32 0, %v6126
  %v6128 = vrot.slane %v5463, %v6127
  %v6129 = vlaneseq
  %v6130 = vshrl.u32 %v6129, 7
  %v6131 = vsub.s32 0, %v6130
  %v6132 = vrot.slane %v5487, %v6131
  %v6133 = vlaneseq
  %v6134 = vshrl.u32 %v6133, 7
  %v6135 = vsub.s32 0, %v6134
  %v6136 = vrot.slane %v5501, %v6135
  %v6137 = vlaneseq
  %v6138 = vshrl.u32 %v6137, 7
  %v6139 = vsub.s32 0, %v6138
  %v6140 = vrot.slane %v5509, %v6139
  %v6141 = vlaneseq
  %v6142 = vshrl.u32 %v6141, 7
  %v6143 = vsub.s32 0, %v6142
  %v6144 = vrot.slane %v5511, %v6143
  %v6145 = vlaneseq
  %v6146 = vshrl.u32 %v6145, 7
  %v6147 = vsub.s32 0, %v6146
  %v6148 = vrot.slane %v5494, %v6147
  %v6149 = vlaneseq
  %v6150 = vshrl.u32 %v6149, 7
  %v6151 = vsub.s32 0, %v6150
  %v6152 = vrot.slane %v5508, %v6151
  %v6153 = vlaneseq
  %v6154 = vshrl.u32 %v6153, 7
  %v6155 = vsub.s32 0, %v6154
  %v6156 = vrot.slane %v5510, %v6155
  %v6157 = vlaneseq
  %v6158 = vshrl.u32 %v6157, 7
  %v6159 = vsub.s32 0, %v6158
  %v6160 = vrot.slane %v5512, %v6159
  %v6161 = vlaneseq
  %v6162 = vshrl.u32 %v6161, 7
  %v6163 = vsub.s32 0, %v6162
  %v6164 = vrot.slane %v5536, %v6163
  %v6165 = vlaneseq
  %v6166 = vshrl.u32 %v6165, 7
  %v6167 = vsub.s32 0, %v6166
  %v6168 = vrot.slane %v5550, %v6167
  %v6169 = vlaneseq
  %v6170 = vshrl.u32 %v6169, 7
  %v6171 = vsub.s32 0, %v6170
  %v6172 = vrot.slane %v5558, %v6171
  %v6173 = vlaneseq
  %v6174 = vshrl.u32 %v6173, 7
  %v6175 = vsub.s32 0, %v6174
  %v6176 = vrot.slane %v5560, %v6175
  %v6177 = vlaneseq
  %v6178 = vshrl.u32 %v6177, 7
  %v6179 = vsub.s32 0, %v6178
  %v6180 = vrot.slane %v5543, %v6179
  %v6181 = vlaneseq
  %v6182 = vshrl.u32 %v6181, 7
  %v6183 = vsub.s32 0, %v6182
  %v6184 = vrot.slane %v5557, %v6183
  %v6185 = vlaneseq
  %v6186 = vshrl.u32 %v6185, 7
  %v6187 = vsub.s32 0, %v6186
  %v6188 = vrot.slane %v5559, %v6187
  %v6189 = vlaneseq
  %v6190 = vshrl.u32 %v6189, 7
  %v6191 = vsub.s32 0, %v6190
  %v6192 = vrot.slane %v5561, %v6191
  %v6193 = vlaneseq
  %v6194 = vshrl.u32 %v6193, 7
  %v6195 = vsub.s32 0, %v6194
  %v6196 = vrot.slane %v5585, %v6195
  %v6197 = vlaneseq
  %v6198 = vshrl.u32 %v6197, 7
  %v6199 = vsub.s32 0, %v6198
  %v6200 = vrot.slane %v5599, %v6199
  %v6201 = vlaneseq
  %v6202 = vshrl.u32 %v6201, 7
  %v6203 = vsub.s32 0, %v6202
  %v6204 = vrot.slane %v5607, %v6203
  %v6205 = vlaneseq
  %v6206 = vshrl.u32 %v6205, 7
  %v6207 = vsub.s32 0, %v6206
  %v6208 = vrot.slane %v5609, %v6207
  %v6209 = vlaneseq
  %v6210 = vshrl.u32 %v6209, 7
  %v6211 = vsub.s32 0, %v6210
  %v6212 = vrot.slane %v5592, %v6211
  %v6213 = vlaneseq
  %v6214 = vshrl.u32 %v6213, 7
  %v6215 = vsub.s32 0, %v6214
  %v6216 = vrot.slane %v5606, %v6215
  %v6217 = vlaneseq
  %v6218 = vshrl.u32 %v6217, 7
  %v6219 = vsub.s32 0, %v6218
  %v6220 = vrot.slane %v5608, %v6219
  %v6221 = vlaneseq
  %v6222 = vshrl.u32 %v6221, 7
  %v6223 = vsub.s32 0, %v6222
  %v6224 = vrot.slane %v5610, %v6223
  %v6225 = vlaneseq
  %v6226 = vshrl.u32 %v6225, 7
  %v6227 = vsub.s32 0, %v6226
  %v6228 = vrot.slane %v5634, %v6227
  %v6229 = vlaneseq
  %v6230 = vshrl.u32 %v6229, 7
  %v6231 = vsub.s32 0, %v6230
  %v6232 = vrot.slane %v5648, %v6231
  %v6233 = vlaneseq
  %v6234 = vshrl.u32 %v6233, 7
  %v6235 = vsub.s32 0, %v6234
  %v6236 = vrot.slane %v5656, %v6235
  %v6237 = vlaneseq
  %v6238 = vshrl.u32 %v6237, 7
  %v6239 = vsub.s32 0, %v6238
  %v6240 = vrot.slane %v5658, %v6239
  %v6241 = vlaneseq
  %v6242 = vshrl.u32 %v6241, 7
  %v6243 = vsub.s32 0, %v6242
  %v6244 = vrot.slane %v5641, %v6243
  %v6245 = vlaneseq
  %v6246 = vshrl.u32 %v6245, 7
  %v6247 = vsub.s32 0, %v6246
  %v6248 = vrot.slane %v5655, %v6247
  %v6249 = vlaneseq
  %v6250 = vshrl.u32 %v6249, 7
  %v6251 = vsub.s32 0, %v6250
  %v6252 = vrot.slane %v5657, %v6251
  %v6253 = vlaneseq
  %v6254 = vshrl.u32 %v6253, 7
  %v6255 = vsub.s32 0, %v6254
  %v6256 = vrot.slane %v5659, %v6255
  %v6257 = vlaneseq
  %v6258 = vshrl.u32 %v6257, 7
  %v6259 = vsub.s32 0, %v6258
  %v6260 = vrot.slane %v5683, %v6259
  %v6261 = vlaneseq
  %v6262 = vshrl.u32 %v6261, 7
  %v6263 = vsub.s32 0, %v6262
  %v6264 = vrot.slane %v5697, %v6263
  %v6265 = vlaneseq
  %v6266 = vshrl.u32 %v6265, 7
  %v6267 = vsub.s32 0, %v6266
  %v6268 = vrot.slane %v5705, %v6267
  %v6269 = vlaneseq
  %v6270 = vshrl.u32 %v6269, 7
  %v6271 = vsub.s32 0, %v6270
  %v6272 = vrot.slane %v5707, %v6271
  %v6273 = vlaneseq
  %v6274 = vshrl.u32 %v6273, 7
  %v6275 = vsub.s32 0, %v6274
  %v6276 = vrot.slane %v5690, %v6275
  %v6277 = vlaneseq
  %v6278 = vshrl.u32 %v6277, 7
  %v6279 = vsub.s32 0, %v6278
  %v6280 = vrot.slane %v5704, %v6279
  %v6281 = vlaneseq
  %v6282 = vshrl.u32 %v6281, 7
  %v6283 = vsub.s32 0, %v6282
  %v6284 = vrot.slane %v5706, %v6283
  %v6285 = vlaneseq
  %v6286 = vshrl.u32 %v6285, 7
  %v6287 = vsub.s32 0, %v6286
  %v6288 = vrot.slane %v5708, %v6287
  %v6289 = vlaneseq
  %v6290 = vshrl.u32 %v6289, 7
  %v6291 = vsub.s32 0, %v6290
  %v6292 = vrot.slane %v5732, %v6291
  %v6293 = vlaneseq
  %v6294 = vshrl.u32 %v6293, 7
  %v6295 = vsub.s32 0, %v6294
  %v6296 = vrot.slane %v5746, %v6295
  %v6297 = vlaneseq
  %v6298 = vshrl.u32 %v6297, 7
  %v6299 = vsub.s32 0, %v6298
  %v6300 = vrot.slane %v5754, %v6299
  %v6301 = vlaneseq
  %v6302 = vshrl.u32 %v6301, 7
  %v6303 = vsub.s32 0, %v6302
  %v6304 = vrot.slane %v5756, %v6303
  %v6305 = vlaneseq
  %v6306 = vshrl.u32 %v6305, 7
  %v6307 = vsub.s32 0, %v6306
  %v6308 = vrot.slane %v5739, %v6307
  %v6309 = vlaneseq
  %v6310 = vshrl.u32 %v6309, 7
  %v6311 = vsub.s32 0, %v6310
  %v6312 = vrot.slane %v5753, %v6311
  %v6313 = vlaneseq
  %v6314 = vshrl.u32 %v6313, 7
  %v6315 = vsub.s32 0, %v6314
  %v6316 = vrot.slane %v5755, %v6315
  %v6317 = vlaneseq
  %v6318 = vshrl.u32 %v6317, 7
  %v6319 = vsub.s32 0, %v6318
  %v6320 = vrot.slane %v5757, %v6319
  %v6321 = vlaneseq
  %v6322 = vshrl.u32 %v6321, 7
  %v6323 = vsub.s32 0, %v6322
  %v6324 = vrot.slane %v5781, %v6323
  %v6325 = vlaneseq
  %v6326 = vshrl.u32 %v6325, 7
  %v6327 = vsub.s32 0, %v6326
  %v6328 = vrot.slane %v5795, %v6327
  %v6329 = vlaneseq
  %v6330 = vshrl.u32 %v6329, 7
  %v6331 = vsub.s32 0, %v6330
  %v6332 = vrot.slane %v5803, %v6331
  %v6333 = vlaneseq
  %v6334 = vshrl.u32 %v6333, 7
  %v6335 = vsub.s32 0, %v6334
  %v6336 = vrot.slane %v5805, %v6335
  %v6337 = vlaneseq
  %v6338 = vshrl.u32 %v6337, 7
  %v6339 = vsub.s32 0, %v6338
  %v6340 = vrot.slane %v5788, %v6339
  %v6341 = vlaneseq
  %v6342 = vshrl.u32 %v6341, 7
  %v6343 = vsub.s32 0, %v6342
  %v6344 = vrot.slane %v5802, %v6343
  %v6345 = vlaneseq
  %v6346 = vshrl.u32 %v6345, 7
  %v6347 = vsub.s32 0, %v6346
  %v6348 = vrot.slane %v5804, %v6347
  %v6349 = vlaneseq
  %v6350 = vshrl.u32 %v6349, 7
  %v6351 = vsub.s32 0, %v6350
  %v6352 = vrot.slane %v5806, %v6351
  %v6353 = vlaneseq
  %v6354 = vshrl.u32 %v6353, 7
  %v6355 = vsub.s32 0, %v6354
  %v6356 = vrot.slane %v5830, %v6355
  %v6357 = vlaneseq
  %v6358 = vshrl.u32 %v6357, 7
  %v6359 = vsub.s32 0, %v6358
  %v6360 = vrot.slane %v5844, %v6359
  %v6361 = vlaneseq
  %v6362 = vshrl.u32 %v6361, 7
  %v6363 = vsub.s32 0, %v6362
  %v6364 = vrot.slane %v5852, %v6363
  %v6365 = vlaneseq
  %v6366 = vshrl.u32 %v6365, 7
  %v6367 = vsub.s32 0, %v6366
  %v6368 = vrot.slane %v5854, %v6367
  %v6369 = vlaneseq
  %v6370 = vshrl.u32 %v6369, 7
  %v6371 = vsub.s32 0, %v6370
  %v6372 = vrot.slane %v5837, %v6371
  %v6373 = vlaneseq
  %v6374 = vshrl.u32 %v6373, 7
  %v6375 = vsub.s32 0, %v6374
  %v6376 = vrot.slane %v5851, %v6375
  %v6377 = vlaneseq
  %v6378 = vshrl.u32 %v6377, 7
  %v6379 = vsub.s32 0, %v6378
  %v6380 = vrot.slane %v5853, %v6379
  %v6381 = vlaneseq
  %v6382 = vshrl.u32 %v6381, 7
  %v6383 = vsub.s32 0, %v6382
  %v6384 = vrot.slane %v5855, %v6383
  %v6385 = vlaneseq
  %v6386 = vshrl.u32 %v6385, 7
  %v6387 = vsub.s32 0, %v6386
  %v6388 = vrot.slane %v5879, %v6387
  %v6389 = vlaneseq
  %v6390 = vshrl.u32 %v6389, 7
  %v6391 = vsub.s32 0, %v6390
  %v6392 = vrot.slane %v5893, %v6391
  %v6393 = vlaneseq
  %v6394 = vshrl.u32 %v6393, 7
  %v6395 = vsub.s32 0, %v6394
  %v6396 = vrot.slane %v5901, %v6395
  %v6397 = vlaneseq
  %v6398 = vshrl.u32 %v6397, 7
  %v6399 = vsub.s32 0, %v6398
  %v6400 = vrot.slane %v5903, %v6399
  %v6401 = vlaneseq
  %v6402 = vshrl.u32 %v6401, 7
  %v6403 = vsub.s32 0, %v6402
  %v6404 = vrot.slane %v5886, %v6403
  %v6405 = vlaneseq
  %v6406 = vshrl.u32 %v6405, 7
  %v6407 = vsub.s32 0, %v6406
  %v6408 = vrot.slane %v5900, %v6407
  %v6409 = vlaneseq
  %v6410 = vshrl.u32 %v6409, 7
  %v6411 = vsub.s32 0, %v6410
  %v6412 = vrot.slane %v5902, %v6411
  %v6413 = vlaneseq
  %v6414 = vshrl.u32 %v6413, 7
  %v6415 = vsub.s32 0, %v6414
  %v6416 = vrot.slane %v5904, %v6415
  %v6547 = vunpack.c.l.b16 %v5103
  %v6548 = vunpack.c.l.b16 %v5104
  %v6549 = vpack.c.b16 %v6548, %v6547
  %v6552 = vsel %vm3274, %v5039, 0
  %v6555 = vsel %vm3274, %v5040, 0
  %v6558 = vsel %vm3274, %v5041, 0
  %v6561 = vsel %vm3274, %v5042, 0
  %v6564 = vsel %vm3274, %v5043, 0
  %v6567 = vsel %vm3274, %v5044, 0
  %v6570 = vsel %vm3274, %v5045, 0
  %v6573 = vsel %vm3274, %v5046, 0
  %v6576 = vsel %vm3274, %v5047, 0
  %v6579 = vsel %vm3274, %v5048, 0
  %v6582 = vsel %vm3274, %v5049, 0
  %v6585 = vsel %vm3274, %v5050, 0
  %v6588 = vsel %vm3274, %v5051, 0
  %v6591 = vsel %vm3274, %v5052, 0
  %v6594 = vsel %vm3274, %v5053, 0
  %v6597 = vsel %vm3274, %v5054, 0
  %v6600 = vsel %vm3274, %v5055, 0
  %v6603 = vsel %vm3274, %v5056, 0
  %v6606 = vsel %vm3274, %v5057, 0
  %v6609 = vsel %vm3274, %v5058, 0
  %v6612 = vsel %vm3274, %v5059, 0
  %v6615 = vsel %vm3274, %v5060, 0
  %v6618 = vsel %vm3274, %v5061, 0
  %v6621 = vsel %vm3274, %v5062, 0
  %v6624 = vsel %vm3274, %v5063, 0
  %v6627 = vsel %vm3274, %v5064, 0
  %v6630 = vsel %vm3274, %v5065, 0
  %v6633 = vsel %vm3274, %v5066, 0
  %v6636 = vsel %vm3274, %v5067, 0
  %v6639 = vsel %vm3274, %v5068, 0
  %v6642 = vsel %vm3274, %v5069, 0
  %v6645 = vsel %vm3274, %v5070, 0
  %v6648 = vsel %vm3274, %v5071, 0
  %v6651 = vsel %vm3274, %v5072, 0
  %v6654 = vsel %vm3274, %v5073, 0
  %v6657 = vsel %vm3274, %v5074, 0
  %v6660 = vsel %vm3274, %v5075, 0
  %v6663 = vsel %vm3274, %v5076, 0
  %v6666 = vsel %vm3274, %v5077, 0
  %v6669 = vsel %vm3274, %v5078, 0
  %v6672 = vsel %vm3274, %v5079, 0
  %v6675 = vsel %vm3274, %v5080, 0
  %v6678 = vsel %vm3274, %v5081, 0
  %v6681 = vsel %vm3274, %v5082, 0
  %v6684 = vsel %vm3274, %v5083, 0
  %v6687 = vsel %vm3274, %v5084, 0
  %v6690 = vsel %vm3274, %v5085, 0
  %v6693 = vsel %vm3274, %v5086, 0
  %v6696 = vsel %vm3274, %v5087, 0
  %v6699 = vsel %vm3274, %v5088, 0
  %v6702 = vsel %vm3274, %v5089, 0
  %v6705 = vsel %vm3274, %v5090, 0
  %v6708 = vsel %vm3274, %v5091, 0
  %v6711 = vsel %vm3274, %v5092, 0
  %v6714 = vsel %vm3274, %v5093, 0
  %v6717 = vsel %vm3274, %v5094, 0
  %v6720 = vsel %vm3274, %v5095, 0
  %v6723 = vsel %vm3274, %v5096, 0
  %v6726 = vsel %vm3274, %v5097, 0
  %v6729 = vsel %vm3274, %v5098, 0
  %v6732 = vsel %vm3274, %v5099, 0
  %v6735 = vsel %vm3274, %v5100, 0
  %v6738 = vsel %vm3274, %v5101, 0
  %v6741 = vsel %vm3274, %v5102, 0
  %6743 = vmatprep.subr.bf16.mxu0 0
  %6744 = vmatpush1.bf16.msra.mxu0 %v6549
  %6745 = vmatprep.subr.bf16.mxu0 0
  %6746 = vmatpush1.bf16.msra.mxu0 0
  %6747 = vmatprep.subr.bf16.mxu0 0
  %6748 = vmatpush1.bf16.msra.mxu0 0
  %6749 = vmatprep.subr.bf16.mxu0 0
  %6750 = vmatpush1.bf16.msra.mxu0 0
  %6751 = vmatprep.subr.bf16.mxu0 0
  %6752 = vmatpush1.bf16.msra.mxu0 0
  %6753 = vmatprep.subr.bf16.mxu0 0
  %6754 = vmatpush1.bf16.msra.mxu0 0
  %6755 = vmatprep.subr.bf16.mxu0 0
  %6756 = vmatpush1.bf16.msra.mxu0 0
  %6757 = vmatprep.subr.bf16.mxu0 0
  %6758 = vmatpush1.bf16.msra.mxu0 0
  %6759 = vmatprep.subr.bf16.mxu0 0
  %6760 = vmatpush1.bf16.msra.mxu0 0
  %6761 = vmatprep.subr.bf16.mxu0 0
  %6762 = vmatpush1.bf16.msra.mxu0 0
  %6763 = vmatprep.subr.bf16.mxu0 0
  %6764 = vmatpush1.bf16.msra.mxu0 0
  %6765 = vmatprep.subr.bf16.mxu0 0
  %6766 = vmatpush1.bf16.msra.mxu0 0
  %6767 = vmatprep.subr.bf16.mxu0 0
  %6768 = vmatpush1.bf16.msra.mxu0 0
  %6769 = vmatprep.subr.bf16.mxu0 0
  %6770 = vmatpush1.bf16.msra.mxu0 0
  %6771 = vmatprep.subr.bf16.mxu0 0
  %6772 = vmatpush1.bf16.msra.mxu0 0
  %6773 = vmatprep.subr.bf16.mxu0 0
  %6774 = vmatpush1.bf16.msra.mxu0 0
  %6775 = vmatprep.mubr.bf16.mxu0 0
  %6776 = vmatmul.mubr.bf16.gmra.mrb[0].mxu0 %v6552
  %v6777 = vpop.f32.mrb[0].mxu0
  %v6778 = vadd.f32 %v5908, %v6777
  %v6779 = vpop.f32.mrb[0].mxu0
  %v6780 = vpop.f32.mrb[0].mxu0
  %v6781 = vadd.f32 %v5912, %v6780
  %v6782 = vpop.f32.mrb[0].mxu0
  %6783 = vmatprep.mubr.bf16.mxu0 0
  %6784 = vmatmul.mubr.bf16.gmra.mrb[0].mxu0 %v6555
  %v6785 = vpop.f32.mrb[0].mxu0
  %v6786 = vadd.f32 %v5916, %v6785
  %v6787 = vpop.f32.mrb[0].mxu0
  %v6788 = vpop.f32.mrb[0].mxu0
  %v6789 = vadd.f32 %v5920, %v6788
  %v6790 = vpop.f32.mrb[0].mxu0
  %6791 = vmatprep.mubr.bf16.mxu0 0
  %6792 = vmatmul.mubr.bf16.gmra.mrb[0].mxu0 %v6558
  %v6793 = vpop.f32.mrb[0].mxu0
  %v6794 = vadd.f32 %v5924, %v6793
  %v6795 = vpop.f32.mrb[0].mxu0
  %v6796 = vpop.f32.mrb[0].mxu0
  %v6797 = vadd.f32 %v5928, %v6796
  %v6798 = vpop.f32.mrb[0].mxu0
  %6799 = vmatprep.mubr.bf16.mxu0 0
  %6800 = vmatmul.mubr.bf16.gmra.mrb[0].mxu0 %v6561
  %v6801 = vpop.f32.mrb[0].mxu0
  %v6802 = vadd.f32 %v5932, %v6801
  %v6803 = vpop.f32.mrb[0].mxu0
  %v6804 = vpop.f32.mrb[0].mxu0
  %v6805 = vadd.f32 %v5936, %v6804
  %v6806 = vpop.f32.mrb[0].mxu0
  %6807 = vmatprep.mubr.bf16.mxu0 0
  %6808 = vmatmul.mubr.bf16.gmra.mrb[0].mxu0 %v6564
  %v6809 = vpop.f32.mrb[0].mxu0
  %v6810 = vadd.f32 %v5940, %v6809
  %v6811 = vpop.f32.mrb[0].mxu0
  %v6812 = vpop.f32.mrb[0].mxu0
  %v6813 = vadd.f32 %v5944, %v6812
  %v6814 = vpop.f32.mrb[0].mxu0
  %6815 = vmatprep.mubr.bf16.mxu0 0
  %6816 = vmatmul.mubr.bf16.gmra.mrb[0].mxu0 %v6567
  %v6817 = vpop.f32.mrb[0].mxu0
  %v6818 = vadd.f32 %v5948, %v6817
  %v6819 = vpop.f32.mrb[0].mxu0
  %v6820 = vpop.f32.mrb[0].mxu0
  %v6821 = vadd.f32 %v5952, %v6820
  %v6822 = vpop.f32.mrb[0].mxu0
  %6823 = vmatprep.mubr.bf16.mxu0 0
  %6824 = vmatmul.mubr.bf16.gmra.mrb[0].mxu0 %v6570
  %v6825 = vpop.f32.mrb[0].mxu0
  %v6826 = vadd.f32 %v5956, %v6825
  %v6827 = vpop.f32.mrb[0].mxu0
  %v6828 = vpop.f32.mrb[0].mxu0
  %v6829 = vadd.f32 %v5960, %v6828
  %v6830 = vpop.f32.mrb[0].mxu0
  %6831 = vmatprep.mubr.bf16.mxu0 0
  %6832 = vmatmul.mubr.bf16.gmra.mrb[0].mxu0 %v6573
  %v6833 = vpop.f32.mrb[0].mxu0
  %v6834 = vadd.f32 %v5964, %v6833
  %v6835 = vpop.f32.mrb[0].mxu0
  %v6836 = vpop.f32.mrb[0].mxu0
  %v6837 = vadd.f32 %v5968, %v6836
  %v6838 = vpop.f32.mrb[0].mxu0
  %6839 = vmatprep.mubr.bf16.mxu0 0
  %6840 = vmatmul.mubr.bf16.gmra.mrb[0].mxu0 %v6576
  %v6841 = vpop.f32.mrb[0].mxu0
  %v6842 = vadd.f32 %v5972, %v6841
  %v6843 = vpop.f32.mrb[0].mxu0
  %v6844 = vpop.f32.mrb[0].mxu0
  %v6845 = vadd.f32 %v5976, %v6844
  %v6846 = vpop.f32.mrb[0].mxu0
  %6847 = vmatprep.mubr.bf16.mxu0 0
  %6848 = vmatmul.mubr.bf16.gmra.mrb[0].mxu0 %v6579
  %v6849 = vpop.f32.mrb[0].mxu0
  %v6850 = vadd.f32 %v5980, %v6849
  %v6851 = vpop.f32.mrb[0].mxu0
  %v6852 = vpop.f32.mrb[0].mxu0
  %v6853 = vadd.f32 %v5984, %v6852
  %v6854 = vpop.f32.mrb[0].mxu0
  %6855 = vmatprep.mubr.bf16.mxu0 0
  %6856 = vmatmul.mubr.bf16.gmra.mrb[0].mxu0 %v6582
  %v6857 = vpop.f32.mrb[0].mxu0
  %v6858 = vadd.f32 %v5988, %v6857
  %v6859 = vpop.f32.mrb[0].mxu0
  %v6860 = vpop.f32.mrb[0].mxu0
  %v6861 = vadd.f32 %v5992, %v6860
  %v6862 = vpop.f32.mrb[0].mxu0
  %6863 = vmatprep.mubr.bf16.mxu0 0
  %6864 = vmatmul.mubr.bf16.gmra.mrb[0].mxu0 %v6585
  %v6865 = vpop.f32.mrb[0].mxu0
  %v6866 = vadd.f32 %v5996, %v6865
  %v6867 = vpop.f32.mrb[0].mxu0
  %v6868 = vpop.f32.mrb[0].mxu0
  %v6869 = vadd.f32 %v6000, %v6868
  %v6870 = vpop.f32.mrb[0].mxu0
  %6871 = vmatprep.mubr.bf16.mxu0 0
  %6872 = vmatmul.mubr.bf16.gmra.mrb[0].mxu0 %v6588
  %v6873 = vpop.f32.mrb[0].mxu0
  %v6874 = vadd.f32 %v6004, %v6873
  %v6875 = vpop.f32.mrb[0].mxu0
  %v6876 = vpop.f32.mrb[0].mxu0
  %v6877 = vadd.f32 %v6008, %v6876
  %v6878 = vpop.f32.mrb[0].mxu0
  %6879 = vmatprep.mubr.bf16.mxu0 0
  %6880 = vmatmul.mubr.bf16.gmra.mrb[0].mxu0 %v6591
  %v6881 = vpop.f32.mrb[0].mxu0
  %v6882 = vadd.f32 %v6012, %v6881
  %v6883 = vpop.f32.mrb[0].mxu0
  %v6884 = vpop.f32.mrb[0].mxu0
  %v6885 = vadd.f32 %v6016, %v6884
  %v6886 = vpop.f32.mrb[0].mxu0
  %6887 = vmatprep.mubr.bf16.mxu0 0
  %6888 = vmatmul.mubr.bf16.gmra.mrb[0].mxu0 %v6594
  %v6889 = vpop.f32.mrb[0].mxu0
  %v6890 = vadd.f32 %v6020, %v6889
  %v6891 = vpop.f32.mrb[0].mxu0
  %v6892 = vpop.f32.mrb[0].mxu0
  %v6893 = vadd.f32 %v6024, %v6892
  %v6894 = vpop.f32.mrb[0].mxu0
  %6895 = vmatprep.mubr.bf16.mxu0 0
  %6896 = vmatmul.mubr.bf16.gmra.mrb[0].mxu0 %v6597
  %v6897 = vpop.f32.mrb[0].mxu0
  %v6898 = vadd.f32 %v6028, %v6897
  %v6899 = vpop.f32.mrb[0].mxu0
  %v6900 = vpop.f32.mrb[0].mxu0
  %v6901 = vadd.f32 %v6032, %v6900
  %v6902 = vpop.f32.mrb[0].mxu0
  %6903 = vmatprep.mubr.bf16.mxu0 0
  %6904 = vmatmul.mubr.bf16.gmra.mrb[0].mxu0 %v6600
  %v6905 = vpop.f32.mrb[0].mxu0
  %v6906 = vadd.f32 %v6036, %v6905
  %v6907 = vpop.f32.mrb[0].mxu0
  %v6908 = vpop.f32.mrb[0].mxu0
  %v6909 = vadd.f32 %v6040, %v6908
  %v6910 = vpop.f32.mrb[0].mxu0
  %6911 = vmatprep.mubr.bf16.mxu0 0
  %6912 = vmatmul.mubr.bf16.gmra.mrb[0].mxu0 %v6603
  %v6913 = vpop.f32.mrb[0].mxu0
  %v6914 = vadd.f32 %v6044, %v6913
  %v6915 = vpop.f32.mrb[0].mxu0
  %v6916 = vpop.f32.mrb[0].mxu0
  %v6917 = vadd.f32 %v6048, %v6916
  %v6918 = vpop.f32.mrb[0].mxu0
  %6919 = vmatprep.mubr.bf16.mxu0 0
  %6920 = vmatmul.mubr.bf16.gmra.mrb[0].mxu0 %v6606
  %v6921 = vpop.f32.mrb[0].mxu0
  %v6922 = vadd.f32 %v6052, %v6921
  %v6923 = vpop.f32.mrb[0].mxu0
  %v6924 = vpop.f32.mrb[0].mxu0
  %v6925 = vadd.f32 %v6056, %v6924
  %v6926 = vpop.f32.mrb[0].mxu0
  %6927 = vmatprep.mubr.bf16.mxu0 0
  %6928 = vmatmul.mubr.bf16.gmra.mrb[0].mxu0 %v6609
  %v6929 = vpop.f32.mrb[0].mxu0
  %v6930 = vadd.f32 %v6060, %v6929
  %v6931 = vpop.f32.mrb[0].mxu0
  %v6932 = vpop.f32.mrb[0].mxu0
  %v6933 = vadd.f32 %v6064, %v6932
  %v6934 = vpop.f32.mrb[0].mxu0
  %6935 = vmatprep.mubr.bf16.mxu0 0
  %6936 = vmatmul.mubr.bf16.gmra.mrb[0].mxu0 %v6612
  %v6937 = vpop.f32.mrb[0].mxu0
  %v6938 = vadd.f32 %v6068, %v6937
  %v6939 = vpop.f32.mrb[0].mxu0
  %v6940 = vpop.f32.mrb[0].mxu0
  %v6941 = vadd.f32 %v6072, %v6940
  %v6942 = vpop.f32.mrb[0].mxu0
  %6943 = vmatprep.mubr.bf16.mxu0 0
  %6944 = vmatmul.mubr.bf16.gmra.mrb[0].mxu0 %v6615
  %v6945 = vpop.f32.mrb[0].mxu0
  %v6946 = vadd.f32 %v6076, %v6945
  %v6947 = vpop.f32.mrb[0].mxu0
  %v6948 = vpop.f32.mrb[0].mxu0
  %v6949 = vadd.f32 %v6080, %v6948
  %v6950 = vpop.f32.mrb[0].mxu0
  %6951 = vmatprep.mubr.bf16.mxu0 0
  %6952 = vmatmul.mubr.bf16.gmra.mrb[0].mxu0 %v6618
  %v6953 = vpop.f32.mrb[0].mxu0
  %v6954 = vadd.f32 %v6084, %v6953
  %v6955 = vpop.f32.mrb[0].mxu0
  %v6956 = vpop.f32.mrb[0].mxu0
  %v6957 = vadd.f32 %v6088, %v6956
  %v6958 = vpop.f32.mrb[0].mxu0
  %6959 = vmatprep.mubr.bf16.mxu0 0
  %6960 = vmatmul.mubr.bf16.gmra.mrb[0].mxu0 %v6621
  %v6961 = vpop.f32.mrb[0].mxu0
  %v6962 = vadd.f32 %v6092, %v6961
  %v6963 = vpop.f32.mrb[0].mxu0
  %v6964 = vpop.f32.mrb[0].mxu0
  %v6965 = vadd.f32 %v6096, %v6964
  %v6966 = vpop.f32.mrb[0].mxu0
  %6967 = vmatprep.mubr.bf16.mxu0 0
  %6968 = vmatmul.mubr.bf16.gmra.mrb[0].mxu0 %v6624
  %v6969 = vpop.f32.mrb[0].mxu0
  %v6970 = vadd.f32 %v6100, %v6969
  %v6971 = vpop.f32.mrb[0].mxu0
  %v6972 = vpop.f32.mrb[0].mxu0
  %v6973 = vadd.f32 %v6104, %v6972
  %v6974 = vpop.f32.mrb[0].mxu0
  %6975 = vmatprep.mubr.bf16.mxu0 0
  %6976 = vmatmul.mubr.bf16.gmra.mrb[0].mxu0 %v6627
  %v6977 = vpop.f32.mrb[0].mxu0
  %v6978 = vadd.f32 %v6108, %v6977
  %v6979 = vpop.f32.mrb[0].mxu0
  %v6980 = vpop.f32.mrb[0].mxu0
  %v6981 = vadd.f32 %v6112, %v6980
  %v6982 = vpop.f32.mrb[0].mxu0
  %6983 = vmatprep.mubr.bf16.mxu0 0
  %6984 = vmatmul.mubr.bf16.gmra.mrb[0].mxu0 %v6630
  %v6985 = vpop.f32.mrb[0].mxu0
  %v6986 = vadd.f32 %v6116, %v6985
  %v6987 = vpop.f32.mrb[0].mxu0
  %v6988 = vpop.f32.mrb[0].mxu0
  %v6989 = vadd.f32 %v6120, %v6988
  %v6990 = vpop.f32.mrb[0].mxu0
  %6991 = vmatprep.mubr.bf16.mxu0 0
  %6992 = vmatmul.mubr.bf16.gmra.mrb[0].mxu0 %v6633
  %v6993 = vpop.f32.mrb[0].mxu0
  %v6994 = vadd.f32 %v6124, %v6993
  %v6995 = vpop.f32.mrb[0].mxu0
  %v6996 = vpop.f32.mrb[0].mxu0
  %v6997 = vadd.f32 %v6128, %v6996
  %v6998 = vpop.f32.mrb[0].mxu0
  %6999 = vmatprep.mubr.bf16.mxu0 0
  %7000 = vmatmul.mubr.bf16.gmra.mrb[0].mxu0 %v6636
  %v7001 = vpop.f32.mrb[0].mxu0
  %v7002 = vadd.f32 %v6132, %v7001
  %v7003 = vpop.f32.mrb[0].mxu0
  %v7004 = vpop.f32.mrb[0].mxu0
  %v7005 = vadd.f32 %v6136, %v7004
  %v7006 = vpop.f32.mrb[0].mxu0
  %7007 = vmatprep.mubr.bf16.mxu0 0
  %7008 = vmatmul.mubr.bf16.gmra.mrb[0].mxu0 %v6639
  %v7009 = vpop.f32.mrb[0].mxu0
  %v7010 = vadd.f32 %v6140, %v7009
  %v7011 = vpop.f32.mrb[0].mxu0
  %v7012 = vpop.f32.mrb[0].mxu0
  %v7013 = vadd.f32 %v6144, %v7012
  %v7014 = vpop.f32.mrb[0].mxu0
  %7015 = vmatprep.mubr.bf16.mxu0 0
  %7016 = vmatmul.mubr.bf16.gmra.mrb[0].mxu0 %v6642
  %v7017 = vpop.f32.mrb[0].mxu0
  %v7018 = vadd.f32 %v6148, %v7017
  %v7019 = vpop.f32.mrb[0].mxu0
  %v7020 = vpop.f32.mrb[0].mxu0
  %v7021 = vadd.f32 %v6152, %v7020
  %v7022 = vpop.f32.mrb[0].mxu0
  %7023 = vmatprep.mubr.bf16.mxu0 0
  %7024 = vmatmul.mubr.bf16.gmra.mrb[0].mxu0 %v6645
  %v7025 = vpop.f32.mrb[0].mxu0
  %v7026 = vadd.f32 %v6156, %v7025
  %v7027 = vpop.f32.mrb[0].mxu0
  %v7028 = vpop.f32.mrb[0].mxu0
  %v7029 = vadd.f32 %v6160, %v7028
  %v7030 = vpop.f32.mrb[0].mxu0
  %7031 = vmatprep.mubr.bf16.mxu0 0
  %7032 = vmatmul.mubr.bf16.gmra.mrb[0].mxu0 %v6648
  %v7033 = vpop.f32.mrb[0].mxu0
  %v7034 = vadd.f32 %v6164, %v7033
  %v7035 = vpop.f32.mrb[0].mxu0
  %v7036 = vpop.f32.mrb[0].mxu0
  %v7037 = vadd.f32 %v6168, %v7036
  %v7038 = vpop.f32.mrb[0].mxu0
  %7039 = vmatprep.mubr.bf16.mxu0 0
  %7040 = vmatmul.mubr.bf16.gmra.mrb[0].mxu0 %v6651
  %v7041 = vpop.f32.mrb[0].mxu0
  %v7042 = vadd.f32 %v6172, %v7041
  %v7043 = vpop.f32.mrb[0].mxu0
  %v7044 = vpop.f32.mrb[0].mxu0
  %v7045 = vadd.f32 %v6176, %v7044
  %v7046 = vpop.f32.mrb[0].mxu0
  %7047 = vmatprep.mubr.bf16.mxu0 0
  %7048 = vmatmul.mubr.bf16.gmra.mrb[0].mxu0 %v6654
  %v7049 = vpop.f32.mrb[0].mxu0
  %v7050 = vadd.f32 %v6180, %v7049
  %v7051 = vpop.f32.mrb[0].mxu0
  %v7052 = vpop.f32.mrb[0].mxu0
  %v7053 = vadd.f32 %v6184, %v7052
  %v7054 = vpop.f32.mrb[0].mxu0
  %7055 = vmatprep.mubr.bf16.mxu0 0
  %7056 = vmatmul.mubr.bf16.gmra.mrb[0].mxu0 %v6657
  %v7057 = vpop.f32.mrb[0].mxu0
  %v7058 = vadd.f32 %v6188, %v7057
  %v7059 = vpop.f32.mrb[0].mxu0
  %v7060 = vpop.f32.mrb[0].mxu0
  %v7061 = vadd.f32 %v6192, %v7060
  %v7062 = vpop.f32.mrb[0].mxu0
  %7063 = vmatprep.mubr.bf16.mxu0 0
  %7064 = vmatmul.mubr.bf16.gmra.mrb[0].mxu0 %v6660
  %v7065 = vpop.f32.mrb[0].mxu0
  %v7066 = vadd.f32 %v6196, %v7065
  %v7067 = vpop.f32.mrb[0].mxu0
  %v7068 = vpop.f32.mrb[0].mxu0
  %v7069 = vadd.f32 %v6200, %v7068
  %v7070 = vpop.f32.mrb[0].mxu0
  %7071 = vmatprep.mubr.bf16.mxu0 0
  %7072 = vmatmul.mubr.bf16.gmra.mrb[0].mxu0 %v6663
  %v7073 = vpop.f32.mrb[0].mxu0
  %v7074 = vadd.f32 %v6204, %v7073
  %v7075 = vpop.f32.mrb[0].mxu0
  %v7076 = vpop.f32.mrb[0].mxu0
  %v7077 = vadd.f32 %v6208, %v7076
  %v7078 = vpop.f32.mrb[0].mxu0
  %7079 = vmatprep.mubr.bf16.mxu0 0
  %7080 = vmatmul.mubr.bf16.gmra.mrb[0].mxu0 %v6666
  %v7081 = vpop.f32.mrb[0].mxu0
  %v7082 = vadd.f32 %v6212, %v7081
  %v7083 = vpop.f32.mrb[0].mxu0
  %v7084 = vpop.f32.mrb[0].mxu0
  %v7085 = vadd.f32 %v6216, %v7084
  %v7086 = vpop.f32.mrb[0].mxu0
  %7087 = vmatprep.mubr.bf16.mxu0 0
  %7088 = vmatmul.mubr.bf16.gmra.mrb[0].mxu0 %v6669
  %v7089 = vpop.f32.mrb[0].mxu0
  %v7090 = vadd.f32 %v6220, %v7089
  %v7091 = vpop.f32.mrb[0].mxu0
  %v7092 = vpop.f32.mrb[0].mxu0
  %v7093 = vadd.f32 %v6224, %v7092
  %v7094 = vpop.f32.mrb[0].mxu0
  %7095 = vmatprep.mubr.bf16.mxu0 0
  %7096 = vmatmul.mubr.bf16.gmra.mrb[0].mxu0 %v6672
  %v7097 = vpop.f32.mrb[0].mxu0
  %v7098 = vadd.f32 %v6228, %v7097
  %v7099 = vpop.f32.mrb[0].mxu0
  %v7100 = vpop.f32.mrb[0].mxu0
  %v7101 = vadd.f32 %v6232, %v7100
  %v7102 = vpop.f32.mrb[0].mxu0
  %7103 = vmatprep.mubr.bf16.mxu0 0
  %7104 = vmatmul.mubr.bf16.gmra.mrb[0].mxu0 %v6675
  %v7105 = vpop.f32.mrb[0].mxu0
  %v7106 = vadd.f32 %v6236, %v7105
  %v7107 = vpop.f32.mrb[0].mxu0
  %v7108 = vpop.f32.mrb[0].mxu0
  %v7109 = vadd.f32 %v6240, %v7108
  %v7110 = vpop.f32.mrb[0].mxu0
  %7111 = vmatprep.mubr.bf16.mxu0 0
  %7112 = vmatmul.mubr.bf16.gmra.mrb[0].mxu0 %v6678
  %v7113 = vpop.f32.mrb[0].mxu0
  %v7114 = vadd.f32 %v6244, %v7113
  %v7115 = vpop.f32.mrb[0].mxu0
  %v7116 = vpop.f32.mrb[0].mxu0
  %v7117 = vadd.f32 %v6248, %v7116
  %v7118 = vpop.f32.mrb[0].mxu0
  %7119 = vmatprep.mubr.bf16.mxu0 0
  %7120 = vmatmul.mubr.bf16.gmra.mrb[0].mxu0 %v6681
  %v7121 = vpop.f32.mrb[0].mxu0
  %v7122 = vadd.f32 %v6252, %v7121
  %v7123 = vpop.f32.mrb[0].mxu0
  %v7124 = vpop.f32.mrb[0].mxu0
  %v7125 = vadd.f32 %v6256, %v7124
  %v7126 = vpop.f32.mrb[0].mxu0
  %7127 = vmatprep.mubr.bf16.mxu0 0
  %7128 = vmatmul.mubr.bf16.gmra.mrb[0].mxu0 %v6684
  %v7129 = vpop.f32.mrb[0].mxu0
  %v7130 = vadd.f32 %v6260, %v7129
  %v7131 = vpop.f32.mrb[0].mxu0
  %v7132 = vpop.f32.mrb[0].mxu0
  %v7133 = vadd.f32 %v6264, %v7132
  %v7134 = vpop.f32.mrb[0].mxu0
  %7135 = vmatprep.mubr.bf16.mxu0 0
  %7136 = vmatmul.mubr.bf16.gmra.mrb[0].mxu0 %v6687
  %v7137 = vpop.f32.mrb[0].mxu0
  %v7138 = vadd.f32 %v6268, %v7137
  %v7139 = vpop.f32.mrb[0].mxu0
  %v7140 = vpop.f32.mrb[0].mxu0
  %v7141 = vadd.f32 %v6272, %v7140
  %v7142 = vpop.f32.mrb[0].mxu0
  %7143 = vmatprep.mubr.bf16.mxu0 0
  %7144 = vmatmul.mubr.bf16.gmra.mrb[0].mxu0 %v6690
  %v7145 = vpop.f32.mrb[0].mxu0
  %v7146 = vadd.f32 %v6276, %v7145
  %v7147 = vpop.f32.mrb[0].mxu0
  %v7148 = vpop.f32.mrb[0].mxu0
  %v7149 = vadd.f32 %v6280, %v7148
  %v7150 = vpop.f32.mrb[0].mxu0
  %7151 = vmatprep.mubr.bf16.mxu0 0
  %7152 = vmatmul.mubr.bf16.gmra.mrb[0].mxu0 %v6693
  %v7153 = vpop.f32.mrb[0].mxu0
  %v7154 = vadd.f32 %v6284, %v7153
  %v7155 = vpop.f32.mrb[0].mxu0
  %v7156 = vpop.f32.mrb[0].mxu0
  %v7157 = vadd.f32 %v6288, %v7156
  %v7158 = vpop.f32.mrb[0].mxu0
  %7159 = vmatprep.mubr.bf16.mxu0 0
  %7160 = vmatmul.mubr.bf16.gmra.mrb[0].mxu0 %v6696
  %v7161 = vpop.f32.mrb[0].mxu0
  %v7162 = vadd.f32 %v6292, %v7161
  %v7163 = vpop.f32.mrb[0].mxu0
  %v7164 = vpop.f32.mrb[0].mxu0
  %v7165 = vadd.f32 %v6296, %v7164
  %v7166 = vpop.f32.mrb[0].mxu0
  %7167 = vmatprep.mubr.bf16.mxu0 0
  %7168 = vmatmul.mubr.bf16.gmra.mrb[0].mxu0 %v6699
  %v7169 = vpop.f32.mrb[0].mxu0
  %v7170 = vadd.f32 %v6300, %v7169
  %v7171 = vpop.f32.mrb[0].mxu0
  %v7172 = vpop.f32.mrb[0].mxu0
  %v7173 = vadd.f32 %v6304, %v7172
  %v7174 = vpop.f32.mrb[0].mxu0
  %7175 = vmatprep.mubr.bf16.mxu0 0
  %7176 = vmatmul.mubr.bf16.gmra.mrb[0].mxu0 %v6702
  %v7177 = vpop.f32.mrb[0].mxu0
  %v7178 = vadd.f32 %v6308, %v7177
  %v7179 = vpop.f32.mrb[0].mxu0
  %v7180 = vpop.f32.mrb[0].mxu0
  %v7181 = vadd.f32 %v6312, %v7180
  %v7182 = vpop.f32.mrb[0].mxu0
  %7183 = vmatprep.mubr.bf16.mxu0 0
  %7184 = vmatmul.mubr.bf16.gmra.mrb[0].mxu0 %v6705
  %v7185 = vpop.f32.mrb[0].mxu0
  %v7186 = vadd.f32 %v6316, %v7185
  %v7187 = vpop.f32.mrb[0].mxu0
  %v7188 = vpop.f32.mrb[0].mxu0
  %v7189 = vadd.f32 %v6320, %v7188
  %v7190 = vpop.f32.mrb[0].mxu0
  %7191 = vmatprep.mubr.bf16.mxu0 0
  %7192 = vmatmul.mubr.bf16.gmra.mrb[0].mxu0 %v6708
  %v7193 = vpop.f32.mrb[0].mxu0
  %v7194 = vadd.f32 %v6324, %v7193
  %v7195 = vpop.f32.mrb[0].mxu0
  %v7196 = vpop.f32.mrb[0].mxu0
  %v7197 = vadd.f32 %v6328, %v7196
  %v7198 = vpop.f32.mrb[0].mxu0
  %7199 = vmatprep.mubr.bf16.mxu0 0
  %7200 = vmatmul.mubr.bf16.gmra.mrb[0].mxu0 %v6711
  %v7201 = vpop.f32.mrb[0].mxu0
  %v7202 = vadd.f32 %v6332, %v7201
  %v7203 = vpop.f32.mrb[0].mxu0
  %v7204 = vpop.f32.mrb[0].mxu0
  %v7205 = vadd.f32 %v6336, %v7204
  %v7206 = vpop.f32.mrb[0].mxu0
  %7207 = vmatprep.mubr.bf16.mxu0 0
  %7208 = vmatmul.mubr.bf16.gmra.mrb[0].mxu0 %v6714
  %v7209 = vpop.f32.mrb[0].mxu0
  %v7210 = vadd.f32 %v6340, %v7209
  %v7211 = vpop.f32.mrb[0].mxu0
  %v7212 = vpop.f32.mrb[0].mxu0
  %v7213 = vadd.f32 %v6344, %v7212
  %v7214 = vpop.f32.mrb[0].mxu0
  %7215 = vmatprep.mubr.bf16.mxu0 0
  %7216 = vmatmul.mubr.bf16.gmra.mrb[0].mxu0 %v6717
  %v7217 = vpop.f32.mrb[0].mxu0
  %v7218 = vadd.f32 %v6348, %v7217
  %v7219 = vpop.f32.mrb[0].mxu0
  %v7220 = vpop.f32.mrb[0].mxu0
  %v7221 = vadd.f32 %v6352, %v7220
  %v7222 = vpop.f32.mrb[0].mxu0
  %7223 = vmatprep.mubr.bf16.mxu0 0
  %7224 = vmatmul.mubr.bf16.gmra.mrb[0].mxu0 %v6720
  %v7225 = vpop.f32.mrb[0].mxu0
  %v7226 = vadd.f32 %v6356, %v7225
  %v7227 = vpop.f32.mrb[0].mxu0
  %v7228 = vpop.f32.mrb[0].mxu0
  %v7229 = vadd.f32 %v6360, %v7228
  %v7230 = vpop.f32.mrb[0].mxu0
  %7231 = vmatprep.mubr.bf16.mxu0 0
  %7232 = vmatmul.mubr.bf16.gmra.mrb[0].mxu0 %v6723
  %v7233 = vpop.f32.mrb[0].mxu0
  %v7234 = vadd.f32 %v6364, %v7233
  %v7235 = vpop.f32.mrb[0].mxu0
  %v7236 = vpop.f32.mrb[0].mxu0
  %v7237 = vadd.f32 %v6368, %v7236
  %v7238 = vpop.f32.mrb[0].mxu0
  %7239 = vmatprep.mubr.bf16.mxu0 0
  %7240 = vmatmul.mubr.bf16.gmra.mrb[0].mxu0 %v6726
  %v7241 = vpop.f32.mrb[0].mxu0
  %v7242 = vadd.f32 %v6372, %v7241
  %v7243 = vpop.f32.mrb[0].mxu0
  %v7244 = vpop.f32.mrb[0].mxu0
  %v7245 = vadd.f32 %v6376, %v7244
  %v7246 = vpop.f32.mrb[0].mxu0
  %7247 = vmatprep.mubr.bf16.mxu0 0
  %7248 = vmatmul.mubr.bf16.gmra.mrb[0].mxu0 %v6729
  %v7249 = vpop.f32.mrb[0].mxu0
  %v7250 = vadd.f32 %v6380, %v7249
  %v7251 = vpop.f32.mrb[0].mxu0
  %v7252 = vpop.f32.mrb[0].mxu0
  %v7253 = vadd.f32 %v6384, %v7252
  %v7254 = vpop.f32.mrb[0].mxu0
  %7255 = vmatprep.mubr.bf16.mxu0 0
  %7256 = vmatmul.mubr.bf16.gmra.mrb[0].mxu0 %v6732
  %v7257 = vpop.f32.mrb[0].mxu0
  %v7258 = vadd.f32 %v6388, %v7257
  %v7259 = vpop.f32.mrb[0].mxu0
  %v7260 = vpop.f32.mrb[0].mxu0
  %v7261 = vadd.f32 %v6392, %v7260
  %v7262 = vpop.f32.mrb[0].mxu0
  %7263 = vmatprep.mubr.bf16.mxu0 0
  %7264 = vmatmul.mubr.bf16.gmra.mrb[0].mxu0 %v6735
  %v7265 = vpop.f32.mrb[0].mxu0
  %v7266 = vadd.f32 %v6396, %v7265
  %v7267 = vpop.f32.mrb[0].mxu0
  %v7268 = vpop.f32.mrb[0].mxu0
  %v7269 = vadd.f32 %v6400, %v7268
  %v7270 = vpop.f32.mrb[0].mxu0
  %7271 = vmatprep.mubr.bf16.mxu0 0
  %7272 = vmatmul.mubr.bf16.gmra.mrb[0].mxu0 %v6738
  %v7273 = vpop.f32.mrb[0].mxu0
  %v7274 = vadd.f32 %v6404, %v7273
  %v7275 = vpop.f32.mrb[0].mxu0
  %v7276 = vpop.f32.mrb[0].mxu0
  %v7277 = vadd.f32 %v6408, %v7276
  %v7278 = vpop.f32.mrb[0].mxu0
  %7279 = vmatprep.mubr.bf16.mxu0 0
  %7280 = vmatmul.mubr.bf16.gmra.mrb[0].mxu0 %v6741
  %v7281 = vpop.f32.mrb[0].mxu0
  %v7282 = vadd.f32 %v6412, %v7281
  %v7283 = vpop.f32.mrb[0].mxu0
  %v7284 = vpop.f32.mrb[0].mxu0
  %v7285 = vadd.f32 %v6416, %v7284
  %v7286 = vpop.f32.mrb[0].mxu0
  %7287 = vdwg.mxu0
  %vm7288 = vcmp.ge.f32.partialorder %v6778, 1.0
  %vm7289 = vcmp.ge.f32.partialorder %v6781, 1.0
  %vm7290 = vcmp.ge.f32.partialorder %v6786, 1.0
  %vm7291 = vcmp.ge.f32.partialorder %v6789, 1.0
  %vm7292 = vcmp.ge.f32.partialorder %v6794, 1.0
  %vm7293 = vcmp.ge.f32.partialorder %v6797, 1.0
  %vm7294 = vcmp.ge.f32.partialorder %v6802, 1.0
  %vm7295 = vcmp.ge.f32.partialorder %v6805, 1.0
  %vm7296 = vcmp.ge.f32.partialorder %v6810, 1.0
  %vm7297 = vcmp.ge.f32.partialorder %v6813, 1.0
  %vm7298 = vcmp.ge.f32.partialorder %v6818, 1.0
  %vm7299 = vcmp.ge.f32.partialorder %v6821, 1.0
  %vm7300 = vcmp.ge.f32.partialorder %v6826, 1.0
  %vm7301 = vcmp.ge.f32.partialorder %v6829, 1.0
  %vm7302 = vcmp.ge.f32.partialorder %v6834, 1.0
  %vm7303 = vcmp.ge.f32.partialorder %v6837, 1.0
  %vm7304 = vcmp.ge.f32.partialorder %v6842, 1.0
  %vm7305 = vcmp.ge.f32.partialorder %v6845, 1.0
  %vm7306 = vcmp.ge.f32.partialorder %v6850, 1.0
  %vm7307 = vcmp.ge.f32.partialorder %v6853, 1.0
  %vm7308 = vcmp.ge.f32.partialorder %v6858, 1.0
  %vm7309 = vcmp.ge.f32.partialorder %v6861, 1.0
  %vm7310 = vcmp.ge.f32.partialorder %v6866, 1.0
  %vm7311 = vcmp.ge.f32.partialorder %v6869, 1.0
  %vm7312 = vcmp.ge.f32.partialorder %v6874, 1.0
  %vm7313 = vcmp.ge.f32.partialorder %v6877, 1.0
  %vm7314 = vcmp.ge.f32.partialorder %v6882, 1.0
  %vm7315 = vcmp.ge.f32.partialorder %v6885, 1.0
  %vm7316 = vcmp.ge.f32.partialorder %v6890, 1.0
  %vm7317 = vcmp.ge.f32.partialorder %v6893, 1.0
  %vm7318 = vcmp.ge.f32.partialorder %v6898, 1.0
  %vm7319 = vcmp.ge.f32.partialorder %v6901, 1.0
  %vm7320 = vcmp.ge.f32.partialorder %v6906, 1.0
  %vm7321 = vcmp.ge.f32.partialorder %v6909, 1.0
  %vm7322 = vcmp.ge.f32.partialorder %v6914, 1.0
  %vm7323 = vcmp.ge.f32.partialorder %v6917, 1.0
  %vm7324 = vcmp.ge.f32.partialorder %v6922, 1.0
  %vm7325 = vcmp.ge.f32.partialorder %v6925, 1.0
  %vm7326 = vcmp.ge.f32.partialorder %v6930, 1.0
  %vm7327 = vcmp.ge.f32.partialorder %v6933, 1.0
  %vm7328 = vcmp.ge.f32.partialorder %v6938, 1.0
  %vm7329 = vcmp.ge.f32.partialorder %v6941, 1.0
  %vm7330 = vcmp.ge.f32.partialorder %v6946, 1.0
  %vm7331 = vcmp.ge.f32.partialorder %v6949, 1.0
  %vm7332 = vcmp.ge.f32.partialorder %v6954, 1.0
  %vm7333 = vcmp.ge.f32.partialorder %v6957, 1.0
  %vm7334 = vcmp.ge.f32.partialorder %v6962, 1.0
  %vm7335 = vcmp.ge.f32.partialorder %v6965, 1.0
  %vm7336 = vcmp.ge.f32.partialorder %v6970, 1.0
  %vm7337 = vcmp.ge.f32.partialorder %v6973, 1.0
  %vm7338 = vcmp.ge.f32.partialorder %v6978, 1.0
  %vm7339 = vcmp.ge.f32.partialorder %v6981, 1.0
  %vm7340 = vcmp.ge.f32.partialorder %v6986, 1.0
  %vm7341 = vcmp.ge.f32.partialorder %v6989, 1.0
  %vm7342 = vcmp.ge.f32.partialorder %v6994, 1.0
  %vm7343 = vcmp.ge.f32.partialorder %v6997, 1.0
  %vm7344 = vcmp.ge.f32.partialorder %v7002, 1.0
  %vm7345 = vcmp.ge.f32.partialorder %v7005, 1.0
  %vm7346 = vcmp.ge.f32.partialorder %v7010, 1.0
  %vm7347 = vcmp.ge.f32.partialorder %v7013, 1.0
  %vm7348 = vcmp.ge.f32.partialorder %v7018, 1.0
  %vm7349 = vcmp.ge.f32.partialorder %v7021, 1.0
  %vm7350 = vcmp.ge.f32.partialorder %v7026, 1.0
  %vm7351 = vcmp.ge.f32.partialorder %v7029, 1.0
  %vm7352 = vcmp.ge.f32.partialorder %v7034, 1.0
  %vm7353 = vcmp.ge.f32.partialorder %v7037, 1.0
  %vm7354 = vcmp.ge.f32.partialorder %v7042, 1.0
  %vm7355 = vcmp.ge.f32.partialorder %v7045, 1.0
  %vm7356 = vcmp.ge.f32.partialorder %v7050, 1.0
  %vm7357 = vcmp.ge.f32.partialorder %v7053, 1.0
  %vm7358 = vcmp.ge.f32.partialorder %v7058, 1.0
  %vm7359 = vcmp.ge.f32.partialorder %v7061, 1.0
  %vm7360 = vcmp.ge.f32.partialorder %v7066, 1.0
  %vm7361 = vcmp.ge.f32.partialorder %v7069, 1.0
  %vm7362 = vcmp.ge.f32.partialorder %v7074, 1.0
  %vm7363 = vcmp.ge.f32.partialorder %v7077, 1.0
  %vm7364 = vcmp.ge.f32.partialorder %v7082, 1.0
  %vm7365 = vcmp.ge.f32.partialorder %v7085, 1.0
  %vm7366 = vcmp.ge.f32.partialorder %v7090, 1.0
  %vm7367 = vcmp.ge.f32.partialorder %v7093, 1.0
  %vm7368 = vcmp.ge.f32.partialorder %v7098, 1.0
  %vm7369 = vcmp.ge.f32.partialorder %v7101, 1.0
  %vm7370 = vcmp.ge.f32.partialorder %v7106, 1.0
  %vm7371 = vcmp.ge.f32.partialorder %v7109, 1.0
  %vm7372 = vcmp.ge.f32.partialorder %v7114, 1.0
  %vm7373 = vcmp.ge.f32.partialorder %v7117, 1.0
  %vm7374 = vcmp.ge.f32.partialorder %v7122, 1.0
  %vm7375 = vcmp.ge.f32.partialorder %v7125, 1.0
  %vm7376 = vcmp.ge.f32.partialorder %v7130, 1.0
  %vm7377 = vcmp.ge.f32.partialorder %v7133, 1.0
  %vm7378 = vcmp.ge.f32.partialorder %v7138, 1.0
  %vm7379 = vcmp.ge.f32.partialorder %v7141, 1.0
  %vm7380 = vcmp.ge.f32.partialorder %v7146, 1.0
  %vm7381 = vcmp.ge.f32.partialorder %v7149, 1.0
  %vm7382 = vcmp.ge.f32.partialorder %v7154, 1.0
  %vm7383 = vcmp.ge.f32.partialorder %v7157, 1.0
  %vm7384 = vcmp.ge.f32.partialorder %v7162, 1.0
  %vm7385 = vcmp.ge.f32.partialorder %v7165, 1.0
  %vm7386 = vcmp.ge.f32.partialorder %v7170, 1.0
  %vm7387 = vcmp.ge.f32.partialorder %v7173, 1.0
  %vm7388 = vcmp.ge.f32.partialorder %v7178, 1.0
  %vm7389 = vcmp.ge.f32.partialorder %v7181, 1.0
  %vm7390 = vcmp.ge.f32.partialorder %v7186, 1.0
  %vm7391 = vcmp.ge.f32.partialorder %v7189, 1.0
  %vm7392 = vcmp.ge.f32.partialorder %v7194, 1.0
  %vm7393 = vcmp.ge.f32.partialorder %v7197, 1.0
  %vm7394 = vcmp.ge.f32.partialorder %v7202, 1.0
  %vm7395 = vcmp.ge.f32.partialorder %v7205, 1.0
  %vm7396 = vcmp.ge.f32.partialorder %v7210, 1.0
  %vm7397 = vcmp.ge.f32.partialorder %v7213, 1.0
  %vm7398 = vcmp.ge.f32.partialorder %v7218, 1.0
  %vm7399 = vcmp.ge.f32.partialorder %v7221, 1.0
  %vm7400 = vcmp.ge.f32.partialorder %v7226, 1.0
  %vm7401 = vcmp.ge.f32.partialorder %v7229, 1.0
  %vm7402 = vcmp.ge.f32.partialorder %v7234, 1.0
  %vm7403 = vcmp.ge.f32.partialorder %v7237, 1.0
  %vm7404 = vcmp.ge.f32.partialorder %v7242, 1.0
  %vm7405 = vcmp.ge.f32.partialorder %v7245, 1.0
  %vm7406 = vcmp.ge.f32.partialorder %v7250, 1.0
  %vm7407 = vcmp.ge.f32.partialorder %v7253, 1.0
  %vm7408 = vcmp.ge.f32.partialorder %v7258, 1.0
  %vm7409 = vcmp.ge.f32.partialorder %v7261, 1.0
  %vm7410 = vcmp.ge.f32.partialorder %v7266, 1.0
  %vm7411 = vcmp.ge.f32.partialorder %v7269, 1.0
  %vm7412 = vcmp.ge.f32.partialorder %v7274, 1.0
  %vm7413 = vcmp.ge.f32.partialorder %v7277, 1.0
  %vm7414 = vcmp.ge.f32.partialorder %v7282, 1.0
  %vm7415 = vcmp.ge.f32.partialorder %v7285, 1.0
  %v7416 = vsel %vm7288, 1, 0
  %v7417 = vsel %vm7289, 1, 0
  %v7418 = vsel %vm7290, 1, 0
  %v7419 = vsel %vm7291, 1, 0
  %v7420 = vsel %vm7292, 1, 0
  %v7421 = vsel %vm7293, 1, 0
  %v7422 = vsel %vm7294, 1, 0
  %v7423 = vsel %vm7295, 1, 0
  %v7424 = vsel %vm7296, 1, 0
  %v7425 = vsel %vm7297, 1, 0
  %v7426 = vsel %vm7298, 1, 0
  %v7427 = vsel %vm7299, 1, 0
  %v7428 = vsel %vm7300, 1, 0
  %v7429 = vsel %vm7301, 1, 0
  %v7430 = vsel %vm7302, 1, 0
  %v7431 = vsel %vm7303, 1, 0
  %v7432 = vsel %vm7304, 1, 0
  %v7433 = vsel %vm7305, 1, 0
  %v7434 = vsel %vm7306, 1, 0
  %v7435 = vsel %vm7307, 1, 0
  %v7436 = vsel %vm7308, 1, 0
  %v7437 = vsel %vm7309, 1, 0
  %v7438 = vsel %vm7310, 1, 0
  %v7439 = vsel %vm7311, 1, 0
  %v7440 = vsel %vm7312, 1, 0
  %v7441 = vsel %vm7313, 1, 0
  %v7442 = vsel %vm7314, 1, 0
  %v7443 = vsel %vm7315, 1, 0
  %v7444 = vsel %vm7316, 1, 0
  %v7445 = vsel %vm7317, 1, 0
  %v7446 = vsel %vm7318, 1, 0
  %v7447 = vsel %vm7319, 1, 0
  %v7448 = vsel %vm7320, 1, 0
  %v7449 = vsel %vm7321, 1, 0
  %v7450 = vsel %vm7322, 1, 0
  %v7451 = vsel %vm7323, 1, 0
  %v7452 = vsel %vm7324, 1, 0
  %v7453 = vsel %vm7325, 1, 0
  %v7454 = vsel %vm7326, 1, 0
  %v7455 = vsel %vm7327, 1, 0
  %v7456 = vsel %vm7328, 1, 0
  %v7457 = vsel %vm7329, 1, 0
  %v7458 = vsel %vm7330, 1, 0
  %v7459 = vsel %vm7331, 1, 0
  %v7460 = vsel %vm7332, 1, 0
  %v7461 = vsel %vm7333, 1, 0
  %v7462 = vsel %vm7334, 1, 0
  %v7463 = vsel %vm7335, 1, 0
  %v7464 = vsel %vm7336, 1, 0
  %v7465 = vsel %vm7337, 1, 0
  %v7466 = vsel %vm7338, 1, 0
  %v7467 = vsel %vm7339, 1, 0
  %v7468 = vsel %vm7340, 1, 0
  %v7469 = vsel %vm7341, 1, 0
  %v7470 = vsel %vm7342, 1, 0
  %v7471 = vsel %vm7343, 1, 0
  %v7472 = vsel %vm7344, 1, 0
  %v7473 = vsel %vm7345, 1, 0
  %v7474 = vsel %vm7346, 1, 0
  %v7475 = vsel %vm7347, 1, 0
  %v7476 = vsel %vm7348, 1, 0
  %v7477 = vsel %vm7349, 1, 0
  %v7478 = vsel %vm7350, 1, 0
  %v7479 = vsel %vm7351, 1, 0
  %v7480 = vsel %vm7352, 1, 0
  %v7481 = vsel %vm7353, 1, 0
  %v7482 = vsel %vm7354, 1, 0
  %v7483 = vsel %vm7355, 1, 0
  %v7484 = vsel %vm7356, 1, 0
  %v7485 = vsel %vm7357, 1, 0
  %v7486 = vsel %vm7358, 1, 0
  %v7487 = vsel %vm7359, 1, 0
  %v7488 = vsel %vm7360, 1, 0
  %v7489 = vsel %vm7361, 1, 0
  %v7490 = vsel %vm7362, 1, 0
  %v7491 = vsel %vm7363, 1, 0
  %v7492 = vsel %vm7364, 1, 0
  %v7493 = vsel %vm7365, 1, 0
  %v7494 = vsel %vm7366, 1, 0
  %v7495 = vsel %vm7367, 1, 0
  %v7496 = vsel %vm7368, 1, 0
  %v7497 = vsel %vm7369, 1, 0
  %v7498 = vsel %vm7370, 1, 0
  %v7499 = vsel %vm7371, 1, 0
  %v7500 = vsel %vm7372, 1, 0
  %v7501 = vsel %vm7373, 1, 0
  %v7502 = vsel %vm7374, 1, 0
  %v7503 = vsel %vm7375, 1, 0
  %v7504 = vsel %vm7376, 1, 0
  %v7505 = vsel %vm7377, 1, 0
  %v7506 = vsel %vm7378, 1, 0
  %v7507 = vsel %vm7379, 1, 0
  %v7508 = vsel %vm7380, 1, 0
  %v7509 = vsel %vm7381, 1, 0
  %v7510 = vsel %vm7382, 1, 0
  %v7511 = vsel %vm7383, 1, 0
  %v7512 = vsel %vm7384, 1, 0
  %v7513 = vsel %vm7385, 1, 0
  %v7514 = vsel %vm7386, 1, 0
  %v7515 = vsel %vm7387, 1, 0
  %v7516 = vsel %vm7388, 1, 0
  %v7517 = vsel %vm7389, 1, 0
  %v7518 = vsel %vm7390, 1, 0
  %v7519 = vsel %vm7391, 1, 0
  %v7520 = vsel %vm7392, 1, 0
  %v7521 = vsel %vm7393, 1, 0
  %v7522 = vsel %vm7394, 1, 0
  %v7523 = vsel %vm7395, 1, 0
  %v7524 = vsel %vm7396, 1, 0
  %v7525 = vsel %vm7397, 1, 0
  %v7526 = vsel %vm7398, 1, 0
  %v7527 = vsel %vm7399, 1, 0
  %v7528 = vsel %vm7400, 1, 0
  %v7529 = vsel %vm7401, 1, 0
  %v7530 = vsel %vm7402, 1, 0
  %v7531 = vsel %vm7403, 1, 0
  %v7532 = vsel %vm7404, 1, 0
  %v7533 = vsel %vm7405, 1, 0
  %v7534 = vsel %vm7406, 1, 0
  %v7535 = vsel %vm7407, 1, 0
  %v7536 = vsel %vm7408, 1, 0
  %v7537 = vsel %vm7409, 1, 0
  %v7538 = vsel %vm7410, 1, 0
  %v7539 = vsel %vm7411, 1, 0
  %v7540 = vsel %vm7412, 1, 0
  %v7541 = vsel %vm7413, 1, 0
  %v7542 = vsel %vm7414, 1, 0
  %v7543 = vsel %vm7415, 1, 0
  %v7544 = vcvt.s32.f32 %v7416
  %v7545 = vcvt.s32.f32 %v7417
  %v7546 = vcvt.s32.f32 %v7418
  %v7547 = vcvt.s32.f32 %v7419
  %v7548 = vcvt.s32.f32 %v7420
  %v7549 = vcvt.s32.f32 %v7421
  %v7550 = vcvt.s32.f32 %v7422
  %v7551 = vcvt.s32.f32 %v7423
  %v7552 = vcvt.s32.f32 %v7424
  %v7553 = vcvt.s32.f32 %v7425
  %v7554 = vcvt.s32.f32 %v7426
  %v7555 = vcvt.s32.f32 %v7427
  %v7556 = vcvt.s32.f32 %v7428
  %v7557 = vcvt.s32.f32 %v7429
  %v7558 = vcvt.s32.f32 %v7430
  %v7559 = vcvt.s32.f32 %v7431
  %v7560 = vcvt.s32.f32 %v7432
  %v7561 = vcvt.s32.f32 %v7433
  %v7562 = vcvt.s32.f32 %v7434
  %v7563 = vcvt.s32.f32 %v7435
  %v7564 = vcvt.s32.f32 %v7436
  %v7565 = vcvt.s32.f32 %v7437
  %v7566 = vcvt.s32.f32 %v7438
  %v7567 = vcvt.s32.f32 %v7439
  %v7568 = vcvt.s32.f32 %v7440
  %v7569 = vcvt.s32.f32 %v7441
  %v7570 = vcvt.s32.f32 %v7442
  %v7571 = vcvt.s32.f32 %v7443
  %v7572 = vcvt.s32.f32 %v7444
  %v7573 = vcvt.s32.f32 %v7445
  %v7574 = vcvt.s32.f32 %v7446
  %v7575 = vcvt.s32.f32 %v7447
  %v7576 = vcvt.s32.f32 %v7448
  %v7577 = vcvt.s32.f32 %v7449
  %v7578 = vcvt.s32.f32 %v7450
  %v7579 = vcvt.s32.f32 %v7451
  %v7580 = vcvt.s32.f32 %v7452
  %v7581 = vcvt.s32.f32 %v7453
  %v7582 = vcvt.s32.f32 %v7454
  %v7583 = vcvt.s32.f32 %v7455
  %v7584 = vcvt.s32.f32 %v7456
  %v7585 = vcvt.s32.f32 %v7457
  %v7586 = vcvt.s32.f32 %v7458
  %v7587 = vcvt.s32.f32 %v7459
  %v7588 = vcvt.s32.f32 %v7460
  %v7589 = vcvt.s32.f32 %v7461
  %v7590 = vcvt.s32.f32 %v7462
  %v7591 = vcvt.s32.f32 %v7463
  %v7592 = vcvt.s32.f32 %v7464
  %v7593 = vcvt.s32.f32 %v7465
  %v7594 = vcvt.s32.f32 %v7466
  %v7595 = vcvt.s32.f32 %v7467
  %v7596 = vcvt.s32.f32 %v7468
  %v7597 = vcvt.s32.f32 %v7469
  %v7598 = vcvt.s32.f32 %v7470
  %v7599 = vcvt.s32.f32 %v7471
  %v7600 = vcvt.s32.f32 %v7472
  %v7601 = vcvt.s32.f32 %v7473
  %v7602 = vcvt.s32.f32 %v7474
  %v7603 = vcvt.s32.f32 %v7475
  %v7604 = vcvt.s32.f32 %v7476
  %v7605 = vcvt.s32.f32 %v7477
  %v7606 = vcvt.s32.f32 %v7478
  %v7607 = vcvt.s32.f32 %v7479
  %v7608 = vcvt.s32.f32 %v7480
  %v7609 = vcvt.s32.f32 %v7481
  %v7610 = vcvt.s32.f32 %v7482
  %v7611 = vcvt.s32.f32 %v7483
  %v7612 = vcvt.s32.f32 %v7484
  %v7613 = vcvt.s32.f32 %v7485
  %v7614 = vcvt.s32.f32 %v7486
  %v7615 = vcvt.s32.f32 %v7487
  %v7616 = vcvt.s32.f32 %v7488
  %v7617 = vcvt.s32.f32 %v7489
  %v7618 = vcvt.s32.f32 %v7490
  %v7619 = vcvt.s32.f32 %v7491
  %v7620 = vcvt.s32.f32 %v7492
  %v7621 = vcvt.s32.f32 %v7493
  %v7622 = vcvt.s32.f32 %v7494
  %v7623 = vcvt.s32.f32 %v7495
  %v7624 = vcvt.s32.f32 %v7496
  %v7625 = vcvt.s32.f32 %v7497
  %v7626 = vcvt.s32.f32 %v7498
  %v7627 = vcvt.s32.f32 %v7499
  %v7628 = vcvt.s32.f32 %v7500
  %v7629 = vcvt.s32.f32 %v7501
  %v7630 = vcvt.s32.f32 %v7502
  %v7631 = vcvt.s32.f32 %v7503
  %v7632 = vcvt.s32.f32 %v7504
  %v7633 = vcvt.s32.f32 %v7505
  %v7634 = vcvt.s32.f32 %v7506
  %v7635 = vcvt.s32.f32 %v7507
  %v7636 = vcvt.s32.f32 %v7508
  %v7637 = vcvt.s32.f32 %v7509
  %v7638 = vcvt.s32.f32 %v7510
  %v7639 = vcvt.s32.f32 %v7511
  %v7640 = vcvt.s32.f32 %v7512
  %v7641 = vcvt.s32.f32 %v7513
  %v7642 = vcvt.s32.f32 %v7514
  %v7643 = vcvt.s32.f32 %v7515
  %v7644 = vcvt.s32.f32 %v7516
  %v7645 = vcvt.s32.f32 %v7517
  %v7646 = vcvt.s32.f32 %v7518
  %v7647 = vcvt.s32.f32 %v7519
  %v7648 = vcvt.s32.f32 %v7520
  %v7649 = vcvt.s32.f32 %v7521
  %v7650 = vcvt.s32.f32 %v7522
  %v7651 = vcvt.s32.f32 %v7523
  %v7652 = vcvt.s32.f32 %v7524
  %v7653 = vcvt.s32.f32 %v7525
  %v7654 = vcvt.s32.f32 %v7526
  %v7655 = vcvt.s32.f32 %v7527
  %v7656 = vcvt.s32.f32 %v7528
  %v7657 = vcvt.s32.f32 %v7529
  %v7658 = vcvt.s32.f32 %v7530
  %v7659 = vcvt.s32.f32 %v7531
  %v7660 = vcvt.s32.f32 %v7532
  %v7661 = vcvt.s32.f32 %v7533
  %v7662 = vcvt.s32.f32 %v7534
  %v7663 = vcvt.s32.f32 %v7535
  %v7664 = vcvt.s32.f32 %v7536
  %v7665 = vcvt.s32.f32 %v7537
  %v7666 = vcvt.s32.f32 %v7538
  %v7667 = vcvt.s32.f32 %v7539
  %v7668 = vcvt.s32.f32 %v7540
  %v7669 = vcvt.s32.f32 %v7541
  %v7670 = vcvt.s32.f32 %v7542
  %v7671 = vcvt.s32.f32 %v7543
  %v7672 = vpack.c.bf16 %v7545, %v7544
  %v7673 = vpack.c.bf16 %v7547, %v7546
  %v7674 = vpack.c.bf16 %v7549, %v7548
  %v7675 = vpack.c.bf16 %v7551, %v7550
  %v7676 = vpack.c.bf16 %v7553, %v7552
  %v7677 = vpack.c.bf16 %v7555, %v7554
  %v7678 = vpack.c.bf16 %v7557, %v7556
  %v7679 = vpack.c.bf16 %v7559, %v7558
  %v7680 = vpack.c.bf16 %v7561, %v7560
  %v7681 = vpack.c.bf16 %v7563, %v7562
  %v7682 = vpack.c.bf16 %v7565, %v7564
  %v7683 = vpack.c.bf16 %v7567, %v7566
  %v7684 = vpack.c.bf16 %v7569, %v7568
  %v7685 = vpack.c.bf16 %v7571, %v7570
  %v7686 = vpack.c.bf16 %v7573, %v7572
  %v7687 = vpack.c.bf16 %v7575, %v7574
  %v7688 = vpack.c.bf16 %v7577, %v7576
  %v7689 = vpack.c.bf16 %v7579, %v7578
  %v7690 = vpack.c.bf16 %v7581, %v7580
  %v7691 = vpack.c.bf16 %v7583, %v7582
  %v7692 = vpack.c.bf16 %v7585, %v7584
  %v7693 = vpack.c.bf16 %v7587, %v7586
  %v7694 = vpack.c.bf16 %v7589, %v7588
  %v7695 = vpack.c.bf16 %v7591, %v7590
  %v7696 = vpack.c.bf16 %v7593, %v7592
  %v7697 = vpack.c.bf16 %v7595, %v7594
  %v7698 = vpack.c.bf16 %v7597, %v7596
  %v7699 = vpack.c.bf16 %v7599, %v7598
  %v7700 = vpack.c.bf16 %v7601, %v7600
  %v7701 = vpack.c.bf16 %v7603, %v7602
  %v7702 = vpack.c.bf16 %v7605, %v7604
  %v7703 = vpack.c.bf16 %v7607, %v7606
  %v7704 = vpack.c.bf16 %v7609, %v7608
  %v7705 = vpack.c.bf16 %v7611, %v7610
  %v7706 = vpack.c.bf16 %v7613, %v7612
  %v7707 = vpack.c.bf16 %v7615, %v7614
  %v7708 = vpack.c.bf16 %v7617, %v7616
  %v7709 = vpack.c.bf16 %v7619, %v7618
  %v7710 = vpack.c.bf16 %v7621, %v7620
  %v7711 = vpack.c.bf16 %v7623, %v7622
  %v7712 = vpack.c.bf16 %v7625, %v7624
  %v7713 = vpack.c.bf16 %v7627, %v7626
  %v7714 = vpack.c.bf16 %v7629, %v7628
  %v7715 = vpack.c.bf16 %v7631, %v7630
  %v7716 = vpack.c.bf16 %v7633, %v7632
  %v7717 = vpack.c.bf16 %v7635, %v7634
  %v7718 = vpack.c.bf16 %v7637, %v7636
  %v7719 = vpack.c.bf16 %v7639, %v7638
  %v7720 = vpack.c.bf16 %v7641, %v7640
  %v7721 = vpack.c.bf16 %v7643, %v7642
  %v7722 = vpack.c.bf16 %v7645, %v7644
  %v7723 = vpack.c.bf16 %v7647, %v7646
  %v7724 = vpack.c.bf16 %v7649, %v7648
  %v7725 = vpack.c.bf16 %v7651, %v7650
  %v7726 = vpack.c.bf16 %v7653, %v7652
  %v7727 = vpack.c.bf16 %v7655, %v7654
  %v7728 = vpack.c.bf16 %v7657, %v7656
  %v7729 = vpack.c.bf16 %v7659, %v7658
  %v7730 = vpack.c.bf16 %v7661, %v7660
  %v7731 = vpack.c.bf16 %v7663, %v7662
  %v7732 = vpack.c.bf16 %v7665, %v7664
  %v7733 = vpack.c.bf16 %v7667, %v7666
  %v7734 = vpack.c.bf16 %v7669, %v7668
  %v7735 = vpack.c.bf16 %v7671, %v7670
  %7800 = vrot.lane.b32.xlu0 %v7672, 16
  %v7801 = vpop.permute.xlu0 %7800
  %7802 = vrot.lane.b32.xlu0 %v7673, 16
  %v7803 = vpop.permute.xlu0 %7802
  %7804 = vrot.lane.b32.xlu0 %v7674, 16
  %v7805 = vpop.permute.xlu0 %7804
  %7806 = vrot.lane.b32.xlu0 %v7675, 16
  %v7807 = vpop.permute.xlu0 %7806
  %7808 = vrot.lane.b32.xlu0 %v7676, 16
  %v7809 = vpop.permute.xlu0 %7808
  %7810 = vrot.lane.b32.xlu0 %v7677, 16
  %v7811 = vpop.permute.xlu0 %7810
  %7812 = vrot.lane.b32.xlu0 %v7678, 16
  %v7813 = vpop.permute.xlu0 %7812
  %7814 = vrot.lane.b32.xlu0 %v7679, 16
  %v7815 = vpop.permute.xlu0 %7814
  %7816 = vrot.lane.b32.xlu0 %v7680, 16
  %v7817 = vpop.permute.xlu0 %7816
  %7818 = vrot.lane.b32.xlu0 %v7681, 16
  %v7819 = vpop.permute.xlu0 %7818
  %7820 = vrot.lane.b32.xlu0 %v7682, 16
  %v7821 = vpop.permute.xlu0 %7820
  %7822 = vrot.lane.b32.xlu0 %v7683, 16
  %v7823 = vpop.permute.xlu0 %7822
  %7824 = vrot.lane.b32.xlu0 %v7684, 16
  %v7825 = vpop.permute.xlu0 %7824
  %7826 = vrot.lane.b32.xlu0 %v7685, 16
  %v7827 = vpop.permute.xlu0 %7826
  %7828 = vrot.lane.b32.xlu0 %v7686, 16
  %v7829 = vpop.permute.xlu0 %7828
  %7830 = vrot.lane.b32.xlu0 %v7687, 16
  %v7831 = vpop.permute.xlu0 %7830
  %7832 = vrot.lane.b32.xlu0 %v7688, 16
  %v7833 = vpop.permute.xlu0 %7832
  %7834 = vrot.lane.b32.xlu0 %v7689, 16
  %v7835 = vpop.permute.xlu0 %7834
  %7836 = vrot.lane.b32.xlu0 %v7690, 16
  %v7837 = vpop.permute.xlu0 %7836
  %7838 = vrot.lane.b32.xlu0 %v7691, 16
  %v7839 = vpop.permute.xlu0 %7838
  %7840 = vrot.lane.b32.xlu0 %v7692, 16
  %v7841 = vpop.permute.xlu0 %7840
  %7842 = vrot.lane.b32.xlu0 %v7693, 16
  %v7843 = vpop.permute.xlu0 %7842
  %7844 = vrot.lane.b32.xlu0 %v7694, 16
  %v7845 = vpop.permute.xlu0 %7844
  %7846 = vrot.lane.b32.xlu0 %v7695, 16
  %v7847 = vpop.permute.xlu0 %7846
  %7848 = vrot.lane.b32.xlu0 %v7696, 16
  %v7849 = vpop.permute.xlu0 %7848
  %7850 = vrot.lane.b32.xlu0 %v7697, 16
  %v7851 = vpop.permute.xlu0 %7850
  %7852 = vrot.lane.b32.xlu0 %v7698, 16
  %v7853 = vpop.permute.xlu0 %7852
  %7854 = vrot.lane.b32.xlu0 %v7699, 16
  %v7855 = vpop.permute.xlu0 %7854
  %7856 = vrot.lane.b32.xlu0 %v7700, 16
  %v7857 = vpop.permute.xlu0 %7856
  %7858 = vrot.lane.b32.xlu0 %v7701, 16
  %v7859 = vpop.permute.xlu0 %7858
  %7860 = vrot.lane.b32.xlu0 %v7702, 16
  %v7861 = vpop.permute.xlu0 %7860
  %7862 = vrot.lane.b32.xlu0 %v7703, 16
  %v7863 = vpop.permute.xlu0 %7862
  %7864 = vrot.lane.b32.xlu0 %v7704, 16
  %v7865 = vpop.permute.xlu0 %7864
  %7866 = vrot.lane.b32.xlu0 %v7705, 16
  %v7867 = vpop.permute.xlu0 %7866
  %7868 = vrot.lane.b32.xlu0 %v7706, 16
  %v7869 = vpop.permute.xlu0 %7868
  %7870 = vrot.lane.b32.xlu0 %v7707, 16
  %v7871 = vpop.permute.xlu0 %7870
  %7872 = vrot.lane.b32.xlu0 %v7708, 16
  %v7873 = vpop.permute.xlu0 %7872
  %7874 = vrot.lane.b32.xlu0 %v7709, 16
  %v7875 = vpop.permute.xlu0 %7874
  %7876 = vrot.lane.b32.xlu0 %v7710, 16
  %v7877 = vpop.permute.xlu0 %7876
  %7878 = vrot.lane.b32.xlu0 %v7711, 16
  %v7879 = vpop.permute.xlu0 %7878
  %7880 = vrot.lane.b32.xlu0 %v7712, 16
  %v7881 = vpop.permute.xlu0 %7880
  %7882 = vrot.lane.b32.xlu0 %v7713, 16
  %v7883 = vpop.permute.xlu0 %7882
  %7884 = vrot.lane.b32.xlu0 %v7714, 16
  %v7885 = vpop.permute.xlu0 %7884
  %7886 = vrot.lane.b32.xlu0 %v7715, 16
  %v7887 = vpop.permute.xlu0 %7886
  %7888 = vrot.lane.b32.xlu0 %v7716, 16
  %v7889 = vpop.permute.xlu0 %7888
  %7890 = vrot.lane.b32.xlu0 %v7717, 16
  %v7891 = vpop.permute.xlu0 %7890
  %7892 = vrot.lane.b32.xlu0 %v7718, 16
  %v7893 = vpop.permute.xlu0 %7892
  %7894 = vrot.lane.b32.xlu0 %v7719, 16
  %v7895 = vpop.permute.xlu0 %7894
  %7896 = vrot.lane.b32.xlu0 %v7720, 16
  %v7897 = vpop.permute.xlu0 %7896
  %7898 = vrot.lane.b32.xlu0 %v7721, 16
  %v7899 = vpop.permute.xlu0 %7898
  %7900 = vrot.lane.b32.xlu0 %v7722, 16
  %v7901 = vpop.permute.xlu0 %7900
  %7902 = vrot.lane.b32.xlu0 %v7723, 16
  %v7903 = vpop.permute.xlu0 %7902
  %7904 = vrot.lane.b32.xlu0 %v7724, 16
  %v7905 = vpop.permute.xlu0 %7904
  %7906 = vrot.lane.b32.xlu0 %v7725, 16
  %v7907 = vpop.permute.xlu0 %7906
  %7908 = vrot.lane.b32.xlu0 %v7726, 16
  %v7909 = vpop.permute.xlu0 %7908
  %7910 = vrot.lane.b32.xlu0 %v7727, 16
  %v7911 = vpop.permute.xlu0 %7910
  %7912 = vrot.lane.b32.xlu0 %v7728, 16
  %v7913 = vpop.permute.xlu0 %7912
  %7914 = vrot.lane.b32.xlu0 %v7729, 16
  %v7915 = vpop.permute.xlu0 %7914
  %7916 = vrot.lane.b32.xlu0 %v7730, 16
  %v7917 = vpop.permute.xlu0 %7916
  %7918 = vrot.lane.b32.xlu0 %v7731, 16
  %v7919 = vpop.permute.xlu0 %7918
  %7920 = vrot.lane.b32.xlu0 %v7732, 16
  %v7921 = vpop.permute.xlu0 %7920
  %7922 = vrot.lane.b32.xlu0 %v7733, 16
  %v7923 = vpop.permute.xlu0 %7922
  %7924 = vrot.lane.b32.xlu0 %v7734, 16
  %v7925 = vpop.permute.xlu0 %7924
  %7926 = vrot.lane.b32.xlu0 %v7735, 16
  %v7927 = vpop.permute.xlu0 %7926
  %vm7992 = vcmask 261248
  %7993 = vst.msk [vmem:[#allocation2] sm:$0xff] %vm7992, %v7801
  %7994 = vst.msk [vmem:[#allocation2 + $0x8] sm:$0xff] %vm7992, %v7803
  %7995 = vst.msk [vmem:[#allocation2 + $0x10] sm:$0xff] %vm7992, %v7805
  %7996 = vst.msk [vmem:[#allocation2 + $0x18] sm:$0xff] %vm7992, %v7807
  %7997 = vst.msk [vmem:[#allocation2 + $0x20] sm:$0xff] %vm7992, %v7809
  %7998 = vst.msk [vmem:[#allocation2 + $0x28] sm:$0xff] %vm7992, %v7811
  %7999 = vst.msk [vmem:[#allocation2 + $0x30] sm:$0xff] %vm7992, %v7813
  %8000 = vst.msk [vmem:[#allocation2 + $0x38] sm:$0xff] %vm7992, %v7815
  %8001 = vst.msk [vmem:[#allocation2 + $0x40] sm:$0xff] %vm7992, %v7817
  %8002 = vst.msk [vmem:[#allocation2 + $0x48] sm:$0xff] %vm7992, %v7819
  %8003 = vst.msk [vmem:[#allocation2 + $0x50] sm:$0xff] %vm7992, %v7821
  %8004 = vst.msk [vmem:[#allocation2 + $0x58] sm:$0xff] %vm7992, %v7823
  %8005 = vst.msk [vmem:[#allocation2 + $0x60] sm:$0xff] %vm7992, %v7825
  %8006 = vst.msk [vmem:[#allocation2 + $0x68] sm:$0xff] %vm7992, %v7827
  %8007 = vst.msk [vmem:[#allocation2 + $0x70] sm:$0xff] %vm7992, %v7829
  %8008 = vst.msk [vmem:[#allocation2 + $0x78] sm:$0xff] %vm7992, %v7831
  %8009 = vst.msk [vmem:[#allocation2 + $0x80] sm:$0xff] %vm7992, %v7833
  %8010 = vst.msk [vmem:[#allocation2 + $0x88] sm:$0xff] %vm7992, %v7835
  %8011 = vst.msk [vmem:[#allocation2 + $0x90] sm:$0xff] %vm7992, %v7837
  %8012 = vst.msk [vmem:[#allocation2 + $0x98] sm:$0xff] %vm7992, %v7839
  %8013 = vst.msk [vmem:[#allocation2 + $0xa0] sm:$0xff] %vm7992, %v7841
  %8014 = vst.msk [vmem:[#allocation2 + $0xa8] sm:$0xff] %vm7992, %v7843
  %8015 = vst.msk [vmem:[#allocation2 + $0xb0] sm:$0xff] %vm7992, %v7845
  %8016 = vst.msk [vmem:[#allocation2 + $0xb8] sm:$0xff] %vm7992, %v7847
  %8017 = vst.msk [vmem:[#allocation2 + $0xc0] sm:$0xff] %vm7992, %v7849
  %8018 = vst.msk [vmem:[#allocation2 + $0xc8] sm:$0xff] %vm7992, %v7851
  %8019 = vst.msk [vmem:[#allocation2 + $0xd0] sm:$0xff] %vm7992, %v7853
  %8020 = vst.msk [vmem:[#allocation2 + $0xd8] sm:$0xff] %vm7992, %v7855
  %8021 = vst.msk [vmem:[#allocation2 + $0xe0] sm:$0xff] %vm7992, %v7857
  %8022 = vst.msk [vmem:[#allocation2 + $0xe8] sm:$0xff] %vm7992, %v7859
  %8023 = vst.msk [vmem:[#allocation2 + $0xf0] sm:$0xff] %vm7992, %v7861
  %8024 = vst.msk [vmem:[#allocation2 + $0xf8] sm:$0xff] %vm7992, %v7863
  %8025 = vst.msk [vmem:[#allocation2 + $0x100] sm:$0xff] %vm7992, %v7865
  %8026 = vst.msk [vmem:[#allocation2 + $0x108] sm:$0xff] %vm7992, %v7867
  %8027 = vst.msk [vmem:[#allocation2 + $0x110] sm:$0xff] %vm7992, %v7869
  %8028 = vst.msk [vmem:[#allocation2 + $0x118] sm:$0xff] %vm7992, %v7871
  %8029 = vst.msk [vmem:[#allocation2 + $0x120] sm:$0xff] %vm7992, %v7873
  %8030 = vst.msk [vmem:[#allocation2 + $0x128] sm:$0xff] %vm7992, %v7875
  %8031 = vst.msk [vmem:[#allocation2 + $0x130] sm:$0xff] %vm7992, %v7877
  %8032 = vst.msk [vmem:[#allocation2 + $0x138] sm:$0xff] %vm7992, %v7879
  %8033 = vst.msk [vmem:[#allocation2 + $0x140] sm:$0xff] %vm7992, %v7881
  %8034 = vst.msk [vmem:[#allocation2 + $0x148] sm:$0xff] %vm7992, %v7883
  %8035 = vst.msk [vmem:[#allocation2 + $0x150] sm:$0xff] %vm7992, %v7885
  %8036 = vst.msk [vmem:[#allocation2 + $0x158] sm:$0xff] %vm7992, %v7887
  %8037 = vst.msk [vmem:[#allocation2 + $0x160] sm:$0xff] %vm7992, %v7889
  %8038 = vst.msk [vmem:[#allocation2 + $0x168] sm:$0xff] %vm7992, %v7891
  %8039 = vst.msk [vmem:[#allocation2 + $0x170] sm:$0xff] %vm7992, %v7893
  %8040 = vst.msk [vmem:[#allocation2 + $0x178] sm:$0xff] %vm7992, %v7895
  %8041 = vst.msk [vmem:[#allocation2 + $0x180] sm:$0xff] %vm7992, %v7897
  %8042 = vst.msk [vmem:[#allocation2 + $0x188] sm:$0xff] %vm7992, %v7899
  %8043 = vst.msk [vmem:[#allocation2 + $0x190] sm:$0xff] %vm7992, %v7901
  %8044 = vst.msk [vmem:[#allocation2 + $0x198] sm:$0xff] %vm7992, %v7903
  %8045 = vst.msk [vmem:[#allocation2 + $0x1a0] sm:$0xff] %vm7992, %v7905
  %8046 = vst.msk [vmem:[#allocation2 + $0x1a8] sm:$0xff] %vm7992, %v7907
  %8047 = vst.msk [vmem:[#allocation2 + $0x1b0] sm:$0xff] %vm7992, %v7909
  %8048 = vst.msk [vmem:[#allocation2 + $0x1b8] sm:$0xff] %vm7992, %v7911
  %8049 = vst.msk [vmem:[#allocation2 + $0x1c0] sm:$0xff] %vm7992, %v7913
  %8050 = vst.msk [vmem:[#allocation2 + $0x1c8] sm:$0xff] %vm7992, %v7915
  %8051 = vst.msk [vmem:[#allocation2 + $0x1d0] sm:$0xff] %vm7992, %v7917
  %8052 = vst.msk [vmem:[#allocation2 + $0x1d8] sm:$0xff] %vm7992, %v7919
  %8053 = vst.msk [vmem:[#allocation2 + $0x1e0] sm:$0xff] %vm7992, %v7921
  %8054 = vst.msk [vmem:[#allocation2 + $0x1e8] sm:$0xff] %vm7992, %v7923
  %8055 = vst.msk [vmem:[#allocation2 + $0x1f0] sm:$0xff] %vm7992, %v7925
  %8056 = vst.msk [vmem:[#allocation2 + $0x1f8] sm:$0xff] %vm7992, %v7927
  %v8057 = vsel %vm3274, %v6778, -inf
  %v8058 = vrot.slane %v8057, 4
  %v8059 = vmax.f32 %v8057, %v8058
  %v8060 = vrot.slane %v8059, 2
  %v8061 = vmax.f32 %v8059, %v8060
  %v8062 = vrot.slane %v8061, 1
  %v8063 = vmax.f32 %v8061, %v8062
  %v8064 = vsel %vm3274, %v6781, -inf
  %v8065 = vrot.slane %v8064, 4
  %v8066 = vmax.f32 %v8064, %v8065
  %v8067 = vrot.slane %v8066, 2
  %v8068 = vmax.f32 %v8066, %v8067
  %v8069 = vrot.slane %v8068, 1
  %v8070 = vmax.f32 %v8068, %v8069
  %v8071 = vsel %vm3274, %v6786, -inf
  %v8072 = vrot.slane %v8071, 4
  %v8073 = vmax.f32 %v8071, %v8072
  %v8074 = vrot.slane %v8073, 2
  %v8075 = vmax.f32 %v8073, %v8074
  %v8076 = vrot.slane %v8075, 1
  %v8077 = vmax.f32 %v8075, %v8076
  %v8078 = vsel %vm3274, %v6789, -inf
  %v8079 = vrot.slane %v8078, 4
  %v8080 = vmax.f32 %v8078, %v8079
  %v8081 = vrot.slane %v8080, 2
  %v8082 = vmax.f32 %v8080, %v8081
  %v8083 = vrot.slane %v8082, 1
  %v8084 = vmax.f32 %v8082, %v8083
  %v8085 = vsel %vm3274, %v6794, -inf
  %v8086 = vrot.slane %v8085, 4
  %v8087 = vmax.f32 %v8085, %v8086
  %v8088 = vrot.slane %v8087, 2
  %v8089 = vmax.f32 %v8087, %v8088
  %v8090 = vrot.slane %v8089, 1
  %v8091 = vmax.f32 %v8089, %v8090
  %v8092 = vsel %vm3274, %v6797, -inf
  %v8093 = vrot.slane %v8092, 4
  %v8094 = vmax.f32 %v8092, %v8093
  %v8095 = vrot.slane %v8094, 2
  %v8096 = vmax.f32 %v8094, %v8095
  %v8097 = vrot.slane %v8096, 1
  %v8098 = vmax.f32 %v8096, %v8097
  %v8099 = vsel %vm3274, %v6802, -inf
  %v8100 = vrot.slane %v8099, 4
  %v8101 = vmax.f32 %v8099, %v8100
  %v8102 = vrot.slane %v8101, 2
  %v8103 = vmax.f32 %v8101, %v8102
  %v8104 = vrot.slane %v8103, 1
  %v8105 = vmax.f32 %v8103, %v8104
  %v8106 = vsel %vm3274, %v6805, -inf
  %v8107 = vrot.slane %v8106, 4
  %v8108 = vmax.f32 %v8106, %v8107
  %v8109 = vrot.slane %v8108, 2
  %v8110 = vmax.f32 %v8108, %v8109
  %v8111 = vrot.slane %v8110, 1
  %v8112 = vmax.f32 %v8110, %v8111
  %v8113 = vsel %vm3274, %v6810, -inf
  %v8114 = vrot.slane %v8113, 4
  %v8115 = vmax.f32 %v8113, %v8114
  %v8116 = vrot.slane %v8115, 2
  %v8117 = vmax.f32 %v8115, %v8116
  %v8118 = vrot.slane %v8117, 1
  %v8119 = vmax.f32 %v8117, %v8118
  %v8120 = vsel %vm3274, %v6813, -inf
  %v8121 = vrot.slane %v8120, 4
  %v8122 = vmax.f32 %v8120, %v8121
  %v8123 = vrot.slane %v8122, 2
  %v8124 = vmax.f32 %v8122, %v8123
  %v8125 = vrot.slane %v8124, 1
  %v8126 = vmax.f32 %v8124, %v8125
  %v8127 = vsel %vm3274, %v6818, -inf
  %v8128 = vrot.slane %v8127, 4
  %v8129 = vmax.f32 %v8127, %v8128
  %v8130 = vrot.slane %v8129, 2
  %v8131 = vmax.f32 %v8129, %v8130
  %v8132 = vrot.slane %v8131, 1
  %v8133 = vmax.f32 %v8131, %v8132
  %v8134 = vsel %vm3274, %v6821, -inf
  %v8135 = vrot.slane %v8134, 4
  %v8136 = vmax.f32 %v8134, %v8135
  %v8137 = vrot.slane %v8136, 2
  %v8138 = vmax.f32 %v8136, %v8137
  %v8139 = vrot.slane %v8138, 1
  %v8140 = vmax.f32 %v8138, %v8139
  %v8141 = vsel %vm3274, %v6826, -inf
  %v8142 = vrot.slane %v8141, 4
  %v8143 = vmax.f32 %v8141, %v8142
  %v8144 = vrot.slane %v8143, 2
  %v8145 = vmax.f32 %v8143, %v8144
  %v8146 = vrot.slane %v8145, 1
  %v8147 = vmax.f32 %v8145, %v8146
  %v8148 = vsel %vm3274, %v6829, -inf
  %v8149 = vrot.slane %v8148, 4
  %v8150 = vmax.f32 %v8148, %v8149
  %v8151 = vrot.slane %v8150, 2
  %v8152 = vmax.f32 %v8150, %v8151
  %v8153 = vrot.slane %v8152, 1
  %v8154 = vmax.f32 %v8152, %v8153
  %v8155 = vsel %vm3274, %v6834, -inf
  %v8156 = vrot.slane %v8155, 4
  %v8157 = vmax.f32 %v8155, %v8156
  %v8158 = vrot.slane %v8157, 2
  %v8159 = vmax.f32 %v8157, %v8158
  %v8160 = vrot.slane %v8159, 1
  %v8161 = vmax.f32 %v8159, %v8160
  %v8162 = vsel %vm3274, %v6837, -inf
  %v8163 = vrot.slane %v8162, 4
  %v8164 = vmax.f32 %v8162, %v8163
  %v8165 = vrot.slane %v8164, 2
  %v8166 = vmax.f32 %v8164, %v8165
  %v8167 = vrot.slane %v8166, 1
  %v8168 = vmax.f32 %v8166, %v8167
  %v8169 = vsel %vm3274, %v6842, -inf
  %v8170 = vrot.slane %v8169, 4
  %v8171 = vmax.f32 %v8169, %v8170
  %v8172 = vrot.slane %v8171, 2
  %v8173 = vmax.f32 %v8171, %v8172
  %v8174 = vrot.slane %v8173, 1
  %v8175 = vmax.f32 %v8173, %v8174
  %v8176 = vsel %vm3274, %v6845, -inf
  %v8177 = vrot.slane %v8176, 4
  %v8178 = vmax.f32 %v8176, %v8177
  %v8179 = vrot.slane %v8178, 2
  %v8180 = vmax.f32 %v8178, %v8179
  %v8181 = vrot.slane %v8180, 1
  %v8182 = vmax.f32 %v8180, %v8181
  %v8183 = vsel %vm3274, %v6850, -inf
  %v8184 = vrot.slane %v8183, 4
  %v8185 = vmax.f32 %v8183, %v8184
  %v8186 = vrot.slane %v8185, 2
  %v8187 = vmax.f32 %v8185, %v8186
  %v8188 = vrot.slane %v8187, 1
  %v8189 = vmax.f32 %v8187, %v8188
  %v8190 = vsel %vm3274, %v6853, -inf
  %v8191 = vrot.slane %v8190, 4
  %v8192 = vmax.f32 %v8190, %v8191
  %v8193 = vrot.slane %v8192, 2
  %v8194 = vmax.f32 %v8192, %v8193
  %v8195 = vrot.slane %v8194, 1
  %v8196 = vmax.f32 %v8194, %v8195
  %v8197 = vsel %vm3274, %v6858, -inf
  %v8198 = vrot.slane %v8197, 4
  %v8199 = vmax.f32 %v8197, %v8198
  %v8200 = vrot.slane %v8199, 2
  %v8201 = vmax.f32 %v8199, %v8200
  %v8202 = vrot.slane %v8201, 1
  %v8203 = vmax.f32 %v8201, %v8202
  %v8204 = vsel %vm3274, %v6861, -inf
  %v8205 = vrot.slane %v8204, 4
  %v8206 = vmax.f32 %v8204, %v8205
  %v8207 = vrot.slane %v8206, 2
  %v8208 = vmax.f32 %v8206, %v8207
  %v8209 = vrot.slane %v8208, 1
  %v8210 = vmax.f32 %v8208, %v8209
  %v8211 = vsel %vm3274, %v6866, -inf
  %v8212 = vrot.slane %v8211, 4
  %v8213 = vmax.f32 %v8211, %v8212
  %v8214 = vrot.slane %v8213, 2
  %v8215 = vmax.f32 %v8213, %v8214
  %v8216 = vrot.slane %v8215, 1
  %v8217 = vmax.f32 %v8215, %v8216
  %v8218 = vsel %vm3274, %v6869, -inf
  %v8219 = vrot.slane %v8218, 4
  %v8220 = vmax.f32 %v8218, %v8219
  %v8221 = vrot.slane %v8220, 2
  %v8222 = vmax.f32 %v8220, %v8221
  %v8223 = vrot.slane %v8222, 1
  %v8224 = vmax.f32 %v8222, %v8223
  %v8225 = vsel %vm3274, %v6874, -inf
  %v8226 = vrot.slane %v8225, 4
  %v8227 = vmax.f32 %v8225, %v8226
  %v8228 = vrot.slane %v8227, 2
  %v8229 = vmax.f32 %v8227, %v8228
  %v8230 = vrot.slane %v8229, 1
  %v8231 = vmax.f32 %v8229, %v8230
  %v8232 = vsel %vm3274, %v6877, -inf
  %v8233 = vrot.slane %v8232, 4
  %v8234 = vmax.f32 %v8232, %v8233
  %v8235 = vrot.slane %v8234, 2
  %v8236 = vmax.f32 %v8234, %v8235
  %v8237 = vrot.slane %v8236, 1
  %v8238 = vmax.f32 %v8236, %v8237
  %v8239 = vsel %vm3274, %v6882, -inf
  %v8240 = vrot.slane %v8239, 4
  %v8241 = vmax.f32 %v8239, %v8240
  %v8242 = vrot.slane %v8241, 2
  %v8243 = vmax.f32 %v8241, %v8242
  %v8244 = vrot.slane %v8243, 1
  %v8245 = vmax.f32 %v8243, %v8244
  %v8246 = vsel %vm3274, %v6885, -inf
  %v8247 = vrot.slane %v8246, 4
  %v8248 = vmax.f32 %v8246, %v8247
  %v8249 = vrot.slane %v8248, 2
  %v8250 = vmax.f32 %v8248, %v8249
  %v8251 = vrot.slane %v8250, 1
  %v8252 = vmax.f32 %v8250, %v8251
  %v8253 = vsel %vm3274, %v6890, -inf
  %v8254 = vrot.slane %v8253, 4
  %v8255 = vmax.f32 %v8253, %v8254
  %v8256 = vrot.slane %v8255, 2
  %v8257 = vmax.f32 %v8255, %v8256
  %v8258 = vrot.slane %v8257, 1
  %v8259 = vmax.f32 %v8257, %v8258
  %v8260 = vsel %vm3274, %v6893, -inf
  %v8261 = vrot.slane %v8260, 4
  %v8262 = vmax.f32 %v8260, %v8261
  %v8263 = vrot.slane %v8262, 2
  %v8264 = vmax.f32 %v8262, %v8263
  %v8265 = vrot.slane %v8264, 1
  %v8266 = vmax.f32 %v8264, %v8265
  %v8267 = vsel %vm3274, %v6898, -inf
  %v8268 = vrot.slane %v8267, 4
  %v8269 = vmax.f32 %v8267, %v8268
  %v8270 = vrot.slane %v8269, 2
  %v8271 = vmax.f32 %v8269, %v8270
  %v8272 = vrot.slane %v8271, 1
  %v8273 = vmax.f32 %v8271, %v8272
  %v8274 = vsel %vm3274, %v6901, -inf
  %v8275 = vrot.slane %v8274, 4
  %v8276 = vmax.f32 %v8274, %v8275
  %v8277 = vrot.slane %v8276, 2
  %v8278 = vmax.f32 %v8276, %v8277
  %v8279 = vrot.slane %v8278, 1
  %v8280 = vmax.f32 %v8278, %v8279
  %v8281 = vsel %vm3274, %v6906, -inf
  %v8282 = vrot.slane %v8281, 4
  %v8283 = vmax.f32 %v8281, %v8282
  %v8284 = vrot.slane %v8283, 2
  %v8285 = vmax.f32 %v8283, %v8284
  %v8286 = vrot.slane %v8285, 1
  %v8287 = vmax.f32 %v8285, %v8286
  %v8288 = vsel %vm3274, %v6909, -inf
  %v8289 = vrot.slane %v8288, 4
  %v8290 = vmax.f32 %v8288, %v8289
  %v8291 = vrot.slane %v8290, 2
  %v8292 = vmax.f32 %v8290, %v8291
  %v8293 = vrot.slane %v8292, 1
  %v8294 = vmax.f32 %v8292, %v8293
  %v8295 = vsel %vm3274, %v6914, -inf
  %v8296 = vrot.slane %v8295, 4
  %v8297 = vmax.f32 %v8295, %v8296
  %v8298 = vrot.slane %v8297, 2
  %v8299 = vmax.f32 %v8297, %v8298
  %v8300 = vrot.slane %v8299, 1
  %v8301 = vmax.f32 %v8299, %v8300
  %v8302 = vsel %vm3274, %v6917, -inf
  %v8303 = vrot.slane %v8302, 4
  %v8304 = vmax.f32 %v8302, %v8303
  %v8305 = vrot.slane %v8304, 2
  %v8306 = vmax.f32 %v8304, %v8305
  %v8307 = vrot.slane %v8306, 1
  %v8308 = vmax.f32 %v8306, %v8307
  %v8309 = vsel %vm3274, %v6922, -inf
  %v8310 = vrot.slane %v8309, 4
  %v8311 = vmax.f32 %v8309, %v8310
  %v8312 = vrot.slane %v8311, 2
  %v8313 = vmax.f32 %v8311, %v8312
  %v8314 = vrot.slane %v8313, 1
  %v8315 = vmax.f32 %v8313, %v8314
  %v8316 = vsel %vm3274, %v6925, -inf
  %v8317 = vrot.slane %v8316, 4
  %v8318 = vmax.f32 %v8316, %v8317
  %v8319 = vrot.slane %v8318, 2
  %v8320 = vmax.f32 %v8318, %v8319
  %v8321 = vrot.slane %v8320, 1
  %v8322 = vmax.f32 %v8320, %v8321
  %v8323 = vsel %vm3274, %v6930, -inf
  %v8324 = vrot.slane %v8323, 4
  %v8325 = vmax.f32 %v8323, %v8324
  %v8326 = vrot.slane %v8325, 2
  %v8327 = vmax.f32 %v8325, %v8326
  %v8328 = vrot.slane %v8327, 1
  %v8329 = vmax.f32 %v8327, %v8328
  %v8330 = vsel %vm3274, %v6933, -inf
  %v8331 = vrot.slane %v8330, 4
  %v8332 = vmax.f32 %v8330, %v8331
  %v8333 = vrot.slane %v8332, 2
  %v8334 = vmax.f32 %v8332, %v8333
  %v8335 = vrot.slane %v8334, 1
  %v8336 = vmax.f32 %v8334, %v8335
  %v8337 = vsel %vm3274, %v6938, -inf
  %v8338 = vrot.slane %v8337, 4
  %v8339 = vmax.f32 %v8337, %v8338
  %v8340 = vrot.slane %v8339, 2
  %v8341 = vmax.f32 %v8339, %v8340
  %v8342 = vrot.slane %v8341, 1
  %v8343 = vmax.f32 %v8341, %v8342
  %v8344 = vsel %vm3274, %v6941, -inf
  %v8345 = vrot.slane %v8344, 4
  %v8346 = vmax.f32 %v8344, %v8345
  %v8347 = vrot.slane %v8346, 2
  %v8348 = vmax.f32 %v8346, %v8347
  %v8349 = vrot.slane %v8348, 1
  %v8350 = vmax.f32 %v8348, %v8349
  %v8351 = vsel %vm3274, %v6946, -inf
  %v8352 = vrot.slane %v8351, 4
  %v8353 = vmax.f32 %v8351, %v8352
  %v8354 = vrot.slane %v8353, 2
  %v8355 = vmax.f32 %v8353, %v8354
  %v8356 = vrot.slane %v8355, 1
  %v8357 = vmax.f32 %v8355, %v8356
  %v8358 = vsel %vm3274, %v6949, -inf
  %v8359 = vrot.slane %v8358, 4
  %v8360 = vmax.f32 %v8358, %v8359
  %v8361 = vrot.slane %v8360, 2
  %v8362 = vmax.f32 %v8360, %v8361
  %v8363 = vrot.slane %v8362, 1
  %v8364 = vmax.f32 %v8362, %v8363
  %v8365 = vsel %vm3274, %v6954, -inf
  %v8366 = vrot.slane %v8365, 4
  %v8367 = vmax.f32 %v8365, %v8366
  %v8368 = vrot.slane %v8367, 2
  %v8369 = vmax.f32 %v8367, %v8368
  %v8370 = vrot.slane %v8369, 1
  %v8371 = vmax.f32 %v8369, %v8370
  %v8372 = vsel %vm3274, %v6957, -inf
  %v8373 = vrot.slane %v8372, 4
  %v8374 = vmax.f32 %v8372, %v8373
  %v8375 = vrot.slane %v8374, 2
  %v8376 = vmax.f32 %v8374, %v8375
  %v8377 = vrot.slane %v8376, 1
  %v8378 = vmax.f32 %v8376, %v8377
  %v8379 = vsel %vm3274, %v6962, -inf
  %v8380 = vrot.slane %v8379, 4
  %v8381 = vmax.f32 %v8379, %v8380
  %v8382 = vrot.slane %v8381, 2
  %v8383 = vmax.f32 %v8381, %v8382
  %v8384 = vrot.slane %v8383, 1
  %v8385 = vmax.f32 %v8383, %v8384
  %v8386 = vsel %vm3274, %v6965, -inf
  %v8387 = vrot.slane %v8386, 4
  %v8388 = vmax.f32 %v8386, %v8387
  %v8389 = vrot.slane %v8388, 2
  %v8390 = vmax.f32 %v8388, %v8389
  %v8391 = vrot.slane %v8390, 1
  %v8392 = vmax.f32 %v8390, %v8391
  %v8393 = vsel %vm3274, %v6970, -inf
  %v8394 = vrot.slane %v8393, 4
  %v8395 = vmax.f32 %v8393, %v8394
  %v8396 = vrot.slane %v8395, 2
  %v8397 = vmax.f32 %v8395, %v8396
  %v8398 = vrot.slane %v8397, 1
  %v8399 = vmax.f32 %v8397, %v8398
  %v8400 = vsel %vm3274, %v6973, -inf
  %v8401 = vrot.slane %v8400, 4
  %v8402 = vmax.f32 %v8400, %v8401
  %v8403 = vrot.slane %v8402, 2
  %v8404 = vmax.f32 %v8402, %v8403
  %v8405 = vrot.slane %v8404, 1
  %v8406 = vmax.f32 %v8404, %v8405
  %v8407 = vsel %vm3274, %v6978, -inf
  %v8408 = vrot.slane %v8407, 4
  %v8409 = vmax.f32 %v8407, %v8408
  %v8410 = vrot.slane %v8409, 2
  %v8411 = vmax.f32 %v8409, %v8410
  %v8412 = vrot.slane %v8411, 1
  %v8413 = vmax.f32 %v8411, %v8412
  %v8414 = vsel %vm3274, %v6981, -inf
  %v8415 = vrot.slane %v8414, 4
  %v8416 = vmax.f32 %v8414, %v8415
  %v8417 = vrot.slane %v8416, 2
  %v8418 = vmax.f32 %v8416, %v8417
  %v8419 = vrot.slane %v8418, 1
  %v8420 = vmax.f32 %v8418, %v8419
  %v8421 = vsel %vm3274, %v6986, -inf
  %v8422 = vrot.slane %v8421, 4
  %v8423 = vmax.f32 %v8421, %v8422
  %v8424 = vrot.slane %v8423, 2
  %v8425 = vmax.f32 %v8423, %v8424
  %v8426 = vrot.slane %v8425, 1
  %v8427 = vmax.f32 %v8425, %v8426
  %v8428 = vsel %vm3274, %v6989, -inf
  %v8429 = vrot.slane %v8428, 4
  %v8430 = vmax.f32 %v8428, %v8429
  %v8431 = vrot.slane %v8430, 2
  %v8432 = vmax.f32 %v8430, %v8431
  %v8433 = vrot.slane %v8432, 1
  %v8434 = vmax.f32 %v8432, %v8433
  %v8435 = vsel %vm3274, %v6994, -inf
  %v8436 = vrot.slane %v8435, 4
  %v8437 = vmax.f32 %v8435, %v8436
  %v8438 = vrot.slane %v8437, 2
  %v8439 = vmax.f32 %v8437, %v8438
  %v8440 = vrot.slane %v8439, 1
  %v8441 = vmax.f32 %v8439, %v8440
  %v8442 = vsel %vm3274, %v6997, -inf
  %v8443 = vrot.slane %v8442, 4
  %v8444 = vmax.f32 %v8442, %v8443
  %v8445 = vrot.slane %v8444, 2
  %v8446 = vmax.f32 %v8444, %v8445
  %v8447 = vrot.slane %v8446, 1
  %v8448 = vmax.f32 %v8446, %v8447
  %v8449 = vsel %vm3274, %v7002, -inf
  %v8450 = vrot.slane %v8449, 4
  %v8451 = vmax.f32 %v8449, %v8450
  %v8452 = vrot.slane %v8451, 2
  %v8453 = vmax.f32 %v8451, %v8452
  %v8454 = vrot.slane %v8453, 1
  %v8455 = vmax.f32 %v8453, %v8454
  %v8456 = vsel %vm3274, %v7005, -inf
  %v8457 = vrot.slane %v8456, 4
  %v8458 = vmax.f32 %v8456, %v8457
  %v8459 = vrot.slane %v8458, 2
  %v8460 = vmax.f32 %v8458, %v8459
  %v8461 = vrot.slane %v8460, 1
  %v8462 = vmax.f32 %v8460, %v8461
  %v8463 = vsel %vm3274, %v7010, -inf
  %v8464 = vrot.slane %v8463, 4
  %v8465 = vmax.f32 %v8463, %v8464
  %v8466 = vrot.slane %v8465, 2
  %v8467 = vmax.f32 %v8465, %v8466
  %v8468 = vrot.slane %v8467, 1
  %v8469 = vmax.f32 %v8467, %v8468
  %v8470 = vsel %vm3274, %v7013, -inf
  %v8471 = vrot.slane %v8470, 4
  %v8472 = vmax.f32 %v8470, %v8471
  %v8473 = vrot.slane %v8472, 2
  %v8474 = vmax.f32 %v8472, %v8473
  %v8475 = vrot.slane %v8474, 1
  %v8476 = vmax.f32 %v8474, %v8475
  %v8477 = vsel %vm3274, %v7018, -inf
  %v8478 = vrot.slane %v8477, 4
  %v8479 = vmax.f32 %v8477, %v8478
  %v8480 = vrot.slane %v8479, 2
  %v8481 = vmax.f32 %v8479, %v8480
  %v8482 = vrot.slane %v8481, 1
  %v8483 = vmax.f32 %v8481, %v8482
  %v8484 = vsel %vm3274, %v7021, -inf
  %v8485 = vrot.slane %v8484, 4
  %v8486 = vmax.f32 %v8484, %v8485
  %v8487 = vrot.slane %v8486, 2
  %v8488 = vmax.f32 %v8486, %v8487
  %v8489 = vrot.slane %v8488, 1
  %v8490 = vmax.f32 %v8488, %v8489
  %v8491 = vsel %vm3274, %v7026, -inf
  %v8492 = vrot.slane %v8491, 4
  %v8493 = vmax.f32 %v8491, %v8492
  %v8494 = vrot.slane %v8493, 2
  %v8495 = vmax.f32 %v8493, %v8494
  %v8496 = vrot.slane %v8495, 1
  %v8497 = vmax.f32 %v8495, %v8496
  %v8498 = vsel %vm3274, %v7029, -inf
  %v8499 = vrot.slane %v8498, 4
  %v8500 = vmax.f32 %v8498, %v8499
  %v8501 = vrot.slane %v8500, 2
  %v8502 = vmax.f32 %v8500, %v8501
  %v8503 = vrot.slane %v8502, 1
  %v8504 = vmax.f32 %v8502, %v8503
  %v8505 = vsel %vm3274, %v7034, -inf
  %v8506 = vrot.slane %v8505, 4
  %v8507 = vmax.f32 %v8505, %v8506
  %v8508 = vrot.slane %v8507, 2
  %v8509 = vmax.f32 %v8507, %v8508
  %v8510 = vrot.slane %v8509, 1
  %v8511 = vmax.f32 %v8509, %v8510
  %v8512 = vsel %vm3274, %v7037, -inf
  %v8513 = vrot.slane %v8512, 4
  %v8514 = vmax.f32 %v8512, %v8513
  %v8515 = vrot.slane %v8514, 2
  %v8516 = vmax.f32 %v8514, %v8515
  %v8517 = vrot.slane %v8516, 1
  %v8518 = vmax.f32 %v8516, %v8517
  %v8519 = vsel %vm3274, %v7042, -inf
  %v8520 = vrot.slane %v8519, 4
  %v8521 = vmax.f32 %v8519, %v8520
  %v8522 = vrot.slane %v8521, 2
  %v8523 = vmax.f32 %v8521, %v8522
  %v8524 = vrot.slane %v8523, 1
  %v8525 = vmax.f32 %v8523, %v8524
  %v8526 = vsel %vm3274, %v7045, -inf
  %v8527 = vrot.slane %v8526, 4
  %v8528 = vmax.f32 %v8526, %v8527
  %v8529 = vrot.slane %v8528, 2
  %v8530 = vmax.f32 %v8528, %v8529
  %v8531 = vrot.slane %v8530, 1
  %v8532 = vmax.f32 %v8530, %v8531
  %v8533 = vsel %vm3274, %v7050, -inf
  %v8534 = vrot.slane %v8533, 4
  %v8535 = vmax.f32 %v8533, %v8534
  %v8536 = vrot.slane %v8535, 2
  %v8537 = vmax.f32 %v8535, %v8536
  %v8538 = vrot.slane %v8537, 1
  %v8539 = vmax.f32 %v8537, %v8538
  %v8540 = vsel %vm3274, %v7053, -inf
  %v8541 = vrot.slane %v8540, 4
  %v8542 = vmax.f32 %v8540, %v8541
  %v8543 = vrot.slane %v8542, 2
  %v8544 = vmax.f32 %v8542, %v8543
  %v8545 = vrot.slane %v8544, 1
  %v8546 = vmax.f32 %v8544, %v8545
  %v8547 = vsel %vm3274, %v7058, -inf
  %v8548 = vrot.slane %v8547, 4
  %v8549 = vmax.f32 %v8547, %v8548
  %v8550 = vrot.slane %v8549, 2
  %v8551 = vmax.f32 %v8549, %v8550
  %v8552 = vrot.slane %v8551, 1
  %v8553 = vmax.f32 %v8551, %v8552
  %v8554 = vsel %vm3274, %v7061, -inf
  %v8555 = vrot.slane %v8554, 4
  %v8556 = vmax.f32 %v8554, %v8555
  %v8557 = vrot.slane %v8556, 2
  %v8558 = vmax.f32 %v8556, %v8557
  %v8559 = vrot.slane %v8558, 1
  %v8560 = vmax.f32 %v8558, %v8559
  %v8561 = vsel %vm3274, %v7066, -inf
  %v8562 = vrot.slane %v8561, 4
  %v8563 = vmax.f32 %v8561, %v8562
  %v8564 = vrot.slane %v8563, 2
  %v8565 = vmax.f32 %v8563, %v8564
  %v8566 = vrot.slane %v8565, 1
  %v8567 = vmax.f32 %v8565, %v8566
  %v8568 = vsel %vm3274, %v7069, -inf
  %v8569 = vrot.slane %v8568, 4
  %v8570 = vmax.f32 %v8568, %v8569
  %v8571 = vrot.slane %v8570, 2
  %v8572 = vmax.f32 %v8570, %v8571
  %v8573 = vrot.slane %v8572, 1
  %v8574 = vmax.f32 %v8572, %v8573
  %v8575 = vsel %vm3274, %v7074, -inf
  %v8576 = vrot.slane %v8575, 4
  %v8577 = vmax.f32 %v8575, %v8576
  %v8578 = vrot.slane %v8577, 2
  %v8579 = vmax.f32 %v8577, %v8578
  %v8580 = vrot.slane %v8579, 1
  %v8581 = vmax.f32 %v8579, %v8580
  %v8582 = vsel %vm3274, %v7077, -inf
  %v8583 = vrot.slane %v8582, 4
  %v8584 = vmax.f32 %v8582, %v8583
  %v8585 = vrot.slane %v8584, 2
  %v8586 = vmax.f32 %v8584, %v8585
  %v8587 = vrot.slane %v8586, 1
  %v8588 = vmax.f32 %v8586, %v8587
  %v8589 = vsel %vm3274, %v7082, -inf
  %v8590 = vrot.slane %v8589, 4
  %v8591 = vmax.f32 %v8589, %v8590
  %v8592 = vrot.slane %v8591, 2
  %v8593 = vmax.f32 %v8591, %v8592
  %v8594 = vrot.slane %v8593, 1
  %v8595 = vmax.f32 %v8593, %v8594
  %v8596 = vsel %vm3274, %v7085, -inf
  %v8597 = vrot.slane %v8596, 4
  %v8598 = vmax.f32 %v8596, %v8597
  %v8599 = vrot.slane %v8598, 2
  %v8600 = vmax.f32 %v8598, %v8599
  %v8601 = vrot.slane %v8600, 1
  %v8602 = vmax.f32 %v8600, %v8601
  %v8603 = vsel %vm3274, %v7090, -inf
  %v8604 = vrot.slane %v8603, 4
  %v8605 = vmax.f32 %v8603, %v8604
  %v8606 = vrot.slane %v8605, 2
  %v8607 = vmax.f32 %v8605, %v8606
  %v8608 = vrot.slane %v8607, 1
  %v8609 = vmax.f32 %v8607, %v8608
  %v8610 = vsel %vm3274, %v7093, -inf
  %v8611 = vrot.slane %v8610, 4
  %v8612 = vmax.f32 %v8610, %v8611
  %v8613 = vrot.slane %v8612, 2
  %v8614 = vmax.f32 %v8612, %v8613
  %v8615 = vrot.slane %v8614, 1
  %v8616 = vmax.f32 %v8614, %v8615
  %v8617 = vsel %vm3274, %v7098, -inf
  %v8618 = vrot.slane %v8617, 4
  %v8619 = vmax.f32 %v8617, %v8618
  %v8620 = vrot.slane %v8619, 2
  %v8621 = vmax.f32 %v8619, %v8620
  %v8622 = vrot.slane %v8621, 1
  %v8623 = vmax.f32 %v8621, %v8622
  %v8624 = vsel %vm3274, %v7101, -inf
  %v8625 = vrot.slane %v8624, 4
  %v8626 = vmax.f32 %v8624, %v8625
  %v8627 = vrot.slane %v8626, 2
  %v8628 = vmax.f32 %v8626, %v8627
  %v8629 = vrot.slane %v8628, 1
  %v8630 = vmax.f32 %v8628, %v8629
  %v8631 = vsel %vm3274, %v7106, -inf
  %v8632 = vrot.slane %v8631, 4
  %v8633 = vmax.f32 %v8631, %v8632
  %v8634 = vrot.slane %v8633, 2
  %v8635 = vmax.f32 %v8633, %v8634
  %v8636 = vrot.slane %v8635, 1
  %v8637 = vmax.f32 %v8635, %v8636
  %v8638 = vsel %vm3274, %v7109, -inf
  %v8639 = vrot.slane %v8638, 4
  %v8640 = vmax.f32 %v8638, %v8639
  %v8641 = vrot.slane %v8640, 2
  %v8642 = vmax.f32 %v8640, %v8641
  %v8643 = vrot.slane %v8642, 1
  %v8644 = vmax.f32 %v8642, %v8643
  %v8645 = vsel %vm3274, %v7114, -inf
  %v8646 = vrot.slane %v8645, 4
  %v8647 = vmax.f32 %v8645, %v8646
  %v8648 = vrot.slane %v8647, 2
  %v8649 = vmax.f32 %v8647, %v8648
  %v8650 = vrot.slane %v8649, 1
  %v8651 = vmax.f32 %v8649, %v8650
  %v8652 = vsel %vm3274, %v7117, -inf
  %v8653 = vrot.slane %v8652, 4
  %v8654 = vmax.f32 %v8652, %v8653
  %v8655 = vrot.slane %v8654, 2
  %v8656 = vmax.f32 %v8654, %v8655
  %v8657 = vrot.slane %v8656, 1
  %v8658 = vmax.f32 %v8656, %v8657
  %v8659 = vsel %vm3274, %v7122, -inf
  %v8660 = vrot.slane %v8659, 4
  %v8661 = vmax.f32 %v8659, %v8660
  %v8662 = vrot.slane %v8661, 2
  %v8663 = vmax.f32 %v8661, %v8662
  %v8664 = vrot.slane %v8663, 1
  %v8665 = vmax.f32 %v8663, %v8664
  %v8666 = vsel %vm3274, %v7125, -inf
  %v8667 = vrot.slane %v8666, 4
  %v8668 = vmax.f32 %v8666, %v8667
  %v8669 = vrot.slane %v8668, 2
  %v8670 = vmax.f32 %v8668, %v8669
  %v8671 = vrot.slane %v8670, 1
  %v8672 = vmax.f32 %v8670, %v8671
  %v8673 = vsel %vm3274, %v7130, -inf
  %v8674 = vrot.slane %v8673, 4
  %v8675 = vmax.f32 %v8673, %v8674
  %v8676 = vrot.slane %v8675, 2
  %v8677 = vmax.f32 %v8675, %v8676
  %v8678 = vrot.slane %v8677, 1
  %v8679 = vmax.f32 %v8677, %v8678
  %v8680 = vsel %vm3274, %v7133, -inf
  %v8681 = vrot.slane %v8680, 4
  %v8682 = vmax.f32 %v8680, %v8681
  %v8683 = vrot.slane %v8682, 2
  %v8684 = vmax.f32 %v8682, %v8683
  %v8685 = vrot.slane %v8684, 1
  %v8686 = vmax.f32 %v8684, %v8685
  %v8687 = vsel %vm3274, %v7138, -inf
  %v8688 = vrot.slane %v8687, 4
  %v8689 = vmax.f32 %v8687, %v8688
  %v8690 = vrot.slane %v8689, 2
  %v8691 = vmax.f32 %v8689, %v8690
  %v8692 = vrot.slane %v8691, 1
  %v8693 = vmax.f32 %v8691, %v8692
  %v8694 = vsel %vm3274, %v7141, -inf
  %v8695 = vrot.slane %v8694, 4
  %v8696 = vmax.f32 %v8694, %v8695
  %v8697 = vrot.slane %v8696, 2
  %v8698 = vmax.f32 %v8696, %v8697
  %v8699 = vrot.slane %v8698, 1
  %v8700 = vmax.f32 %v8698, %v8699
  %v8701 = vsel %vm3274, %v7146, -inf
  %v8702 = vrot.slane %v8701, 4
  %v8703 = vmax.f32 %v8701, %v8702
  %v8704 = vrot.slane %v8703, 2
  %v8705 = vmax.f32 %v8703, %v8704
  %v8706 = vrot.slane %v8705, 1
  %v8707 = vmax.f32 %v8705, %v8706
  %v8708 = vsel %vm3274, %v7149, -inf
  %v8709 = vrot.slane %v8708, 4
  %v8710 = vmax.f32 %v8708, %v8709
  %v8711 = vrot.slane %v8710, 2
  %v8712 = vmax.f32 %v8710, %v8711
  %v8713 = vrot.slane %v8712, 1
  %v8714 = vmax.f32 %v8712, %v8713
  %v8715 = vsel %vm3274, %v7154, -inf
  %v8716 = vrot.slane %v8715, 4
  %v8717 = vmax.f32 %v8715, %v8716
  %v8718 = vrot.slane %v8717, 2
  %v8719 = vmax.f32 %v8717, %v8718
  %v8720 = vrot.slane %v8719, 1
  %v8721 = vmax.f32 %v8719, %v8720
  %v8722 = vsel %vm3274, %v7157, -inf
  %v8723 = vrot.slane %v8722, 4
  %v8724 = vmax.f32 %v8722, %v8723
  %v8725 = vrot.slane %v8724, 2
  %v8726 = vmax.f32 %v8724, %v8725
  %v8727 = vrot.slane %v8726, 1
  %v8728 = vmax.f32 %v8726, %v8727
  %v8729 = vsel %vm3274, %v7162, -inf
  %v8730 = vrot.slane %v8729, 4
  %v8731 = vmax.f32 %v8729, %v8730
  %v8732 = vrot.slane %v8731, 2
  %v8733 = vmax.f32 %v8731, %v8732
  %v8734 = vrot.slane %v8733, 1
  %v8735 = vmax.f32 %v8733, %v8734
  %v8736 = vsel %vm3274, %v7165, -inf
  %v8737 = vrot.slane %v8736, 4
  %v8738 = vmax.f32 %v8736, %v8737
  %v8739 = vrot.slane %v8738, 2
  %v8740 = vmax.f32 %v8738, %v8739
  %v8741 = vrot.slane %v8740, 1
  %v8742 = vmax.f32 %v8740, %v8741
  %v8743 = vsel %vm3274, %v7170, -inf
  %v8744 = vrot.slane %v8743, 4
  %v8745 = vmax.f32 %v8743, %v8744
  %v8746 = vrot.slane %v8745, 2
  %v8747 = vmax.f32 %v8745, %v8746
  %v8748 = vrot.slane %v8747, 1
  %v8749 = vmax.f32 %v8747, %v8748
  %v8750 = vsel %vm3274, %v7173, -inf
  %v8751 = vrot.slane %v8750, 4
  %v8752 = vmax.f32 %v8750, %v8751
  %v8753 = vrot.slane %v8752, 2
  %v8754 = vmax.f32 %v8752, %v8753
  %v8755 = vrot.slane %v8754, 1
  %v8756 = vmax.f32 %v8754, %v8755
  %v8757 = vsel %vm3274, %v7178, -inf
  %v8758 = vrot.slane %v8757, 4
  %v8759 = vmax.f32 %v8757, %v8758
  %v8760 = vrot.slane %v8759, 2
  %v8761 = vmax.f32 %v8759, %v8760
  %v8762 = vrot.slane %v8761, 1
  %v8763 = vmax.f32 %v8761, %v8762
  %v8764 = vsel %vm3274, %v7181, -inf
  %v8765 = vrot.slane %v8764, 4
  %v8766 = vmax.f32 %v8764, %v8765
  %v8767 = vrot.slane %v8766, 2
  %v8768 = vmax.f32 %v8766, %v8767
  %v8769 = vrot.slane %v8768, 1
  %v8770 = vmax.f32 %v8768, %v8769
  %v8771 = vsel %vm3274, %v7186, -inf
  %v8772 = vrot.slane %v8771, 4
  %v8773 = vmax.f32 %v8771, %v8772
  %v8774 = vrot.slane %v8773, 2
  %v8775 = vmax.f32 %v8773, %v8774
  %v8776 = vrot.slane %v8775, 1
  %v8777 = vmax.f32 %v8775, %v8776
  %v8778 = vsel %vm3274, %v7189, -inf
  %v8779 = vrot.slane %v8778, 4
  %v8780 = vmax.f32 %v8778, %v8779
  %v8781 = vrot.slane %v8780, 2
  %v8782 = vmax.f32 %v8780, %v8781
  %v8783 = vrot.slane %v8782, 1
  %v8784 = vmax.f32 %v8782, %v8783
  %v8785 = vsel %vm3274, %v7194, -inf
  %v8786 = vrot.slane %v8785, 4
  %v8787 = vmax.f32 %v8785, %v8786
  %v8788 = vrot.slane %v8787, 2
  %v8789 = vmax.f32 %v8787, %v8788
  %v8790 = vrot.slane %v8789, 1
  %v8791 = vmax.f32 %v8789, %v8790
  %v8792 = vsel %vm3274, %v7197, -inf
  %v8793 = vrot.slane %v8792, 4
  %v8794 = vmax.f32 %v8792, %v8793
  %v8795 = vrot.slane %v8794, 2
  %v8796 = vmax.f32 %v8794, %v8795
  %v8797 = vrot.slane %v8796, 1
  %v8798 = vmax.f32 %v8796, %v8797
  %v8799 = vsel %vm3274, %v7202, -inf
  %v8800 = vrot.slane %v8799, 4
  %v8801 = vmax.f32 %v8799, %v8800
  %v8802 = vrot.slane %v8801, 2
  %v8803 = vmax.f32 %v8801, %v8802
  %v8804 = vrot.slane %v8803, 1
  %v8805 = vmax.f32 %v8803, %v8804
  %v8806 = vsel %vm3274, %v7205, -inf
  %v8807 = vrot.slane %v8806, 4
  %v8808 = vmax.f32 %v8806, %v8807
  %v8809 = vrot.slane %v8808, 2
  %v8810 = vmax.f32 %v8808, %v8809
  %v8811 = vrot.slane %v8810, 1
  %v8812 = vmax.f32 %v8810, %v8811
  %v8813 = vsel %vm3274, %v7210, -inf
  %v8814 = vrot.slane %v8813, 4
  %v8815 = vmax.f32 %v8813, %v8814
  %v8816 = vrot.slane %v8815, 2
  %v8817 = vmax.f32 %v8815, %v8816
  %v8818 = vrot.slane %v8817, 1
  %v8819 = vmax.f32 %v8817, %v8818
  %v8820 = vsel %vm3274, %v7213, -inf
  %v8821 = vrot.slane %v8820, 4
  %v8822 = vmax.f32 %v8820, %v8821
  %v8823 = vrot.slane %v8822, 2
  %v8824 = vmax.f32 %v8822, %v8823
  %v8825 = vrot.slane %v8824, 1
  %v8826 = vmax.f32 %v8824, %v8825
  %v8827 = vsel %vm3274, %v7218, -inf
  %v8828 = vrot.slane %v8827, 4
  %v8829 = vmax.f32 %v8827, %v8828
  %v8830 = vrot.slane %v8829, 2
  %v8831 = vmax.f32 %v8829, %v8830
  %v8832 = vrot.slane %v8831, 1
  %v8833 = vmax.f32 %v8831, %v8832
  %v8834 = vsel %vm3274, %v7221, -inf
  %v8835 = vrot.slane %v8834, 4
  %v8836 = vmax.f32 %v8834, %v8835
  %v8837 = vrot.slane %v8836, 2
  %v8838 = vmax.f32 %v8836, %v8837
  %v8839 = vrot.slane %v8838, 1
  %v8840 = vmax.f32 %v8838, %v8839
  %v8841 = vsel %vm3274, %v7226, -inf
  %v8842 = vrot.slane %v8841, 4
  %v8843 = vmax.f32 %v8841, %v8842
  %v8844 = vrot.slane %v8843, 2
  %v8845 = vmax.f32 %v8843, %v8844
  %v8846 = vrot.slane %v8845, 1
  %v8847 = vmax.f32 %v8845, %v8846
  %v8848 = vsel %vm3274, %v7229, -inf
  %v8849 = vrot.slane %v8848, 4
  %v8850 = vmax.f32 %v8848, %v8849
  %v8851 = vrot.slane %v8850, 2
  %v8852 = vmax.f32 %v8850, %v8851
  %v8853 = vrot.slane %v8852, 1
  %v8854 = vmax.f32 %v8852, %v8853
  %v8855 = vsel %vm3274, %v7234, -inf
  %v8856 = vrot.slane %v8855, 4
  %v8857 = vmax.f32 %v8855, %v8856
  %v8858 = vrot.slane %v8857, 2
  %v8859 = vmax.f32 %v8857, %v8858
  %v8860 = vrot.slane %v8859, 1
  %v8861 = vmax.f32 %v8859, %v8860
  %v8862 = vsel %vm3274, %v7237, -inf
  %v8863 = vrot.slane %v8862, 4
  %v8864 = vmax.f32 %v8862, %v8863
  %v8865 = vrot.slane %v8864, 2
  %v8866 = vmax.f32 %v8864, %v8865
  %v8867 = vrot.slane %v8866, 1
  %v8868 = vmax.f32 %v8866, %v8867
  %v8869 = vsel %vm3274, %v7242, -inf
  %v8870 = vrot.slane %v8869, 4
  %v8871 = vmax.f32 %v8869, %v8870
  %v8872 = vrot.slane %v8871, 2
  %v8873 = vmax.f32 %v8871, %v8872
  %v8874 = vrot.slane %v8873, 1
  %v8875 = vmax.f32 %v8873, %v8874
  %v8876 = vsel %vm3274, %v7245, -inf
  %v8877 = vrot.slane %v8876, 4
  %v8878 = vmax.f32 %v8876, %v8877
  %v8879 = vrot.slane %v8878, 2
  %v8880 = vmax.f32 %v8878, %v8879
  %v8881 = vrot.slane %v8880, 1
  %v8882 = vmax.f32 %v8880, %v8881
  %v8883 = vsel %vm3274, %v7250, -inf
  %v8884 = vrot.slane %v8883, 4
  %v8885 = vmax.f32 %v8883, %v8884
  %v8886 = vrot.slane %v8885, 2
  %v8887 = vmax.f32 %v8885, %v8886
  %v8888 = vrot.slane %v8887, 1
  %v8889 = vmax.f32 %v8887, %v8888
  %v8890 = vsel %vm3274, %v7253, -inf
  %v8891 = vrot.slane %v8890, 4
  %v8892 = vmax.f32 %v8890, %v8891
  %v8893 = vrot.slane %v8892, 2
  %v8894 = vmax.f32 %v8892, %v8893
  %v8895 = vrot.slane %v8894, 1
  %v8896 = vmax.f32 %v8894, %v8895
  %v8897 = vsel %vm3274, %v7258, -inf
  %v8898 = vrot.slane %v8897, 4
  %v8899 = vmax.f32 %v8897, %v8898
  %v8900 = vrot.slane %v8899, 2
  %v8901 = vmax.f32 %v8899, %v8900
  %v8902 = vrot.slane %v8901, 1
  %v8903 = vmax.f32 %v8901, %v8902
  %v8904 = vsel %vm3274, %v7261, -inf
  %v8905 = vrot.slane %v8904, 4
  %v8906 = vmax.f32 %v8904, %v8905
  %v8907 = vrot.slane %v8906, 2
  %v8908 = vmax.f32 %v8906, %v8907
  %v8909 = vrot.slane %v8908, 1
  %v8910 = vmax.f32 %v8908, %v8909
  %v8911 = vsel %vm3274, %v7266, -inf
  %v8912 = vrot.slane %v8911, 4
  %v8913 = vmax.f32 %v8911, %v8912
  %v8914 = vrot.slane %v8913, 2
  %v8915 = vmax.f32 %v8913, %v8914
  %v8916 = vrot.slane %v8915, 1
  %v8917 = vmax.f32 %v8915, %v8916
  %v8918 = vsel %vm3274, %v7269, -inf
  %v8919 = vrot.slane %v8918, 4
  %v8920 = vmax.f32 %v8918, %v8919
  %v8921 = vrot.slane %v8920, 2
  %v8922 = vmax.f32 %v8920, %v8921
  %v8923 = vrot.slane %v8922, 1
  %v8924 = vmax.f32 %v8922, %v8923
  %v8925 = vsel %vm3274, %v7274, -inf
  %v8926 = vrot.slane %v8925, 4
  %v8927 = vmax.f32 %v8925, %v8926
  %v8928 = vrot.slane %v8927, 2
  %v8929 = vmax.f32 %v8927, %v8928
  %v8930 = vrot.slane %v8929, 1
  %v8931 = vmax.f32 %v8929, %v8930
  %v8932 = vsel %vm3274, %v7277, -inf
  %v8933 = vrot.slane %v8932, 4
  %v8934 = vmax.f32 %v8932, %v8933
  %v8935 = vrot.slane %v8934, 2
  %v8936 = vmax.f32 %v8934, %v8935
  %v8937 = vrot.slane %v8936, 1
  %v8938 = vmax.f32 %v8936, %v8937
  %v8939 = vsel %vm3274, %v7282, -inf
  %v8940 = vrot.slane %v8939, 4
  %v8941 = vmax.f32 %v8939, %v8940
  %v8942 = vrot.slane %v8941, 2
  %v8943 = vmax.f32 %v8941, %v8942
  %v8944 = vrot.slane %v8943, 1
  %v8945 = vmax.f32 %v8943, %v8944
  %v8946 = vsel %vm3274, %v7285, -inf
  %v8947 = vrot.slane %v8946, 4
  %v8948 = vmax.f32 %v8946, %v8947
  %v8949 = vrot.slane %v8948, 2
  %v8950 = vmax.f32 %v8948, %v8949
  %v8951 = vrot.slane %v8950, 1
  %v8952 = vmax.f32 %v8950, %v8951
  %vm8953 = vcmp.ge.f32.partialorder %v8063, 1.0
  %vm8954 = vcmp.ge.f32.partialorder %v8070, 1.0
  %vm8955 = vcmp.ge.f32.partialorder %v8077, 1.0
  %vm8956 = vcmp.ge.f32.partialorder %v8084, 1.0
  %vm8957 = vcmp.ge.f32.partialorder %v8091, 1.0
  %vm8958 = vcmp.ge.f32.partialorder %v8098, 1.0
  %vm8959 = vcmp.ge.f32.partialorder %v8105, 1.0
  %vm8960 = vcmp.ge.f32.partialorder %v8112, 1.0
  %vm8961 = vcmp.ge.f32.partialorder %v8119, 1.0
  %vm8962 = vcmp.ge.f32.partialorder %v8126, 1.0
  %vm8963 = vcmp.ge.f32.partialorder %v8133, 1.0
  %vm8964 = vcmp.ge.f32.partialorder %v8140, 1.0
  %vm8965 = vcmp.ge.f32.partialorder %v8147, 1.0
  %vm8966 = vcmp.ge.f32.partialorder %v8154, 1.0
  %vm8967 = vcmp.ge.f32.partialorder %v8161, 1.0
  %vm8968 = vcmp.ge.f32.partialorder %v8168, 1.0
  %vm8969 = vcmp.ge.f32.partialorder %v8175, 1.0
  %vm8970 = vcmp.ge.f32.partialorder %v8182, 1.0
  %vm8971 = vcmp.ge.f32.partialorder %v8189, 1.0
  %vm8972 = vcmp.ge.f32.partialorder %v8196, 1.0
  %vm8973 = vcmp.ge.f32.partialorder %v8203, 1.0
  %vm8974 = vcmp.ge.f32.partialorder %v8210, 1.0
  %vm8975 = vcmp.ge.f32.partialorder %v8217, 1.0
  %vm8976 = vcmp.ge.f32.partialorder %v8224, 1.0
  %vm8977 = vcmp.ge.f32.partialorder %v8231, 1.0
  %vm8978 = vcmp.ge.f32.partialorder %v8238, 1.0
  %vm8979 = vcmp.ge.f32.partialorder %v8245, 1.0
  %vm8980 = vcmp.ge.f32.partialorder %v8252, 1.0
  %vm8981 = vcmp.ge.f32.partialorder %v8259, 1.0
  %vm8982 = vcmp.ge.f32.partialorder %v8266, 1.0
  %vm8983 = vcmp.ge.f32.partialorder %v8273, 1.0
  %vm8984 = vcmp.ge.f32.partialorder %v8280, 1.0
  %vm8985 = vcmp.ge.f32.partialorder %v8287, 1.0
  %vm8986 = vcmp.ge.f32.partialorder %v8294, 1.0
  %vm8987 = vcmp.ge.f32.partialorder %v8301, 1.0
  %vm8988 = vcmp.ge.f32.partialorder %v8308, 1.0
  %vm8989 = vcmp.ge.f32.partialorder %v8315, 1.0
  %vm8990 = vcmp.ge.f32.partialorder %v8322, 1.0
  %vm8991 = vcmp.ge.f32.partialorder %v8329, 1.0
  %vm8992 = vcmp.ge.f32.partialorder %v8336, 1.0
  %vm8993 = vcmp.ge.f32.partialorder %v8343, 1.0
  %vm8994 = vcmp.ge.f32.partialorder %v8350, 1.0
  %vm8995 = vcmp.ge.f32.partialorder %v8357, 1.0
  %vm8996 = vcmp.ge.f32.partialorder %v8364, 1.0
  %vm8997 = vcmp.ge.f32.partialorder %v8371, 1.0
  %vm8998 = vcmp.ge.f32.partialorder %v8378, 1.0
  %vm8999 = vcmp.ge.f32.partialorder %v8385, 1.0
  %vm9000 = vcmp.ge.f32.partialorder %v8392, 1.0
  %vm9001 = vcmp.ge.f32.partialorder %v8399, 1.0
  %vm9002 = vcmp.ge.f32.partialorder %v8406, 1.0
  %vm9003 = vcmp.ge.f32.partialorder %v8413, 1.0
  %vm9004 = vcmp.ge.f32.partialorder %v8420, 1.0
  %vm9005 = vcmp.ge.f32.partialorder %v8427, 1.0
  %vm9006 = vcmp.ge.f32.partialorder %v8434, 1.0
  %vm9007 = vcmp.ge.f32.partialorder %v8441, 1.0
  %vm9008 = vcmp.ge.f32.partialorder %v8448, 1.0
  %vm9009 = vcmp.ge.f32.partialorder %v8455, 1.0
  %vm9010 = vcmp.ge.f32.partialorder %v8462, 1.0
  %vm9011 = vcmp.ge.f32.partialorder %v8469, 1.0
  %vm9012 = vcmp.ge.f32.partialorder %v8476, 1.0
  %vm9013 = vcmp.ge.f32.partialorder %v8483, 1.0
  %vm9014 = vcmp.ge.f32.partialorder %v8490, 1.0
  %vm9015 = vcmp.ge.f32.partialorder %v8497, 1.0
  %vm9016 = vcmp.ge.f32.partialorder %v8504, 1.0
  %vm9017 = vcmp.ge.f32.partialorder %v8511, 1.0
  %vm9018 = vcmp.ge.f32.partialorder %v8518, 1.0
  %vm9019 = vcmp.ge.f32.partialorder %v8525, 1.0
  %vm9020 = vcmp.ge.f32.partialorder %v8532, 1.0
  %vm9021 = vcmp.ge.f32.partialorder %v8539, 1.0
  %vm9022 = vcmp.ge.f32.partialorder %v8546, 1.0
  %vm9023 = vcmp.ge.f32.partialorder %v8553, 1.0
  %vm9024 = vcmp.ge.f32.partialorder %v8560, 1.0
  %vm9025 = vcmp.ge.f32.partialorder %v8567, 1.0
  %vm9026 = vcmp.ge.f32.partialorder %v8574, 1.0
  %vm9027 = vcmp.ge.f32.partialorder %v8581, 1.0
  %vm9028 = vcmp.ge.f32.partialorder %v8588, 1.0
  %vm9029 = vcmp.ge.f32.partialorder %v8595, 1.0
  %vm9030 = vcmp.ge.f32.partialorder %v8602, 1.0
  %vm9031 = vcmp.ge.f32.partialorder %v8609, 1.0
  %vm9032 = vcmp.ge.f32.partialorder %v8616, 1.0
  %vm9033 = vcmp.ge.f32.partialorder %v8623, 1.0
  %vm9034 = vcmp.ge.f32.partialorder %v8630, 1.0
  %vm9035 = vcmp.ge.f32.partialorder %v8637, 1.0
  %vm9036 = vcmp.ge.f32.partialorder %v8644, 1.0
  %vm9037 = vcmp.ge.f32.partialorder %v8651, 1.0
  %vm9038 = vcmp.ge.f32.partialorder %v8658, 1.0
  %vm9039 = vcmp.ge.f32.partialorder %v8665, 1.0
  %vm9040 = vcmp.ge.f32.partialorder %v8672, 1.0
  %vm9041 = vcmp.ge.f32.partialorder %v8679, 1.0
  %vm9042 = vcmp.ge.f32.partialorder %v8686, 1.0
  %vm9043 = vcmp.ge.f32.partialorder %v8693, 1.0
  %vm9044 = vcmp.ge.f32.partialorder %v8700, 1.0
  %vm9045 = vcmp.ge.f32.partialorder %v8707, 1.0
  %vm9046 = vcmp.ge.f32.partialorder %v8714, 1.0
  %vm9047 = vcmp.ge.f32.partialorder %v8721, 1.0
  %vm9048 = vcmp.ge.f32.partialorder %v8728, 1.0
  %vm9049 = vcmp.ge.f32.partialorder %v8735, 1.0
  %vm9050 = vcmp.ge.f32.partialorder %v8742, 1.0
  %vm9051 = vcmp.ge.f32.partialorder %v8749, 1.0
  %vm9052 = vcmp.ge.f32.partialorder %v8756, 1.0
  %vm9053 = vcmp.ge.f32.partialorder %v8763, 1.0
  %vm9054 = vcmp.ge.f32.partialorder %v8770, 1.0
  %vm9055 = vcmp.ge.f32.partialorder %v8777, 1.0
  %vm9056 = vcmp.ge.f32.partialorder %v8784, 1.0
  %vm9057 = vcmp.ge.f32.partialorder %v8791, 1.0
  %vm9058 = vcmp.ge.f32.partialorder %v8798, 1.0
  %vm9059 = vcmp.ge.f32.partialorder %v8805, 1.0
  %vm9060 = vcmp.ge.f32.partialorder %v8812, 1.0
  %vm9061 = vcmp.ge.f32.partialorder %v8819, 1.0
  %vm9062 = vcmp.ge.f32.partialorder %v8826, 1.0
  %vm9063 = vcmp.ge.f32.partialorder %v8833, 1.0
  %vm9064 = vcmp.ge.f32.partialorder %v8840, 1.0
  %vm9065 = vcmp.ge.f32.partialorder %v8847, 1.0
  %vm9066 = vcmp.ge.f32.partialorder %v8854, 1.0
  %vm9067 = vcmp.ge.f32.partialorder %v8861, 1.0
  %vm9068 = vcmp.ge.f32.partialorder %v8868, 1.0
  %vm9069 = vcmp.ge.f32.partialorder %v8875, 1.0
  %vm9070 = vcmp.ge.f32.partialorder %v8882, 1.0
  %vm9071 = vcmp.ge.f32.partialorder %v8889, 1.0
  %vm9072 = vcmp.ge.f32.partialorder %v8896, 1.0
  %vm9073 = vcmp.ge.f32.partialorder %v8903, 1.0
  %vm9074 = vcmp.ge.f32.partialorder %v8910, 1.0
  %vm9075 = vcmp.ge.f32.partialorder %v8917, 1.0
  %vm9076 = vcmp.ge.f32.partialorder %v8924, 1.0
  %vm9077 = vcmp.ge.f32.partialorder %v8931, 1.0
  %vm9078 = vcmp.ge.f32.partialorder %v8938, 1.0
  %vm9079 = vcmp.ge.f32.partialorder %v8945, 1.0
  %vm9080 = vcmp.ge.f32.partialorder %v8952, 1.0
  %v9081 = vsel %vm8953, 1, 0
  %v9082 = vsel %vm8954, 1, 0
  %v9083 = vsel %vm8955, 1, 0
  %v9084 = vsel %vm8956, 1, 0
  %v9085 = vsel %vm8957, 1, 0
  %v9086 = vsel %vm8958, 1, 0
  %v9087 = vsel %vm8959, 1, 0
  %v9088 = vsel %vm8960, 1, 0
  %v9089 = vsel %vm8961, 1, 0
  %v9090 = vsel %vm8962, 1, 0
  %v9091 = vsel %vm8963, 1, 0
  %v9092 = vsel %vm8964, 1, 0
  %v9093 = vsel %vm8965, 1, 0
  %v9094 = vsel %vm8966, 1, 0
  %v9095 = vsel %vm8967, 1, 0
  %v9096 = vsel %vm8968, 1, 0
  %v9097 = vsel %vm8969, 1, 0
  %v9098 = vsel %vm8970, 1, 0
  %v9099 = vsel %vm8971, 1, 0
  %v9100 = vsel %vm8972, 1, 0
  %v9101 = vsel %vm8973, 1, 0
  %v9102 = vsel %vm8974, 1, 0
  %v9103 = vsel %vm8975, 1, 0
  %v9104 = vsel %vm8976, 1, 0
  %v9105 = vsel %vm8977, 1, 0
  %v9106 = vsel %vm8978, 1, 0
  %v9107 = vsel %vm8979, 1, 0
  %v9108 = vsel %vm8980, 1, 0
  %v9109 = vsel %vm8981, 1, 0
  %v9110 = vsel %vm8982, 1, 0
  %v9111 = vsel %vm8983, 1, 0
  %v9112 = vsel %vm8984, 1, 0
  %v9113 = vsel %vm8985, 1, 0
  %v9114 = vsel %vm8986, 1, 0
  %v9115 = vsel %vm8987, 1, 0
  %v9116 = vsel %vm8988, 1, 0
  %v9117 = vsel %vm8989, 1, 0
  %v9118 = vsel %vm8990, 1, 0
  %v9119 = vsel %vm8991, 1, 0
  %v9120 = vsel %vm8992, 1, 0
  %v9121 = vsel %vm8993, 1, 0
  %v9122 = vsel %vm8994, 1, 0
  %v9123 = vsel %vm8995, 1, 0
  %v9124 = vsel %vm8996, 1, 0
  %v9125 = vsel %vm8997, 1, 0
  %v9126 = vsel %vm8998, 1, 0
  %v9127 = vsel %vm8999, 1, 0
  %v9128 = vsel %vm9000, 1, 0
  %v9129 = vsel %vm9001, 1, 0
  %v9130 = vsel %vm9002, 1, 0
  %v9131 = vsel %vm9003, 1, 0
  %v9132 = vsel %vm9004, 1, 0
  %v9133 = vsel %vm9005, 1, 0
  %v9134 = vsel %vm9006, 1, 0
  %v9135 = vsel %vm9007, 1, 0
  %v9136 = vsel %vm9008, 1, 0
  %v9137 = vsel %vm9009, 1, 0
  %v9138 = vsel %vm9010, 1, 0
  %v9139 = vsel %vm9011, 1, 0
  %v9140 = vsel %vm9012, 1, 0
  %v9141 = vsel %vm9013, 1, 0
  %v9142 = vsel %vm9014, 1, 0
  %v9143 = vsel %vm9015, 1, 0
  %v9144 = vsel %vm9016, 1, 0
  %v9145 = vsel %vm9017, 1, 0
  %v9146 = vsel %vm9018, 1, 0
  %v9147 = vsel %vm9019, 1, 0
  %v9148 = vsel %vm9020, 1, 0
  %v9149 = vsel %vm9021, 1, 0
  %v9150 = vsel %vm9022, 1, 0
  %v9151 = vsel %vm9023, 1, 0
  %v9152 = vsel %vm9024, 1, 0
  %v9153 = vsel %vm9025, 1, 0
  %v9154 = vsel %vm9026, 1, 0
  %v9155 = vsel %vm9027, 1, 0
  %v9156 = vsel %vm9028, 1, 0
  %v9157 = vsel %vm9029, 1, 0
  %v9158 = vsel %vm9030, 1, 0
  %v9159 = vsel %vm9031, 1, 0
  %v9160 = vsel %vm9032, 1, 0
  %v9161 = vsel %vm9033, 1, 0
  %v9162 = vsel %vm9034, 1, 0
  %v9163 = vsel %vm9035, 1, 0
  %v9164 = vsel %vm9036, 1, 0
  %v9165 = vsel %vm9037, 1, 0
  %v9166 = vsel %vm9038, 1, 0
  %v9167 = vsel %vm9039, 1, 0
  %v9168 = vsel %vm9040, 1, 0
  %v9169 = vsel %vm9041, 1, 0
  %v9170 = vsel %vm9042, 1, 0
  %v9171 = vsel %vm9043, 1, 0
  %v9172 = vsel %vm9044, 1, 0
  %v9173 = vsel %vm9045, 1, 0
  %v9174 = vsel %vm9046, 1, 0
  %v9175 = vsel %vm9047, 1, 0
  %v9176 = vsel %vm9048, 1, 0
  %v9177 = vsel %vm9049, 1, 0
  %v9178 = vsel %vm9050, 1, 0
  %v9179 = vsel %vm9051, 1, 0
  %v9180 = vsel %vm9052, 1, 0
  %v9181 = vsel %vm9053, 1, 0
  %v9182 = vsel %vm9054, 1, 0
  %v9183 = vsel %vm9055, 1, 0
  %v9184 = vsel %vm9056, 1, 0
  %v9185 = vsel %vm9057, 1, 0
  %v9186 = vsel %vm9058, 1, 0
  %v9187 = vsel %vm9059, 1, 0
  %v9188 = vsel %vm9060, 1, 0
  %v9189 = vsel %vm9061, 1, 0
  %v9190 = vsel %vm9062, 1, 0
  %v9191 = vsel %vm9063, 1, 0
  %v9192 = vsel %vm9064, 1, 0
  %v9193 = vsel %vm9065, 1, 0
  %v9194 = vsel %vm9066, 1, 0
  %v9195 = vsel %vm9067, 1, 0
  %v9196 = vsel %vm9068, 1, 0
  %v9197 = vsel %vm9069, 1, 0
  %v9198 = vsel %vm9070, 1, 0
  %v9199 = vsel %vm9071, 1, 0
  %v9200 = vsel %vm9072, 1, 0
  %v9201 = vsel %vm9073, 1, 0
  %v9202 = vsel %vm9074, 1, 0
  %v9203 = vsel %vm9075, 1, 0
  %v9204 = vsel %vm9076, 1, 0
  %v9205 = vsel %vm9077, 1, 0
  %v9206 = vsel %vm9078, 1, 0
  %v9207 = vsel %vm9079, 1, 0
  %v9208 = vsel %vm9080, 1, 0
  %v9209 = vcvt.s32.f32 %v9081
  %v9210 = vcvt.s32.f32 %v9082
  %v9211 = vcvt.s32.f32 %v9083
  %v9212 = vcvt.s32.f32 %v9084
  %v9213 = vcvt.s32.f32 %v9085
  %v9214 = vcvt.s32.f32 %v9086
  %v9215 = vcvt.s32.f32 %v9087
  %v9216 = vcvt.s32.f32 %v9088
  %v9217 = vcvt.s32.f32 %v9089
  %v9218 = vcvt.s32.f32 %v9090
  %v9219 = vcvt.s32.f32 %v9091
  %v9220 = vcvt.s32.f32 %v9092
  %v9221 = vcvt.s32.f32 %v9093
  %v9222 = vcvt.s32.f32 %v9094
  %v9223 = vcvt.s32.f32 %v9095
  %v9224 = vcvt.s32.f32 %v9096
  %v9225 = vcvt.s32.f32 %v9097
  %v9226 = vcvt.s32.f32 %v9098
  %v9227 = vcvt.s32.f32 %v9099
  %v9228 = vcvt.s32.f32 %v9100
  %v9229 = vcvt.s32.f32 %v9101
  %v9230 = vcvt.s32.f32 %v9102
  %v9231 = vcvt.s32.f32 %v9103
  %v9232 = vcvt.s32.f32 %v9104
  %v9233 = vcvt.s32.f32 %v9105
  %v9234 = vcvt.s32.f32 %v9106
  %v9235 = vcvt.s32.f32 %v9107
  %v9236 = vcvt.s32.f32 %v9108
  %v9237 = vcvt.s32.f32 %v9109
  %v9238 = vcvt.s32.f32 %v9110
  %v9239 = vcvt.s32.f32 %v9111
  %v9240 = vcvt.s32.f32 %v9112
  %v9241 = vcvt.s32.f32 %v9113
  %v9242 = vcvt.s32.f32 %v9114
  %v9243 = vcvt.s32.f32 %v9115
  %v9244 = vcvt.s32.f32 %v9116
  %v9245 = vcvt.s32.f32 %v9117
  %v9246 = vcvt.s32.f32 %v9118
  %v9247 = vcvt.s32.f32 %v9119
  %v9248 = vcvt.s32.f32 %v9120
  %v9249 = vcvt.s32.f32 %v9121
  %v9250 = vcvt.s32.f32 %v9122
  %v9251 = vcvt.s32.f32 %v9123
  %v9252 = vcvt.s32.f32 %v9124
  %v9253 = vcvt.s32.f32 %v9125
  %v9254 = vcvt.s32.f32 %v9126
  %v9255 = vcvt.s32.f32 %v9127
  %v9256 = vcvt.s32.f32 %v9128
  %v9257 = vcvt.s32.f32 %v9129
  %v9258 = vcvt.s32.f32 %v9130
  %v9259 = vcvt.s32.f32 %v9131
  %v9260 = vcvt.s32.f32 %v9132
  %v9261 = vcvt.s32.f32 %v9133
  %v9262 = vcvt.s32.f32 %v9134
  %v9263 = vcvt.s32.f32 %v9135
  %v9264 = vcvt.s32.f32 %v9136
  %v9265 = vcvt.s32.f32 %v9137
  %v9266 = vcvt.s32.f32 %v9138
  %v9267 = vcvt.s32.f32 %v9139
  %v9268 = vcvt.s32.f32 %v9140
  %v9269 = vcvt.s32.f32 %v9141
  %v9270 = vcvt.s32.f32 %v9142
  %v9271 = vcvt.s32.f32 %v9143
  %v9272 = vcvt.s32.f32 %v9144
  %v9273 = vcvt.s32.f32 %v9145
  %v9274 = vcvt.s32.f32 %v9146
  %v9275 = vcvt.s32.f32 %v9147
  %v9276 = vcvt.s32.f32 %v9148
  %v9277 = vcvt.s32.f32 %v9149
  %v9278 = vcvt.s32.f32 %v9150
  %v9279 = vcvt.s32.f32 %v9151
  %v9280 = vcvt.s32.f32 %v9152
  %v9281 = vcvt.s32.f32 %v9153
  %v9282 = vcvt.s32.f32 %v9154
  %v9283 = vcvt.s32.f32 %v9155
  %v9284 = vcvt.s32.f32 %v9156
  %v9285 = vcvt.s32.f32 %v9157
  %v9286 = vcvt.s32.f32 %v9158
  %v9287 = vcvt.s32.f32 %v9159
  %v9288 = vcvt.s32.f32 %v9160
  %v9289 = vcvt.s32.f32 %v9161
  %v9290 = vcvt.s32.f32 %v9162
  %v9291 = vcvt.s32.f32 %v9163
  %v9292 = vcvt.s32.f32 %v9164
  %v9293 = vcvt.s32.f32 %v9165
  %v9294 = vcvt.s32.f32 %v9166
  %v9295 = vcvt.s32.f32 %v9167
  %v9296 = vcvt.s32.f32 %v9168
  %v9297 = vcvt.s32.f32 %v9169
  %v9298 = vcvt.s32.f32 %v9170
  %v9299 = vcvt.s32.f32 %v9171
  %v9300 = vcvt.s32.f32 %v9172
  %v9301 = vcvt.s32.f32 %v9173
  %v9302 = vcvt.s32.f32 %v9174
  %v9303 = vcvt.s32.f32 %v9175
  %v9304 = vcvt.s32.f32 %v9176
  %v9305 = vcvt.s32.f32 %v9177
  %v9306 = vcvt.s32.f32 %v9178
  %v9307 = vcvt.s32.f32 %v9179
  %v9308 = vcvt.s32.f32 %v9180
  %v9309 = vcvt.s32.f32 %v9181
  %v9310 = vcvt.s32.f32 %v9182
  %v9311 = vcvt.s32.f32 %v9183
  %v9312 = vcvt.s32.f32 %v9184
  %v9313 = vcvt.s32.f32 %v9185
  %v9314 = vcvt.s32.f32 %v9186
  %v9315 = vcvt.s32.f32 %v9187
  %v9316 = vcvt.s32.f32 %v9188
  %v9317 = vcvt.s32.f32 %v9189
  %v9318 = vcvt.s32.f32 %v9190
  %v9319 = vcvt.s32.f32 %v9191
  %v9320 = vcvt.s32.f32 %v9192
  %v9321 = vcvt.s32.f32 %v9193
  %v9322 = vcvt.s32.f32 %v9194
  %v9323 = vcvt.s32.f32 %v9195
  %v9324 = vcvt.s32.f32 %v9196
  %v9325 = vcvt.s32.f32 %v9197
  %v9326 = vcvt.s32.f32 %v9198
  %v9327 = vcvt.s32.f32 %v9199
  %v9328 = vcvt.s32.f32 %v9200
  %v9329 = vcvt.s32.f32 %v9201
  %v9330 = vcvt.s32.f32 %v9202
  %v9331 = vcvt.s32.f32 %v9203
  %v9332 = vcvt.s32.f32 %v9204
  %v9333 = vcvt.s32.f32 %v9205
  %v9334 = vcvt.s32.f32 %v9206
  %v9335 = vcvt.s32.f32 %v9207
  %v9336 = vcvt.s32.f32 %v9208
  %v9465 = vsel %vm4747, %v9210, %v9209
  %v9466 = vsel %vm4749, %v9211, %v9465
  %v9467 = vsel %vm4751, %v9212, %v9466
  %v9468 = vsel %vm4753, %v9213, %v9467
  %v9469 = vsel %vm4755, %v9214, %v9468
  %v9470 = vsel %vm4757, %v9215, %v9469
  %v9471 = vsel %vm4759, %v9216, %v9470
  %v9472 = vsel %vm4747, %v9218, %v9217
  %v9473 = vsel %vm4749, %v9219, %v9472
  %v9474 = vsel %vm4751, %v9220, %v9473
  %v9475 = vsel %vm4753, %v9221, %v9474
  %v9476 = vsel %vm4755, %v9222, %v9475
  %v9477 = vsel %vm4757, %v9223, %v9476
  %v9478 = vsel %vm4759, %v9224, %v9477
  %v9479 = vsel %vm4747, %v9226, %v9225
  %v9480 = vsel %vm4749, %v9227, %v9479
  %v9481 = vsel %vm4751, %v9228, %v9480
  %v9482 = vsel %vm4753, %v9229, %v9481
  %v9483 = vsel %vm4755, %v9230, %v9482
  %v9484 = vsel %vm4757, %v9231, %v9483
  %v9485 = vsel %vm4759, %v9232, %v9484
  %v9486 = vsel %vm4747, %v9234, %v9233
  %v9487 = vsel %vm4749, %v9235, %v9486
  %v9488 = vsel %vm4751, %v9236, %v9487
  %v9489 = vsel %vm4753, %v9237, %v9488
  %v9490 = vsel %vm4755, %v9238, %v9489
  %v9491 = vsel %vm4757, %v9239, %v9490
  %v9492 = vsel %vm4759, %v9240, %v9491
  %v9493 = vsel %vm4747, %v9242, %v9241
  %v9494 = vsel %vm4749, %v9243, %v9493
  %v9495 = vsel %vm4751, %v9244, %v9494
  %v9496 = vsel %vm4753, %v9245, %v9495
  %v9497 = vsel %vm4755, %v9246, %v9496
  %v9498 = vsel %vm4757, %v9247, %v9497
  %v9499 = vsel %vm4759, %v9248, %v9498
  %v9500 = vsel %vm4747, %v9250, %v9249
  %v9501 = vsel %vm4749, %v9251, %v9500
  %v9502 = vsel %vm4751, %v9252, %v9501
  %v9503 = vsel %vm4753, %v9253, %v9502
  %v9504 = vsel %vm4755, %v9254, %v9503
  %v9505 = vsel %vm4757, %v9255, %v9504
  %v9506 = vsel %vm4759, %v9256, %v9505
  %v9507 = vsel %vm4747, %v9258, %v9257
  %v9508 = vsel %vm4749, %v9259, %v9507
  %v9509 = vsel %vm4751, %v9260, %v9508
  %v9510 = vsel %vm4753, %v9261, %v9509
  %v9511 = vsel %vm4755, %v9262, %v9510
  %v9512 = vsel %vm4757, %v9263, %v9511
  %v9513 = vsel %vm4759, %v9264, %v9512
  %v9514 = vsel %vm4747, %v9266, %v9265
  %v9515 = vsel %vm4749, %v9267, %v9514
  %v9516 = vsel %vm4751, %v9268, %v9515
  %v9517 = vsel %vm4753, %v9269, %v9516
  %v9518 = vsel %vm4755, %v9270, %v9517
  %v9519 = vsel %vm4757, %v9271, %v9518
  %v9520 = vsel %vm4759, %v9272, %v9519
  %v9521 = vsel %vm4747, %v9274, %v9273
  %v9522 = vsel %vm4749, %v9275, %v9521
  %v9523 = vsel %vm4751, %v9276, %v9522
  %v9524 = vsel %vm4753, %v9277, %v9523
  %v9525 = vsel %vm4755, %v9278, %v9524
  %v9526 = vsel %vm4757, %v9279, %v9525
  %v9527 = vsel %vm4759, %v9280, %v9526
  %v9528 = vsel %vm4747, %v9282, %v9281
  %v9529 = vsel %vm4749, %v9283, %v9528
  %v9530 = vsel %vm4751, %v9284, %v9529
  %v9531 = vsel %vm4753, %v9285, %v9530
  %v9532 = vsel %vm4755, %v9286, %v9531
  %v9533 = vsel %vm4757, %v9287, %v9532
  %v9534 = vsel %vm4759, %v9288, %v9533
  %v9535 = vsel %vm4747, %v9290, %v9289
  %v9536 = vsel %vm4749, %v9291, %v9535
  %v9537 = vsel %vm4751, %v9292, %v9536
  %v9538 = vsel %vm4753, %v9293, %v9537
  %v9539 = vsel %vm4755, %v9294, %v9538
  %v9540 = vsel %vm4757, %v9295, %v9539
  %v9541 = vsel %vm4759, %v9296, %v9540
  %v9542 = vsel %vm4747, %v9298, %v9297
  %v9543 = vsel %vm4749, %v9299, %v9542
  %v9544 = vsel %vm4751, %v9300, %v9543
  %v9545 = vsel %vm4753, %v9301, %v9544
  %v9546 = vsel %vm4755, %v9302, %v9545
  %v9547 = vsel %vm4757, %v9303, %v9546
  %v9548 = vsel %vm4759, %v9304, %v9547
  %v9549 = vsel %vm4747, %v9306, %v9305
  %v9550 = vsel %vm4749, %v9307, %v9549
  %v9551 = vsel %vm4751, %v9308, %v9550
  %v9552 = vsel %vm4753, %v9309, %v9551
  %v9553 = vsel %vm4755, %v9310, %v9552
  %v9554 = vsel %vm4757, %v9311, %v9553
  %v9555 = vsel %vm4759, %v9312, %v9554
  %v9556 = vsel %vm4747, %v9314, %v9313
  %v9557 = vsel %vm4749, %v9315, %v9556
  %v9558 = vsel %vm4751, %v9316, %v9557
  %v9559 = vsel %vm4753, %v9317, %v9558
  %v9560 = vsel %vm4755, %v9318, %v9559
  %v9561 = vsel %vm4757, %v9319, %v9560
  %v9562 = vsel %vm4759, %v9320, %v9561
  %v9563 = vsel %vm4747, %v9322, %v9321
  %v9564 = vsel %vm4749, %v9323, %v9563
  %v9565 = vsel %vm4751, %v9324, %v9564
  %v9566 = vsel %vm4753, %v9325, %v9565
  %v9567 = vsel %vm4755, %v9326, %v9566
  %v9568 = vsel %vm4757, %v9327, %v9567
  %v9569 = vsel %vm4759, %v9328, %v9568
  %v9570 = vsel %vm4747, %v9330, %v9329
  %v9571 = vsel %vm4749, %v9331, %v9570
  %v9572 = vsel %vm4751, %v9332, %v9571
  %v9573 = vsel %vm4753, %v9333, %v9572
  %v9574 = vsel %vm4755, %v9334, %v9573
  %v9575 = vsel %vm4757, %v9335, %v9574
  %v9576 = vsel %vm4759, %v9336, %v9575
  %9577 = vrot.lane.b32.xlu0 %v9471, 16
  %v9578 = vpop.permute.xlu0 %9577
  %9579 = vrot.lane.b32.xlu0 %v9478, 16
  %v9580 = vpop.permute.xlu0 %9579
  %9581 = vrot.lane.b32.xlu0 %v9485, 16
  %v9582 = vpop.permute.xlu0 %9581
  %9583 = vrot.lane.b32.xlu0 %v9492, 16
  %v9584 = vpop.permute.xlu0 %9583
  %9585 = vrot.lane.b32.xlu0 %v9499, 16
  %v9586 = vpop.permute.xlu0 %9585
  %9587 = vrot.lane.b32.xlu0 %v9506, 16
  %v9588 = vpop.permute.xlu0 %9587
  %9589 = vrot.lane.b32.xlu0 %v9513, 16
  %v9590 = vpop.permute.xlu0 %9589
  %9591 = vrot.lane.b32.xlu0 %v9520, 16
  %v9592 = vpop.permute.xlu0 %9591
  %9593 = vrot.lane.b32.xlu0 %v9527, 16
  %v9594 = vpop.permute.xlu0 %9593
  %9595 = vrot.lane.b32.xlu0 %v9534, 16
  %v9596 = vpop.permute.xlu0 %9595
  %9597 = vrot.lane.b32.xlu0 %v9541, 16
  %v9598 = vpop.permute.xlu0 %9597
  %9599 = vrot.lane.b32.xlu0 %v9548, 16
  %v9600 = vpop.permute.xlu0 %9599
  %9601 = vrot.lane.b32.xlu0 %v9555, 16
  %v9602 = vpop.permute.xlu0 %9601
  %9603 = vrot.lane.b32.xlu0 %v9562, 16
  %v9604 = vpop.permute.xlu0 %9603
  %9605 = vrot.lane.b32.xlu0 %v9569, 16
  %v9606 = vpop.permute.xlu0 %9605
  %9607 = vrot.lane.b32.xlu0 %v9576, 16
  %v9608 = vpop.permute.xlu0 %9607
  %9625 = vst.msk [vmem:[%s11] sm:$0xff] %vm7992, %v9578
  %9626 = vst.msk [vmem:[%s11 + $0x8] sm:$0xff] %vm7992, %v9580
  %9627 = vst.msk [vmem:[%s11 + $0x10] sm:$0xff] %vm7992, %v9582
  %9628 = vst.msk [vmem:[%s11 + $0x18] sm:$0xff] %vm7992, %v9584
  %9629 = vst.msk [vmem:[%s11 + $0x20] sm:$0xff] %vm7992, %v9586
  %9630 = vst.msk [vmem:[%s11 + $0x28] sm:$0xff] %vm7992, %v9588
  %9631 = vst.msk [vmem:[%s11 + $0x30] sm:$0xff] %vm7992, %v9590
  %9632 = vst.msk [vmem:[%s11 + $0x38] sm:$0xff] %vm7992, %v9592
  %9633 = vst.msk [vmem:[%s11 + $0x40] sm:$0xff] %vm7992, %v9594
  %9634 = vst.msk [vmem:[%s11 + $0x48] sm:$0xff] %vm7992, %v9596
  %9635 = vst.msk [vmem:[%s11 + $0x50] sm:$0xff] %vm7992, %v9598
  %9636 = vst.msk [vmem:[%s11 + $0x58] sm:$0xff] %vm7992, %v9600
  %9637 = vst.msk [vmem:[%s11 + $0x60] sm:$0xff] %vm7992, %v9602
  %9638 = vst.msk [vmem:[%s11 + $0x68] sm:$0xff] %vm7992, %v9604
  %9639 = vst.msk [vmem:[%s11 + $0x70] sm:$0xff] %vm7992, %v9606
  %9640 = vst.msk [vmem:[%s11 + $0x78] sm:$0xff] %vm7992, %v9608
  %v9641 = vld [vmem:[%s9] sm:$0xf]
  %v9642 = vld [vmem:[%s10] sm:$0x1]
  %v9644 = vlaneseq
  %v9645 = vshrl.u32 %v9644, 7
  %v9646 = vsub.s32 0, %v9645
  %v9647 = vrot.slane %v9642, %v9646
  %v9650 = vsel %vm96, %v9641, 0
  %9652 = vmatprep.subr.bf16.mxu0 0
  %9653 = vmatpush1.bf16.msra.mxu0 %v9650
  %9654 = vmatprep.subr.bf16.mxu0 0
  %9655 = vmatpush1.bf16.msra.mxu0 0
  %9656 = vmatprep.subr.bf16.mxu0 0
  %9657 = vmatpush1.bf16.msra.mxu0 0
  %9658 = vmatprep.subr.bf16.mxu0 0
  %9659 = vmatpush1.bf16.msra.mxu0 0
  %9660 = vmatprep.subr.bf16.mxu0 0
  %9661 = vmatpush1.bf16.msra.mxu0 0
  %9662 = vmatprep.subr.bf16.mxu0 0
  %9663 = vmatpush1.bf16.msra.mxu0 0
  %9664 = vmatprep.subr.bf16.mxu0 0
  %9665 = vmatpush1.bf16.msra.mxu0 0
  %9666 = vmatprep.subr.bf16.mxu0 0
  %9667 = vmatpush1.bf16.msra.mxu0 0
  %9668 = vmatprep.subr.bf16.mxu0 0
  %9669 = vmatpush1.bf16.msra.mxu0 0
  %9670 = vmatprep.subr.bf16.mxu0 0
  %9671 = vmatpush1.bf16.msra.mxu0 0
  %9672 = vmatprep.subr.bf16.mxu0 0
  %9673 = vmatpush1.bf16.msra.mxu0 0
  %9674 = vmatprep.subr.bf16.mxu0 0
  %9675 = vmatpush1.bf16.msra.mxu0 0
  %9676 = vmatprep.subr.bf16.mxu0 0
  %9677 = vmatpush1.bf16.msra.mxu0 0
  %9678 = vmatprep.subr.bf16.mxu0 0
  %9679 = vmatpush1.bf16.msra.mxu0 0
  %9680 = vmatprep.subr.bf16.mxu0 0
  %9681 = vmatpush1.bf16.msra.mxu0 0
  %9682 = vmatprep.subr.bf16.mxu0 0
  %9683 = vmatpush1.bf16.msra.mxu0 0
  %9684 = vmatprep.mubr.bf16.mxu0 0
  %9685 = vmatmul.mubr.bf16.gmra.mrb[0].mxu0 %v73
  %v9686 = vpop.f32.mrb[0].mxu0
  %v9687 = vadd.f32 %v9647, %v9686
  %v9688 = vpop.f32.mrb[0].mxu0
  %v9689 = vpop.f32.mrb[0].mxu0
  %v9690 = vadd.f32 %v9647, %v9689
  %v9691 = vpop.f32.mrb[0].mxu0
  %9692 = vmatprep.mubr.bf16.mxu0 0
  %9693 = vmatmul.mubr.bf16.gmra.mrb[0].mxu0 %v76
  %v9694 = vpop.f32.mrb[0].mxu0
  %v9695 = vadd.f32 %v9647, %v9694
  %v9696 = vpop.f32.mrb[0].mxu0
  %v9697 = vpop.f32.mrb[0].mxu0
  %v9698 = vadd.f32 %v9647, %v9697
  %v9699 = vpop.f32.mrb[0].mxu0
  %9700 = vmatprep.mubr.bf16.mxu0 0
  %9701 = vmatmul.mubr.bf16.gmra.mrb[0].mxu0 %v79
  %v9702 = vpop.f32.mrb[0].mxu0
  %v9703 = vadd.f32 %v9647, %v9702
  %v9704 = vpop.f32.mrb[0].mxu0
  %v9705 = vpop.f32.mrb[0].mxu0
  %v9706 = vadd.f32 %v9647, %v9705
  %v9707 = vpop.f32.mrb[0].mxu0
  %9708 = vmatprep.mubr.bf16.mxu0 0
  %9709 = vmatmul.mubr.bf16.gmra.mrb[0].mxu0 %v82
  %v9710 = vpop.f32.mrb[0].mxu0
  %v9711 = vadd.f32 %v9647, %v9710
  %v9712 = vpop.f32.mrb[0].mxu0
  %v9713 = vpop.f32.mrb[0].mxu0
  %v9714 = vadd.f32 %v9647, %v9713
  %v9715 = vpop.f32.mrb[0].mxu0
  %9716 = vmatprep.mubr.bf16.mxu0 0
  %9717 = vmatmul.mubr.bf16.gmra.mrb[0].mxu0 %v85
  %v9718 = vpop.f32.mrb[0].mxu0
  %v9719 = vadd.f32 %v9647, %v9718
  %v9720 = vpop.f32.mrb[0].mxu0
  %v9721 = vpop.f32.mrb[0].mxu0
  %v9722 = vadd.f32 %v9647, %v9721
  %v9723 = vpop.f32.mrb[0].mxu0
  %9724 = vmatprep.mubr.bf16.mxu0 0
  %9725 = vmatmul.mubr.bf16.gmra.mrb[0].mxu0 %v88
  %v9726 = vpop.f32.mrb[0].mxu0
  %v9727 = vadd.f32 %v9647, %v9726
  %v9728 = vpop.f32.mrb[0].mxu0
  %v9729 = vpop.f32.mrb[0].mxu0
  %v9730 = vadd.f32 %v9647, %v9729
  %v9731 = vpop.f32.mrb[0].mxu0
  %9732 = vmatprep.mubr.bf16.mxu0 0
  %9733 = vmatmul.mubr.bf16.gmra.mrb[0].mxu0 %v91
  %v9734 = vpop.f32.mrb[0].mxu0
  %v9735 = vadd.f32 %v9647, %v9734
  %v9736 = vpop.f32.mrb[0].mxu0
  %v9737 = vpop.f32.mrb[0].mxu0
  %v9738 = vadd.f32 %v9647, %v9737
  %v9739 = vpop.f32.mrb[0].mxu0
  %9740 = vmatprep.mubr.bf16.mxu0 0
  %9741 = vmatmul.mubr.bf16.gmra.mrb[0].mxu0 %v94
  %v9742 = vpop.f32.mrb[0].mxu0
  %v9743 = vadd.f32 %v9647, %v9742
  %v9744 = vpop.f32.mrb[0].mxu0
  %v9745 = vpop.f32.mrb[0].mxu0
  %v9746 = vadd.f32 %v9647, %v9745
  %v9747 = vpop.f32.mrb[0].mxu0
  %9748 = vdwg.mxu0
  %v9749 = vld [vmem:[#allocation2] sm:$0xff]
  %v9750 = vld [vmem:[#allocation2 + $0x8] sm:$0xff]
  %v9751 = vld [vmem:[#allocation2 + $0x10] sm:$0xff]
  %v9752 = vld [vmem:[#allocation2 + $0x18] sm:$0xff]
  %v9753 = vld [vmem:[#allocation2 + $0x20] sm:$0xff]
  %v9754 = vld [vmem:[#allocation2 + $0x28] sm:$0xff]
  %v9755 = vld [vmem:[#allocation2 + $0x30] sm:$0xff]
  %v9756 = vld [vmem:[#allocation2 + $0x38] sm:$0xff]
  %v9757 = vld [vmem:[#allocation2 + $0x40] sm:$0xff]
  %v9758 = vld [vmem:[#allocation2 + $0x48] sm:$0xff]
  %v9759 = vld [vmem:[#allocation2 + $0x50] sm:$0xff]
  %v9760 = vld [vmem:[#allocation2 + $0x58] sm:$0xff]
  %v9761 = vld [vmem:[#allocation2 + $0x60] sm:$0xff]
  %v9762 = vld [vmem:[#allocation2 + $0x68] sm:$0xff]
  %v9763 = vld [vmem:[#allocation2 + $0x70] sm:$0xff]
  %v9764 = vld [vmem:[#allocation2 + $0x78] sm:$0xff]
  %v9765 = vld [vmem:[#allocation2 + $0x80] sm:$0xff]
  %v9766 = vld [vmem:[#allocation2 + $0x88] sm:$0xff]
  %v9767 = vld [vmem:[#allocation2 + $0x90] sm:$0xff]
  %v9768 = vld [vmem:[#allocation2 + $0x98] sm:$0xff]
  %v9769 = vld [vmem:[#allocation2 + $0xa0] sm:$0xff]
  %v9770 = vld [vmem:[#allocation2 + $0xa8] sm:$0xff]
  %v9771 = vld [vmem:[#allocation2 + $0xb0] sm:$0xff]
  %v9772 = vld [vmem:[#allocation2 + $0xb8] sm:$0xff]
  %v9773 = vld [vmem:[#allocation2 + $0xc0] sm:$0xff]
  %v9774 = vld [vmem:[#allocation2 + $0xc8] sm:$0xff]
  %v9775 = vld [vmem:[#allocation2 + $0xd0] sm:$0xff]
  %v9776 = vld [vmem:[#allocation2 + $0xd8] sm:$0xff]
  %v9777 = vld [vmem:[#allocation2 + $0xe0] sm:$0xff]
  %v9778 = vld [vmem:[#allocation2 + $0xe8] sm:$0xff]
  %v9779 = vld [vmem:[#allocation2 + $0xf0] sm:$0xff]
  %v9780 = vld [vmem:[#allocation2 + $0xf8] sm:$0xff]
  %v9781 = vld [vmem:[#allocation2 + $0x100] sm:$0xff]
  %v9782 = vld [vmem:[#allocation2 + $0x108] sm:$0xff]
  %v9783 = vld [vmem:[#allocation2 + $0x110] sm:$0xff]
  %v9784 = vld [vmem:[#allocation2 + $0x118] sm:$0xff]
  %v9785 = vld [vmem:[#allocation2 + $0x120] sm:$0xff]
  %v9786 = vld [vmem:[#allocation2 + $0x128] sm:$0xff]
  %v9787 = vld [vmem:[#allocation2 + $0x130] sm:$0xff]
  %v9788 = vld [vmem:[#allocation2 + $0x138] sm:$0xff]
  %v9789 = vld [vmem:[#allocation2 + $0x140] sm:$0xff]
  %v9790 = vld [vmem:[#allocation2 + $0x148] sm:$0xff]
  %v9791 = vld [vmem:[#allocation2 + $0x150] sm:$0xff]
  %v9792 = vld [vmem:[#allocation2 + $0x158] sm:$0xff]
  %v9793 = vld [vmem:[#allocation2 + $0x160] sm:$0xff]
  %v9794 = vld [vmem:[#allocation2 + $0x168] sm:$0xff]
  %v9795 = vld [vmem:[#allocation2 + $0x170] sm:$0xff]
  %v9796 = vld [vmem:[#allocation2 + $0x178] sm:$0xff]
  %v9797 = vld [vmem:[#allocation2 + $0x180] sm:$0xff]
  %v9798 = vld [vmem:[#allocation2 + $0x188] sm:$0xff]
  %v9799 = vld [vmem:[#allocation2 + $0x190] sm:$0xff]
  %v9800 = vld [vmem:[#allocation2 + $0x198] sm:$0xff]
  %v9801 = vld [vmem:[#allocation2 + $0x1a0] sm:$0xff]
  %v9802 = vld [vmem:[#allocation2 + $0x1a8] sm:$0xff]
  %v9803 = vld [vmem:[#allocation2 + $0x1b0] sm:$0xff]
  %v9804 = vld [vmem:[#allocation2 + $0x1b8] sm:$0xff]
  %v9805 = vld [vmem:[#allocation2 + $0x1c0] sm:$0xff]
  %v9806 = vld [vmem:[#allocation2 + $0x1c8] sm:$0xff]
  %v9807 = vld [vmem:[#allocation2 + $0x1d0] sm:$0xff]
  %v9808 = vld [vmem:[#allocation2 + $0x1d8] sm:$0xff]
  %v9809 = vld [vmem:[#allocation2 + $0x1e0] sm:$0xff]
  %v9810 = vld [vmem:[#allocation2 + $0x1e8] sm:$0xff]
  %v9811 = vld [vmem:[#allocation2 + $0x1f0] sm:$0xff]
  %v9812 = vld [vmem:[#allocation2 + $0x1f8] sm:$0xff]
  %v9813 = vld [vmem:[%s8] sm:$0xf]
  %v9814 = vld [vmem:[%s8 + $0x4] sm:$0xf]
  %v9815 = vld [vmem:[%s8 + $0x8] sm:$0xf]
  %v9816 = vld [vmem:[%s8 + $0xc] sm:$0xf]
  %v9833 = vcombine.high %v9687, %v9687
  %v9835 = vunpack.c.l.s4 1966171168
  %v9836 = vunpack.c.0.s8 %v9835
  %v9837 = vlaneseq
  %v9838 = vshrl.u32 %v9837, 7
  %v9839 = vsub.s32 %v9836, %v9838
  %v9840 = vrot.slane %v9687, %v9839
  %v9842 = vunpack.c.l.s4 1966171168
  %v9843 = vunpack.c.0.s8 %v9842
  %v9844 = vlaneseq
  %v9845 = vshrl.u32 %v9844, 7
  %v9846 = vsub.s32 %v9843, %v9845
  %v9847 = vrot.slane %v9833, %v9846
  %v9848 = vcombine.high %v9840, %v9840
  %v9849 = vcombine.high %v9847, %v9847
  %v9851 = vunpack.c.l.s4 1966171168
  %v9852 = vunpack.c.0.s8 %v9851
  %v9853 = vlaneseq
  %v9854 = vshrl.u32 %v9853, 7
  %v9855 = vsub.s32 %v9852, %v9854
  %v9856 = vrot.slane %v9840, %v9855
  %v9858 = vunpack.c.l.s4 1966171168
  %v9859 = vunpack.c.0.s8 %v9858
  %v9860 = vlaneseq
  %v9861 = vshrl.u32 %v9860, 7
  %v9862 = vsub.s32 %v9859, %v9861
  %v9863 = vrot.slane %v9847, %v9862
  %v9865 = vunpack.c.l.s4 1966171168
  %v9866 = vunpack.c.0.s8 %v9865
  %v9867 = vlaneseq
  %v9868 = vshrl.u32 %v9867, 7
  %v9869 = vsub.s32 %v9866, %v9868
  %v9870 = vrot.slane %v9848, %v9869
  %v9872 = vunpack.c.l.s4 1966171168
  %v9873 = vunpack.c.0.s8 %v9872
  %v9874 = vlaneseq
  %v9875 = vshrl.u32 %v9874, 7
  %v9876 = vsub.s32 %v9873, %v9875
  %v9877 = vrot.slane %v9849, %v9876
  %v9878 = vcombine.high %v9856, %v9856
  %v9879 = vcombine.high %v9863, %v9863
  %v9880 = vcombine.high %v9870, %v9870
  %v9881 = vcombine.high %v9877, %v9877
  %v9882 = vcombine.high %v9690, %v9690
  %v9884 = vunpack.c.l.s4 1966171168
  %v9885 = vunpack.c.0.s8 %v9884
  %v9886 = vlaneseq
  %v9887 = vshrl.u32 %v9886, 7
  %v9888 = vsub.s32 %v9885, %v9887
  %v9889 = vrot.slane %v9690, %v9888
  %v9891 = vunpack.c.l.s4 1966171168
  %v9892 = vunpack.c.0.s8 %v9891
  %v9893 = vlaneseq
  %v9894 = vshrl.u32 %v9893, 7
  %v9895 = vsub.s32 %v9892, %v9894
  %v9896 = vrot.slane %v9882, %v9895
  %v9897 = vcombine.high %v9889, %v9889
  %v9898 = vcombine.high %v9896, %v9896
  %v9900 = vunpack.c.l.s4 1966171168
  %v9901 = vunpack.c.0.s8 %v9900
  %v9902 = vlaneseq
  %v9903 = vshrl.u32 %v9902, 7
  %v9904 = vsub.s32 %v9901, %v9903
  %v9905 = vrot.slane %v9889, %v9904
  %v9907 = vunpack.c.l.s4 1966171168
  %v9908 = vunpack.c.0.s8 %v9907
  %v9909 = vlaneseq
  %v9910 = vshrl.u32 %v9909, 7
  %v9911 = vsub.s32 %v9908, %v9910
  %v9912 = vrot.slane %v9896, %v9911
  %v9914 = vunpack.c.l.s4 1966171168
  %v9915 = vunpack.c.0.s8 %v9914
  %v9916 = vlaneseq
  %v9917 = vshrl.u32 %v9916, 7
  %v9918 = vsub.s32 %v9915, %v9917
  %v9919 = vrot.slane %v9897, %v9918
  %v9921 = vunpack.c.l.s4 1966171168
  %v9922 = vunpack.c.0.s8 %v9921
  %v9923 = vlaneseq
  %v9924 = vshrl.u32 %v9923, 7
  %v9925 = vsub.s32 %v9922, %v9924
  %v9926 = vrot.slane %v9898, %v9925
  %v9927 = vcombine.high %v9905, %v9905
  %v9928 = vcombine.high %v9912, %v9912
  %v9929 = vcombine.high %v9919, %v9919
  %v9930 = vcombine.high %v9926, %v9926
  %v9931 = vcombine.high %v9695, %v9695
  %v9933 = vunpack.c.l.s4 1966171168
  %v9934 = vunpack.c.0.s8 %v9933
  %v9935 = vlaneseq
  %v9936 = vshrl.u32 %v9935, 7
  %v9937 = vsub.s32 %v9934, %v9936
  %v9938 = vrot.slane %v9695, %v9937
  %v9940 = vunpack.c.l.s4 1966171168
  %v9941 = vunpack.c.0.s8 %v9940
  %v9942 = vlaneseq
  %v9943 = vshrl.u32 %v9942, 7
  %v9944 = vsub.s32 %v9941, %v9943
  %v9945 = vrot.slane %v9931, %v9944
  %v9946 = vcombine.high %v9938, %v9938
  %v9947 = vcombine.high %v9945, %v9945
  %v9949 = vunpack.c.l.s4 1966171168
  %v9950 = vunpack.c.0.s8 %v9949
  %v9951 = vlaneseq
  %v9952 = vshrl.u32 %v9951, 7
  %v9953 = vsub.s32 %v9950, %v9952
  %v9954 = vrot.slane %v9938, %v9953
  %v9956 = vunpack.c.l.s4 1966171168
  %v9957 = vunpack.c.0.s8 %v9956
  %v9958 = vlaneseq
  %v9959 = vshrl.u32 %v9958, 7
  %v9960 = vsub.s32 %v9957, %v9959
  %v9961 = vrot.slane %v9945, %v9960
  %v9963 = vunpack.c.l.s4 1966171168
  %v9964 = vunpack.c.0.s8 %v9963
  %v9965 = vlaneseq
  %v9966 = vshrl.u32 %v9965, 7
  %v9967 = vsub.s32 %v9964, %v9966
  %v9968 = vrot.slane %v9946, %v9967
  %v9970 = vunpack.c.l.s4 1966171168
  %v9971 = vunpack.c.0.s8 %v9970
  %v9972 = vlaneseq
  %v9973 = vshrl.u32 %v9972, 7
  %v9974 = vsub.s32 %v9971, %v9973
  %v9975 = vrot.slane %v9947, %v9974
  %v9976 = vcombine.high %v9954, %v9954
  %v9977 = vcombine.high %v9961, %v9961
  %v9978 = vcombine.high %v9968, %v9968
  %v9979 = vcombine.high %v9975, %v9975
  %v9980 = vcombine.high %v9698, %v9698
  %v9982 = vunpack.c.l.s4 1966171168
  %v9983 = vunpack.c.0.s8 %v9982
  %v9984 = vlaneseq
  %v9985 = vshrl.u32 %v9984, 7
  %v9986 = vsub.s32 %v9983, %v9985
  %v9987 = vrot.slane %v9698, %v9986
  %v9989 = vunpack.c.l.s4 1966171168
  %v9990 = vunpack.c.0.s8 %v9989
  %v9991 = vlaneseq
  %v9992 = vshrl.u32 %v9991, 7
  %v9993 = vsub.s32 %v9990, %v9992
  %v9994 = vrot.slane %v9980, %v9993
  %v9995 = vcombine.high %v9987, %v9987
  %v9996 = vcombine.high %v9994, %v9994
  %v9998 = vunpack.c.l.s4 1966171168
  %v9999 = vunpack.c.0.s8 %v9998
  %v10000 = vlaneseq
  %v10001 = vshrl.u32 %v10000, 7
  %v10002 = vsub.s32 %v9999, %v10001
  %v10003 = vrot.slane %v9987, %v10002
  %v10005 = vunpack.c.l.s4 1966171168
  %v10006 = vunpack.c.0.s8 %v10005
  %v10007 = vlaneseq
  %v10008 = vshrl.u32 %v10007, 7
  %v10009 = vsub.s32 %v10006, %v10008
  %v10010 = vrot.slane %v9994, %v10009
  %v10012 = vunpack.c.l.s4 1966171168
  %v10013 = vunpack.c.0.s8 %v10012
  %v10014 = vlaneseq
  %v10015 = vshrl.u32 %v10014, 7
  %v10016 = vsub.s32 %v10013, %v10015
  %v10017 = vrot.slane %v9995, %v10016
  %v10019 = vunpack.c.l.s4 1966171168
  %v10020 = vunpack.c.0.s8 %v10019
  %v10021 = vlaneseq
  %v10022 = vshrl.u32 %v10021, 7
  %v10023 = vsub.s32 %v10020, %v10022
  %v10024 = vrot.slane %v9996, %v10023
  %v10025 = vcombine.high %v10003, %v10003
  %v10026 = vcombine.high %v10010, %v10010
  %v10027 = vcombine.high %v10017, %v10017
  %v10028 = vcombine.high %v10024, %v10024
  %v10029 = vcombine.high %v9703, %v9703
  %v10031 = vunpack.c.l.s4 1966171168
  %v10032 = vunpack.c.0.s8 %v10031
  %v10033 = vlaneseq
  %v10034 = vshrl.u32 %v10033, 7
  %v10035 = vsub.s32 %v10032, %v10034
  %v10036 = vrot.slane %v9703, %v10035
  %v10038 = vunpack.c.l.s4 1966171168
  %v10039 = vunpack.c.0.s8 %v10038
  %v10040 = vlaneseq
  %v10041 = vshrl.u32 %v10040, 7
  %v10042 = vsub.s32 %v10039, %v10041
  %v10043 = vrot.slane %v10029, %v10042
  %v10044 = vcombine.high %v10036, %v10036
  %v10045 = vcombine.high %v10043, %v10043
  %v10047 = vunpack.c.l.s4 1966171168
  %v10048 = vunpack.c.0.s8 %v10047
  %v10049 = vlaneseq
  %v10050 = vshrl.u32 %v10049, 7
  %v10051 = vsub.s32 %v10048, %v10050
  %v10052 = vrot.slane %v10036, %v10051
  %v10054 = vunpack.c.l.s4 1966171168
  %v10055 = vunpack.c.0.s8 %v10054
  %v10056 = vlaneseq
  %v10057 = vshrl.u32 %v10056, 7
  %v10058 = vsub.s32 %v10055, %v10057
  %v10059 = vrot.slane %v10043, %v10058
  %v10061 = vunpack.c.l.s4 1966171168
  %v10062 = vunpack.c.0.s8 %v10061
  %v10063 = vlaneseq
  %v10064 = vshrl.u32 %v10063, 7
  %v10065 = vsub.s32 %v10062, %v10064
  %v10066 = vrot.slane %v10044, %v10065
  %v10068 = vunpack.c.l.s4 1966171168
  %v10069 = vunpack.c.0.s8 %v10068
  %v10070 = vlaneseq
  %v10071 = vshrl.u32 %v10070, 7
  %v10072 = vsub.s32 %v10069, %v10071
  %v10073 = vrot.slane %v10045, %v10072
  %v10074 = vcombine.high %v10052, %v10052
  %v10075 = vcombine.high %v10059, %v10059
  %v10076 = vcombine.high %v10066, %v10066
  %v10077 = vcombine.high %v10073, %v10073
  %v10078 = vcombine.high %v9706, %v9706
  %v10080 = vunpack.c.l.s4 1966171168
  %v10081 = vunpack.c.0.s8 %v10080
  %v10082 = vlaneseq
  %v10083 = vshrl.u32 %v10082, 7
  %v10084 = vsub.s32 %v10081, %v10083
  %v10085 = vrot.slane %v9706, %v10084
  %v10087 = vunpack.c.l.s4 1966171168
  %v10088 = vunpack.c.0.s8 %v10087
  %v10089 = vlaneseq
  %v10090 = vshrl.u32 %v10089, 7
  %v10091 = vsub.s32 %v10088, %v10090
  %v10092 = vrot.slane %v10078, %v10091
  %v10093 = vcombine.high %v10085, %v10085
  %v10094 = vcombine.high %v10092, %v10092
  %v10096 = vunpack.c.l.s4 1966171168
  %v10097 = vunpack.c.0.s8 %v10096
  %v10098 = vlaneseq
  %v10099 = vshrl.u32 %v10098, 7
  %v10100 = vsub.s32 %v10097, %v10099
  %v10101 = vrot.slane %v10085, %v10100
  %v10103 = vunpack.c.l.s4 1966171168
  %v10104 = vunpack.c.0.s8 %v10103
  %v10105 = vlaneseq
  %v10106 = vshrl.u32 %v10105, 7
  %v10107 = vsub.s32 %v10104, %v10106
  %v10108 = vrot.slane %v10092, %v10107
  %v10110 = vunpack.c.l.s4 1966171168
  %v10111 = vunpack.c.0.s8 %v10110
  %v10112 = vlaneseq
  %v10113 = vshrl.u32 %v10112, 7
  %v10114 = vsub.s32 %v10111, %v10113
  %v10115 = vrot.slane %v10093, %v10114
  %v10117 = vunpack.c.l.s4 1966171168
  %v10118 = vunpack.c.0.s8 %v10117
  %v10119 = vlaneseq
  %v10120 = vshrl.u32 %v10119, 7
  %v10121 = vsub.s32 %v10118, %v10120
  %v10122 = vrot.slane %v10094, %v10121
  %v10123 = vcombine.high %v10101, %v10101
  %v10124 = vcombine.high %v10108, %v10108
  %v10125 = vcombine.high %v10115, %v10115
  %v10126 = vcombine.high %v10122, %v10122
  %v10127 = vcombine.high %v9711, %v9711
  %v10129 = vunpack.c.l.s4 1966171168
  %v10130 = vunpack.c.0.s8 %v10129
  %v10131 = vlaneseq
  %v10132 = vshrl.u32 %v10131, 7
  %v10133 = vsub.s32 %v10130, %v10132
  %v10134 = vrot.slane %v9711, %v10133
  %v10136 = vunpack.c.l.s4 1966171168
  %v10137 = vunpack.c.0.s8 %v10136
  %v10138 = vlaneseq
  %v10139 = vshrl.u32 %v10138, 7
  %v10140 = vsub.s32 %v10137, %v10139
  %v10141 = vrot.slane %v10127, %v10140
  %v10142 = vcombine.high %v10134, %v10134
  %v10143 = vcombine.high %v10141, %v10141
  %v10145 = vunpack.c.l.s4 1966171168
  %v10146 = vunpack.c.0.s8 %v10145
  %v10147 = vlaneseq
  %v10148 = vshrl.u32 %v10147, 7
  %v10149 = vsub.s32 %v10146, %v10148
  %v10150 = vrot.slane %v10134, %v10149
  %v10152 = vunpack.c.l.s4 1966171168
  %v10153 = vunpack.c.0.s8 %v10152
  %v10154 = vlaneseq
  %v10155 = vshrl.u32 %v10154, 7
  %v10156 = vsub.s32 %v10153, %v10155
  %v10157 = vrot.slane %v10141, %v10156
  %v10159 = vunpack.c.l.s4 1966171168
  %v10160 = vunpack.c.0.s8 %v10159
  %v10161 = vlaneseq
  %v10162 = vshrl.u32 %v10161, 7
  %v10163 = vsub.s32 %v10160, %v10162
  %v10164 = vrot.slane %v10142, %v10163
  %v10166 = vunpack.c.l.s4 1966171168
  %v10167 = vunpack.c.0.s8 %v10166
  %v10168 = vlaneseq
  %v10169 = vshrl.u32 %v10168, 7
  %v10170 = vsub.s32 %v10167, %v10169
  %v10171 = vrot.slane %v10143, %v10170
  %v10172 = vcombine.high %v10150, %v10150
  %v10173 = vcombine.high %v10157, %v10157
  %v10174 = vcombine.high %v10164, %v10164
  %v10175 = vcombine.high %v10171, %v10171
  %v10176 = vcombine.high %v9714, %v9714
  %v10178 = vunpack.c.l.s4 1966171168
  %v10179 = vunpack.c.0.s8 %v10178
  %v10180 = vlaneseq
  %v10181 = vshrl.u32 %v10180, 7
  %v10182 = vsub.s32 %v10179, %v10181
  %v10183 = vrot.slane %v9714, %v10182
  %v10185 = vunpack.c.l.s4 1966171168
  %v10186 = vunpack.c.0.s8 %v10185
  %v10187 = vlaneseq
  %v10188 = vshrl.u32 %v10187, 7
  %v10189 = vsub.s32 %v10186, %v10188
  %v10190 = vrot.slane %v10176, %v10189
  %v10191 = vcombine.high %v10183, %v10183
  %v10192 = vcombine.high %v10190, %v10190
  %v10194 = vunpack.c.l.s4 1966171168
  %v10195 = vunpack.c.0.s8 %v10194
  %v10196 = vlaneseq
  %v10197 = vshrl.u32 %v10196, 7
  %v10198 = vsub.s32 %v10195, %v10197
  %v10199 = vrot.slane %v10183, %v10198
  %v10201 = vunpack.c.l.s4 1966171168
  %v10202 = vunpack.c.0.s8 %v10201
  %v10203 = vlaneseq
  %v10204 = vshrl.u32 %v10203, 7
  %v10205 = vsub.s32 %v10202, %v10204
  %v10206 = vrot.slane %v10190, %v10205
  %v10208 = vunpack.c.l.s4 1966171168
  %v10209 = vunpack.c.0.s8 %v10208
  %v10210 = vlaneseq
  %v10211 = vshrl.u32 %v10210, 7
  %v10212 = vsub.s32 %v10209, %v10211
  %v10213 = vrot.slane %v10191, %v10212
  %v10215 = vunpack.c.l.s4 1966171168
  %v10216 = vunpack.c.0.s8 %v10215
  %v10217 = vlaneseq
  %v10218 = vshrl.u32 %v10217, 7
  %v10219 = vsub.s32 %v10216, %v10218
  %v10220 = vrot.slane %v10192, %v10219
  %v10221 = vcombine.high %v10199, %v10199
  %v10222 = vcombine.high %v10206, %v10206
  %v10223 = vcombine.high %v10213, %v10213
  %v10224 = vcombine.high %v10220, %v10220
  %v10225 = vcombine.high %v9719, %v9719
  %v10227 = vunpack.c.l.s4 1966171168
  %v10228 = vunpack.c.0.s8 %v10227
  %v10229 = vlaneseq
  %v10230 = vshrl.u32 %v10229, 7
  %v10231 = vsub.s32 %v10228, %v10230
  %v10232 = vrot.slane %v9719, %v10231
  %v10234 = vunpack.c.l.s4 1966171168
  %v10235 = vunpack.c.0.s8 %v10234
  %v10236 = vlaneseq
  %v10237 = vshrl.u32 %v10236, 7
  %v10238 = vsub.s32 %v10235, %v10237
  %v10239 = vrot.slane %v10225, %v10238
  %v10240 = vcombine.high %v10232, %v10232
  %v10241 = vcombine.high %v10239, %v10239
  %v10243 = vunpack.c.l.s4 1966171168
  %v10244 = vunpack.c.0.s8 %v10243
  %v10245 = vlaneseq
  %v10246 = vshrl.u32 %v10245, 7
  %v10247 = vsub.s32 %v10244, %v10246
  %v10248 = vrot.slane %v10232, %v10247
  %v10250 = vunpack.c.l.s4 1966171168
  %v10251 = vunpack.c.0.s8 %v10250
  %v10252 = vlaneseq
  %v10253 = vshrl.u32 %v10252, 7
  %v10254 = vsub.s32 %v10251, %v10253
  %v10255 = vrot.slane %v10239, %v10254
  %v10257 = vunpack.c.l.s4 1966171168
  %v10258 = vunpack.c.0.s8 %v10257
  %v10259 = vlaneseq
  %v10260 = vshrl.u32 %v10259, 7
  %v10261 = vsub.s32 %v10258, %v10260
  %v10262 = vrot.slane %v10240, %v10261
  %v10264 = vunpack.c.l.s4 1966171168
  %v10265 = vunpack.c.0.s8 %v10264
  %v10266 = vlaneseq
  %v10267 = vshrl.u32 %v10266, 7
  %v10268 = vsub.s32 %v10265, %v10267
  %v10269 = vrot.slane %v10241, %v10268
  %v10270 = vcombine.high %v10248, %v10248
  %v10271 = vcombine.high %v10255, %v10255
  %v10272 = vcombine.high %v10262, %v10262
  %v10273 = vcombine.high %v10269, %v10269
  %v10274 = vcombine.high %v9722, %v9722
  %v10276 = vunpack.c.l.s4 1966171168
  %v10277 = vunpack.c.0.s8 %v10276
  %v10278 = vlaneseq
  %v10279 = vshrl.u32 %v10278, 7
  %v10280 = vsub.s32 %v10277, %v10279
  %v10281 = vrot.slane %v9722, %v10280
  %v10283 = vunpack.c.l.s4 1966171168
  %v10284 = vunpack.c.0.s8 %v10283
  %v10285 = vlaneseq
  %v10286 = vshrl.u32 %v10285, 7
  %v10287 = vsub.s32 %v10284, %v10286
  %v10288 = vrot.slane %v10274, %v10287
  %v10289 = vcombine.high %v10281, %v10281
  %v10290 = vcombine.high %v10288, %v10288
  %v10292 = vunpack.c.l.s4 1966171168
  %v10293 = vunpack.c.0.s8 %v10292
  %v10294 = vlaneseq
  %v10295 = vshrl.u32 %v10294, 7
  %v10296 = vsub.s32 %v10293, %v10295
  %v10297 = vrot.slane %v10281, %v10296
  %v10299 = vunpack.c.l.s4 1966171168
  %v10300 = vunpack.c.0.s8 %v10299
  %v10301 = vlaneseq
  %v10302 = vshrl.u32 %v10301, 7
  %v10303 = vsub.s32 %v10300, %v10302
  %v10304 = vrot.slane %v10288, %v10303
  %v10306 = vunpack.c.l.s4 1966171168
  %v10307 = vunpack.c.0.s8 %v10306
  %v10308 = vlaneseq
  %v10309 = vshrl.u32 %v10308, 7
  %v10310 = vsub.s32 %v10307, %v10309
  %v10311 = vrot.slane %v10289, %v10310
  %v10313 = vunpack.c.l.s4 1966171168
  %v10314 = vunpack.c.0.s8 %v10313
  %v10315 = vlaneseq
  %v10316 = vshrl.u32 %v10315, 7
  %v10317 = vsub.s32 %v10314, %v10316
  %v10318 = vrot.slane %v10290, %v10317
  %v10319 = vcombine.high %v10297, %v10297
  %v10320 = vcombine.high %v10304, %v10304
  %v10321 = vcombine.high %v10311, %v10311
  %v10322 = vcombine.high %v10318, %v10318
  %v10323 = vcombine.high %v9727, %v9727
  %v10325 = vunpack.c.l.s4 1966171168
  %v10326 = vunpack.c.0.s8 %v10325
  %v10327 = vlaneseq
  %v10328 = vshrl.u32 %v10327, 7
  %v10329 = vsub.s32 %v10326, %v10328
  %v10330 = vrot.slane %v9727, %v10329
  %v10332 = vunpack.c.l.s4 1966171168
  %v10333 = vunpack.c.0.s8 %v10332
  %v10334 = vlaneseq
  %v10335 = vshrl.u32 %v10334, 7
  %v10336 = vsub.s32 %v10333, %v10335
  %v10337 = vrot.slane %v10323, %v10336
  %v10338 = vcombine.high %v10330, %v10330
  %v10339 = vcombine.high %v10337, %v10337
  %v10341 = vunpack.c.l.s4 1966171168
  %v10342 = vunpack.c.0.s8 %v10341
  %v10343 = vlaneseq
  %v10344 = vshrl.u32 %v10343, 7
  %v10345 = vsub.s32 %v10342, %v10344
  %v10346 = vrot.slane %v10330, %v10345
  %v10348 = vunpack.c.l.s4 1966171168
  %v10349 = vunpack.c.0.s8 %v10348
  %v10350 = vlaneseq
  %v10351 = vshrl.u32 %v10350, 7
  %v10352 = vsub.s32 %v10349, %v10351
  %v10353 = vrot.slane %v10337, %v10352
  %v10355 = vunpack.c.l.s4 1966171168
  %v10356 = vunpack.c.0.s8 %v10355
  %v10357 = vlaneseq
  %v10358 = vshrl.u32 %v10357, 7
  %v10359 = vsub.s32 %v10356, %v10358
  %v10360 = vrot.slane %v10338, %v10359
  %v10362 = vunpack.c.l.s4 1966171168
  %v10363 = vunpack.c.0.s8 %v10362
  %v10364 = vlaneseq
  %v10365 = vshrl.u32 %v10364, 7
  %v10366 = vsub.s32 %v10363, %v10365
  %v10367 = vrot.slane %v10339, %v10366
  %v10368 = vcombine.high %v10346, %v10346
  %v10369 = vcombine.high %v10353, %v10353
  %v10370 = vcombine.high %v10360, %v10360
  %v10371 = vcombine.high %v10367, %v10367
  %v10372 = vcombine.high %v9730, %v9730
  %v10374 = vunpack.c.l.s4 1966171168
  %v10375 = vunpack.c.0.s8 %v10374
  %v10376 = vlaneseq
  %v10377 = vshrl.u32 %v10376, 7
  %v10378 = vsub.s32 %v10375, %v10377
  %v10379 = vrot.slane %v9730, %v10378
  %v10381 = vunpack.c.l.s4 1966171168
  %v10382 = vunpack.c.0.s8 %v10381
  %v10383 = vlaneseq
  %v10384 = vshrl.u32 %v10383, 7
  %v10385 = vsub.s32 %v10382, %v10384
  %v10386 = vrot.slane %v10372, %v10385
  %v10387 = vcombine.high %v10379, %v10379
  %v10388 = vcombine.high %v10386, %v10386
  %v10390 = vunpack.c.l.s4 1966171168
  %v10391 = vunpack.c.0.s8 %v10390
  %v10392 = vlaneseq
  %v10393 = vshrl.u32 %v10392, 7
  %v10394 = vsub.s32 %v10391, %v10393
  %v10395 = vrot.slane %v10379, %v10394
  %v10397 = vunpack.c.l.s4 1966171168
  %v10398 = vunpack.c.0.s8 %v10397
  %v10399 = vlaneseq
  %v10400 = vshrl.u32 %v10399, 7
  %v10401 = vsub.s32 %v10398, %v10400
  %v10402 = vrot.slane %v10386, %v10401
  %v10404 = vunpack.c.l.s4 1966171168
  %v10405 = vunpack.c.0.s8 %v10404
  %v10406 = vlaneseq
  %v10407 = vshrl.u32 %v10406, 7
  %v10408 = vsub.s32 %v10405, %v10407
  %v10409 = vrot.slane %v10387, %v10408
  %v10411 = vunpack.c.l.s4 1966171168
  %v10412 = vunpack.c.0.s8 %v10411
  %v10413 = vlaneseq
  %v10414 = vshrl.u32 %v10413, 7
  %v10415 = vsub.s32 %v10412, %v10414
  %v10416 = vrot.slane %v10388, %v10415
  %v10417 = vcombine.high %v10395, %v10395
  %v10418 = vcombine.high %v10402, %v10402
  %v10419 = vcombine.high %v10409, %v10409
  %v10420 = vcombine.high %v10416, %v10416
  %v10421 = vcombine.high %v9735, %v9735
  %v10423 = vunpack.c.l.s4 1966171168
  %v10424 = vunpack.c.0.s8 %v10423
  %v10425 = vlaneseq
  %v10426 = vshrl.u32 %v10425, 7
  %v10427 = vsub.s32 %v10424, %v10426
  %v10428 = vrot.slane %v9735, %v10427
  %v10430 = vunpack.c.l.s4 1966171168
  %v10431 = vunpack.c.0.s8 %v10430
  %v10432 = vlaneseq
  %v10433 = vshrl.u32 %v10432, 7
  %v10434 = vsub.s32 %v10431, %v10433
  %v10435 = vrot.slane %v10421, %v10434
  %v10436 = vcombine.high %v10428, %v10428
  %v10437 = vcombine.high %v10435, %v10435
  %v10439 = vunpack.c.l.s4 1966171168
  %v10440 = vunpack.c.0.s8 %v10439
  %v10441 = vlaneseq
  %v10442 = vshrl.u32 %v10441, 7
  %v10443 = vsub.s32 %v10440, %v10442
  %v10444 = vrot.slane %v10428, %v10443
  %v10446 = vunpack.c.l.s4 1966171168
  %v10447 = vunpack.c.0.s8 %v10446
  %v10448 = vlaneseq
  %v10449 = vshrl.u32 %v10448, 7
  %v10450 = vsub.s32 %v10447, %v10449
  %v10451 = vrot.slane %v10435, %v10450
  %v10453 = vunpack.c.l.s4 1966171168
  %v10454 = vunpack.c.0.s8 %v10453
  %v10455 = vlaneseq
  %v10456 = vshrl.u32 %v10455, 7
  %v10457 = vsub.s32 %v10454, %v10456
  %v10458 = vrot.slane %v10436, %v10457
  %v10460 = vunpack.c.l.s4 1966171168
  %v10461 = vunpack.c.0.s8 %v10460
  %v10462 = vlaneseq
  %v10463 = vshrl.u32 %v10462, 7
  %v10464 = vsub.s32 %v10461, %v10463
  %v10465 = vrot.slane %v10437, %v10464
  %v10466 = vcombine.high %v10444, %v10444
  %v10467 = vcombine.high %v10451, %v10451
  %v10468 = vcombine.high %v10458, %v10458
  %v10469 = vcombine.high %v10465, %v10465
  %v10470 = vcombine.high %v9738, %v9738
  %v10472 = vunpack.c.l.s4 1966171168
  %v10473 = vunpack.c.0.s8 %v10472
  %v10474 = vlaneseq
  %v10475 = vshrl.u32 %v10474, 7
  %v10476 = vsub.s32 %v10473, %v10475
  %v10477 = vrot.slane %v9738, %v10476
  %v10479 = vunpack.c.l.s4 1966171168
  %v10480 = vunpack.c.0.s8 %v10479
  %v10481 = vlaneseq
  %v10482 = vshrl.u32 %v10481, 7
  %v10483 = vsub.s32 %v10480, %v10482
  %v10484 = vrot.slane %v10470, %v10483
  %v10485 = vcombine.high %v10477, %v10477
  %v10486 = vcombine.high %v10484, %v10484
  %v10488 = vunpack.c.l.s4 1966171168
  %v10489 = vunpack.c.0.s8 %v10488
  %v10490 = vlaneseq
  %v10491 = vshrl.u32 %v10490, 7
  %v10492 = vsub.s32 %v10489, %v10491
  %v10493 = vrot.slane %v10477, %v10492
  %v10495 = vunpack.c.l.s4 1966171168
  %v10496 = vunpack.c.0.s8 %v10495
  %v10497 = vlaneseq
  %v10498 = vshrl.u32 %v10497, 7
  %v10499 = vsub.s32 %v10496, %v10498
  %v10500 = vrot.slane %v10484, %v10499
  %v10502 = vunpack.c.l.s4 1966171168
  %v10503 = vunpack.c.0.s8 %v10502
  %v10504 = vlaneseq
  %v10505 = vshrl.u32 %v10504, 7
  %v10506 = vsub.s32 %v10503, %v10505
  %v10507 = vrot.slane %v10485, %v10506
  %v10509 = vunpack.c.l.s4 1966171168
  %v10510 = vunpack.c.0.s8 %v10509
  %v10511 = vlaneseq
  %v10512 = vshrl.u32 %v10511, 7
  %v10513 = vsub.s32 %v10510, %v10512
  %v10514 = vrot.slane %v10486, %v10513
  %v10515 = vcombine.high %v10493, %v10493
  %v10516 = vcombine.high %v10500, %v10500
  %v10517 = vcombine.high %v10507, %v10507
  %v10518 = vcombine.high %v10514, %v10514
  %v10519 = vcombine.high %v9743, %v9743
  %v10521 = vunpack.c.l.s4 1966171168
  %v10522 = vunpack.c.0.s8 %v10521
  %v10523 = vlaneseq
  %v10524 = vshrl.u32 %v10523, 7
  %v10525 = vsub.s32 %v10522, %v10524
  %v10526 = vrot.slane %v9743, %v10525
  %v10528 = vunpack.c.l.s4 1966171168
  %v10529 = vunpack.c.0.s8 %v10528
  %v10530 = vlaneseq
  %v10531 = vshrl.u32 %v10530, 7
  %v10532 = vsub.s32 %v10529, %v10531
  %v10533 = vrot.slane %v10519, %v10532
  %v10534 = vcombine.high %v10526, %v10526
  %v10535 = vcombine.high %v10533, %v10533
  %v10537 = vunpack.c.l.s4 1966171168
  %v10538 = vunpack.c.0.s8 %v10537
  %v10539 = vlaneseq
  %v10540 = vshrl.u32 %v10539, 7
  %v10541 = vsub.s32 %v10538, %v10540
  %v10542 = vrot.slane %v10526, %v10541
  %v10544 = vunpack.c.l.s4 1966171168
  %v10545 = vunpack.c.0.s8 %v10544
  %v10546 = vlaneseq
  %v10547 = vshrl.u32 %v10546, 7
  %v10548 = vsub.s32 %v10545, %v10547
  %v10549 = vrot.slane %v10533, %v10548
  %v10551 = vunpack.c.l.s4 1966171168
  %v10552 = vunpack.c.0.s8 %v10551
  %v10553 = vlaneseq
  %v10554 = vshrl.u32 %v10553, 7
  %v10555 = vsub.s32 %v10552, %v10554
  %v10556 = vrot.slane %v10534, %v10555
  %v10558 = vunpack.c.l.s4 1966171168
  %v10559 = vunpack.c.0.s8 %v10558
  %v10560 = vlaneseq
  %v10561 = vshrl.u32 %v10560, 7
  %v10562 = vsub.s32 %v10559, %v10561
  %v10563 = vrot.slane %v10535, %v10562
  %v10564 = vcombine.high %v10542, %v10542
  %v10565 = vcombine.high %v10549, %v10549
  %v10566 = vcombine.high %v10556, %v10556
  %v10567 = vcombine.high %v10563, %v10563
  %v10568 = vcombine.high %v9746, %v9746
  %v10570 = vunpack.c.l.s4 1966171168
  %v10571 = vunpack.c.0.s8 %v10570
  %v10572 = vlaneseq
  %v10573 = vshrl.u32 %v10572, 7
  %v10574 = vsub.s32 %v10571, %v10573
  %v10575 = vrot.slane %v9746, %v10574
  %v10577 = vunpack.c.l.s4 1966171168
  %v10578 = vunpack.c.0.s8 %v10577
  %v10579 = vlaneseq
  %v10580 = vshrl.u32 %v10579, 7
  %v10581 = vsub.s32 %v10578, %v10580
  %v10582 = vrot.slane %v10568, %v10581
  %v10583 = vcombine.high %v10575, %v10575
  %v10584 = vcombine.high %v10582, %v10582
  %v10586 = vunpack.c.l.s4 1966171168
  %v10587 = vunpack.c.0.s8 %v10586
  %v10588 = vlaneseq
  %v10589 = vshrl.u32 %v10588, 7
  %v10590 = vsub.s32 %v10587, %v10589
  %v10591 = vrot.slane %v10575, %v10590
  %v10593 = vunpack.c.l.s4 1966171168
  %v10594 = vunpack.c.0.s8 %v10593
  %v10595 = vlaneseq
  %v10596 = vshrl.u32 %v10595, 7
  %v10597 = vsub.s32 %v10594, %v10596
  %v10598 = vrot.slane %v10582, %v10597
  %v10600 = vunpack.c.l.s4 1966171168
  %v10601 = vunpack.c.0.s8 %v10600
  %v10602 = vlaneseq
  %v10603 = vshrl.u32 %v10602, 7
  %v10604 = vsub.s32 %v10601, %v10603
  %v10605 = vrot.slane %v10583, %v10604
  %v10607 = vunpack.c.l.s4 1966171168
  %v10608 = vunpack.c.0.s8 %v10607
  %v10609 = vlaneseq
  %v10610 = vshrl.u32 %v10609, 7
  %v10611 = vsub.s32 %v10608, %v10610
  %v10612 = vrot.slane %v10584, %v10611
  %v10613 = vcombine.high %v10591, %v10591
  %v10614 = vcombine.high %v10598, %v10598
  %v10615 = vcombine.high %v10605, %v10605
  %v10616 = vcombine.high %v10612, %v10612
  %v10617 = vlaneseq
  %v10618 = vshrl.u32 %v10617, 7
  %v10619 = vsub.s32 0, %v10618
  %v10620 = vrot.slane %v9856, %v10619
  %v10621 = vlaneseq
  %v10622 = vshrl.u32 %v10621, 7
  %v10623 = vsub.s32 0, %v10622
  %v10624 = vrot.slane %v9870, %v10623
  %v10625 = vlaneseq
  %v10626 = vshrl.u32 %v10625, 7
  %v10627 = vsub.s32 0, %v10626
  %v10628 = vrot.slane %v9878, %v10627
  %v10629 = vlaneseq
  %v10630 = vshrl.u32 %v10629, 7
  %v10631 = vsub.s32 0, %v10630
  %v10632 = vrot.slane %v9880, %v10631
  %v10633 = vlaneseq
  %v10634 = vshrl.u32 %v10633, 7
  %v10635 = vsub.s32 0, %v10634
  %v10636 = vrot.slane %v9863, %v10635
  %v10637 = vlaneseq
  %v10638 = vshrl.u32 %v10637, 7
  %v10639 = vsub.s32 0, %v10638
  %v10640 = vrot.slane %v9877, %v10639
  %v10641 = vlaneseq
  %v10642 = vshrl.u32 %v10641, 7
  %v10643 = vsub.s32 0, %v10642
  %v10644 = vrot.slane %v9879, %v10643
  %v10645 = vlaneseq
  %v10646 = vshrl.u32 %v10645, 7
  %v10647 = vsub.s32 0, %v10646
  %v10648 = vrot.slane %v9881, %v10647
  %v10649 = vlaneseq
  %v10650 = vshrl.u32 %v10649, 7
  %v10651 = vsub.s32 0, %v10650
  %v10652 = vrot.slane %v9905, %v10651
  %v10653 = vlaneseq
  %v10654 = vshrl.u32 %v10653, 7
  %v10655 = vsub.s32 0, %v10654
  %v10656 = vrot.slane %v9919, %v10655
  %v10657 = vlaneseq
  %v10658 = vshrl.u32 %v10657, 7
  %v10659 = vsub.s32 0, %v10658
  %v10660 = vrot.slane %v9927, %v10659
  %v10661 = vlaneseq
  %v10662 = vshrl.u32 %v10661, 7
  %v10663 = vsub.s32 0, %v10662
  %v10664 = vrot.slane %v9929, %v10663
  %v10665 = vlaneseq
  %v10666 = vshrl.u32 %v10665, 7
  %v10667 = vsub.s32 0, %v10666
  %v10668 = vrot.slane %v9912, %v10667
  %v10669 = vlaneseq
  %v10670 = vshrl.u32 %v10669, 7
  %v10671 = vsub.s32 0, %v10670
  %v10672 = vrot.slane %v9926, %v10671
  %v10673 = vlaneseq
  %v10674 = vshrl.u32 %v10673, 7
  %v10675 = vsub.s32 0, %v10674
  %v10676 = vrot.slane %v9928, %v10675
  %v10677 = vlaneseq
  %v10678 = vshrl.u32 %v10677, 7
  %v10679 = vsub.s32 0, %v10678
  %v10680 = vrot.slane %v9930, %v10679
  %v10681 = vlaneseq
  %v10682 = vshrl.u32 %v10681, 7
  %v10683 = vsub.s32 0, %v10682
  %v10684 = vrot.slane %v9954, %v10683
  %v10685 = vlaneseq
  %v10686 = vshrl.u32 %v10685, 7
  %v10687 = vsub.s32 0, %v10686
  %v10688 = vrot.slane %v9968, %v10687
  %v10689 = vlaneseq
  %v10690 = vshrl.u32 %v10689, 7
  %v10691 = vsub.s32 0, %v10690
  %v10692 = vrot.slane %v9976, %v10691
  %v10693 = vlaneseq
  %v10694 = vshrl.u32 %v10693, 7
  %v10695 = vsub.s32 0, %v10694
  %v10696 = vrot.slane %v9978, %v10695
  %v10697 = vlaneseq
  %v10698 = vshrl.u32 %v10697, 7
  %v10699 = vsub.s32 0, %v10698
  %v10700 = vrot.slane %v9961, %v10699
  %v10701 = vlaneseq
  %v10702 = vshrl.u32 %v10701, 7
  %v10703 = vsub.s32 0, %v10702
  %v10704 = vrot.slane %v9975, %v10703
  %v10705 = vlaneseq
  %v10706 = vshrl.u32 %v10705, 7
  %v10707 = vsub.s32 0, %v10706
  %v10708 = vrot.slane %v9977, %v10707
  %v10709 = vlaneseq
  %v10710 = vshrl.u32 %v10709, 7
  %v10711 = vsub.s32 0, %v10710
  %v10712 = vrot.slane %v9979, %v10711
  %v10713 = vlaneseq
  %v10714 = vshrl.u32 %v10713, 7
  %v10715 = vsub.s32 0, %v10714
  %v10716 = vrot.slane %v10003, %v10715
  %v10717 = vlaneseq
  %v10718 = vshrl.u32 %v10717, 7
  %v10719 = vsub.s32 0, %v10718
  %v10720 = vrot.slane %v10017, %v10719
  %v10721 = vlaneseq
  %v10722 = vshrl.u32 %v10721, 7
  %v10723 = vsub.s32 0, %v10722
  %v10724 = vrot.slane %v10025, %v10723
  %v10725 = vlaneseq
  %v10726 = vshrl.u32 %v10725, 7
  %v10727 = vsub.s32 0, %v10726
  %v10728 = vrot.slane %v10027, %v10727
  %v10729 = vlaneseq
  %v10730 = vshrl.u32 %v10729, 7
  %v10731 = vsub.s32 0, %v10730
  %v10732 = vrot.slane %v10010, %v10731
  %v10733 = vlaneseq
  %v10734 = vshrl.u32 %v10733, 7
  %v10735 = vsub.s32 0, %v10734
  %v10736 = vrot.slane %v10024, %v10735
  %v10737 = vlaneseq
  %v10738 = vshrl.u32 %v10737, 7
  %v10739 = vsub.s32 0, %v10738
  %v10740 = vrot.slane %v10026, %v10739
  %v10741 = vlaneseq
  %v10742 = vshrl.u32 %v10741, 7
  %v10743 = vsub.s32 0, %v10742
  %v10744 = vrot.slane %v10028, %v10743
  %v10745 = vlaneseq
  %v10746 = vshrl.u32 %v10745, 7
  %v10747 = vsub.s32 0, %v10746
  %v10748 = vrot.slane %v10052, %v10747
  %v10749 = vlaneseq
  %v10750 = vshrl.u32 %v10749, 7
  %v10751 = vsub.s32 0, %v10750
  %v10752 = vrot.slane %v10066, %v10751
  %v10753 = vlaneseq
  %v10754 = vshrl.u32 %v10753, 7
  %v10755 = vsub.s32 0, %v10754
  %v10756 = vrot.slane %v10074, %v10755
  %v10757 = vlaneseq
  %v10758 = vshrl.u32 %v10757, 7
  %v10759 = vsub.s32 0, %v10758
  %v10760 = vrot.slane %v10076, %v10759
  %v10761 = vlaneseq
  %v10762 = vshrl.u32 %v10761, 7
  %v10763 = vsub.s32 0, %v10762
  %v10764 = vrot.slane %v10059, %v10763
  %v10765 = vlaneseq
  %v10766 = vshrl.u32 %v10765, 7
  %v10767 = vsub.s32 0, %v10766
  %v10768 = vrot.slane %v10073, %v10767
  %v10769 = vlaneseq
  %v10770 = vshrl.u32 %v10769, 7
  %v10771 = vsub.s32 0, %v10770
  %v10772 = vrot.slane %v10075, %v10771
  %v10773 = vlaneseq
  %v10774 = vshrl.u32 %v10773, 7
  %v10775 = vsub.s32 0, %v10774
  %v10776 = vrot.slane %v10077, %v10775
  %v10777 = vlaneseq
  %v10778 = vshrl.u32 %v10777, 7
  %v10779 = vsub.s32 0, %v10778
  %v10780 = vrot.slane %v10101, %v10779
  %v10781 = vlaneseq
  %v10782 = vshrl.u32 %v10781, 7
  %v10783 = vsub.s32 0, %v10782
  %v10784 = vrot.slane %v10115, %v10783
  %v10785 = vlaneseq
  %v10786 = vshrl.u32 %v10785, 7
  %v10787 = vsub.s32 0, %v10786
  %v10788 = vrot.slane %v10123, %v10787
  %v10789 = vlaneseq
  %v10790 = vshrl.u32 %v10789, 7
  %v10791 = vsub.s32 0, %v10790
  %v10792 = vrot.slane %v10125, %v10791
  %v10793 = vlaneseq
  %v10794 = vshrl.u32 %v10793, 7
  %v10795 = vsub.s32 0, %v10794
  %v10796 = vrot.slane %v10108, %v10795
  %v10797 = vlaneseq
  %v10798 = vshrl.u32 %v10797, 7
  %v10799 = vsub.s32 0, %v10798
  %v10800 = vrot.slane %v10122, %v10799
  %v10801 = vlaneseq
  %v10802 = vshrl.u32 %v10801, 7
  %v10803 = vsub.s32 0, %v10802
  %v10804 = vrot.slane %v10124, %v10803
  %v10805 = vlaneseq
  %v10806 = vshrl.u32 %v10805, 7
  %v10807 = vsub.s32 0, %v10806
  %v10808 = vrot.slane %v10126, %v10807
  %v10809 = vlaneseq
  %v10810 = vshrl.u32 %v10809, 7
  %v10811 = vsub.s32 0, %v10810
  %v10812 = vrot.slane %v10150, %v10811
  %v10813 = vlaneseq
  %v10814 = vshrl.u32 %v10813, 7
  %v10815 = vsub.s32 0, %v10814
  %v10816 = vrot.slane %v10164, %v10815
  %v10817 = vlaneseq
  %v10818 = vshrl.u32 %v10817, 7
  %v10819 = vsub.s32 0, %v10818
  %v10820 = vrot.slane %v10172, %v10819
  %v10821 = vlaneseq
  %v10822 = vshrl.u32 %v10821, 7
  %v10823 = vsub.s32 0, %v10822
  %v10824 = vrot.slane %v10174, %v10823
  %v10825 = vlaneseq
  %v10826 = vshrl.u32 %v10825, 7
  %v10827 = vsub.s32 0, %v10826
  %v10828 = vrot.slane %v10157, %v10827
  %v10829 = vlaneseq
  %v10830 = vshrl.u32 %v10829, 7
  %v10831 = vsub.s32 0, %v10830
  %v10832 = vrot.slane %v10171, %v10831
  %v10833 = vlaneseq
  %v10834 = vshrl.u32 %v10833, 7
  %v10835 = vsub.s32 0, %v10834
  %v10836 = vrot.slane %v10173, %v10835
  %v10837 = vlaneseq
  %v10838 = vshrl.u32 %v10837, 7
  %v10839 = vsub.s32 0, %v10838
  %v10840 = vrot.slane %v10175, %v10839
  %v10841 = vlaneseq
  %v10842 = vshrl.u32 %v10841, 7
  %v10843 = vsub.s32 0, %v10842
  %v10844 = vrot.slane %v10199, %v10843
  %v10845 = vlaneseq
  %v10846 = vshrl.u32 %v10845, 7
  %v10847 = vsub.s32 0, %v10846
  %v10848 = vrot.slane %v10213, %v10847
  %v10849 = vlaneseq
  %v10850 = vshrl.u32 %v10849, 7
  %v10851 = vsub.s32 0, %v10850
  %v10852 = vrot.slane %v10221, %v10851
  %v10853 = vlaneseq
  %v10854 = vshrl.u32 %v10853, 7
  %v10855 = vsub.s32 0, %v10854
  %v10856 = vrot.slane %v10223, %v10855
  %v10857 = vlaneseq
  %v10858 = vshrl.u32 %v10857, 7
  %v10859 = vsub.s32 0, %v10858
  %v10860 = vrot.slane %v10206, %v10859
  %v10861 = vlaneseq
  %v10862 = vshrl.u32 %v10861, 7
  %v10863 = vsub.s32 0, %v10862
  %v10864 = vrot.slane %v10220, %v10863
  %v10865 = vlaneseq
  %v10866 = vshrl.u32 %v10865, 7
  %v10867 = vsub.s32 0, %v10866
  %v10868 = vrot.slane %v10222, %v10867
  %v10869 = vlaneseq
  %v10870 = vshrl.u32 %v10869, 7
  %v10871 = vsub.s32 0, %v10870
  %v10872 = vrot.slane %v10224, %v10871
  %v10873 = vlaneseq
  %v10874 = vshrl.u32 %v10873, 7
  %v10875 = vsub.s32 0, %v10874
  %v10876 = vrot.slane %v10248, %v10875
  %v10877 = vlaneseq
  %v10878 = vshrl.u32 %v10877, 7
  %v10879 = vsub.s32 0, %v10878
  %v10880 = vrot.slane %v10262, %v10879
  %v10881 = vlaneseq
  %v10882 = vshrl.u32 %v10881, 7
  %v10883 = vsub.s32 0, %v10882
  %v10884 = vrot.slane %v10270, %v10883
  %v10885 = vlaneseq
  %v10886 = vshrl.u32 %v10885, 7
  %v10887 = vsub.s32 0, %v10886
  %v10888 = vrot.slane %v10272, %v10887
  %v10889 = vlaneseq
  %v10890 = vshrl.u32 %v10889, 7
  %v10891 = vsub.s32 0, %v10890
  %v10892 = vrot.slane %v10255, %v10891
  %v10893 = vlaneseq
  %v10894 = vshrl.u32 %v10893, 7
  %v10895 = vsub.s32 0, %v10894
  %v10896 = vrot.slane %v10269, %v10895
  %v10897 = vlaneseq
  %v10898 = vshrl.u32 %v10897, 7
  %v10899 = vsub.s32 0, %v10898
  %v10900 = vrot.slane %v10271, %v10899
  %v10901 = vlaneseq
  %v10902 = vshrl.u32 %v10901, 7
  %v10903 = vsub.s32 0, %v10902
  %v10904 = vrot.slane %v10273, %v10903
  %v10905 = vlaneseq
  %v10906 = vshrl.u32 %v10905, 7
  %v10907 = vsub.s32 0, %v10906
  %v10908 = vrot.slane %v10297, %v10907
  %v10909 = vlaneseq
  %v10910 = vshrl.u32 %v10909, 7
  %v10911 = vsub.s32 0, %v10910
  %v10912 = vrot.slane %v10311, %v10911
  %v10913 = vlaneseq
  %v10914 = vshrl.u32 %v10913, 7
  %v10915 = vsub.s32 0, %v10914
  %v10916 = vrot.slane %v10319, %v10915
  %v10917 = vlaneseq
  %v10918 = vshrl.u32 %v10917, 7
  %v10919 = vsub.s32 0, %v10918
  %v10920 = vrot.slane %v10321, %v10919
  %v10921 = vlaneseq
  %v10922 = vshrl.u32 %v10921, 7
  %v10923 = vsub.s32 0, %v10922
  %v10924 = vrot.slane %v10304, %v10923
  %v10925 = vlaneseq
  %v10926 = vshrl.u32 %v10925, 7
  %v10927 = vsub.s32 0, %v10926
  %v10928 = vrot.slane %v10318, %v10927
  %v10929 = vlaneseq
  %v10930 = vshrl.u32 %v10929, 7
  %v10931 = vsub.s32 0, %v10930
  %v10932 = vrot.slane %v10320, %v10931
  %v10933 = vlaneseq
  %v10934 = vshrl.u32 %v10933, 7
  %v10935 = vsub.s32 0, %v10934
  %v10936 = vrot.slane %v10322, %v10935
  %v10937 = vlaneseq
  %v10938 = vshrl.u32 %v10937, 7
  %v10939 = vsub.s32 0, %v10938
  %v10940 = vrot.slane %v10346, %v10939
  %v10941 = vlaneseq
  %v10942 = vshrl.u32 %v10941, 7
  %v10943 = vsub.s32 0, %v10942
  %v10944 = vrot.slane %v10360, %v10943
  %v10945 = vlaneseq
  %v10946 = vshrl.u32 %v10945, 7
  %v10947 = vsub.s32 0, %v10946
  %v10948 = vrot.slane %v10368, %v10947
  %v10949 = vlaneseq
  %v10950 = vshrl.u32 %v10949, 7
  %v10951 = vsub.s32 0, %v10950
  %v10952 = vrot.slane %v10370, %v10951
  %v10953 = vlaneseq
  %v10954 = vshrl.u32 %v10953, 7
  %v10955 = vsub.s32 0, %v10954
  %v10956 = vrot.slane %v10353, %v10955
  %v10957 = vlaneseq
  %v10958 = vshrl.u32 %v10957, 7
  %v10959 = vsub.s32 0, %v10958
  %v10960 = vrot.slane %v10367, %v10959
  %v10961 = vlaneseq
  %v10962 = vshrl.u32 %v10961, 7
  %v10963 = vsub.s32 0, %v10962
  %v10964 = vrot.slane %v10369, %v10963
  %v10965 = vlaneseq
  %v10966 = vshrl.u32 %v10965, 7
  %v10967 = vsub.s32 0, %v10966
  %v10968 = vrot.slane %v10371, %v10967
  %v10969 = vlaneseq
  %v10970 = vshrl.u32 %v10969, 7
  %v10971 = vsub.s32 0, %v10970
  %v10972 = vrot.slane %v10395, %v10971
  %v10973 = vlaneseq
  %v10974 = vshrl.u32 %v10973, 7
  %v10975 = vsub.s32 0, %v10974
  %v10976 = vrot.slane %v10409, %v10975
  %v10977 = vlaneseq
  %v10978 = vshrl.u32 %v10977, 7
  %v10979 = vsub.s32 0, %v10978
  %v10980 = vrot.slane %v10417, %v10979
  %v10981 = vlaneseq
  %v10982 = vshrl.u32 %v10981, 7
  %v10983 = vsub.s32 0, %v10982
  %v10984 = vrot.slane %v10419, %v10983
  %v10985 = vlaneseq
  %v10986 = vshrl.u32 %v10985, 7
  %v10987 = vsub.s32 0, %v10986
  %v10988 = vrot.slane %v10402, %v10987
  %v10989 = vlaneseq
  %v10990 = vshrl.u32 %v10989, 7
  %v10991 = vsub.s32 0, %v10990
  %v10992 = vrot.slane %v10416, %v10991
  %v10993 = vlaneseq
  %v10994 = vshrl.u32 %v10993, 7
  %v10995 = vsub.s32 0, %v10994
  %v10996 = vrot.slane %v10418, %v10995
  %v10997 = vlaneseq
  %v10998 = vshrl.u32 %v10997, 7
  %v10999 = vsub.s32 0, %v10998
  %v11000 = vrot.slane %v10420, %v10999
  %v11001 = vlaneseq
  %v11002 = vshrl.u32 %v11001, 7
  %v11003 = vsub.s32 0, %v11002
  %v11004 = vrot.slane %v10444, %v11003
  %v11005 = vlaneseq
  %v11006 = vshrl.u32 %v11005, 7
  %v11007 = vsub.s32 0, %v11006
  %v11008 = vrot.slane %v10458, %v11007
  %v11009 = vlaneseq
  %v11010 = vshrl.u32 %v11009, 7
  %v11011 = vsub.s32 0, %v11010
  %v11012 = vrot.slane %v10466, %v11011
  %v11013 = vlaneseq
  %v11014 = vshrl.u32 %v11013, 7
  %v11015 = vsub.s32 0, %v11014
  %v11016 = vrot.slane %v10468, %v11015
  %v11017 = vlaneseq
  %v11018 = vshrl.u32 %v11017, 7
  %v11019 = vsub.s32 0, %v11018
  %v11020 = vrot.slane %v10451, %v11019
  %v11021 = vlaneseq
  %v11022 = vshrl.u32 %v11021, 7
  %v11023 = vsub.s32 0, %v11022
  %v11024 = vrot.slane %v10465, %v11023
  %v11025 = vlaneseq
  %v11026 = vshrl.u32 %v11025, 7
  %v11027 = vsub.s32 0, %v11026
  %v11028 = vrot.slane %v10467, %v11027
  %v11029 = vlaneseq
  %v11030 = vshrl.u32 %v11029, 7
  %v11031 = vsub.s32 0, %v11030
  %v11032 = vrot.slane %v10469, %v11031
  %v11033 = vlaneseq
  %v11034 = vshrl.u32 %v11033, 7
  %v11035 = vsub.s32 0, %v11034
  %v11036 = vrot.slane %v10493, %v11035
  %v11037 = vlaneseq
  %v11038 = vshrl.u32 %v11037, 7
  %v11039 = vsub.s32 0, %v11038
  %v11040 = vrot.slane %v10507, %v11039
  %v11041 = vlaneseq
  %v11042 = vshrl.u32 %v11041, 7
  %v11043 = vsub.s32 0, %v11042
  %v11044 = vrot.slane %v10515, %v11043
  %v11045 = vlaneseq
  %v11046 = vshrl.u32 %v11045, 7
  %v11047 = vsub.s32 0, %v11046
  %v11048 = vrot.slane %v10517, %v11047
  %v11049 = vlaneseq
  %v11050 = vshrl.u32 %v11049, 7
  %v11051 = vsub.s32 0, %v11050
  %v11052 = vrot.slane %v10500, %v11051
  %v11053 = vlaneseq
  %v11054 = vshrl.u32 %v11053, 7
  %v11055 = vsub.s32 0, %v11054
  %v11056 = vrot.slane %v10514, %v11055
  %v11057 = vlaneseq
  %v11058 = vshrl.u32 %v11057, 7
  %v11059 = vsub.s32 0, %v11058
  %v11060 = vrot.slane %v10516, %v11059
  %v11061 = vlaneseq
  %v11062 = vshrl.u32 %v11061, 7
  %v11063 = vsub.s32 0, %v11062
  %v11064 = vrot.slane %v10518, %v11063
  %v11065 = vlaneseq
  %v11066 = vshrl.u32 %v11065, 7
  %v11067 = vsub.s32 0, %v11066
  %v11068 = vrot.slane %v10542, %v11067
  %v11069 = vlaneseq
  %v11070 = vshrl.u32 %v11069, 7
  %v11071 = vsub.s32 0, %v11070
  %v11072 = vrot.slane %v10556, %v11071
  %v11073 = vlaneseq
  %v11074 = vshrl.u32 %v11073, 7
  %v11075 = vsub.s32 0, %v11074
  %v11076 = vrot.slane %v10564, %v11075
  %v11077 = vlaneseq
  %v11078 = vshrl.u32 %v11077, 7
  %v11079 = vsub.s32 0, %v11078
  %v11080 = vrot.slane %v10566, %v11079
  %v11081 = vlaneseq
  %v11082 = vshrl.u32 %v11081, 7
  %v11083 = vsub.s32 0, %v11082
  %v11084 = vrot.slane %v10549, %v11083
  %v11085 = vlaneseq
  %v11086 = vshrl.u32 %v11085, 7
  %v11087 = vsub.s32 0, %v11086
  %v11088 = vrot.slane %v10563, %v11087
  %v11089 = vlaneseq
  %v11090 = vshrl.u32 %v11089, 7
  %v11091 = vsub.s32 0, %v11090
  %v11092 = vrot.slane %v10565, %v11091
  %v11093 = vlaneseq
  %v11094 = vshrl.u32 %v11093, 7
  %v11095 = vsub.s32 0, %v11094
  %v11096 = vrot.slane %v10567, %v11095
  %v11097 = vlaneseq
  %v11098 = vshrl.u32 %v11097, 7
  %v11099 = vsub.s32 0, %v11098
  %v11100 = vrot.slane %v10591, %v11099
  %v11101 = vlaneseq
  %v11102 = vshrl.u32 %v11101, 7
  %v11103 = vsub.s32 0, %v11102
  %v11104 = vrot.slane %v10605, %v11103
  %v11105 = vlaneseq
  %v11106 = vshrl.u32 %v11105, 7
  %v11107 = vsub.s32 0, %v11106
  %v11108 = vrot.slane %v10613, %v11107
  %v11109 = vlaneseq
  %v11110 = vshrl.u32 %v11109, 7
  %v11111 = vsub.s32 0, %v11110
  %v11112 = vrot.slane %v10615, %v11111
  %v11113 = vlaneseq
  %v11114 = vshrl.u32 %v11113, 7
  %v11115 = vsub.s32 0, %v11114
  %v11116 = vrot.slane %v10598, %v11115
  %v11117 = vlaneseq
  %v11118 = vshrl.u32 %v11117, 7
  %v11119 = vsub.s32 0, %v11118
  %v11120 = vrot.slane %v10612, %v11119
  %v11121 = vlaneseq
  %v11122 = vshrl.u32 %v11121, 7
  %v11123 = vsub.s32 0, %v11122
  %v11124 = vrot.slane %v10614, %v11123
  %v11125 = vlaneseq
  %v11126 = vshrl.u32 %v11125, 7
  %v11127 = vsub.s32 0, %v11126
  %v11128 = vrot.slane %v10616, %v11127
  %v11261 = vunpack.c.l.b16 %v9813
  %v11262 = vunpack.c.l.b16 %v9814
  %v11263 = vunpack.c.l.b16 %v9815
  %v11264 = vunpack.c.l.b16 %v9816
  %v11265 = vpack.c.b16 %v11262, %v11261
  %v11266 = vpack.c.b16 %v11264, %v11263
  %vm11269 = vcmask 261120
  %v11271 = vsel %vm11269, %v9749, 0
  %v11274 = vsel %vm11269, %v9750, 0
  %v11277 = vsel %vm11269, %v9751, 0
  %v11280 = vsel %vm11269, %v9752, 0
  %v11283 = vsel %vm11269, %v9753, 0
  %v11286 = vsel %vm11269, %v9754, 0
  %v11289 = vsel %vm11269, %v9755, 0
  %v11292 = vsel %vm11269, %v9756, 0
  %v11295 = vsel %vm11269, %v9757, 0
  %v11298 = vsel %vm11269, %v9758, 0
  %v11301 = vsel %vm11269, %v9759, 0
  %v11304 = vsel %vm11269, %v9760, 0
  %v11307 = vsel %vm11269, %v9761, 0
  %v11310 = vsel %vm11269, %v9762, 0
  %v11313 = vsel %vm11269, %v9763, 0
  %v11316 = vsel %vm11269, %v9764, 0
  %v11319 = vsel %vm11269, %v9765, 0
  %v11322 = vsel %vm11269, %v9766, 0
  %v11325 = vsel %vm11269, %v9767, 0
  %v11328 = vsel %vm11269, %v9768, 0
  %v11331 = vsel %vm11269, %v9769, 0
  %v11334 = vsel %vm11269, %v9770, 0
  %v11337 = vsel %vm11269, %v9771, 0
  %v11340 = vsel %vm11269, %v9772, 0
  %v11343 = vsel %vm11269, %v9773, 0
  %v11346 = vsel %vm11269, %v9774, 0
  %v11349 = vsel %vm11269, %v9775, 0
  %v11352 = vsel %vm11269, %v9776, 0
  %v11355 = vsel %vm11269, %v9777, 0
  %v11358 = vsel %vm11269, %v9778, 0
  %v11361 = vsel %vm11269, %v9779, 0
  %v11364 = vsel %vm11269, %v9780, 0
  %v11367 = vsel %vm11269, %v9781, 0
  %v11370 = vsel %vm11269, %v9782, 0
  %v11373 = vsel %vm11269, %v9783, 0
  %v11376 = vsel %vm11269, %v9784, 0
  %v11379 = vsel %vm11269, %v9785, 0
  %v11382 = vsel %vm11269, %v9786, 0
  %v11385 = vsel %vm11269, %v9787, 0
  %v11388 = vsel %vm11269, %v9788, 0
  %v11391 = vsel %vm11269, %v9789, 0
  %v11394 = vsel %vm11269, %v9790, 0
  %v11397 = vsel %vm11269, %v9791, 0
  %v11400 = vsel %vm11269, %v9792, 0
  %v11403 = vsel %vm11269, %v9793, 0
  %v11406 = vsel %vm11269, %v9794, 0
  %v11409 = vsel %vm11269, %v9795, 0
  %v11412 = vsel %vm11269, %v9796, 0
  %v11415 = vsel %vm11269, %v9797, 0
  %v11418 = vsel %vm11269, %v9798, 0
  %v11421 = vsel %vm11269, %v9799, 0
  %v11424 = vsel %vm11269, %v9800, 0
  %v11427 = vsel %vm11269, %v9801, 0
  %v11430 = vsel %vm11269, %v9802, 0
  %v11433 = vsel %vm11269, %v9803, 0
  %v11436 = vsel %vm11269, %v9804, 0
  %v11439 = vsel %vm11269, %v9805, 0
  %v11442 = vsel %vm11269, %v9806, 0
  %v11445 = vsel %vm11269, %v9807, 0
  %v11448 = vsel %vm11269, %v9808, 0
  %v11451 = vsel %vm11269, %v9809, 0
  %v11454 = vsel %vm11269, %v9810, 0
  %v11457 = vsel %vm11269, %v9811, 0
  %v11460 = vsel %vm11269, %v9812, 0
  %11462 = vmatprep.subr.bf16.mxu0 0
  %11463 = vmatpush1.bf16.msra.mxu0 %v11265
  %11464 = vmatprep.subr.bf16.mxu0 0
  %11465 = vmatpush1.bf16.msra.mxu0 %v11266
  %11466 = vmatprep.subr.bf16.mxu0 0
  %11467 = vmatpush1.bf16.msra.mxu0 0
  %11468 = vmatprep.subr.bf16.mxu0 0
  %11469 = vmatpush1.bf16.msra.mxu0 0
  %11470 = vmatprep.subr.bf16.mxu0 0
  %11471 = vmatpush1.bf16.msra.mxu0 0
  %11472 = vmatprep.subr.bf16.mxu0 0
  %11473 = vmatpush1.bf16.msra.mxu0 0
  %11474 = vmatprep.subr.bf16.mxu0 0
  %11475 = vmatpush1.bf16.msra.mxu0 0
  %11476 = vmatprep.subr.bf16.mxu0 0
  %11477 = vmatpush1.bf16.msra.mxu0 0
  %11478 = vmatprep.subr.bf16.mxu0 0
  %11479 = vmatpush1.bf16.msra.mxu0 0
  %11480 = vmatprep.subr.bf16.mxu0 0
  %11481 = vmatpush1.bf16.msra.mxu0 0
  %11482 = vmatprep.subr.bf16.mxu0 0
  %11483 = vmatpush1.bf16.msra.mxu0 0
  %11484 = vmatprep.subr.bf16.mxu0 0
  %11485 = vmatpush1.bf16.msra.mxu0 0
  %11486 = vmatprep.subr.bf16.mxu0 0
  %11487 = vmatpush1.bf16.msra.mxu0 0
  %11488 = vmatprep.subr.bf16.mxu0 0
  %11489 = vmatpush1.bf16.msra.mxu0 0
  %11490 = vmatprep.subr.bf16.mxu0 0
  %11491 = vmatpush1.bf16.msra.mxu0 0
  %11492 = vmatprep.subr.bf16.mxu0 0
  %11493 = vmatpush1.bf16.msra.mxu0 0
  %11494 = vmatprep.mubr.bf16.mxu0 0
  %11495 = vmatmul.mubr.bf16.gmra.mrb[0].mxu0 %v11271
  %v11496 = vpop.f32.mrb[0].mxu0
  %v11497 = vadd.f32 %v10620, %v11496
  %v11498 = vpop.f32.mrb[0].mxu0
  %v11499 = vpop.f32.mrb[0].mxu0
  %v11500 = vadd.f32 %v10624, %v11499
  %v11501 = vpop.f32.mrb[0].mxu0
  %11502 = vmatprep.mubr.bf16.mxu0 0
  %11503 = vmatmul.mubr.bf16.gmra.mrb[0].mxu0 %v11274
  %v11504 = vpop.f32.mrb[0].mxu0
  %v11505 = vadd.f32 %v10628, %v11504
  %v11506 = vpop.f32.mrb[0].mxu0
  %v11507 = vpop.f32.mrb[0].mxu0
  %v11508 = vadd.f32 %v10632, %v11507
  %v11509 = vpop.f32.mrb[0].mxu0
  %11510 = vmatprep.mubr.bf16.mxu0 0
  %11511 = vmatmul.mubr.bf16.gmra.mrb[0].mxu0 %v11277
  %v11512 = vpop.f32.mrb[0].mxu0
  %v11513 = vadd.f32 %v10636, %v11512
  %v11514 = vpop.f32.mrb[0].mxu0
  %v11515 = vpop.f32.mrb[0].mxu0
  %v11516 = vadd.f32 %v10640, %v11515
  %v11517 = vpop.f32.mrb[0].mxu0
  %11518 = vmatprep.mubr.bf16.mxu0 0
  %11519 = vmatmul.mubr.bf16.gmra.mrb[0].mxu0 %v11280
  %v11520 = vpop.f32.mrb[0].mxu0
  %v11521 = vadd.f32 %v10644, %v11520
  %v11522 = vpop.f32.mrb[0].mxu0
  %v11523 = vpop.f32.mrb[0].mxu0
  %v11524 = vadd.f32 %v10648, %v11523
  %v11525 = vpop.f32.mrb[0].mxu0
  %11526 = vmatprep.mubr.bf16.mxu0 0
  %11527 = vmatmul.mubr.bf16.gmra.mrb[0].mxu0 %v11283
  %v11528 = vpop.f32.mrb[0].mxu0
  %v11529 = vadd.f32 %v10652, %v11528
  %v11530 = vpop.f32.mrb[0].mxu0
  %v11531 = vpop.f32.mrb[0].mxu0
  %v11532 = vadd.f32 %v10656, %v11531
  %v11533 = vpop.f32.mrb[0].mxu0
  %11534 = vmatprep.mubr.bf16.mxu0 0
  %11535 = vmatmul.mubr.bf16.gmra.mrb[0].mxu0 %v11286
  %v11536 = vpop.f32.mrb[0].mxu0
  %v11537 = vadd.f32 %v10660, %v11536
  %v11538 = vpop.f32.mrb[0].mxu0
  %v11539 = vpop.f32.mrb[0].mxu0
  %v11540 = vadd.f32 %v10664, %v11539
  %v11541 = vpop.f32.mrb[0].mxu0
  %11542 = vmatprep.mubr.bf16.mxu0 0
  %11543 = vmatmul.mubr.bf16.gmra.mrb[0].mxu0 %v11289
  %v11544 = vpop.f32.mrb[0].mxu0
  %v11545 = vadd.f32 %v10668, %v11544
  %v11546 = vpop.f32.mrb[0].mxu0
  %v11547 = vpop.f32.mrb[0].mxu0
  %v11548 = vadd.f32 %v10672, %v11547
  %v11549 = vpop.f32.mrb[0].mxu0
  %11550 = vmatprep.mubr.bf16.mxu0 0
  %11551 = vmatmul.mubr.bf16.gmra.mrb[0].mxu0 %v11292
  %v11552 = vpop.f32.mrb[0].mxu0
  %v11553 = vadd.f32 %v10676, %v11552
  %v11554 = vpop.f32.mrb[0].mxu0
  %v11555 = vpop.f32.mrb[0].mxu0
  %v11556 = vadd.f32 %v10680, %v11555
  %v11557 = vpop.f32.mrb[0].mxu0
  %11558 = vmatprep.mubr.bf16.mxu0 0
  %11559 = vmatmul.mubr.bf16.gmra.mrb[0].mxu0 %v11295
  %v11560 = vpop.f32.mrb[0].mxu0
  %v11561 = vadd.f32 %v10684, %v11560
  %v11562 = vpop.f32.mrb[0].mxu0
  %v11563 = vpop.f32.mrb[0].mxu0
  %v11564 = vadd.f32 %v10688, %v11563
  %v11565 = vpop.f32.mrb[0].mxu0
  %11566 = vmatprep.mubr.bf16.mxu0 0
  %11567 = vmatmul.mubr.bf16.gmra.mrb[0].mxu0 %v11298
  %v11568 = vpop.f32.mrb[0].mxu0
  %v11569 = vadd.f32 %v10692, %v11568
  %v11570 = vpop.f32.mrb[0].mxu0
  %v11571 = vpop.f32.mrb[0].mxu0
  %v11572 = vadd.f32 %v10696, %v11571
  %v11573 = vpop.f32.mrb[0].mxu0
  %11574 = vmatprep.mubr.bf16.mxu0 0
  %11575 = vmatmul.mubr.bf16.gmra.mrb[0].mxu0 %v11301
  %v11576 = vpop.f32.mrb[0].mxu0
  %v11577 = vadd.f32 %v10700, %v11576
  %v11578 = vpop.f32.mrb[0].mxu0
  %v11579 = vpop.f32.mrb[0].mxu0
  %v11580 = vadd.f32 %v10704, %v11579
  %v11581 = vpop.f32.mrb[0].mxu0
  %11582 = vmatprep.mubr.bf16.mxu0 0
  %11583 = vmatmul.mubr.bf16.gmra.mrb[0].mxu0 %v11304
  %v11584 = vpop.f32.mrb[0].mxu0
  %v11585 = vadd.f32 %v10708, %v11584
  %v11586 = vpop.f32.mrb[0].mxu0
  %v11587 = vpop.f32.mrb[0].mxu0
  %v11588 = vadd.f32 %v10712, %v11587
  %v11589 = vpop.f32.mrb[0].mxu0
  %11590 = vmatprep.mubr.bf16.mxu0 0
  %11591 = vmatmul.mubr.bf16.gmra.mrb[0].mxu0 %v11307
  %v11592 = vpop.f32.mrb[0].mxu0
  %v11593 = vadd.f32 %v10716, %v11592
  %v11594 = vpop.f32.mrb[0].mxu0
  %v11595 = vpop.f32.mrb[0].mxu0
  %v11596 = vadd.f32 %v10720, %v11595
  %v11597 = vpop.f32.mrb[0].mxu0
  %11598 = vmatprep.mubr.bf16.mxu0 0
  %11599 = vmatmul.mubr.bf16.gmra.mrb[0].mxu0 %v11310
  %v11600 = vpop.f32.mrb[0].mxu0
  %v11601 = vadd.f32 %v10724, %v11600
  %v11602 = vpop.f32.mrb[0].mxu0
  %v11603 = vpop.f32.mrb[0].mxu0
  %v11604 = vadd.f32 %v10728, %v11603
  %v11605 = vpop.f32.mrb[0].mxu0
  %11606 = vmatprep.mubr.bf16.mxu0 0
  %11607 = vmatmul.mubr.bf16.gmra.mrb[0].mxu0 %v11313
  %v11608 = vpop.f32.mrb[0].mxu0
  %v11609 = vadd.f32 %v10732, %v11608
  %v11610 = vpop.f32.mrb[0].mxu0
  %v11611 = vpop.f32.mrb[0].mxu0
  %v11612 = vadd.f32 %v10736, %v11611
  %v11613 = vpop.f32.mrb[0].mxu0
  %11614 = vmatprep.mubr.bf16.mxu0 0
  %11615 = vmatmul.mubr.bf16.gmra.mrb[0].mxu0 %v11316
  %v11616 = vpop.f32.mrb[0].mxu0
  %v11617 = vadd.f32 %v10740, %v11616
  %v11618 = vpop.f32.mrb[0].mxu0
  %v11619 = vpop.f32.mrb[0].mxu0
  %v11620 = vadd.f32 %v10744, %v11619
  %v11621 = vpop.f32.mrb[0].mxu0
  %11622 = vmatprep.mubr.bf16.mxu0 0
  %11623 = vmatmul.mubr.bf16.gmra.mrb[0].mxu0 %v11319
  %v11624 = vpop.f32.mrb[0].mxu0
  %v11625 = vadd.f32 %v10748, %v11624
  %v11626 = vpop.f32.mrb[0].mxu0
  %v11627 = vpop.f32.mrb[0].mxu0
  %v11628 = vadd.f32 %v10752, %v11627
  %v11629 = vpop.f32.mrb[0].mxu0
  %11630 = vmatprep.mubr.bf16.mxu0 0
  %11631 = vmatmul.mubr.bf16.gmra.mrb[0].mxu0 %v11322
  %v11632 = vpop.f32.mrb[0].mxu0
  %v11633 = vadd.f32 %v10756, %v11632
  %v11634 = vpop.f32.mrb[0].mxu0
  %v11635 = vpop.f32.mrb[0].mxu0
  %v11636 = vadd.f32 %v10760, %v11635
  %v11637 = vpop.f32.mrb[0].mxu0
  %11638 = vmatprep.mubr.bf16.mxu0 0
  %11639 = vmatmul.mubr.bf16.gmra.mrb[0].mxu0 %v11325
  %v11640 = vpop.f32.mrb[0].mxu0
  %v11641 = vadd.f32 %v10764, %v11640
  %v11642 = vpop.f32.mrb[0].mxu0
  %v11643 = vpop.f32.mrb[0].mxu0
  %v11644 = vadd.f32 %v10768, %v11643
  %v11645 = vpop.f32.mrb[0].mxu0
  %11646 = vmatprep.mubr.bf16.mxu0 0
  %11647 = vmatmul.mubr.bf16.gmra.mrb[0].mxu0 %v11328
  %v11648 = vpop.f32.mrb[0].mxu0
  %v11649 = vadd.f32 %v10772, %v11648
  %v11650 = vpop.f32.mrb[0].mxu0
  %v11651 = vpop.f32.mrb[0].mxu0
  %v11652 = vadd.f32 %v10776, %v11651
  %v11653 = vpop.f32.mrb[0].mxu0
  %11654 = vmatprep.mubr.bf16.mxu0 0
  %11655 = vmatmul.mubr.bf16.gmra.mrb[0].mxu0 %v11331
  %v11656 = vpop.f32.mrb[0].mxu0
  %v11657 = vadd.f32 %v10780, %v11656
  %v11658 = vpop.f32.mrb[0].mxu0
  %v11659 = vpop.f32.mrb[0].mxu0
  %v11660 = vadd.f32 %v10784, %v11659
  %v11661 = vpop.f32.mrb[0].mxu0
  %11662 = vmatprep.mubr.bf16.mxu0 0
  %11663 = vmatmul.mubr.bf16.gmra.mrb[0].mxu0 %v11334
  %v11664 = vpop.f32.mrb[0].mxu0
  %v11665 = vadd.f32 %v10788, %v11664
  %v11666 = vpop.f32.mrb[0].mxu0
  %v11667 = vpop.f32.mrb[0].mxu0
  %v11668 = vadd.f32 %v10792, %v11667
  %v11669 = vpop.f32.mrb[0].mxu0
  %11670 = vmatprep.mubr.bf16.mxu0 0
  %11671 = vmatmul.mubr.bf16.gmra.mrb[0].mxu0 %v11337
  %v11672 = vpop.f32.mrb[0].mxu0
  %v11673 = vadd.f32 %v10796, %v11672
  %v11674 = vpop.f32.mrb[0].mxu0
  %v11675 = vpop.f32.mrb[0].mxu0
  %v11676 = vadd.f32 %v10800, %v11675
  %v11677 = vpop.f32.mrb[0].mxu0
  %11678 = vmatprep.mubr.bf16.mxu0 0
  %11679 = vmatmul.mubr.bf16.gmra.mrb[0].mxu0 %v11340
  %v11680 = vpop.f32.mrb[0].mxu0
  %v11681 = vadd.f32 %v10804, %v11680
  %v11682 = vpop.f32.mrb[0].mxu0
  %v11683 = vpop.f32.mrb[0].mxu0
  %v11684 = vadd.f32 %v10808, %v11683
  %v11685 = vpop.f32.mrb[0].mxu0
  %11686 = vmatprep.mubr.bf16.mxu0 0
  %11687 = vmatmul.mubr.bf16.gmra.mrb[0].mxu0 %v11343
  %v11688 = vpop.f32.mrb[0].mxu0
  %v11689 = vadd.f32 %v10812, %v11688
  %v11690 = vpop.f32.mrb[0].mxu0
  %v11691 = vpop.f32.mrb[0].mxu0
  %v11692 = vadd.f32 %v10816, %v11691
  %v11693 = vpop.f32.mrb[0].mxu0
  %11694 = vmatprep.mubr.bf16.mxu0 0
  %11695 = vmatmul.mubr.bf16.gmra.mrb[0].mxu0 %v11346
  %v11696 = vpop.f32.mrb[0].mxu0
  %v11697 = vadd.f32 %v10820, %v11696
  %v11698 = vpop.f32.mrb[0].mxu0
  %v11699 = vpop.f32.mrb[0].mxu0
  %v11700 = vadd.f32 %v10824, %v11699
  %v11701 = vpop.f32.mrb[0].mxu0
  %11702 = vmatprep.mubr.bf16.mxu0 0
  %11703 = vmatmul.mubr.bf16.gmra.mrb[0].mxu0 %v11349
  %v11704 = vpop.f32.mrb[0].mxu0
  %v11705 = vadd.f32 %v10828, %v11704
  %v11706 = vpop.f32.mrb[0].mxu0
  %v11707 = vpop.f32.mrb[0].mxu0
  %v11708 = vadd.f32 %v10832, %v11707
  %v11709 = vpop.f32.mrb[0].mxu0
  %11710 = vmatprep.mubr.bf16.mxu0 0
  %11711 = vmatmul.mubr.bf16.gmra.mrb[0].mxu0 %v11352
  %v11712 = vpop.f32.mrb[0].mxu0
  %v11713 = vadd.f32 %v10836, %v11712
  %v11714 = vpop.f32.mrb[0].mxu0
  %v11715 = vpop.f32.mrb[0].mxu0
  %v11716 = vadd.f32 %v10840, %v11715
  %v11717 = vpop.f32.mrb[0].mxu0
  %11718 = vmatprep.mubr.bf16.mxu0 0
  %11719 = vmatmul.mubr.bf16.gmra.mrb[0].mxu0 %v11355
  %v11720 = vpop.f32.mrb[0].mxu0
  %v11721 = vadd.f32 %v10844, %v11720
  %v11722 = vpop.f32.mrb[0].mxu0
  %v11723 = vpop.f32.mrb[0].mxu0
  %v11724 = vadd.f32 %v10848, %v11723
  %v11725 = vpop.f32.mrb[0].mxu0
  %11726 = vmatprep.mubr.bf16.mxu0 0
  %11727 = vmatmul.mubr.bf16.gmra.mrb[0].mxu0 %v11358
  %v11728 = vpop.f32.mrb[0].mxu0
  %v11729 = vadd.f32 %v10852, %v11728
  %v11730 = vpop.f32.mrb[0].mxu0
  %v11731 = vpop.f32.mrb[0].mxu0
  %v11732 = vadd.f32 %v10856, %v11731
  %v11733 = vpop.f32.mrb[0].mxu0
  %11734 = vmatprep.mubr.bf16.mxu0 0
  %11735 = vmatmul.mubr.bf16.gmra.mrb[0].mxu0 %v11361
  %v11736 = vpop.f32.mrb[0].mxu0
  %v11737 = vadd.f32 %v10860, %v11736
  %v11738 = vpop.f32.mrb[0].mxu0
  %v11739 = vpop.f32.mrb[0].mxu0
  %v11740 = vadd.f32 %v10864, %v11739
  %v11741 = vpop.f32.mrb[0].mxu0
  %11742 = vmatprep.mubr.bf16.mxu0 0
  %11743 = vmatmul.mubr.bf16.gmra.mrb[0].mxu0 %v11364
  %v11744 = vpop.f32.mrb[0].mxu0
  %v11745 = vadd.f32 %v10868, %v11744
  %v11746 = vpop.f32.mrb[0].mxu0
  %v11747 = vpop.f32.mrb[0].mxu0
  %v11748 = vadd.f32 %v10872, %v11747
  %v11749 = vpop.f32.mrb[0].mxu0
  %11750 = vmatprep.mubr.bf16.mxu0 0
  %11751 = vmatmul.mubr.bf16.gmra.mrb[0].mxu0 %v11367
  %v11752 = vpop.f32.mrb[0].mxu0
  %v11753 = vadd.f32 %v10876, %v11752
  %v11754 = vpop.f32.mrb[0].mxu0
  %v11755 = vpop.f32.mrb[0].mxu0
  %v11756 = vadd.f32 %v10880, %v11755
  %v11757 = vpop.f32.mrb[0].mxu0
  %11758 = vmatprep.mubr.bf16.mxu0 0
  %11759 = vmatmul.mubr.bf16.gmra.mrb[0].mxu0 %v11370
  %v11760 = vpop.f32.mrb[0].mxu0
  %v11761 = vadd.f32 %v10884, %v11760
  %v11762 = vpop.f32.mrb[0].mxu0
  %v11763 = vpop.f32.mrb[0].mxu0
  %v11764 = vadd.f32 %v10888, %v11763
  %v11765 = vpop.f32.mrb[0].mxu0
  %11766 = vmatprep.mubr.bf16.mxu0 0
  %11767 = vmatmul.mubr.bf16.gmra.mrb[0].mxu0 %v11373
  %v11768 = vpop.f32.mrb[0].mxu0
  %v11769 = vadd.f32 %v10892, %v11768
  %v11770 = vpop.f32.mrb[0].mxu0
  %v11771 = vpop.f32.mrb[0].mxu0
  %v11772 = vadd.f32 %v10896, %v11771
  %v11773 = vpop.f32.mrb[0].mxu0
  %11774 = vmatprep.mubr.bf16.mxu0 0
  %11775 = vmatmul.mubr.bf16.gmra.mrb[0].mxu0 %v11376
  %v11776 = vpop.f32.mrb[0].mxu0
  %v11777 = vadd.f32 %v10900, %v11776
  %v11778 = vpop.f32.mrb[0].mxu0
  %v11779 = vpop.f32.mrb[0].mxu0
  %v11780 = vadd.f32 %v10904, %v11779
  %v11781 = vpop.f32.mrb[0].mxu0
  %11782 = vmatprep.mubr.bf16.mxu0 0
  %11783 = vmatmul.mubr.bf16.gmra.mrb[0].mxu0 %v11379
  %v11784 = vpop.f32.mrb[0].mxu0
  %v11785 = vadd.f32 %v10908, %v11784
  %v11786 = vpop.f32.mrb[0].mxu0
  %v11787 = vpop.f32.mrb[0].mxu0
  %v11788 = vadd.f32 %v10912, %v11787
  %v11789 = vpop.f32.mrb[0].mxu0
  %11790 = vmatprep.mubr.bf16.mxu0 0
  %11791 = vmatmul.mubr.bf16.gmra.mrb[0].mxu0 %v11382
  %v11792 = vpop.f32.mrb[0].mxu0
  %v11793 = vadd.f32 %v10916, %v11792
  %v11794 = vpop.f32.mrb[0].mxu0
  %v11795 = vpop.f32.mrb[0].mxu0
  %v11796 = vadd.f32 %v10920, %v11795
  %v11797 = vpop.f32.mrb[0].mxu0
  %11798 = vmatprep.mubr.bf16.mxu0 0
  %11799 = vmatmul.mubr.bf16.gmra.mrb[0].mxu0 %v11385
  %v11800 = vpop.f32.mrb[0].mxu0
  %v11801 = vadd.f32 %v10924, %v11800
  %v11802 = vpop.f32.mrb[0].mxu0
  %v11803 = vpop.f32.mrb[0].mxu0
  %v11804 = vadd.f32 %v10928, %v11803
  %v11805 = vpop.f32.mrb[0].mxu0
  %11806 = vmatprep.mubr.bf16.mxu0 0
  %11807 = vmatmul.mubr.bf16.gmra.mrb[0].mxu0 %v11388
  %v11808 = vpop.f32.mrb[0].mxu0
  %v11809 = vadd.f32 %v10932, %v11808
  %v11810 = vpop.f32.mrb[0].mxu0
  %v11811 = vpop.f32.mrb[0].mxu0
  %v11812 = vadd.f32 %v10936, %v11811
  %v11813 = vpop.f32.mrb[0].mxu0
  %11814 = vmatprep.mubr.bf16.mxu0 0
  %11815 = vmatmul.mubr.bf16.gmra.mrb[0].mxu0 %v11391
  %v11816 = vpop.f32.mrb[0].mxu0
  %v11817 = vadd.f32 %v10940, %v11816
  %v11818 = vpop.f32.mrb[0].mxu0
  %v11819 = vpop.f32.mrb[0].mxu0
  %v11820 = vadd.f32 %v10944, %v11819
  %v11821 = vpop.f32.mrb[0].mxu0
  %11822 = vmatprep.mubr.bf16.mxu0 0
  %11823 = vmatmul.mubr.bf16.gmra.mrb[0].mxu0 %v11394
  %v11824 = vpop.f32.mrb[0].mxu0
  %v11825 = vadd.f32 %v10948, %v11824
  %v11826 = vpop.f32.mrb[0].mxu0
  %v11827 = vpop.f32.mrb[0].mxu0
  %v11828 = vadd.f32 %v10952, %v11827
  %v11829 = vpop.f32.mrb[0].mxu0
  %11830 = vmatprep.mubr.bf16.mxu0 0
  %11831 = vmatmul.mubr.bf16.gmra.mrb[0].mxu0 %v11397
  %v11832 = vpop.f32.mrb[0].mxu0
  %v11833 = vadd.f32 %v10956, %v11832
  %v11834 = vpop.f32.mrb[0].mxu0
  %v11835 = vpop.f32.mrb[0].mxu0
  %v11836 = vadd.f32 %v10960, %v11835
  %v11837 = vpop.f32.mrb[0].mxu0
  %11838 = vmatprep.mubr.bf16.mxu0 0
  %11839 = vmatmul.mubr.bf16.gmra.mrb[0].mxu0 %v11400
  %v11840 = vpop.f32.mrb[0].mxu0
  %v11841 = vadd.f32 %v10964, %v11840
  %v11842 = vpop.f32.mrb[0].mxu0
  %v11843 = vpop.f32.mrb[0].mxu0
  %v11844 = vadd.f32 %v10968, %v11843
  %v11845 = vpop.f32.mrb[0].mxu0
  %11846 = vmatprep.mubr.bf16.mxu0 0
  %11847 = vmatmul.mubr.bf16.gmra.mrb[0].mxu0 %v11403
  %v11848 = vpop.f32.mrb[0].mxu0
  %v11849 = vadd.f32 %v10972, %v11848
  %v11850 = vpop.f32.mrb[0].mxu0
  %v11851 = vpop.f32.mrb[0].mxu0
  %v11852 = vadd.f32 %v10976, %v11851
  %v11853 = vpop.f32.mrb[0].mxu0
  %11854 = vmatprep.mubr.bf16.mxu0 0
  %11855 = vmatmul.mubr.bf16.gmra.mrb[0].mxu0 %v11406
  %v11856 = vpop.f32.mrb[0].mxu0
  %v11857 = vadd.f32 %v10980, %v11856
  %v11858 = vpop.f32.mrb[0].mxu0
  %v11859 = vpop.f32.mrb[0].mxu0
  %v11860 = vadd.f32 %v10984, %v11859
  %v11861 = vpop.f32.mrb[0].mxu0
  %11862 = vmatprep.mubr.bf16.mxu0 0
  %11863 = vmatmul.mubr.bf16.gmra.mrb[0].mxu0 %v11409
  %v11864 = vpop.f32.mrb[0].mxu0
  %v11865 = vadd.f32 %v10988, %v11864
  %v11866 = vpop.f32.mrb[0].mxu0
  %v11867 = vpop.f32.mrb[0].mxu0
  %v11868 = vadd.f32 %v10992, %v11867
  %v11869 = vpop.f32.mrb[0].mxu0
  %11870 = vmatprep.mubr.bf16.mxu0 0
  %11871 = vmatmul.mubr.bf16.gmra.mrb[0].mxu0 %v11412
  %v11872 = vpop.f32.mrb[0].mxu0
  %v11873 = vadd.f32 %v10996, %v11872
  %v11874 = vpop.f32.mrb[0].mxu0
  %v11875 = vpop.f32.mrb[0].mxu0
  %v11876 = vadd.f32 %v11000, %v11875
  %v11877 = vpop.f32.mrb[0].mxu0
  %11878 = vmatprep.mubr.bf16.mxu0 0
  %11879 = vmatmul.mubr.bf16.gmra.mrb[0].mxu0 %v11415
  %v11880 = vpop.f32.mrb[0].mxu0
  %v11881 = vadd.f32 %v11004, %v11880
  %v11882 = vpop.f32.mrb[0].mxu0
  %v11883 = vpop.f32.mrb[0].mxu0
  %v11884 = vadd.f32 %v11008, %v11883
  %v11885 = vpop.f32.mrb[0].mxu0
  %11886 = vmatprep.mubr.bf16.mxu0 0
  %11887 = vmatmul.mubr.bf16.gmra.mrb[0].mxu0 %v11418
  %v11888 = vpop.f32.mrb[0].mxu0
  %v11889 = vadd.f32 %v11012, %v11888
  %v11890 = vpop.f32.mrb[0].mxu0
  %v11891 = vpop.f32.mrb[0].mxu0
  %v11892 = vadd.f32 %v11016, %v11891
  %v11893 = vpop.f32.mrb[0].mxu0
  %11894 = vmatprep.mubr.bf16.mxu0 0
  %11895 = vmatmul.mubr.bf16.gmra.mrb[0].mxu0 %v11421
  %v11896 = vpop.f32.mrb[0].mxu0
  %v11897 = vadd.f32 %v11020, %v11896
  %v11898 = vpop.f32.mrb[0].mxu0
  %v11899 = vpop.f32.mrb[0].mxu0
  %v11900 = vadd.f32 %v11024, %v11899
  %v11901 = vpop.f32.mrb[0].mxu0
  %11902 = vmatprep.mubr.bf16.mxu0 0
  %11903 = vmatmul.mubr.bf16.gmra.mrb[0].mxu0 %v11424
  %v11904 = vpop.f32.mrb[0].mxu0
  %v11905 = vadd.f32 %v11028, %v11904
  %v11906 = vpop.f32.mrb[0].mxu0
  %v11907 = vpop.f32.mrb[0].mxu0
  %v11908 = vadd.f32 %v11032, %v11907
  %v11909 = vpop.f32.mrb[0].mxu0
  %11910 = vmatprep.mubr.bf16.mxu0 0
  %11911 = vmatmul.mubr.bf16.gmra.mrb[0].mxu0 %v11427
  %v11912 = vpop.f32.mrb[0].mxu0
  %v11913 = vadd.f32 %v11036, %v11912
  %v11914 = vpop.f32.mrb[0].mxu0
  %v11915 = vpop.f32.mrb[0].mxu0
  %v11916 = vadd.f32 %v11040, %v11915
  %v11917 = vpop.f32.mrb[0].mxu0
  %11918 = vmatprep.mubr.bf16.mxu0 0
  %11919 = vmatmul.mubr.bf16.gmra.mrb[0].mxu0 %v11430
  %v11920 = vpop.f32.mrb[0].mxu0
  %v11921 = vadd.f32 %v11044, %v11920
  %v11922 = vpop.f32.mrb[0].mxu0
  %v11923 = vpop.f32.mrb[0].mxu0
  %v11924 = vadd.f32 %v11048, %v11923
  %v11925 = vpop.f32.mrb[0].mxu0
  %11926 = vmatprep.mubr.bf16.mxu0 0
  %11927 = vmatmul.mubr.bf16.gmra.mrb[0].mxu0 %v11433
  %v11928 = vpop.f32.mrb[0].mxu0
  %v11929 = vadd.f32 %v11052, %v11928
  %v11930 = vpop.f32.mrb[0].mxu0
  %v11931 = vpop.f32.mrb[0].mxu0
  %v11932 = vadd.f32 %v11056, %v11931
  %v11933 = vpop.f32.mrb[0].mxu0
  %11934 = vmatprep.mubr.bf16.mxu0 0
  %11935 = vmatmul.mubr.bf16.gmra.mrb[0].mxu0 %v11436
  %v11936 = vpop.f32.mrb[0].mxu0
  %v11937 = vadd.f32 %v11060, %v11936
  %v11938 = vpop.f32.mrb[0].mxu0
  %v11939 = vpop.f32.mrb[0].mxu0
  %v11940 = vadd.f32 %v11064, %v11939
  %v11941 = vpop.f32.mrb[0].mxu0
  %11942 = vmatprep.mubr.bf16.mxu0 0
  %11943 = vmatmul.mubr.bf16.gmra.mrb[0].mxu0 %v11439
  %v11944 = vpop.f32.mrb[0].mxu0
  %v11945 = vadd.f32 %v11068, %v11944
  %v11946 = vpop.f32.mrb[0].mxu0
  %v11947 = vpop.f32.mrb[0].mxu0
  %v11948 = vadd.f32 %v11072, %v11947
  %v11949 = vpop.f32.mrb[0].mxu0
  %11950 = vmatprep.mubr.bf16.mxu0 0
  %11951 = vmatmul.mubr.bf16.gmra.mrb[0].mxu0 %v11442
  %v11952 = vpop.f32.mrb[0].mxu0
  %v11953 = vadd.f32 %v11076, %v11952
  %v11954 = vpop.f32.mrb[0].mxu0
  %v11955 = vpop.f32.mrb[0].mxu0
  %v11956 = vadd.f32 %v11080, %v11955
  %v11957 = vpop.f32.mrb[0].mxu0
  %11958 = vmatprep.mubr.bf16.mxu0 0
  %11959 = vmatmul.mubr.bf16.gmra.mrb[0].mxu0 %v11445
  %v11960 = vpop.f32.mrb[0].mxu0
  %v11961 = vadd.f32 %v11084, %v11960
  %v11962 = vpop.f32.mrb[0].mxu0
  %v11963 = vpop.f32.mrb[0].mxu0
  %v11964 = vadd.f32 %v11088, %v11963
  %v11965 = vpop.f32.mrb[0].mxu0
  %11966 = vmatprep.mubr.bf16.mxu0 0
  %11967 = vmatmul.mubr.bf16.gmra.mrb[0].mxu0 %v11448
  %v11968 = vpop.f32.mrb[0].mxu0
  %v11969 = vadd.f32 %v11092, %v11968
  %v11970 = vpop.f32.mrb[0].mxu0
  %v11971 = vpop.f32.mrb[0].mxu0
  %v11972 = vadd.f32 %v11096, %v11971
  %v11973 = vpop.f32.mrb[0].mxu0
  %11974 = vmatprep.mubr.bf16.mxu0 0
  %11975 = vmatmul.mubr.bf16.gmra.mrb[0].mxu0 %v11451
  %v11976 = vpop.f32.mrb[0].mxu0
  %v11977 = vadd.f32 %v11100, %v11976
  %v11978 = vpop.f32.mrb[0].mxu0
  %v11979 = vpop.f32.mrb[0].mxu0
  %v11980 = vadd.f32 %v11104, %v11979
  %v11981 = vpop.f32.mrb[0].mxu0
  %11982 = vmatprep.mubr.bf16.mxu0 0
  %11983 = vmatmul.mubr.bf16.gmra.mrb[0].mxu0 %v11454
  %v11984 = vpop.f32.mrb[0].mxu0
  %v11985 = vadd.f32 %v11108, %v11984
  %v11986 = vpop.f32.mrb[0].mxu0
  %v11987 = vpop.f32.mrb[0].mxu0
  %v11988 = vadd.f32 %v11112, %v11987
  %v11989 = vpop.f32.mrb[0].mxu0
  %11990 = vmatprep.mubr.bf16.mxu0 0
  %11991 = vmatmul.mubr.bf16.gmra.mrb[0].mxu0 %v11457
  %v11992 = vpop.f32.mrb[0].mxu0
  %v11993 = vadd.f32 %v11116, %v11992
  %v11994 = vpop.f32.mrb[0].mxu0
  %v11995 = vpop.f32.mrb[0].mxu0
  %v11996 = vadd.f32 %v11120, %v11995
  %v11997 = vpop.f32.mrb[0].mxu0
  %11998 = vmatprep.mubr.bf16.mxu0 0
  %11999 = vmatmul.mubr.bf16.gmra.mrb[0].mxu0 %v11460
  %v12000 = vpop.f32.mrb[0].mxu0
  %v12001 = vadd.f32 %v11124, %v12000
  %v12002 = vpop.f32.mrb[0].mxu0
  %v12003 = vpop.f32.mrb[0].mxu0
  %v12004 = vadd.f32 %v11128, %v12003
  %v12005 = vpop.f32.mrb[0].mxu0
  %12006 = vdwg.mxu0
  %v12007 = vsel %vm3274, %v11497, -inf
  %v12008 = vrot.slane %v12007, 4
  %v12009 = vmax.f32 %v12007, %v12008
  %v12010 = vrot.slane %v12009, 2
  %v12011 = vmax.f32 %v12009, %v12010
  %v12012 = vrot.slane %v12011, 1
  %v12013 = vmax.f32 %v12011, %v12012
  %v12014 = vsel %vm3274, %v11500, -inf
  %v12015 = vrot.slane %v12014, 4
  %v12016 = vmax.f32 %v12014, %v12015
  %v12017 = vrot.slane %v12016, 2
  %v12018 = vmax.f32 %v12016, %v12017
  %v12019 = vrot.slane %v12018, 1
  %v12020 = vmax.f32 %v12018, %v12019
  %v12021 = vsel %vm3274, %v11505, -inf
  %v12022 = vrot.slane %v12021, 4
  %v12023 = vmax.f32 %v12021, %v12022
  %v12024 = vrot.slane %v12023, 2
  %v12025 = vmax.f32 %v12023, %v12024
  %v12026 = vrot.slane %v12025, 1
  %v12027 = vmax.f32 %v12025, %v12026
  %v12028 = vsel %vm3274, %v11508, -inf
  %v12029 = vrot.slane %v12028, 4
  %v12030 = vmax.f32 %v12028, %v12029
  %v12031 = vrot.slane %v12030, 2
  %v12032 = vmax.f32 %v12030, %v12031
  %v12033 = vrot.slane %v12032, 1
  %v12034 = vmax.f32 %v12032, %v12033
  %v12035 = vsel %vm3274, %v11513, -inf
  %v12036 = vrot.slane %v12035, 4
  %v12037 = vmax.f32 %v12035, %v12036
  %v12038 = vrot.slane %v12037, 2
  %v12039 = vmax.f32 %v12037, %v12038
  %v12040 = vrot.slane %v12039, 1
  %v12041 = vmax.f32 %v12039, %v12040
  %v12042 = vsel %vm3274, %v11516, -inf
  %v12043 = vrot.slane %v12042, 4
  %v12044 = vmax.f32 %v12042, %v12043
  %v12045 = vrot.slane %v12044, 2
  %v12046 = vmax.f32 %v12044, %v12045
  %v12047 = vrot.slane %v12046, 1
  %v12048 = vmax.f32 %v12046, %v12047
  %v12049 = vsel %vm3274, %v11521, -inf
  %v12050 = vrot.slane %v12049, 4
  %v12051 = vmax.f32 %v12049, %v12050
  %v12052 = vrot.slane %v12051, 2
  %v12053 = vmax.f32 %v12051, %v12052
  %v12054 = vrot.slane %v12053, 1
  %v12055 = vmax.f32 %v12053, %v12054
  %v12056 = vsel %vm3274, %v11524, -inf
  %v12057 = vrot.slane %v12056, 4
  %v12058 = vmax.f32 %v12056, %v12057
  %v12059 = vrot.slane %v12058, 2
  %v12060 = vmax.f32 %v12058, %v12059
  %v12061 = vrot.slane %v12060, 1
  %v12062 = vmax.f32 %v12060, %v12061
  %v12063 = vsel %vm3274, %v11529, -inf
  %v12064 = vrot.slane %v12063, 4
  %v12065 = vmax.f32 %v12063, %v12064
  %v12066 = vrot.slane %v12065, 2
  %v12067 = vmax.f32 %v12065, %v12066
  %v12068 = vrot.slane %v12067, 1
  %v12069 = vmax.f32 %v12067, %v12068
  %v12070 = vsel %vm3274, %v11532, -inf
  %v12071 = vrot.slane %v12070, 4
  %v12072 = vmax.f32 %v12070, %v12071
  %v12073 = vrot.slane %v12072, 2
  %v12074 = vmax.f32 %v12072, %v12073
  %v12075 = vrot.slane %v12074, 1
  %v12076 = vmax.f32 %v12074, %v12075
  %v12077 = vsel %vm3274, %v11537, -inf
  %v12078 = vrot.slane %v12077, 4
  %v12079 = vmax.f32 %v12077, %v12078
  %v12080 = vrot.slane %v12079, 2
  %v12081 = vmax.f32 %v12079, %v12080
  %v12082 = vrot.slane %v12081, 1
  %v12083 = vmax.f32 %v12081, %v12082
  %v12084 = vsel %vm3274, %v11540, -inf
  %v12085 = vrot.slane %v12084, 4
  %v12086 = vmax.f32 %v12084, %v12085
  %v12087 = vrot.slane %v12086, 2
  %v12088 = vmax.f32 %v12086, %v12087
  %v12089 = vrot.slane %v12088, 1
  %v12090 = vmax.f32 %v12088, %v12089
  %v12091 = vsel %vm3274, %v11545, -inf
  %v12092 = vrot.slane %v12091, 4
  %v12093 = vmax.f32 %v12091, %v12092
  %v12094 = vrot.slane %v12093, 2
  %v12095 = vmax.f32 %v12093, %v12094
  %v12096 = vrot.slane %v12095, 1
  %v12097 = vmax.f32 %v12095, %v12096
  %v12098 = vsel %vm3274, %v11548, -inf
  %v12099 = vrot.slane %v12098, 4
  %v12100 = vmax.f32 %v12098, %v12099
  %v12101 = vrot.slane %v12100, 2
  %v12102 = vmax.f32 %v12100, %v12101
  %v12103 = vrot.slane %v12102, 1
  %v12104 = vmax.f32 %v12102, %v12103
  %v12105 = vsel %vm3274, %v11553, -inf
  %v12106 = vrot.slane %v12105, 4
  %v12107 = vmax.f32 %v12105, %v12106
  %v12108 = vrot.slane %v12107, 2
  %v12109 = vmax.f32 %v12107, %v12108
  %v12110 = vrot.slane %v12109, 1
  %v12111 = vmax.f32 %v12109, %v12110
  %v12112 = vsel %vm3274, %v11556, -inf
  %v12113 = vrot.slane %v12112, 4
  %v12114 = vmax.f32 %v12112, %v12113
  %v12115 = vrot.slane %v12114, 2
  %v12116 = vmax.f32 %v12114, %v12115
  %v12117 = vrot.slane %v12116, 1
  %v12118 = vmax.f32 %v12116, %v12117
  %v12119 = vsel %vm3274, %v11561, -inf
  %v12120 = vrot.slane %v12119, 4
  %v12121 = vmax.f32 %v12119, %v12120
  %v12122 = vrot.slane %v12121, 2
  %v12123 = vmax.f32 %v12121, %v12122
  %v12124 = vrot.slane %v12123, 1
  %v12125 = vmax.f32 %v12123, %v12124
  %v12126 = vsel %vm3274, %v11564, -inf
  %v12127 = vrot.slane %v12126, 4
  %v12128 = vmax.f32 %v12126, %v12127
  %v12129 = vrot.slane %v12128, 2
  %v12130 = vmax.f32 %v12128, %v12129
  %v12131 = vrot.slane %v12130, 1
  %v12132 = vmax.f32 %v12130, %v12131
  %v12133 = vsel %vm3274, %v11569, -inf
  %v12134 = vrot.slane %v12133, 4
  %v12135 = vmax.f32 %v12133, %v12134
  %v12136 = vrot.slane %v12135, 2
  %v12137 = vmax.f32 %v12135, %v12136
  %v12138 = vrot.slane %v12137, 1
  %v12139 = vmax.f32 %v12137, %v12138
  %v12140 = vsel %vm3274, %v11572, -inf
  %v12141 = vrot.slane %v12140, 4
  %v12142 = vmax.f32 %v12140, %v12141
  %v12143 = vrot.slane %v12142, 2
  %v12144 = vmax.f32 %v12142, %v12143
  %v12145 = vrot.slane %v12144, 1
  %v12146 = vmax.f32 %v12144, %v12145
  %v12147 = vsel %vm3274, %v11577, -inf
  %v12148 = vrot.slane %v12147, 4
  %v12149 = vmax.f32 %v12147, %v12148
  %v12150 = vrot.slane %v12149, 2
  %v12151 = vmax.f32 %v12149, %v12150
  %v12152 = vrot.slane %v12151, 1
  %v12153 = vmax.f32 %v12151, %v12152
  %v12154 = vsel %vm3274, %v11580, -inf
  %v12155 = vrot.slane %v12154, 4
  %v12156 = vmax.f32 %v12154, %v12155
  %v12157 = vrot.slane %v12156, 2
  %v12158 = vmax.f32 %v12156, %v12157
  %v12159 = vrot.slane %v12158, 1
  %v12160 = vmax.f32 %v12158, %v12159
  %v12161 = vsel %vm3274, %v11585, -inf
  %v12162 = vrot.slane %v12161, 4
  %v12163 = vmax.f32 %v12161, %v12162
  %v12164 = vrot.slane %v12163, 2
  %v12165 = vmax.f32 %v12163, %v12164
  %v12166 = vrot.slane %v12165, 1
  %v12167 = vmax.f32 %v12165, %v12166
  %v12168 = vsel %vm3274, %v11588, -inf
  %v12169 = vrot.slane %v12168, 4
  %v12170 = vmax.f32 %v12168, %v12169
  %v12171 = vrot.slane %v12170, 2
  %v12172 = vmax.f32 %v12170, %v12171
  %v12173 = vrot.slane %v12172, 1
  %v12174 = vmax.f32 %v12172, %v12173
  %v12175 = vsel %vm3274, %v11593, -inf
  %v12176 = vrot.slane %v12175, 4
  %v12177 = vmax.f32 %v12175, %v12176
  %v12178 = vrot.slane %v12177, 2
  %v12179 = vmax.f32 %v12177, %v12178
  %v12180 = vrot.slane %v12179, 1
  %v12181 = vmax.f32 %v12179, %v12180
  %v12182 = vsel %vm3274, %v11596, -inf
  %v12183 = vrot.slane %v12182, 4
  %v12184 = vmax.f32 %v12182, %v12183
  %v12185 = vrot.slane %v12184, 2
  %v12186 = vmax.f32 %v12184, %v12185
  %v12187 = vrot.slane %v12186, 1
  %v12188 = vmax.f32 %v12186, %v12187
  %v12189 = vsel %vm3274, %v11601, -inf
  %v12190 = vrot.slane %v12189, 4
  %v12191 = vmax.f32 %v12189, %v12190
  %v12192 = vrot.slane %v12191, 2
  %v12193 = vmax.f32 %v12191, %v12192
  %v12194 = vrot.slane %v12193, 1
  %v12195 = vmax.f32 %v12193, %v12194
  %v12196 = vsel %vm3274, %v11604, -inf
  %v12197 = vrot.slane %v12196, 4
  %v12198 = vmax.f32 %v12196, %v12197
  %v12199 = vrot.slane %v12198, 2
  %v12200 = vmax.f32 %v12198, %v12199
  %v12201 = vrot.slane %v12200, 1
  %v12202 = vmax.f32 %v12200, %v12201
  %v12203 = vsel %vm3274, %v11609, -inf
  %v12204 = vrot.slane %v12203, 4
  %v12205 = vmax.f32 %v12203, %v12204
  %v12206 = vrot.slane %v12205, 2
  %v12207 = vmax.f32 %v12205, %v12206
  %v12208 = vrot.slane %v12207, 1
  %v12209 = vmax.f32 %v12207, %v12208
  %v12210 = vsel %vm3274, %v11612, -inf
  %v12211 = vrot.slane %v12210, 4
  %v12212 = vmax.f32 %v12210, %v12211
  %v12213 = vrot.slane %v12212, 2
  %v12214 = vmax.f32 %v12212, %v12213
  %v12215 = vrot.slane %v12214, 1
  %v12216 = vmax.f32 %v12214, %v12215
  %v12217 = vsel %vm3274, %v11617, -inf
  %v12218 = vrot.slane %v12217, 4
  %v12219 = vmax.f32 %v12217, %v12218
  %v12220 = vrot.slane %v12219, 2
  %v12221 = vmax.f32 %v12219, %v12220
  %v12222 = vrot.slane %v12221, 1
  %v12223 = vmax.f32 %v12221, %v12222
  %v12224 = vsel %vm3274, %v11620, -inf
  %v12225 = vrot.slane %v12224, 4
  %v12226 = vmax.f32 %v12224, %v12225
  %v12227 = vrot.slane %v12226, 2
  %v12228 = vmax.f32 %v12226, %v12227
  %v12229 = vrot.slane %v12228, 1
  %v12230 = vmax.f32 %v12228, %v12229
  %v12231 = vsel %vm3274, %v11625, -inf
  %v12232 = vrot.slane %v12231, 4
  %v12233 = vmax.f32 %v12231, %v12232
  %v12234 = vrot.slane %v12233, 2
  %v12235 = vmax.f32 %v12233, %v12234
  %v12236 = vrot.slane %v12235, 1
  %v12237 = vmax.f32 %v12235, %v12236
  %v12238 = vsel %vm3274, %v11628, -inf
  %v12239 = vrot.slane %v12238, 4
  %v12240 = vmax.f32 %v12238, %v12239
  %v12241 = vrot.slane %v12240, 2
  %v12242 = vmax.f32 %v12240, %v12241
  %v12243 = vrot.slane %v12242, 1
  %v12244 = vmax.f32 %v12242, %v12243
  %v12245 = vsel %vm3274, %v11633, -inf
  %v12246 = vrot.slane %v12245, 4
  %v12247 = vmax.f32 %v12245, %v12246
  %v12248 = vrot.slane %v12247, 2
  %v12249 = vmax.f32 %v12247, %v12248
  %v12250 = vrot.slane %v12249, 1
  %v12251 = vmax.f32 %v12249, %v12250
  %v12252 = vsel %vm3274, %v11636, -inf
  %v12253 = vrot.slane %v12252, 4
  %v12254 = vmax.f32 %v12252, %v12253
  %v12255 = vrot.slane %v12254, 2
  %v12256 = vmax.f32 %v12254, %v12255
  %v12257 = vrot.slane %v12256, 1
  %v12258 = vmax.f32 %v12256, %v12257
  %v12259 = vsel %vm3274, %v11641, -inf
  %v12260 = vrot.slane %v12259, 4
  %v12261 = vmax.f32 %v12259, %v12260
  %v12262 = vrot.slane %v12261, 2
  %v12263 = vmax.f32 %v12261, %v12262
  %v12264 = vrot.slane %v12263, 1
  %v12265 = vmax.f32 %v12263, %v12264
  %v12266 = vsel %vm3274, %v11644, -inf
  %v12267 = vrot.slane %v12266, 4
  %v12268 = vmax.f32 %v12266, %v12267
  %v12269 = vrot.slane %v12268, 2
  %v12270 = vmax.f32 %v12268, %v12269
  %v12271 = vrot.slane %v12270, 1
  %v12272 = vmax.f32 %v12270, %v12271
  %v12273 = vsel %vm3274, %v11649, -inf
  %v12274 = vrot.slane %v12273, 4
  %v12275 = vmax.f32 %v12273, %v12274
  %v12276 = vrot.slane %v12275, 2
  %v12277 = vmax.f32 %v12275, %v12276
  %v12278 = vrot.slane %v12277, 1
  %v12279 = vmax.f32 %v12277, %v12278
  %v12280 = vsel %vm3274, %v11652, -inf
  %v12281 = vrot.slane %v12280, 4
  %v12282 = vmax.f32 %v12280, %v12281
  %v12283 = vrot.slane %v12282, 2
  %v12284 = vmax.f32 %v12282, %v12283
  %v12285 = vrot.slane %v12284, 1
  %v12286 = vmax.f32 %v12284, %v12285
  %v12287 = vsel %vm3274, %v11657, -inf
  %v12288 = vrot.slane %v12287, 4
  %v12289 = vmax.f32 %v12287, %v12288
  %v12290 = vrot.slane %v12289, 2
  %v12291 = vmax.f32 %v12289, %v12290
  %v12292 = vrot.slane %v12291, 1
  %v12293 = vmax.f32 %v12291, %v12292
  %v12294 = vsel %vm3274, %v11660, -inf
  %v12295 = vrot.slane %v12294, 4
  %v12296 = vmax.f32 %v12294, %v12295
  %v12297 = vrot.slane %v12296, 2
  %v12298 = vmax.f32 %v12296, %v12297
  %v12299 = vrot.slane %v12298, 1
  %v12300 = vmax.f32 %v12298, %v12299
  %v12301 = vsel %vm3274, %v11665, -inf
  %v12302 = vrot.slane %v12301, 4
  %v12303 = vmax.f32 %v12301, %v12302
  %v12304 = vrot.slane %v12303, 2
  %v12305 = vmax.f32 %v12303, %v12304
  %v12306 = vrot.slane %v12305, 1
  %v12307 = vmax.f32 %v12305, %v12306
  %v12308 = vsel %vm3274, %v11668, -inf
  %v12309 = vrot.slane %v12308, 4
  %v12310 = vmax.f32 %v12308, %v12309
  %v12311 = vrot.slane %v12310, 2
  %v12312 = vmax.f32 %v12310, %v12311
  %v12313 = vrot.slane %v12312, 1
  %v12314 = vmax.f32 %v12312, %v12313
  %v12315 = vsel %vm3274, %v11673, -inf
  %v12316 = vrot.slane %v12315, 4
  %v12317 = vmax.f32 %v12315, %v12316
  %v12318 = vrot.slane %v12317, 2
  %v12319 = vmax.f32 %v12317, %v12318
  %v12320 = vrot.slane %v12319, 1
  %v12321 = vmax.f32 %v12319, %v12320
  %v12322 = vsel %vm3274, %v11676, -inf
  %v12323 = vrot.slane %v12322, 4
  %v12324 = vmax.f32 %v12322, %v12323
  %v12325 = vrot.slane %v12324, 2
  %v12326 = vmax.f32 %v12324, %v12325
  %v12327 = vrot.slane %v12326, 1
  %v12328 = vmax.f32 %v12326, %v12327
  %v12329 = vsel %vm3274, %v11681, -inf
  %v12330 = vrot.slane %v12329, 4
  %v12331 = vmax.f32 %v12329, %v12330
  %v12332 = vrot.slane %v12331, 2
  %v12333 = vmax.f32 %v12331, %v12332
  %v12334 = vrot.slane %v12333, 1
  %v12335 = vmax.f32 %v12333, %v12334
  %v12336 = vsel %vm3274, %v11684, -inf
  %v12337 = vrot.slane %v12336, 4
  %v12338 = vmax.f32 %v12336, %v12337
  %v12339 = vrot.slane %v12338, 2
  %v12340 = vmax.f32 %v12338, %v12339
  %v12341 = vrot.slane %v12340, 1
  %v12342 = vmax.f32 %v12340, %v12341
  %v12343 = vsel %vm3274, %v11689, -inf
  %v12344 = vrot.slane %v12343, 4
  %v12345 = vmax.f32 %v12343, %v12344
  %v12346 = vrot.slane %v12345, 2
  %v12347 = vmax.f32 %v12345, %v12346
  %v12348 = vrot.slane %v12347, 1
  %v12349 = vmax.f32 %v12347, %v12348
  %v12350 = vsel %vm3274, %v11692, -inf
  %v12351 = vrot.slane %v12350, 4
  %v12352 = vmax.f32 %v12350, %v12351
  %v12353 = vrot.slane %v12352, 2
  %v12354 = vmax.f32 %v12352, %v12353
  %v12355 = vrot.slane %v12354, 1
  %v12356 = vmax.f32 %v12354, %v12355
  %v12357 = vsel %vm3274, %v11697, -inf
  %v12358 = vrot.slane %v12357, 4
  %v12359 = vmax.f32 %v12357, %v12358
  %v12360 = vrot.slane %v12359, 2
  %v12361 = vmax.f32 %v12359, %v12360
  %v12362 = vrot.slane %v12361, 1
  %v12363 = vmax.f32 %v12361, %v12362
  %v12364 = vsel %vm3274, %v11700, -inf
  %v12365 = vrot.slane %v12364, 4
  %v12366 = vmax.f32 %v12364, %v12365
  %v12367 = vrot.slane %v12366, 2
  %v12368 = vmax.f32 %v12366, %v12367
  %v12369 = vrot.slane %v12368, 1
  %v12370 = vmax.f32 %v12368, %v12369
  %v12371 = vsel %vm3274, %v11705, -inf
  %v12372 = vrot.slane %v12371, 4
  %v12373 = vmax.f32 %v12371, %v12372
  %v12374 = vrot.slane %v12373, 2
  %v12375 = vmax.f32 %v12373, %v12374
  %v12376 = vrot.slane %v12375, 1
  %v12377 = vmax.f32 %v12375, %v12376
  %v12378 = vsel %vm3274, %v11708, -inf
  %v12379 = vrot.slane %v12378, 4
  %v12380 = vmax.f32 %v12378, %v12379
  %v12381 = vrot.slane %v12380, 2
  %v12382 = vmax.f32 %v12380, %v12381
  %v12383 = vrot.slane %v12382, 1
  %v12384 = vmax.f32 %v12382, %v12383
  %v12385 = vsel %vm3274, %v11713, -inf
  %v12386 = vrot.slane %v12385, 4
  %v12387 = vmax.f32 %v12385, %v12386
  %v12388 = vrot.slane %v12387, 2
  %v12389 = vmax.f32 %v12387, %v12388
  %v12390 = vrot.slane %v12389, 1
  %v12391 = vmax.f32 %v12389, %v12390
  %v12392 = vsel %vm3274, %v11716, -inf
  %v12393 = vrot.slane %v12392, 4
  %v12394 = vmax.f32 %v12392, %v12393
  %v12395 = vrot.slane %v12394, 2
  %v12396 = vmax.f32 %v12394, %v12395
  %v12397 = vrot.slane %v12396, 1
  %v12398 = vmax.f32 %v12396, %v12397
  %v12399 = vsel %vm3274, %v11721, -inf
  %v12400 = vrot.slane %v12399, 4
  %v12401 = vmax.f32 %v12399, %v12400
  %v12402 = vrot.slane %v12401, 2
  %v12403 = vmax.f32 %v12401, %v12402
  %v12404 = vrot.slane %v12403, 1
  %v12405 = vmax.f32 %v12403, %v12404
  %v12406 = vsel %vm3274, %v11724, -inf
  %v12407 = vrot.slane %v12406, 4
  %v12408 = vmax.f32 %v12406, %v12407
  %v12409 = vrot.slane %v12408, 2
  %v12410 = vmax.f32 %v12408, %v12409
  %v12411 = vrot.slane %v12410, 1
  %v12412 = vmax.f32 %v12410, %v12411
  %v12413 = vsel %vm3274, %v11729, -inf
  %v12414 = vrot.slane %v12413, 4
  %v12415 = vmax.f32 %v12413, %v12414
  %v12416 = vrot.slane %v12415, 2
  %v12417 = vmax.f32 %v12415, %v12416
  %v12418 = vrot.slane %v12417, 1
  %v12419 = vmax.f32 %v12417, %v12418
  %v12420 = vsel %vm3274, %v11732, -inf
  %v12421 = vrot.slane %v12420, 4
  %v12422 = vmax.f32 %v12420, %v12421
  %v12423 = vrot.slane %v12422, 2
  %v12424 = vmax.f32 %v12422, %v12423
  %v12425 = vrot.slane %v12424, 1
  %v12426 = vmax.f32 %v12424, %v12425
  %v12427 = vsel %vm3274, %v11737, -inf
  %v12428 = vrot.slane %v12427, 4
  %v12429 = vmax.f32 %v12427, %v12428
  %v12430 = vrot.slane %v12429, 2
  %v12431 = vmax.f32 %v12429, %v12430
  %v12432 = vrot.slane %v12431, 1
  %v12433 = vmax.f32 %v12431, %v12432
  %v12434 = vsel %vm3274, %v11740, -inf
  %v12435 = vrot.slane %v12434, 4
  %v12436 = vmax.f32 %v12434, %v12435
  %v12437 = vrot.slane %v12436, 2
  %v12438 = vmax.f32 %v12436, %v12437
  %v12439 = vrot.slane %v12438, 1
  %v12440 = vmax.f32 %v12438, %v12439
  %v12441 = vsel %vm3274, %v11745, -inf
  %v12442 = vrot.slane %v12441, 4
  %v12443 = vmax.f32 %v12441, %v12442
  %v12444 = vrot.slane %v12443, 2
  %v12445 = vmax.f32 %v12443, %v12444
  %v12446 = vrot.slane %v12445, 1
  %v12447 = vmax.f32 %v12445, %v12446
  %v12448 = vsel %vm3274, %v11748, -inf
  %v12449 = vrot.slane %v12448, 4
  %v12450 = vmax.f32 %v12448, %v12449
  %v12451 = vrot.slane %v12450, 2
  %v12452 = vmax.f32 %v12450, %v12451
  %v12453 = vrot.slane %v12452, 1
  %v12454 = vmax.f32 %v12452, %v12453
  %v12455 = vsel %vm3274, %v11753, -inf
  %v12456 = vrot.slane %v12455, 4
  %v12457 = vmax.f32 %v12455, %v12456
  %v12458 = vrot.slane %v12457, 2
  %v12459 = vmax.f32 %v12457, %v12458
  %v12460 = vrot.slane %v12459, 1
  %v12461 = vmax.f32 %v12459, %v12460
  %v12462 = vsel %vm3274, %v11756, -inf
  %v12463 = vrot.slane %v12462, 4
  %v12464 = vmax.f32 %v12462, %v12463
  %v12465 = vrot.slane %v12464, 2
  %v12466 = vmax.f32 %v12464, %v12465
  %v12467 = vrot.slane %v12466, 1
  %v12468 = vmax.f32 %v12466, %v12467
  %v12469 = vsel %vm3274, %v11761, -inf
  %v12470 = vrot.slane %v12469, 4
  %v12471 = vmax.f32 %v12469, %v12470
  %v12472 = vrot.slane %v12471, 2
  %v12473 = vmax.f32 %v12471, %v12472
  %v12474 = vrot.slane %v12473, 1
  %v12475 = vmax.f32 %v12473, %v12474
  %v12476 = vsel %vm3274, %v11764, -inf
  %v12477 = vrot.slane %v12476, 4
  %v12478 = vmax.f32 %v12476, %v12477
  %v12479 = vrot.slane %v12478, 2
  %v12480 = vmax.f32 %v12478, %v12479
  %v12481 = vrot.slane %v12480, 1
  %v12482 = vmax.f32 %v12480, %v12481
  %v12483 = vsel %vm3274, %v11769, -inf
  %v12484 = vrot.slane %v12483, 4
  %v12485 = vmax.f32 %v12483, %v12484
  %v12486 = vrot.slane %v12485, 2
  %v12487 = vmax.f32 %v12485, %v12486
  %v12488 = vrot.slane %v12487, 1
  %v12489 = vmax.f32 %v12487, %v12488
  %v12490 = vsel %vm3274, %v11772, -inf
  %v12491 = vrot.slane %v12490, 4
  %v12492 = vmax.f32 %v12490, %v12491
  %v12493 = vrot.slane %v12492, 2
  %v12494 = vmax.f32 %v12492, %v12493
  %v12495 = vrot.slane %v12494, 1
  %v12496 = vmax.f32 %v12494, %v12495
  %v12497 = vsel %vm3274, %v11777, -inf
  %v12498 = vrot.slane %v12497, 4
  %v12499 = vmax.f32 %v12497, %v12498
  %v12500 = vrot.slane %v12499, 2
  %v12501 = vmax.f32 %v12499, %v12500
  %v12502 = vrot.slane %v12501, 1
  %v12503 = vmax.f32 %v12501, %v12502
  %v12504 = vsel %vm3274, %v11780, -inf
  %v12505 = vrot.slane %v12504, 4
  %v12506 = vmax.f32 %v12504, %v12505
  %v12507 = vrot.slane %v12506, 2
  %v12508 = vmax.f32 %v12506, %v12507
  %v12509 = vrot.slane %v12508, 1
  %v12510 = vmax.f32 %v12508, %v12509
  %v12511 = vsel %vm3274, %v11785, -inf
  %v12512 = vrot.slane %v12511, 4
  %v12513 = vmax.f32 %v12511, %v12512
  %v12514 = vrot.slane %v12513, 2
  %v12515 = vmax.f32 %v12513, %v12514
  %v12516 = vrot.slane %v12515, 1
  %v12517 = vmax.f32 %v12515, %v12516
  %v12518 = vsel %vm3274, %v11788, -inf
  %v12519 = vrot.slane %v12518, 4
  %v12520 = vmax.f32 %v12518, %v12519
  %v12521 = vrot.slane %v12520, 2
  %v12522 = vmax.f32 %v12520, %v12521
  %v12523 = vrot.slane %v12522, 1
  %v12524 = vmax.f32 %v12522, %v12523
  %v12525 = vsel %vm3274, %v11793, -inf
  %v12526 = vrot.slane %v12525, 4
  %v12527 = vmax.f32 %v12525, %v12526
  %v12528 = vrot.slane %v12527, 2
  %v12529 = vmax.f32 %v12527, %v12528
  %v12530 = vrot.slane %v12529, 1
  %v12531 = vmax.f32 %v12529, %v12530
  %v12532 = vsel %vm3274, %v11796, -inf
  %v12533 = vrot.slane %v12532, 4
  %v12534 = vmax.f32 %v12532, %v12533
  %v12535 = vrot.slane %v12534, 2
  %v12536 = vmax.f32 %v12534, %v12535
  %v12537 = vrot.slane %v12536, 1
  %v12538 = vmax.f32 %v12536, %v12537
  %v12539 = vsel %vm3274, %v11801, -inf
  %v12540 = vrot.slane %v12539, 4
  %v12541 = vmax.f32 %v12539, %v12540
  %v12542 = vrot.slane %v12541, 2
  %v12543 = vmax.f32 %v12541, %v12542
  %v12544 = vrot.slane %v12543, 1
  %v12545 = vmax.f32 %v12543, %v12544
  %v12546 = vsel %vm3274, %v11804, -inf
  %v12547 = vrot.slane %v12546, 4
  %v12548 = vmax.f32 %v12546, %v12547
  %v12549 = vrot.slane %v12548, 2
  %v12550 = vmax.f32 %v12548, %v12549
  %v12551 = vrot.slane %v12550, 1
  %v12552 = vmax.f32 %v12550, %v12551
  %v12553 = vsel %vm3274, %v11809, -inf
  %v12554 = vrot.slane %v12553, 4
  %v12555 = vmax.f32 %v12553, %v12554
  %v12556 = vrot.slane %v12555, 2
  %v12557 = vmax.f32 %v12555, %v12556
  %v12558 = vrot.slane %v12557, 1
  %v12559 = vmax.f32 %v12557, %v12558
  %v12560 = vsel %vm3274, %v11812, -inf
  %v12561 = vrot.slane %v12560, 4
  %v12562 = vmax.f32 %v12560, %v12561
  %v12563 = vrot.slane %v12562, 2
  %v12564 = vmax.f32 %v12562, %v12563
  %v12565 = vrot.slane %v12564, 1
  %v12566 = vmax.f32 %v12564, %v12565
  %v12567 = vsel %vm3274, %v11817, -inf
  %v12568 = vrot.slane %v12567, 4
  %v12569 = vmax.f32 %v12567, %v12568
  %v12570 = vrot.slane %v12569, 2
  %v12571 = vmax.f32 %v12569, %v12570
  %v12572 = vrot.slane %v12571, 1
  %v12573 = vmax.f32 %v12571, %v12572
  %v12574 = vsel %vm3274, %v11820, -inf
  %v12575 = vrot.slane %v12574, 4
  %v12576 = vmax.f32 %v12574, %v12575
  %v12577 = vrot.slane %v12576, 2
  %v12578 = vmax.f32 %v12576, %v12577
  %v12579 = vrot.slane %v12578, 1
  %v12580 = vmax.f32 %v12578, %v12579
  %v12581 = vsel %vm3274, %v11825, -inf
  %v12582 = vrot.slane %v12581, 4
  %v12583 = vmax.f32 %v12581, %v12582
  %v12584 = vrot.slane %v12583, 2
  %v12585 = vmax.f32 %v12583, %v12584
  %v12586 = vrot.slane %v12585, 1
  %v12587 = vmax.f32 %v12585, %v12586
  %v12588 = vsel %vm3274, %v11828, -inf
  %v12589 = vrot.slane %v12588, 4
  %v12590 = vmax.f32 %v12588, %v12589
  %v12591 = vrot.slane %v12590, 2
  %v12592 = vmax.f32 %v12590, %v12591
  %v12593 = vrot.slane %v12592, 1
  %v12594 = vmax.f32 %v12592, %v12593
  %v12595 = vsel %vm3274, %v11833, -inf
  %v12596 = vrot.slane %v12595, 4
  %v12597 = vmax.f32 %v12595, %v12596
  %v12598 = vrot.slane %v12597, 2
  %v12599 = vmax.f32 %v12597, %v12598
  %v12600 = vrot.slane %v12599, 1
  %v12601 = vmax.f32 %v12599, %v12600
  %v12602 = vsel %vm3274, %v11836, -inf
  %v12603 = vrot.slane %v12602, 4
  %v12604 = vmax.f32 %v12602, %v12603
  %v12605 = vrot.slane %v12604, 2
  %v12606 = vmax.f32 %v12604, %v12605
  %v12607 = vrot.slane %v12606, 1
  %v12608 = vmax.f32 %v12606, %v12607
  %v12609 = vsel %vm3274, %v11841, -inf
  %v12610 = vrot.slane %v12609, 4
  %v12611 = vmax.f32 %v12609, %v12610
  %v12612 = vrot.slane %v12611, 2
  %v12613 = vmax.f32 %v12611, %v12612
  %v12614 = vrot.slane %v12613, 1
  %v12615 = vmax.f32 %v12613, %v12614
  %v12616 = vsel %vm3274, %v11844, -inf
  %v12617 = vrot.slane %v12616, 4
  %v12618 = vmax.f32 %v12616, %v12617
  %v12619 = vrot.slane %v12618, 2
  %v12620 = vmax.f32 %v12618, %v12619
  %v12621 = vrot.slane %v12620, 1
  %v12622 = vmax.f32 %v12620, %v12621
  %v12623 = vsel %vm3274, %v11849, -inf
  %v12624 = vrot.slane %v12623, 4
  %v12625 = vmax.f32 %v12623, %v12624
  %v12626 = vrot.slane %v12625, 2
  %v12627 = vmax.f32 %v12625, %v12626
  %v12628 = vrot.slane %v12627, 1
  %v12629 = vmax.f32 %v12627, %v12628
  %v12630 = vsel %vm3274, %v11852, -inf
  %v12631 = vrot.slane %v12630, 4
  %v12632 = vmax.f32 %v12630, %v12631
  %v12633 = vrot.slane %v12632, 2
  %v12634 = vmax.f32 %v12632, %v12633
  %v12635 = vrot.slane %v12634, 1
  %v12636 = vmax.f32 %v12634, %v12635
  %v12637 = vsel %vm3274, %v11857, -inf
  %v12638 = vrot.slane %v12637, 4
  %v12639 = vmax.f32 %v12637, %v12638
  %v12640 = vrot.slane %v12639, 2
  %v12641 = vmax.f32 %v12639, %v12640
  %v12642 = vrot.slane %v12641, 1
  %v12643 = vmax.f32 %v12641, %v12642
  %v12644 = vsel %vm3274, %v11860, -inf
  %v12645 = vrot.slane %v12644, 4
  %v12646 = vmax.f32 %v12644, %v12645
  %v12647 = vrot.slane %v12646, 2
  %v12648 = vmax.f32 %v12646, %v12647
  %v12649 = vrot.slane %v12648, 1
  %v12650 = vmax.f32 %v12648, %v12649
  %v12651 = vsel %vm3274, %v11865, -inf
  %v12652 = vrot.slane %v12651, 4
  %v12653 = vmax.f32 %v12651, %v12652
  %v12654 = vrot.slane %v12653, 2
  %v12655 = vmax.f32 %v12653, %v12654
  %v12656 = vrot.slane %v12655, 1
  %v12657 = vmax.f32 %v12655, %v12656
  %v12658 = vsel %vm3274, %v11868, -inf
  %v12659 = vrot.slane %v12658, 4
  %v12660 = vmax.f32 %v12658, %v12659
  %v12661 = vrot.slane %v12660, 2
  %v12662 = vmax.f32 %v12660, %v12661
  %v12663 = vrot.slane %v12662, 1
  %v12664 = vmax.f32 %v12662, %v12663
  %v12665 = vsel %vm3274, %v11873, -inf
  %v12666 = vrot.slane %v12665, 4
  %v12667 = vmax.f32 %v12665, %v12666
  %v12668 = vrot.slane %v12667, 2
  %v12669 = vmax.f32 %v12667, %v12668
  %v12670 = vrot.slane %v12669, 1
  %v12671 = vmax.f32 %v12669, %v12670
  %v12672 = vsel %vm3274, %v11876, -inf
  %v12673 = vrot.slane %v12672, 4
  %v12674 = vmax.f32 %v12672, %v12673
  %v12675 = vrot.slane %v12674, 2
  %v12676 = vmax.f32 %v12674, %v12675
  %v12677 = vrot.slane %v12676, 1
  %v12678 = vmax.f32 %v12676, %v12677
  %v12679 = vsel %vm3274, %v11881, -inf
  %v12680 = vrot.slane %v12679, 4
  %v12681 = vmax.f32 %v12679, %v12680
  %v12682 = vrot.slane %v12681, 2
  %v12683 = vmax.f32 %v12681, %v12682
  %v12684 = vrot.slane %v12683, 1
  %v12685 = vmax.f32 %v12683, %v12684
  %v12686 = vsel %vm3274, %v11884, -inf
  %v12687 = vrot.slane %v12686, 4
  %v12688 = vmax.f32 %v12686, %v12687
  %v12689 = vrot.slane %v12688, 2
  %v12690 = vmax.f32 %v12688, %v12689
  %v12691 = vrot.slane %v12690, 1
  %v12692 = vmax.f32 %v12690, %v12691
  %v12693 = vsel %vm3274, %v11889, -inf
  %v12694 = vrot.slane %v12693, 4
  %v12695 = vmax.f32 %v12693, %v12694
  %v12696 = vrot.slane %v12695, 2
  %v12697 = vmax.f32 %v12695, %v12696
  %v12698 = vrot.slane %v12697, 1
  %v12699 = vmax.f32 %v12697, %v12698
  %v12700 = vsel %vm3274, %v11892, -inf
  %v12701 = vrot.slane %v12700, 4
  %v12702 = vmax.f32 %v12700, %v12701
  %v12703 = vrot.slane %v12702, 2
  %v12704 = vmax.f32 %v12702, %v12703
  %v12705 = vrot.slane %v12704, 1
  %v12706 = vmax.f32 %v12704, %v12705
  %v12707 = vsel %vm3274, %v11897, -inf
  %v12708 = vrot.slane %v12707, 4
  %v12709 = vmax.f32 %v12707, %v12708
  %v12710 = vrot.slane %v12709, 2
  %v12711 = vmax.f32 %v12709, %v12710
  %v12712 = vrot.slane %v12711, 1
  %v12713 = vmax.f32 %v12711, %v12712
  %v12714 = vsel %vm3274, %v11900, -inf
  %v12715 = vrot.slane %v12714, 4
  %v12716 = vmax.f32 %v12714, %v12715
  %v12717 = vrot.slane %v12716, 2
  %v12718 = vmax.f32 %v12716, %v12717
  %v12719 = vrot.slane %v12718, 1
  %v12720 = vmax.f32 %v12718, %v12719
  %v12721 = vsel %vm3274, %v11905, -inf
  %v12722 = vrot.slane %v12721, 4
  %v12723 = vmax.f32 %v12721, %v12722
  %v12724 = vrot.slane %v12723, 2
  %v12725 = vmax.f32 %v12723, %v12724
  %v12726 = vrot.slane %v12725, 1
  %v12727 = vmax.f32 %v12725, %v12726
  %v12728 = vsel %vm3274, %v11908, -inf
  %v12729 = vrot.slane %v12728, 4
  %v12730 = vmax.f32 %v12728, %v12729
  %v12731 = vrot.slane %v12730, 2
  %v12732 = vmax.f32 %v12730, %v12731
  %v12733 = vrot.slane %v12732, 1
  %v12734 = vmax.f32 %v12732, %v12733
  %v12735 = vsel %vm3274, %v11913, -inf
  %v12736 = vrot.slane %v12735, 4
  %v12737 = vmax.f32 %v12735, %v12736
  %v12738 = vrot.slane %v12737, 2
  %v12739 = vmax.f32 %v12737, %v12738
  %v12740 = vrot.slane %v12739, 1
  %v12741 = vmax.f32 %v12739, %v12740
  %v12742 = vsel %vm3274, %v11916, -inf
  %v12743 = vrot.slane %v12742, 4
  %v12744 = vmax.f32 %v12742, %v12743
  %v12745 = vrot.slane %v12744, 2
  %v12746 = vmax.f32 %v12744, %v12745
  %v12747 = vrot.slane %v12746, 1
  %v12748 = vmax.f32 %v12746, %v12747
  %v12749 = vsel %vm3274, %v11921, -inf
  %v12750 = vrot.slane %v12749, 4
  %v12751 = vmax.f32 %v12749, %v12750
  %v12752 = vrot.slane %v12751, 2
  %v12753 = vmax.f32 %v12751, %v12752
  %v12754 = vrot.slane %v12753, 1
  %v12755 = vmax.f32 %v12753, %v12754
  %v12756 = vsel %vm3274, %v11924, -inf
  %v12757 = vrot.slane %v12756, 4
  %v12758 = vmax.f32 %v12756, %v12757
  %v12759 = vrot.slane %v12758, 2
  %v12760 = vmax.f32 %v12758, %v12759
  %v12761 = vrot.slane %v12760, 1
  %v12762 = vmax.f32 %v12760, %v12761
  %v12763 = vsel %vm3274, %v11929, -inf
  %v12764 = vrot.slane %v12763, 4
  %v12765 = vmax.f32 %v12763, %v12764
  %v12766 = vrot.slane %v12765, 2
  %v12767 = vmax.f32 %v12765, %v12766
  %v12768 = vrot.slane %v12767, 1
  %v12769 = vmax.f32 %v12767, %v12768
  %v12770 = vsel %vm3274, %v11932, -inf
  %v12771 = vrot.slane %v12770, 4
  %v12772 = vmax.f32 %v12770, %v12771
  %v12773 = vrot.slane %v12772, 2
  %v12774 = vmax.f32 %v12772, %v12773
  %v12775 = vrot.slane %v12774, 1
  %v12776 = vmax.f32 %v12774, %v12775
  %v12777 = vsel %vm3274, %v11937, -inf
  %v12778 = vrot.slane %v12777, 4
  %v12779 = vmax.f32 %v12777, %v12778
  %v12780 = vrot.slane %v12779, 2
  %v12781 = vmax.f32 %v12779, %v12780
  %v12782 = vrot.slane %v12781, 1
  %v12783 = vmax.f32 %v12781, %v12782
  %v12784 = vsel %vm3274, %v11940, -inf
  %v12785 = vrot.slane %v12784, 4
  %v12786 = vmax.f32 %v12784, %v12785
  %v12787 = vrot.slane %v12786, 2
  %v12788 = vmax.f32 %v12786, %v12787
  %v12789 = vrot.slane %v12788, 1
  %v12790 = vmax.f32 %v12788, %v12789
  %v12791 = vsel %vm3274, %v11945, -inf
  %v12792 = vrot.slane %v12791, 4
  %v12793 = vmax.f32 %v12791, %v12792
  %v12794 = vrot.slane %v12793, 2
  %v12795 = vmax.f32 %v12793, %v12794
  %v12796 = vrot.slane %v12795, 1
  %v12797 = vmax.f32 %v12795, %v12796
  %v12798 = vsel %vm3274, %v11948, -inf
  %v12799 = vrot.slane %v12798, 4
  %v12800 = vmax.f32 %v12798, %v12799
  %v12801 = vrot.slane %v12800, 2
  %v12802 = vmax.f32 %v12800, %v12801
  %v12803 = vrot.slane %v12802, 1
  %v12804 = vmax.f32 %v12802, %v12803
  %v12805 = vsel %vm3274, %v11953, -inf
  %v12806 = vrot.slane %v12805, 4
  %v12807 = vmax.f32 %v12805, %v12806
  %v12808 = vrot.slane %v12807, 2
  %v12809 = vmax.f32 %v12807, %v12808
  %v12810 = vrot.slane %v12809, 1
  %v12811 = vmax.f32 %v12809, %v12810
  %v12812 = vsel %vm3274, %v11956, -inf
  %v12813 = vrot.slane %v12812, 4
  %v12814 = vmax.f32 %v12812, %v12813
  %v12815 = vrot.slane %v12814, 2
  %v12816 = vmax.f32 %v12814, %v12815
  %v12817 = vrot.slane %v12816, 1
  %v12818 = vmax.f32 %v12816, %v12817
  %v12819 = vsel %vm3274, %v11961, -inf
  %v12820 = vrot.slane %v12819, 4
  %v12821 = vmax.f32 %v12819, %v12820
  %v12822 = vrot.slane %v12821, 2
  %v12823 = vmax.f32 %v12821, %v12822
  %v12824 = vrot.slane %v12823, 1
  %v12825 = vmax.f32 %v12823, %v12824
  %v12826 = vsel %vm3274, %v11964, -inf
  %v12827 = vrot.slane %v12826, 4
  %v12828 = vmax.f32 %v12826, %v12827
  %v12829 = vrot.slane %v12828, 2
  %v12830 = vmax.f32 %v12828, %v12829
  %v12831 = vrot.slane %v12830, 1
  %v12832 = vmax.f32 %v12830, %v12831
  %v12833 = vsel %vm3274, %v11969, -inf
  %v12834 = vrot.slane %v12833, 4
  %v12835 = vmax.f32 %v12833, %v12834
  %v12836 = vrot.slane %v12835, 2
  %v12837 = vmax.f32 %v12835, %v12836
  %v12838 = vrot.slane %v12837, 1
  %v12839 = vmax.f32 %v12837, %v12838
  %v12840 = vsel %vm3274, %v11972, -inf
  %v12841 = vrot.slane %v12840, 4
  %v12842 = vmax.f32 %v12840, %v12841
  %v12843 = vrot.slane %v12842, 2
  %v12844 = vmax.f32 %v12842, %v12843
  %v12845 = vrot.slane %v12844, 1
  %v12846 = vmax.f32 %v12844, %v12845
  %v12847 = vsel %vm3274, %v11977, -inf
  %v12848 = vrot.slane %v12847, 4
  %v12849 = vmax.f32 %v12847, %v12848
  %v12850 = vrot.slane %v12849, 2
  %v12851 = vmax.f32 %v12849, %v12850
  %v12852 = vrot.slane %v12851, 1
  %v12853 = vmax.f32 %v12851, %v12852
  %v12854 = vsel %vm3274, %v11980, -inf
  %v12855 = vrot.slane %v12854, 4
  %v12856 = vmax.f32 %v12854, %v12855
  %v12857 = vrot.slane %v12856, 2
  %v12858 = vmax.f32 %v12856, %v12857
  %v12859 = vrot.slane %v12858, 1
  %v12860 = vmax.f32 %v12858, %v12859
  %v12861 = vsel %vm3274, %v11985, -inf
  %v12862 = vrot.slane %v12861, 4
  %v12863 = vmax.f32 %v12861, %v12862
  %v12864 = vrot.slane %v12863, 2
  %v12865 = vmax.f32 %v12863, %v12864
  %v12866 = vrot.slane %v12865, 1
  %v12867 = vmax.f32 %v12865, %v12866
  %v12868 = vsel %vm3274, %v11988, -inf
  %v12869 = vrot.slane %v12868, 4
  %v12870 = vmax.f32 %v12868, %v12869
  %v12871 = vrot.slane %v12870, 2
  %v12872 = vmax.f32 %v12870, %v12871
  %v12873 = vrot.slane %v12872, 1
  %v12874 = vmax.f32 %v12872, %v12873
  %v12875 = vsel %vm3274, %v11993, -inf
  %v12876 = vrot.slane %v12875, 4
  %v12877 = vmax.f32 %v12875, %v12876
  %v12878 = vrot.slane %v12877, 2
  %v12879 = vmax.f32 %v12877, %v12878
  %v12880 = vrot.slane %v12879, 1
  %v12881 = vmax.f32 %v12879, %v12880
  %v12882 = vsel %vm3274, %v11996, -inf
  %v12883 = vrot.slane %v12882, 4
  %v12884 = vmax.f32 %v12882, %v12883
  %v12885 = vrot.slane %v12884, 2
  %v12886 = vmax.f32 %v12884, %v12885
  %v12887 = vrot.slane %v12886, 1
  %v12888 = vmax.f32 %v12886, %v12887
  %v12889 = vsel %vm3274, %v12001, -inf
  %v12890 = vrot.slane %v12889, 4
  %v12891 = vmax.f32 %v12889, %v12890
  %v12892 = vrot.slane %v12891, 2
  %v12893 = vmax.f32 %v12891, %v12892
  %v12894 = vrot.slane %v12893, 1
  %v12895 = vmax.f32 %v12893, %v12894
  %v12896 = vsel %vm3274, %v12004, -inf
  %v12897 = vrot.slane %v12896, 4
  %v12898 = vmax.f32 %v12896, %v12897
  %v12899 = vrot.slane %v12898, 2
  %v12900 = vmax.f32 %v12898, %v12899
  %v12901 = vrot.slane %v12900, 1
  %v12902 = vmax.f32 %v12900, %v12901
  %v13031 = vsel %vm4747, %v12020, %v12013
  %v13032 = vsel %vm4749, %v12027, %v13031
  %v13033 = vsel %vm4751, %v12034, %v13032
  %v13034 = vsel %vm4753, %v12041, %v13033
  %v13035 = vsel %vm4755, %v12048, %v13034
  %v13036 = vsel %vm4757, %v12055, %v13035
  %v13037 = vsel %vm4759, %v12062, %v13036
  %v13038 = vsel %vm4747, %v12076, %v12069
  %v13039 = vsel %vm4749, %v12083, %v13038
  %v13040 = vsel %vm4751, %v12090, %v13039
  %v13041 = vsel %vm4753, %v12097, %v13040
  %v13042 = vsel %vm4755, %v12104, %v13041
  %v13043 = vsel %vm4757, %v12111, %v13042
  %v13044 = vsel %vm4759, %v12118, %v13043
  %v13045 = vsel %vm4747, %v12132, %v12125
  %v13046 = vsel %vm4749, %v12139, %v13045
  %v13047 = vsel %vm4751, %v12146, %v13046
  %v13048 = vsel %vm4753, %v12153, %v13047
  %v13049 = vsel %vm4755, %v12160, %v13048
  %v13050 = vsel %vm4757, %v12167, %v13049
  %v13051 = vsel %vm4759, %v12174, %v13050
  %v13052 = vsel %vm4747, %v12188, %v12181
  %v13053 = vsel %vm4749, %v12195, %v13052
  %v13054 = vsel %vm4751, %v12202, %v13053
  %v13055 = vsel %vm4753, %v12209, %v13054
  %v13056 = vsel %vm4755, %v12216, %v13055
  %v13057 = vsel %vm4757, %v12223, %v13056
  %v13058 = vsel %vm4759, %v12230, %v13057
  %v13059 = vsel %vm4747, %v12244, %v12237
  %v13060 = vsel %vm4749, %v12251, %v13059
  %v13061 = vsel %vm4751, %v12258, %v13060
  %v13062 = vsel %vm4753, %v12265, %v13061
  %v13063 = vsel %vm4755, %v12272, %v13062
  %v13064 = vsel %vm4757, %v12279, %v13063
  %v13065 = vsel %vm4759, %v12286, %v13064
  %v13066 = vsel %vm4747, %v12300, %v12293
  %v13067 = vsel %vm4749, %v12307, %v13066
  %v13068 = vsel %vm4751, %v12314, %v13067
  %v13069 = vsel %vm4753, %v12321, %v13068
  %v13070 = vsel %vm4755, %v12328, %v13069
  %v13071 = vsel %vm4757, %v12335, %v13070
  %v13072 = vsel %vm4759, %v12342, %v13071
  %v13073 = vsel %vm4747, %v12356, %v12349
  %v13074 = vsel %vm4749, %v12363, %v13073
  %v13075 = vsel %vm4751, %v12370, %v13074
  %v13076 = vsel %vm4753, %v12377, %v13075
  %v13077 = vsel %vm4755, %v12384, %v13076
  %v13078 = vsel %vm4757, %v12391, %v13077
  %v13079 = vsel %vm4759, %v12398, %v13078
  %v13080 = vsel %vm4747, %v12412, %v12405
  %v13081 = vsel %vm4749, %v12419, %v13080
  %v13082 = vsel %vm4751, %v12426, %v13081
  %v13083 = vsel %vm4753, %v12433, %v13082
  %v13084 = vsel %vm4755, %v12440, %v13083
  %v13085 = vsel %vm4757, %v12447, %v13084
  %v13086 = vsel %vm4759, %v12454, %v13085
  %v13087 = vsel %vm4747, %v12468, %v12461
  %v13088 = vsel %vm4749, %v12475, %v13087
  %v13089 = vsel %vm4751, %v12482, %v13088
  %v13090 = vsel %vm4753, %v12489, %v13089
  %v13091 = vsel %vm4755, %v12496, %v13090
  %v13092 = vsel %vm4757, %v12503, %v13091
  %v13093 = vsel %vm4759, %v12510, %v13092
  %v13094 = vsel %vm4747, %v12524, %v12517
  %v13095 = vsel %vm4749, %v12531, %v13094
  %v13096 = vsel %vm4751, %v12538, %v13095
  %v13097 = vsel %vm4753, %v12545, %v13096
  %v13098 = vsel %vm4755, %v12552, %v13097
  %v13099 = vsel %vm4757, %v12559, %v13098
  %v13100 = vsel %vm4759, %v12566, %v13099
  %v13101 = vsel %vm4747, %v12580, %v12573
  %v13102 = vsel %vm4749, %v12587, %v13101
  %v13103 = vsel %vm4751, %v12594, %v13102
  %v13104 = vsel %vm4753, %v12601, %v13103
  %v13105 = vsel %vm4755, %v12608, %v13104
  %v13106 = vsel %vm4757, %v12615, %v13105
  %v13107 = vsel %vm4759, %v12622, %v13106
  %v13108 = vsel %vm4747, %v12636, %v12629
  %v13109 = vsel %vm4749, %v12643, %v13108
  %v13110 = vsel %vm4751, %v12650, %v13109
  %v13111 = vsel %vm4753, %v12657, %v13110
  %v13112 = vsel %vm4755, %v12664, %v13111
  %v13113 = vsel %vm4757, %v12671, %v13112
  %v13114 = vsel %vm4759, %v12678, %v13113
  %v13115 = vsel %vm4747, %v12692, %v12685
  %v13116 = vsel %vm4749, %v12699, %v13115
  %v13117 = vsel %vm4751, %v12706, %v13116
  %v13118 = vsel %vm4753, %v12713, %v13117
  %v13119 = vsel %vm4755, %v12720, %v13118
  %v13120 = vsel %vm4757, %v12727, %v13119
  %v13121 = vsel %vm4759, %v12734, %v13120
  %v13122 = vsel %vm4747, %v12748, %v12741
  %v13123 = vsel %vm4749, %v12755, %v13122
  %v13124 = vsel %vm4751, %v12762, %v13123
  %v13125 = vsel %vm4753, %v12769, %v13124
  %v13126 = vsel %vm4755, %v12776, %v13125
  %v13127 = vsel %vm4757, %v12783, %v13126
  %v13128 = vsel %vm4759, %v12790, %v13127
  %v13129 = vsel %vm4747, %v12804, %v12797
  %v13130 = vsel %vm4749, %v12811, %v13129
  %v13131 = vsel %vm4751, %v12818, %v13130
  %v13132 = vsel %vm4753, %v12825, %v13131
  %v13133 = vsel %vm4755, %v12832, %v13132
  %v13134 = vsel %vm4757, %v12839, %v13133
  %v13135 = vsel %vm4759, %v12846, %v13134
  %v13136 = vsel %vm4747, %v12860, %v12853
  %v13137 = vsel %vm4749, %v12867, %v13136
  %v13138 = vsel %vm4751, %v12874, %v13137
  %v13139 = vsel %vm4753, %v12881, %v13138
  %v13140 = vsel %vm4755, %v12888, %v13139
  %v13141 = vsel %vm4757, %v12895, %v13140
  %v13142 = vsel %vm4759, %v12902, %v13141
  %13159 = vst.msk [vmem:[%s11] sm:$0xff] %vm3274, %v13037
  %13160 = vst.msk [vmem:[%s11 + $0x8] sm:$0xff] %vm3274, %v13044
  %13161 = vst.msk [vmem:[%s11 + $0x10] sm:$0xff] %vm3274, %v13051
  %13162 = vst.msk [vmem:[%s11 + $0x18] sm:$0xff] %vm3274, %v13058
  %13163 = vst.msk [vmem:[%s11 + $0x20] sm:$0xff] %vm3274, %v13065
  %13164 = vst.msk [vmem:[%s11 + $0x28] sm:$0xff] %vm3274, %v13072
  %13165 = vst.msk [vmem:[%s11 + $0x30] sm:$0xff] %vm3274, %v13079
  %13166 = vst.msk [vmem:[%s11 + $0x38] sm:$0xff] %vm3274, %v13086
  %13167 = vst.msk [vmem:[%s11 + $0x40] sm:$0xff] %vm3274, %v13093
  %13168 = vst.msk [vmem:[%s11 + $0x48] sm:$0xff] %vm3274, %v13100
  %13169 = vst.msk [vmem:[%s11 + $0x50] sm:$0xff] %vm3274, %v13107
  %13170 = vst.msk [vmem:[%s11 + $0x58] sm:$0xff] %vm3274, %v13114
  %13171 = vst.msk [vmem:[%s11 + $0x60] sm:$0xff] %vm3274, %v13121
  %13172 = vst.msk [vmem:[%s11 + $0x68] sm:$0xff] %vm3274, %v13128
  %13173 = vst.msk [vmem:[%s11 + $0x70] sm:$0xff] %vm3274, %v13135
  %13174 = vst.msk [vmem:[%s11 + $0x78] sm:$0xff] %vm3274, %v13142
  %13191 = vrot.lane.b32.xlu0 %v39, 48
  %v13192 = vpop.permute.xlu0 %13191
  %13193 = vrot.lane.b32.xlu0 %v40, 48
  %v13194 = vpop.permute.xlu0 %13193
  %13195 = vrot.lane.b32.xlu0 %v41, 48
  %v13196 = vpop.permute.xlu0 %13195
  %13197 = vrot.lane.b32.xlu0 %v42, 48
  %v13198 = vpop.permute.xlu0 %13197
  %13199 = vrot.lane.b32.xlu0 %v43, 48
  %v13200 = vpop.permute.xlu0 %13199
  %13201 = vrot.lane.b32.xlu0 %v44, 48
  %v13202 = vpop.permute.xlu0 %13201
  %13203 = vrot.lane.b32.xlu0 %v45, 48
  %v13204 = vpop.permute.xlu0 %13203
  %13205 = vrot.lane.b32.xlu0 %v46, 48
  %v13206 = vpop.permute.xlu0 %13205
  %13207 = vrot.lane.b32.xlu0 %v47, 48
  %v13208 = vpop.permute.xlu0 %13207
  %13209 = vrot.lane.b32.xlu0 %v48, 48
  %v13210 = vpop.permute.xlu0 %13209
  %13211 = vrot.lane.b32.xlu0 %v49, 48
  %v13212 = vpop.permute.xlu0 %13211
  %13213 = vrot.lane.b32.xlu0 %v50, 48
  %v13214 = vpop.permute.xlu0 %13213
  %13215 = vrot.lane.b32.xlu0 %v51, 48
  %v13216 = vpop.permute.xlu0 %13215
  %13217 = vrot.lane.b32.xlu0 %v52, 48
  %v13218 = vpop.permute.xlu0 %13217
  %13219 = vrot.lane.b32.xlu0 %v53, 48
  %v13220 = vpop.permute.xlu0 %13219
  %13221 = vrot.lane.b32.xlu0 %v54, 48
  %v13222 = vpop.permute.xlu0 %13221
  %vm13239 = vcmask 458112
  %13240 = vst.msk [vmem:[%s11] sm:$0xff] %vm13239, %v13192
  %13241 = vst.msk [vmem:[%s11 + $0x8] sm:$0xff] %vm13239, %v13194
  %13242 = vst.msk [vmem:[%s11 + $0x10] sm:$0xff] %vm13239, %v13196
  %13243 = vst.msk [vmem:[%s11 + $0x18] sm:$0xff] %vm13239, %v13198
  %13244 = vst.msk [vmem:[%s11 + $0x20] sm:$0xff] %vm13239, %v13200
  %13245 = vst.msk [vmem:[%s11 + $0x28] sm:$0xff] %vm13239, %v13202
  %13246 = vst.msk [vmem:[%s11 + $0x30] sm:$0xff] %vm13239, %v13204
  %13247 = vst.msk [vmem:[%s11 + $0x38] sm:$0xff] %vm13239, %v13206
  %13248 = vst.msk [vmem:[%s11 + $0x40] sm:$0xff] %vm13239, %v13208
  %13249 = vst.msk [vmem:[%s11 + $0x48] sm:$0xff] %vm13239, %v13210
  %13250 = vst.msk [vmem:[%s11 + $0x50] sm:$0xff] %vm13239, %v13212
  %13251 = vst.msk [vmem:[%s11 + $0x58] sm:$0xff] %vm13239, %v13214
  %13252 = vst.msk [vmem:[%s11 + $0x60] sm:$0xff] %vm13239, %v13216
  %13253 = vst.msk [vmem:[%s11 + $0x68] sm:$0xff] %vm13239, %v13218
  %13254 = vst.msk [vmem:[%s11 + $0x70] sm:$0xff] %vm13239, %v13220
  %13255 = vst.msk [vmem:[%s11 + $0x78] sm:$0xff] %vm13239, %v13222
  // Predicated region
  $region46: #{tpu_custom_call.1} parent=0 // pred_check
    _
  $region47: #{tpu_custom_call.1} parent=0 // pred_check_branch
    %13257 = sbr.rel (0) target = $region49
  $region48: #{tpu_custom_call.1} parent=0 // pred_region
    _
  $region49: #{tpu_custom_call.1} parent=0 // pred_fallthru
    _
  // Predicated region
  $region50: #{tpu_custom_call.1} parent=0 // pred_check
    _
  $region51: #{tpu_custom_call.1} parent=0 // pred_check_branch
    %13259 = sbr.rel (0) target = $region53
  $region52: #{tpu_custom_call.1} parent=0 // pred_region
    _
  $region53: #{tpu_custom_call.1} parent=0 // pred_fallthru
    _

</llo_original>
